<compile_context>
chip_gen: v6e
topology: v6e:2x2x1
jax: 0.10.0
libtpu: 0.0.40
codegen_flags: <defaults>
</compile_context>

<pallas_src>
import functools
import math

import jax
import jax.numpy as jnp
from jax import lax
from jax.experimental import pallas as pl
from jax.experimental.pallas import tpu as pltpu

# 32 MiB scoped-VMEM cap (review: keep, don't raise).  Per-step footprint is a
# few MiB at most on all of v5e / v6e / v7x.
_VMEM_LIMIT = 32 * 1024 * 1024

# Token (= conv output channel) split across grid steps.  "parallel" -> both
# TensorCores on v7x; on v5e/v6e it is two cheap serial steps whose constant-
# index weight blocks are not re-DMA'd.
_NSPLIT = 2


def _full_spec(shape):
    nd = len(shape)
    return pl.BlockSpec(shape, lambda t, _nd=nd: (0,) * _nd)


# ----------------------------------------------------------------------------
# Fused kernel: conv3x3(BN-folded)+ReLU+maxpool2x2  ->  2x encoder layer
#               -> partial max over this step's tokens.
# ----------------------------------------------------------------------------
def coatnet_fused_kernel(patch_ref, wc_ref, bc_ref, hm_ref, attw_ref,
                         vecs_ref, w1_ref, b1_ref, w2_ref, o_ref, *, batch):
    # patch_ref: (B, 9*C, 4*m) f32   im2col patches, quadrant-major columns
    # wc_ref   : (OCblk, 9*C) f32    conv weights (BN folded), this step's chans
    # bc_ref   : (OCblk, 1)   f32    conv bias + BN shift folded
    # hm_ref   : (E, E)       bf16   block-diagonal per-head mask (0/1)
    # attw_ref : (nl, 4, E, E) bf16  [wq*scale, wk, wv, wo] (transposed for x@W)
    # vecs_ref : (nl, 9, E)   f32    [bq*scale, bk, bv, bo, ln1g, ln1b, b2, ln2g, ln2b]
    # w1_ref   : (nl, E, 2048) bf16 ; b1_ref: (nl, 1, 2048) f32
    # w2_ref   : (nl, 2048, E) bf16
    # o_ref    : (1, B, E)    f32    this step's partial token-max, per image
    nb = batch                                 # images == attention seq length
    ocb = wc_ref.shape[0]                      # tokens handled by this step
    m = patch_ref.shape[2] // 4                # pooled pixels per image
    e = m                                      # == d_model (asserted on host)
    nl = attw_ref.shape[0]
    eps = 1e-5

    # ---- conv + BN + ReLU + maxpool: one K=36 channel-major GEMM per image --
    pooled = []
    for b in range(nb):
        res = jnp.dot(wc_ref[...], patch_ref[b],
                      preferred_element_type=jnp.float32)         # (ocb, 4*m)
        quad = functools.reduce(
            jnp.maximum, [res[:, q * m:(q + 1) * m] for q in range(4)])
        # channel-wise bias and ReLU commute with the 2x2 max
        pooled.append(jnp.maximum(quad + bc_ref[...], 0.0))        # (ocb, m)

    # Token slab, rows = s*ocb + c  (PyTorch view(B,-1,C) quirk: tokens are the
    # conv channels, the embedding is the pooled spatial map; batch_first=False
    # => dim0 of the viewed tensor — the image index — is the attention seq).
    x = jnp.concatenate(pooled, axis=0)                            # (nb*ocb, E)
    n = ocb

    def layer_norm(y, g, bln):
        mu = jnp.mean(y, axis=-1, keepdims=True)
        var = jnp.mean((y - mu) ** 2, axis=-1, keepdims=True)
        return (y - mu) * lax.rsqrt(var + eps) * g + bln

    hm = hm_ref[...]                                               # (E, E) bf16

    for l in range(nl):                                            # unrolled (2)
        vec = vecs_ref[l]                                          # (9, E) f32
        bq, bk, bv, bo = vec[0:1], vec[1:2], vec[2:3], vec[3:4]
        ln1g, ln1b = vec[4:5], vec[5:6]
        b2 = vec[6:7]
        ln2g, ln2b = vec[7:8], vec[8:9]

        # ---- projections: bf16 MXU operands, f32 accumulation
        xb = x.astype(jnp.bfloat16)
        q = jnp.dot(xb, attw_ref[l, 0], preferred_element_type=jnp.float32) + bq
        k = jnp.dot(xb, attw_ref[l, 1], preferred_element_type=jnp.float32) + bk
        v = jnp.dot(xb, attw_ref[l, 2], preferred_element_type=jnp.float32) + bv
        # 1/sqrt(dh) is folded into wq/bq on the host.

        qs = [q[s * n:(s + 1) * n] for s in range(nb)]
        ks = [k[s * n:(s + 1) * n] for s in range(nb)]
        vs = [v[s * n:(s + 1) * n] for s in range(nb)]

        # ---- attention over the S = nb sequence positions (per token / head).
        # Head-wide scores: dot((q*k), head_mask) sums each head's Dh lanes AND
        # replicates the score across those lanes, so softmax and the weighted
        # sum over V stay pure VPU/EUP work — no concats, no K=8 broadcast GEMM.
        attn_blocks = []
        for si in range(nb):
            sw = [jnp.dot((qs[si] * ks[sj]).astype(jnp.bfloat16), hm,
                          preferred_element_type=jnp.float32)       # (n, E)
                  for sj in range(nb)]
            mx = functools.reduce(jnp.maximum, sw)
            ex = [jnp.exp(t - mx) for t in sw]
            den = functools.reduce(lambda a_, b_: a_ + b_, ex)
            inv = pl.reciprocal(den, approx=False)                  # exact (EUP)
            acc = jnp.zeros((n, e), jnp.float32)
            for sj in range(nb):
                acc = acc + (ex[sj] * inv) * vs[sj]
            attn_blocks.append(acc)
        attn = jnp.concatenate(attn_blocks, axis=0)                 # (nb*n, E)
        attn = jnp.dot(attn.astype(jnp.bfloat16), attw_ref[l, 3],
                       preferred_element_type=jnp.float32) + bo

        # ---- residual + LayerNorm 1 (post-norm)
        h1 = layer_norm(x + attn, ln1g, ln1b)

        # ---- FFN E -> 2048 -> E with ReLU (bf16 MXU operands, f32 acc)
        f = jnp.dot(h1.astype(jnp.bfloat16), w1_ref[l],
                    preferred_element_type=jnp.float32) + b1_ref[l]
        f = jnp.maximum(f, 0.0)
        f = jnp.dot(f.astype(jnp.bfloat16), w2_ref[l],
                    preferred_element_type=jnp.float32) + b2

        # ---- residual + LayerNorm 2
        x = layer_norm(h1 + f, ln2g, ln2b)

    # ---- partial torch.max(x, dim=1) over this step's tokens, per image
    parts = [jnp.max(x[s * n:(s + 1) * n], axis=0, keepdims=True)
             for s in range(nb)]
    o_ref[...] = jnp.concatenate(parts, axis=0).reshape(1, nb, e)


# ----------------------------------------------------------------------------
# Host-side wrapper: BN fold, im2col patch pack, weight stacking, one
# pallas_call, tiny XLA epilogue (cross-half max + fc head).
# ----------------------------------------------------------------------------
def coatnet_forward(x, params, num_heads=8):
    b, c, hgt, wid = x.shape
    oc = params["conv_w"].shape[0]
    h2, w2 = hgt // 2, wid // 2
    m = h2 * w2
    e = params["fc_w"].shape[1]                       # d_model (= 64)
    dh = e // num_heads
    qscale = 1.0 / math.sqrt(dh)
    lps = params["layers"]

    # The fused token layout (token = channel, embedding = pooled spatial map)
    # requires pooled H/2*W/2 == d_model, as implied by view(B, -1, 64) on the
    # 16x16 inputs this model is used with.
    assert m == e and oc % _NSPLIT == 0, "fused layout expects 16x16x4 inputs"

    # ---- fold eval-mode BatchNorm into conv weights / bias ----
    scale = params["bn_gamma"] / jnp.sqrt(params["bn_var"] + 1e-5)
    shift = params["bn_beta"] - params["bn_mean"] * scale
    w_eff = params["conv_w"] * scale[:, None, None, None]          # (OC, C, 3, 3)
    w_mat = w_eff.transpose(0, 2, 3, 1).reshape(oc, 9 * c)         # col = tap*C + c
    b_eff = (params["conv_b"] * scale + shift).reshape(oc, 1)

    # ---- im2col patch pack: (B, 9*C, 4*m), lane-dense 4*m last dim,
    #      quadrant-major columns so the 2x2 max-pool is a lane-block max ----
    xp = jnp.pad(x, ((0, 0), (0, 0), (1, 1), (1, 1)))              # (B, C, H+2, W+2)
    taps = []
    for kh in range(3):
        for kw in range(3):
            quads = []
            for a in range(2):
                for bb in range(2):
                    sl = xp[:, :, a + kh:a + kh + 2 * h2 - 1:2,
                            bb + kw:bb + kw + 2 * w2 - 1:2]        # (B, C, h2, w2)
                    quads.append(sl.reshape(b, c, m))
            taps.append(jnp.concatenate(quads, axis=2))            # (B, C, 4*m)
    patches = jnp.concatenate(taps, axis=1)                        # (B, 9*C, 4*m)

    # ---- stacked / packed transformer parameters (few, lane-dense args) ----
    nl = len(lps)
    attn_w = jnp.stack([
        jnp.stack([lp["wq"].T * qscale, lp["wk"].T, lp["wv"].T, lp["wo"].T])
        for lp in lps]).astype(jnp.bfloat16)                       # (nl, 4, E, E)
    vecs = jnp.stack([
        jnp.stack([lp["bq"] * qscale, lp["bk"], lp["bv"], lp["bo"],
                   lp["ln1_g"], lp["ln1_b"], lp["b2"],
                   lp["ln2_g"], lp["ln2_b"]])
        for lp in lps])                                            # (nl, 9, E) f32
    w1 = jnp.stack([lp["w1"].T for lp in lps]).astype(jnp.bfloat16)    # (nl, E, 2048)
    b1 = jnp.stack([lp["b1"].reshape(1, -1) for lp in lps])            # (nl, 1, 2048)
    w2 = jnp.stack([lp["w2"].T for lp in lps]).astype(jnp.bfloat16)    # (nl, 2048, E)

    ids = jnp.arange(e)
    head_mask = (ids[:, None] // dh == ids[None, :] // dh).astype(jnp.bfloat16)

    ocb = oc // _NSPLIT
    kern = functools.partial(coatnet_fused_kernel, batch=b)
    partials = pl.pallas_call(
        kern,
        out_shape=jax.ShapeDtypeStruct((_NSPLIT, b, e), jnp.float32),
        grid=(_NSPLIT,),
        in_specs=[
            _full_spec(patches.shape),                              # patches
            pl.BlockSpec((ocb, 9 * c), lambda t: (t, 0)),           # conv W half
            pl.BlockSpec((ocb, 1), lambda t: (t, 0)),               # conv bias half
            _full_spec(head_mask.shape),
            _full_spec(attn_w.shape),
            _full_spec(vecs.shape),
            _full_spec(w1.shape),
            _full_spec(b1.shape),
            _full_spec(w2.shape),
        ],
        out_specs=pl.BlockSpec((1, b, e), lambda t: (t, 0, 0)),
        compiler_params=pltpu.CompilerParams(
            dimension_semantics=("parallel",),       # v7x: both TensorCores
            vmem_limit_bytes=_VMEM_LIMIT),
    )(patches, w_mat, b_eff, head_mask, attn_w, vecs, w1, b1, w2)

    # Tiny XLA epilogue (reviewer-sanctioned): combine the two token halves'
    # partial max and apply the fc head.
    pooled = jnp.max(partials, axis=0)                              # (B, E)
    return pooled @ params["fc_w"].T + params["fc_b"]               # (B, classes)


# ----------------------------------------------------------------------------
# Deterministic synthetic parameter init (PyTorch weight shapes).
# ----------------------------------------------------------------------------
def init_params(key, num_classes=40):
    keys = iter(jax.random.split(key, 64))

    def nrm(shape, scale=0.05):
        return scale * jax.random.normal(next(keys), shape, jnp.float32)

    params = {
        "conv_w": nrm((64, 4, 3, 3), 0.10),
        "conv_b": nrm((64,), 0.05),
        "bn_gamma": 1.0 + nrm((64,), 0.05),
        "bn_beta": nrm((64,), 0.05),
        "bn_mean": nrm((64,), 0.10),
        "bn_var": 1.0 + jnp.abs(nrm((64,), 0.10)),
        "fc_w": nrm((num_classes, 64), 0.10),
        "fc_b": nrm((num_classes,), 0.05),
        "layers": [],
    }
    for _ in range(2):
        lp = {
            "wq": nrm((64, 64), 0.10), "wk": nrm((64, 64), 0.10),
            "wv": nrm((64, 64), 0.10), "wo": nrm((64, 64), 0.10),
            "bq": nrm((64,), 0.02), "bk": nrm((64,), 0.02),
            "bv": nrm((64,), 0.02), "bo": nrm((64,), 0.02),
            "ln1_g": 1.0 + nrm((64,), 0.02), "ln1_b": nrm((64,), 0.02),
            "w1": nrm((2048, 64), 0.05), "b1": nrm((2048,), 0.02),
            "w2": nrm((64, 2048), 0.05), "b2": nrm((64,), 0.02),
            "ln2_g": 1.0 + nrm((64,), 0.02), "ln2_b": nrm((64,), 0.02),
        }
        params["layers"].append(lp)
    return params


if __name__ == "__main__":
    key = jax.random.PRNGKey(0)
    kp, kx = jax.random.split(key)
    params = init_params(kp, num_classes=40)
    x = jax.random.normal(kx, (2, 4, 16, 16), jnp.float32)    # (B, C, H, W)

    fwd = jax.jit(coatnet_forward)
    out = jax.block_until_ready(fwd(x, params))
    assert out.shape == (2, 40) and out.dtype == jnp.float32
    assert bool(jnp.isfinite(out).all())
    print("KERNEL_OK")
</pallas_src>

<mosaic_0001>
module attributes {stable_mosaic.version = 11 : i64} {
  func.func @coatnet_fused_kernel(%arg0: i32, %arg1: memref<2x36x256xf32, #tpu.memory_space<vmem>>, %arg2: memref<32x36xf32, #tpu.memory_space<vmem>>, %arg3: memref<32x1xf32, #tpu.memory_space<vmem>>, %arg4: memref<64x64xbf16, #tpu.memory_space<vmem>>, %arg5: memref<2x4x64x64xbf16, #tpu.memory_space<vmem>>, %arg6: memref<2x9x64xf32, #tpu.memory_space<vmem>>, %arg7: memref<2x64x2048xbf16, #tpu.memory_space<vmem>>, %arg8: memref<2x1x2048xf32, #tpu.memory_space<vmem>>, %arg9: memref<2x2048x64xbf16, #tpu.memory_space<vmem>>, %arg10: memref<1x2x64xf32, #tpu.memory_space<vmem>>) attributes {dimension_semantics = [#tpu.dimension_semantics<parallel>], iteration_bounds = array<i64: 2>, scalar_prefetch = 0 : i64, scratch_operands = 0 : i64, tpu.core_type = #tpu.core_type<tc>, window_params = [{pipeline_mode = #tpu.pipeline_mode<synchronous>, transform_indices = @transform_0, window_bounds = array<i64: 2, 36, 256>}, {transform_indices = @transform_1, window_bounds = array<i64: 32, 36>}, {transform_indices = @transform_2, window_bounds = array<i64: 32, 1>}, {pipeline_mode = #tpu.pipeline_mode<synchronous>, transform_indices = @transform_3, window_bounds = array<i64: 64, 64>}, {pipeline_mode = #tpu.pipeline_mode<synchronous>, transform_indices = @transform_4, window_bounds = array<i64: 2, 4, 64, 64>}, {pipeline_mode = #tpu.pipeline_mode<synchronous>, transform_indices = @transform_5, window_bounds = array<i64: 2, 9, 64>}, {pipeline_mode = #tpu.pipeline_mode<synchronous>, transform_indices = @transform_6, window_bounds = array<i64: 2, 64, 2048>}, {pipeline_mode = #tpu.pipeline_mode<synchronous>, transform_indices = @transform_7, window_bounds = array<i64: 2, 1, 2048>}, {pipeline_mode = #tpu.pipeline_mode<synchronous>, transform_indices = @transform_8, window_bounds = array<i64: 2, 2048, 64>}, {transform_indices = @transform_9, window_bounds = array<i64: 1, 2, 64>}]} {
    %c0 = arith.constant 0 : index
    %c0_0 = arith.constant 0 : index
    %0 = vector.load %arg2[%c0, %c0_0] : memref<32x36xf32, #tpu.memory_space<vmem>>, vector<32x36xf32>
    %c0_1 = arith.constant 0 : index
    %c0_2 = arith.constant 0 : index
    %c0_3 = arith.constant 0 : index
    %1 = vector.load %arg1[%c0_1, %c0_2, %c0_3] : memref<2x36x256xf32, #tpu.memory_space<vmem>>, vector<1x36x256xf32>
    %2 = vector.shape_cast %1 : vector<1x36x256xf32> to vector<36x256xf32>
    %cst = arith.constant dense<0.000000e+00> : vector<32x256xf32>
    %3 = tpu.matmul %0, %2, %cst {dimension_numbers = #tpu.dot_dimension_numbers<[1], [0], [0], [1], [0, 0, 1, 1], [], []>} : vector<32x36xf32>, vector<36x256xf32>, vector<32x256xf32> -> vector<32x256xf32>
    %4 = vector.extract_strided_slice %3 {offsets = [0, 0], sizes = [32, 64], strides = [1, 1]} : vector<32x256xf32> to vector<32x64xf32>
    %5 = vector.extract_strided_slice %3 {offsets = [0, 64], sizes = [32, 64], strides = [1, 1]} : vector<32x256xf32> to vector<32x64xf32>
    %6 = vector.extract_strided_slice %3 {offsets = [0, 128], sizes = [32, 64], strides = [1, 1]} : vector<32x256xf32> to vector<32x64xf32>
    %7 = vector.extract_strided_slice %3 {offsets = [0, 192], sizes = [32, 64], strides = [1, 1]} : vector<32x256xf32> to vector<32x64xf32>
    %8 = arith.maximumf %4, %5 : vector<32x64xf32>
    %9 = arith.maximumf %8, %6 : vector<32x64xf32>
    %10 = arith.maximumf %9, %7 : vector<32x64xf32>
    %c0_4 = arith.constant 0 : index
    %c0_5 = arith.constant 0 : index
    %11 = vector.load %arg3[%c0_4, %c0_5] : memref<32x1xf32, #tpu.memory_space<vmem>>, vector<32x1xf32>
    %12 = vector.broadcast %11 : vector<32x1xf32> to vector<32x64xf32>
    %13 = arith.addf %10, %12 : vector<32x64xf32>
    %cst_6 = arith.constant 0.000000e+00 : f32
    %14 = vector.broadcast %cst_6 : f32 to vector<32x64xf32>
    %15 = arith.maximumf %13, %14 : vector<32x64xf32>
    %c0_7 = arith.constant 0 : index
    %c0_8 = arith.constant 0 : index
    %16 = vector.load %arg2[%c0_7, %c0_8] : memref<32x36xf32, #tpu.memory_space<vmem>>, vector<32x36xf32>
    %c1 = arith.constant 1 : index
    %c0_9 = arith.constant 0 : index
    %c0_10 = arith.constant 0 : index
    %17 = vector.load %arg1[%c1, %c0_9, %c0_10] : memref<2x36x256xf32, #tpu.memory_space<vmem>>, vector<1x36x256xf32>
    %18 = vector.shape_cast %17 : vector<1x36x256xf32> to vector<36x256xf32>
    %cst_11 = arith.constant dense<0.000000e+00> : vector<32x256xf32>
    %19 = tpu.matmul %16, %18, %cst_11 {dimension_numbers = #tpu.dot_dimension_numbers<[1], [0], [0], [1], [0, 0, 1, 1], [], []>} : vector<32x36xf32>, vector<36x256xf32>, vector<32x256xf32> -> vector<32x256xf32>
    %20 = vector.extract_strided_slice %19 {offsets = [0, 0], sizes = [32, 64], strides = [1, 1]} : vector<32x256xf32> to vector<32x64xf32>
    %21 = vector.extract_strided_slice %19 {offsets = [0, 64], sizes = [32, 64], strides = [1, 1]} : vector<32x256xf32> to vector<32x64xf32>
    %22 = vector.extract_strided_slice %19 {offsets = [0, 128], sizes = [32, 64], strides = [1, 1]} : vector<32x256xf32> to vector<32x64xf32>
    %23 = vector.extract_strided_slice %19 {offsets = [0, 192], sizes = [32, 64], strides = [1, 1]} : vector<32x256xf32> to vector<32x64xf32>
    %24 = arith.maximumf %20, %21 : vector<32x64xf32>
    %25 = arith.maximumf %24, %22 : vector<32x64xf32>
    %26 = arith.maximumf %25, %23 : vector<32x64xf32>
    %c0_12 = arith.constant 0 : index
    %c0_13 = arith.constant 0 : index
    %27 = vector.load %arg3[%c0_12, %c0_13] : memref<32x1xf32, #tpu.memory_space<vmem>>, vector<32x1xf32>
    %28 = vector.broadcast %27 : vector<32x1xf32> to vector<32x64xf32>
    %29 = arith.addf %26, %28 : vector<32x64xf32>
    %cst_14 = arith.constant 0.000000e+00 : f32
    %30 = vector.broadcast %cst_14 : f32 to vector<32x64xf32>
    %31 = arith.maximumf %29, %30 : vector<32x64xf32>
    %32 = tpu.concatenate %15, %31 in 0 : vector<32x64xf32>, vector<32x64xf32> -> vector<64x64xf32>
    %c0_15 = arith.constant 0 : index
    %c0_16 = arith.constant 0 : index
    %33 = vector.load %arg4[%c0_15, %c0_16] : memref<64x64xbf16, #tpu.memory_space<vmem>>, vector<64x64xbf16>
    %c0_17 = arith.constant 0 : index
    %c0_18 = arith.constant 0 : index
    %c0_19 = arith.constant 0 : index
    %34 = vector.load %arg6[%c0_17, %c0_18, %c0_19] : memref<2x9x64xf32, #tpu.memory_space<vmem>>, vector<1x9x64xf32>
    %35 = vector.shape_cast %34 : vector<1x9x64xf32> to vector<9x64xf32>
    %36 = vector.extract_strided_slice %35 {offsets = [0, 0], sizes = [1, 64], strides = [1, 1]} : vector<9x64xf32> to vector<1x64xf32>
    %37 = vector.extract_strided_slice %35 {offsets = [1, 0], sizes = [1, 64], strides = [1, 1]} : vector<9x64xf32> to vector<1x64xf32>
    %38 = vector.extract_strided_slice %35 {offsets = [2, 0], sizes = [1, 64], strides = [1, 1]} : vector<9x64xf32> to vector<1x64xf32>
    %39 = vector.extract_strided_slice %35 {offsets = [3, 0], sizes = [1, 64], strides = [1, 1]} : vector<9x64xf32> to vector<1x64xf32>
    %40 = vector.extract_strided_slice %35 {offsets = [4, 0], sizes = [1, 64], strides = [1, 1]} : vector<9x64xf32> to vector<1x64xf32>
    %41 = vector.extract_strided_slice %35 {offsets = [5, 0], sizes = [1, 64], strides = [1, 1]} : vector<9x64xf32> to vector<1x64xf32>
    %42 = vector.extract_strided_slice %35 {offsets = [6, 0], sizes = [1, 64], strides = [1, 1]} : vector<9x64xf32> to vector<1x64xf32>
    %43 = vector.extract_strided_slice %35 {offsets = [7, 0], sizes = [1, 64], strides = [1, 1]} : vector<9x64xf32> to vector<1x64xf32>
    %44 = vector.extract_strided_slice %35 {offsets = [8, 0], sizes = [1, 64], strides = [1, 1]} : vector<9x64xf32> to vector<1x64xf32>
    %45 = arith.truncf %32 : vector<64x64xf32> to vector<64x64xbf16>
    %c0_20 = arith.constant 0 : index
    %c0_21 = arith.constant 0 : index
    %c0_22 = arith.constant 0 : index
    %c0_23 = arith.constant 0 : index
    %46 = vector.load %arg5[%c0_20, %c0_21, %c0_22, %c0_23] : memref<2x4x64x64xbf16, #tpu.memory_space<vmem>>, vector<1x1x64x64xbf16>
    %47 = vector.shape_cast %46 : vector<1x1x64x64xbf16> to vector<64x64xbf16>
    %cst_24 = arith.constant dense<0.000000e+00> : vector<64x64xf32>
    %48 = tpu.matmul %45, %47, %cst_24 {dimension_numbers = #tpu.dot_dimension_numbers<[1], [0], [0], [1], [0, 0, 1, 1], [], []>} : vector<64x64xbf16>, vector<64x64xbf16>, vector<64x64xf32> -> vector<64x64xf32>
    %49 = vector.broadcast %36 : vector<1x64xf32> to vector<64x64xf32>
    %50 = arith.addf %48, %49 : vector<64x64xf32>
    %c0_25 = arith.constant 0 : index
    %c1_26 = arith.constant 1 : index
    %c0_27 = arith.constant 0 : index
    %c0_28 = arith.constant 0 : index
    %51 = vector.load %arg5[%c0_25, %c1_26, %c0_27, %c0_28] : memref<2x4x64x64xbf16, #tpu.memory_space<vmem>>, vector<1x1x64x64xbf16>
    %52 = vector.shape_cast %51 : vector<1x1x64x64xbf16> to vector<64x64xbf16>
    %cst_29 = arith.constant dense<0.000000e+00> : vector<64x64xf32>
    %53 = tpu.matmul %45, %52, %cst_29 {dimension_numbers = #tpu.dot_dimension_numbers<[1], [0], [0], [1], [0, 0, 1, 1], [], []>} : vector<64x64xbf16>, vector<64x64xbf16>, vector<64x64xf32> -> vector<64x64xf32>
    %54 = vector.broadcast %37 : vector<1x64xf32> to vector<64x64xf32>
    %55 = arith.addf %53, %54 : vector<64x64xf32>
    %c0_30 = arith.constant 0 : index
    %c2 = arith.constant 2 : index
    %c0_31 = arith.constant 0 : index
    %c0_32 = arith.constant 0 : index
    %56 = vector.load %arg5[%c0_30, %c2, %c0_31, %c0_32] : memref<2x4x64x64xbf16, #tpu.memory_space<vmem>>, vector<1x1x64x64xbf16>
    %57 = vector.shape_cast %56 : vector<1x1x64x64xbf16> to vector<64x64xbf16>
    %cst_33 = arith.constant dense<0.000000e+00> : vector<64x64xf32>
    %58 = tpu.matmul %45, %57, %cst_33 {dimension_numbers = #tpu.dot_dimension_numbers<[1], [0], [0], [1], [0, 0, 1, 1], [], []>} : vector<64x64xbf16>, vector<64x64xbf16>, vector<64x64xf32> -> vector<64x64xf32>
    %59 = vector.broadcast %38 : vector<1x64xf32> to vector<64x64xf32>
    %60 = arith.addf %58, %59 : vector<64x64xf32>
    %61 = vector.extract_strided_slice %50 {offsets = [0, 0], sizes = [32, 64], strides = [1, 1]} : vector<64x64xf32> to vector<32x64xf32>
    %62 = vector.extract_strided_slice %50 {offsets = [32, 0], sizes = [32, 64], strides = [1, 1]} : vector<64x64xf32> to vector<32x64xf32>
    %63 = vector.extract_strided_slice %55 {offsets = [0, 0], sizes = [32, 64], strides = [1, 1]} : vector<64x64xf32> to vector<32x64xf32>
    %64 = vector.extract_strided_slice %55 {offsets = [32, 0], sizes = [32, 64], strides = [1, 1]} : vector<64x64xf32> to vector<32x64xf32>
    %65 = vector.extract_strided_slice %60 {offsets = [0, 0], sizes = [32, 64], strides = [1, 1]} : vector<64x64xf32> to vector<32x64xf32>
    %66 = vector.extract_strided_slice %60 {offsets = [32, 0], sizes = [32, 64], strides = [1, 1]} : vector<64x64xf32> to vector<32x64xf32>
    %67 = arith.mulf %61, %63 : vector<32x64xf32>
    %68 = arith.truncf %67 : vector<32x64xf32> to vector<32x64xbf16>
    %cst_34 = arith.constant dense<0.000000e+00> : vector<32x64xf32>
    %69 = tpu.matmul %68, %33, %cst_34 {dimension_numbers = #tpu.dot_dimension_numbers<[1], [0], [0], [1], [0, 0, 1, 1], [], []>} : vector<32x64xbf16>, vector<64x64xbf16>, vector<32x64xf32> -> vector<32x64xf32>
    %70 = arith.mulf %61, %64 : vector<32x64xf32>
    %71 = arith.truncf %70 : vector<32x64xf32> to vector<32x64xbf16>
    %cst_35 = arith.constant dense<0.000000e+00> : vector<32x64xf32>
    %72 = tpu.matmul %71, %33, %cst_35 {dimension_numbers = #tpu.dot_dimension_numbers<[1], [0], [0], [1], [0, 0, 1, 1], [], []>} : vector<32x64xbf16>, vector<64x64xbf16>, vector<32x64xf32> -> vector<32x64xf32>
    %73 = arith.maximumf %69, %72 : vector<32x64xf32>
    %74 = arith.subf %69, %73 : vector<32x64xf32>
    %75 = math.exp %74 : vector<32x64xf32>
    %76 = arith.subf %72, %73 : vector<32x64xf32>
    %77 = math.exp %76 : vector<32x64xf32>
    %78 = arith.addf %75, %77 : vector<32x64xf32>
    %79 = tpu.reciprocal %78 : vector<32x64xf32> -> vector<32x64xf32>
    %cst_36 = arith.constant 0.000000e+00 : f32
    %80 = vector.broadcast %cst_36 : f32 to vector<32x64xf32>
    %81 = arith.mulf %75, %79 : vector<32x64xf32>
    %82 = arith.mulf %81, %65 : vector<32x64xf32>
    %83 = arith.addf %80, %82 : vector<32x64xf32>
    %84 = arith.mulf %77, %79 : vector<32x64xf32>
    %85 = arith.mulf %84, %66 : vector<32x64xf32>
    %86 = arith.addf %83, %85 : vector<32x64xf32>
    %87 = arith.mulf %62, %63 : vector<32x64xf32>
    %88 = arith.truncf %87 : vector<32x64xf32> to vector<32x64xbf16>
    %cst_37 = arith.constant dense<0.000000e+00> : vector<32x64xf32>
    %89 = tpu.matmul %88, %33, %cst_37 {dimension_numbers = #tpu.dot_dimension_numbers<[1], [0], [0], [1], [0, 0, 1, 1], [], []>} : vector<32x64xbf16>, vector<64x64xbf16>, vector<32x64xf32> -> vector<32x64xf32>
    %90 = arith.mulf %62, %64 : vector<32x64xf32>
    %91 = arith.truncf %90 : vector<32x64xf32> to vector<32x64xbf16>
    %cst_38 = arith.constant dense<0.000000e+00> : vector<32x64xf32>
    %92 = tpu.matmul %91, %33, %cst_38 {dimension_numbers = #tpu.dot_dimension_numbers<[1], [0], [0], [1], [0, 0, 1, 1], [], []>} : vector<32x64xbf16>, vector<64x64xbf16>, vector<32x64xf32> -> vector<32x64xf32>
    %93 = arith.maximumf %89, %92 : vector<32x64xf32>
    %94 = arith.subf %89, %93 : vector<32x64xf32>
    %95 = math.exp %94 : vector<32x64xf32>
    %96 = arith.subf %92, %93 : vector<32x64xf32>
    %97 = math.exp %96 : vector<32x64xf32>
    %98 = arith.addf %95, %97 : vector<32x64xf32>
    %99 = tpu.reciprocal %98 : vector<32x64xf32> -> vector<32x64xf32>
    %cst_39 = arith.constant 0.000000e+00 : f32
    %100 = vector.broadcast %cst_39 : f32 to vector<32x64xf32>
    %101 = arith.mulf %95, %99 : vector<32x64xf32>
    %102 = arith.mulf %101, %65 : vector<32x64xf32>
    %103 = arith.addf %100, %102 : vector<32x64xf32>
    %104 = arith.mulf %97, %99 : vector<32x64xf32>
    %105 = arith.mulf %104, %66 : vector<32x64xf32>
    %106 = arith.addf %103, %105 : vector<32x64xf32>
    %107 = tpu.concatenate %86, %106 in 0 : vector<32x64xf32>, vector<32x64xf32> -> vector<64x64xf32>
    %108 = arith.truncf %107 : vector<64x64xf32> to vector<64x64xbf16>
    %c0_40 = arith.constant 0 : index
    %c3 = arith.constant 3 : index
    %c0_41 = arith.constant 0 : index
    %c0_42 = arith.constant 0 : index
    %109 = vector.load %arg5[%c0_40, %c3, %c0_41, %c0_42] : memref<2x4x64x64xbf16, #tpu.memory_space<vmem>>, vector<1x1x64x64xbf16>
    %110 = vector.shape_cast %109 : vector<1x1x64x64xbf16> to vector<64x64xbf16>
    %cst_43 = arith.constant dense<0.000000e+00> : vector<64x64xf32>
    %111 = tpu.matmul %108, %110, %cst_43 {dimension_numbers = #tpu.dot_dimension_numbers<[1], [0], [0], [1], [0, 0, 1, 1], [], []>} : vector<64x64xbf16>, vector<64x64xbf16>, vector<64x64xf32> -> vector<64x64xf32>
    %112 = vector.broadcast %39 : vector<1x64xf32> to vector<64x64xf32>
    %113 = arith.addf %111, %112 : vector<64x64xf32>
    %114 = arith.addf %32, %113 : vector<64x64xf32>
    %cst_44 = arith.constant dense<0.000000e+00> : vector<64xf32>
    %115 = vector.multi_reduction <add>, %114, %cst_44 [1] : vector<64x64xf32> to vector<64xf32>
    %116 = vector.shape_cast %115 : vector<64xf32> to vector<64x1xf32>
    %cst_45 = arith.constant 6.400000e+01 : f32
    %117 = vector.broadcast %cst_45 : f32 to vector<64x1xf32>
    %118 = arith.divf %116, %117 : vector<64x1xf32>
    %119 = vector.broadcast %118 : vector<64x1xf32> to vector<64x64xf32>
    %120 = arith.subf %114, %119 : vector<64x64xf32>
    %121 = arith.mulf %120, %120 : vector<64x64xf32>
    %cst_46 = arith.constant dense<0.000000e+00> : vector<64xf32>
    %122 = vector.multi_reduction <add>, %121, %cst_46 [1] : vector<64x64xf32> to vector<64xf32>
    %123 = vector.shape_cast %122 : vector<64xf32> to vector<64x1xf32>
    %cst_47 = arith.constant 6.400000e+01 : f32
    %124 = vector.broadcast %cst_47 : f32 to vector<64x1xf32>
    %125 = arith.divf %123, %124 : vector<64x1xf32>
    %126 = vector.broadcast %118 : vector<64x1xf32> to vector<64x64xf32>
    %127 = arith.subf %114, %126 : vector<64x64xf32>
    %cst_48 = arith.constant 9.99999974E-6 : f32
    %128 = vector.broadcast %cst_48 : f32 to vector<64x1xf32>
    %129 = arith.addf %125, %128 : vector<64x1xf32>
    %130 = math.rsqrt %129 : vector<64x1xf32>
    %131 = vector.broadcast %130 : vector<64x1xf32> to vector<64x64xf32>
    %132 = arith.mulf %127, %131 : vector<64x64xf32>
    %133 = vector.broadcast %40 : vector<1x64xf32> to vector<64x64xf32>
    %134 = arith.mulf %132, %133 : vector<64x64xf32>
    %135 = vector.broadcast %41 : vector<1x64xf32> to vector<64x64xf32>
    %136 = arith.addf %134, %135 : vector<64x64xf32>
    %137 = arith.truncf %136 : vector<64x64xf32> to vector<64x64xbf16>
    %c0_49 = arith.constant 0 : index
    %c0_50 = arith.constant 0 : index
    %c0_51 = arith.constant 0 : index
    %138 = vector.load %arg7[%c0_49, %c0_50, %c0_51] : memref<2x64x2048xbf16, #tpu.memory_space<vmem>>, vector<1x64x2048xbf16>
    %139 = vector.shape_cast %138 : vector<1x64x2048xbf16> to vector<64x2048xbf16>
    %cst_52 = arith.constant dense<0.000000e+00> : vector<64x2048xf32>
    %140 = tpu.matmul %137, %139, %cst_52 {dimension_numbers = #tpu.dot_dimension_numbers<[1], [0], [0], [1], [0, 0, 1, 1], [], []>} : vector<64x64xbf16>, vector<64x2048xbf16>, vector<64x2048xf32> -> vector<64x2048xf32>
    %c0_53 = arith.constant 0 : index
    %c0_54 = arith.constant 0 : index
    %c0_55 = arith.constant 0 : index
    %141 = vector.load %arg8[%c0_53, %c0_54, %c0_55] : memref<2x1x2048xf32, #tpu.memory_space<vmem>>, vector<1x1x2048xf32>
    %142 = vector.shape_cast %141 : vector<1x1x2048xf32> to vector<1x2048xf32>
    %143 = vector.broadcast %142 : vector<1x2048xf32> to vector<64x2048xf32>
    %144 = arith.addf %140, %143 : vector<64x2048xf32>
    %cst_56 = arith.constant 0.000000e+00 : f32
    %145 = vector.broadcast %cst_56 : f32 to vector<64x2048xf32>
    %146 = arith.maximumf %144, %145 : vector<64x2048xf32>
    %147 = arith.truncf %146 : vector<64x2048xf32> to vector<64x2048xbf16>
    %c0_57 = arith.constant 0 : index
    %c0_58 = arith.constant 0 : index
    %c0_59 = arith.constant 0 : index
    %148 = vector.load %arg9[%c0_57, %c0_58, %c0_59] : memref<2x2048x64xbf16, #tpu.memory_space<vmem>>, vector<1x2048x64xbf16>
    %149 = vector.shape_cast %148 : vector<1x2048x64xbf16> to vector<2048x64xbf16>
    %cst_60 = arith.constant dense<0.000000e+00> : vector<64x64xf32>
    %150 = tpu.matmul %147, %149, %cst_60 {dimension_numbers = #tpu.dot_dimension_numbers<[1], [0], [0], [1], [0, 0, 1, 1], [], []>} : vector<64x2048xbf16>, vector<2048x64xbf16>, vector<64x64xf32> -> vector<64x64xf32>
    %151 = vector.broadcast %42 : vector<1x64xf32> to vector<64x64xf32>
    %152 = arith.addf %150, %151 : vector<64x64xf32>
    %153 = arith.addf %136, %152 : vector<64x64xf32>
    %cst_61 = arith.constant dense<0.000000e+00> : vector<64xf32>
    %154 = vector.multi_reduction <add>, %153, %cst_61 [1] : vector<64x64xf32> to vector<64xf32>
    %155 = vector.shape_cast %154 : vector<64xf32> to vector<64x1xf32>
    %cst_62 = arith.constant 6.400000e+01 : f32
    %156 = vector.broadcast %cst_62 : f32 to vector<64x1xf32>
    %157 = arith.divf %155, %156 : vector<64x1xf32>
    %158 = vector.broadcast %157 : vector<64x1xf32> to vector<64x64xf32>
    %159 = arith.subf %153, %158 : vector<64x64xf32>
    %160 = arith.mulf %159, %159 : vector<64x64xf32>
    %cst_63 = arith.constant dense<0.000000e+00> : vector<64xf32>
    %161 = vector.multi_reduction <add>, %160, %cst_63 [1] : vector<64x64xf32> to vector<64xf32>
    %162 = vector.shape_cast %161 : vector<64xf32> to vector<64x1xf32>
    %cst_64 = arith.constant 6.400000e+01 : f32
    %163 = vector.broadcast %cst_64 : f32 to vector<64x1xf32>
    %164 = arith.divf %162, %163 : vector<64x1xf32>
    %165 = vector.broadcast %157 : vector<64x1xf32> to vector<64x64xf32>
    %166 = arith.subf %153, %165 : vector<64x64xf32>
    %cst_65 = arith.constant 9.99999974E-6 : f32
    %167 = vector.broadcast %cst_65 : f32 to vector<64x1xf32>
    %168 = arith.addf %164, %167 : vector<64x1xf32>
    %169 = math.rsqrt %168 : vector<64x1xf32>
    %170 = vector.broadcast %169 : vector<64x1xf32> to vector<64x64xf32>
    %171 = arith.mulf %166, %170 : vector<64x64xf32>
    %172 = vector.broadcast %43 : vector<1x64xf32> to vector<64x64xf32>
    %173 = arith.mulf %171, %172 : vector<64x64xf32>
    %174 = vector.broadcast %44 : vector<1x64xf32> to vector<64x64xf32>
    %175 = arith.addf %173, %174 : vector<64x64xf32>
    %c1_66 = arith.constant 1 : index
    %c0_67 = arith.constant 0 : index
    %c0_68 = arith.constant 0 : index
    %176 = vector.load %arg6[%c1_66, %c0_67, %c0_68] : memref<2x9x64xf32, #tpu.memory_space<vmem>>, vector<1x9x64xf32>
    %177 = vector.shape_cast %176 : vector<1x9x64xf32> to vector<9x64xf32>
    %178 = vector.extract_strided_slice %177 {offsets = [0, 0], sizes = [1, 64], strides = [1, 1]} : vector<9x64xf32> to vector<1x64xf32>
    %179 = vector.extract_strided_slice %177 {offsets = [1, 0], sizes = [1, 64], strides = [1, 1]} : vector<9x64xf32> to vector<1x64xf32>
    %180 = vector.extract_strided_slice %177 {offsets = [2, 0], sizes = [1, 64], strides = [1, 1]} : vector<9x64xf32> to vector<1x64xf32>
    %181 = vector.extract_strided_slice %177 {offsets = [3, 0], sizes = [1, 64], strides = [1, 1]} : vector<9x64xf32> to vector<1x64xf32>
    %182 = vector.extract_strided_slice %177 {offsets = [4, 0], sizes = [1, 64], strides = [1, 1]} : vector<9x64xf32> to vector<1x64xf32>
    %183 = vector.extract_strided_slice %177 {offsets = [5, 0], sizes = [1, 64], strides = [1, 1]} : vector<9x64xf32> to vector<1x64xf32>
    %184 = vector.extract_strided_slice %177 {offsets = [6, 0], sizes = [1, 64], strides = [1, 1]} : vector<9x64xf32> to vector<1x64xf32>
    %185 = vector.extract_strided_slice %177 {offsets = [7, 0], sizes = [1, 64], strides = [1, 1]} : vector<9x64xf32> to vector<1x64xf32>
    %186 = vector.extract_strided_slice %177 {offsets = [8, 0], sizes = [1, 64], strides = [1, 1]} : vector<9x64xf32> to vector<1x64xf32>
    %187 = arith.truncf %175 : vector<64x64xf32> to vector<64x64xbf16>
    %c1_69 = arith.constant 1 : index
    %c0_70 = arith.constant 0 : index
    %c0_71 = arith.constant 0 : index
    %c0_72 = arith.constant 0 : index
    %188 = vector.load %arg5[%c1_69, %c0_70, %c0_71, %c0_72] : memref<2x4x64x64xbf16, #tpu.memory_space<vmem>>, vector<1x1x64x64xbf16>
    %189 = vector.shape_cast %188 : vector<1x1x64x64xbf16> to vector<64x64xbf16>
    %cst_73 = arith.constant dense<0.000000e+00> : vector<64x64xf32>
    %190 = tpu.matmul %187, %189, %cst_73 {dimension_numbers = #tpu.dot_dimension_numbers<[1], [0], [0], [1], [0, 0, 1, 1], [], []>} : vector<64x64xbf16>, vector<64x64xbf16>, vector<64x64xf32> -> vector<64x64xf32>
    %191 = vector.broadcast %178 : vector<1x64xf32> to vector<64x64xf32>
    %192 = arith.addf %190, %191 : vector<64x64xf32>
    %c1_74 = arith.constant 1 : index
    %c1_75 = arith.constant 1 : index
    %c0_76 = arith.constant 0 : index
    %c0_77 = arith.constant 0 : index
    %193 = vector.load %arg5[%c1_74, %c1_75, %c0_76, %c0_77] : memref<2x4x64x64xbf16, #tpu.memory_space<vmem>>, vector<1x1x64x64xbf16>
    %194 = vector.shape_cast %193 : vector<1x1x64x64xbf16> to vector<64x64xbf16>
    %cst_78 = arith.constant dense<0.000000e+00> : vector<64x64xf32>
    %195 = tpu.matmul %187, %194, %cst_78 {dimension_numbers = #tpu.dot_dimension_numbers<[1], [0], [0], [1], [0, 0, 1, 1], [], []>} : vector<64x64xbf16>, vector<64x64xbf16>, vector<64x64xf32> -> vector<64x64xf32>
    %196 = vector.broadcast %179 : vector<1x64xf32> to vector<64x64xf32>
    %197 = arith.addf %195, %196 : vector<64x64xf32>
    %c1_79 = arith.constant 1 : index
    %c2_80 = arith.constant 2 : index
    %c0_81 = arith.constant 0 : index
    %c0_82 = arith.constant 0 : index
    %198 = vector.load %arg5[%c1_79, %c2_80, %c0_81, %c0_82] : memref<2x4x64x64xbf16, #tpu.memory_space<vmem>>, vector<1x1x64x64xbf16>
    %199 = vector.shape_cast %198 : vector<1x1x64x64xbf16> to vector<64x64xbf16>
    %cst_83 = arith.constant dense<0.000000e+00> : vector<64x64xf32>
    %200 = tpu.matmul %187, %199, %cst_83 {dimension_numbers = #tpu.dot_dimension_numbers<[1], [0], [0], [1], [0, 0, 1, 1], [], []>} : vector<64x64xbf16>, vector<64x64xbf16>, vector<64x64xf32> -> vector<64x64xf32>
    %201 = vector.broadcast %180 : vector<1x64xf32> to vector<64x64xf32>
    %202 = arith.addf %200, %201 : vector<64x64xf32>
    %203 = vector.extract_strided_slice %192 {offsets = [0, 0], sizes = [32, 64], strides = [1, 1]} : vector<64x64xf32> to vector<32x64xf32>
    %204 = vector.extract_strided_slice %192 {offsets = [32, 0], sizes = [32, 64], strides = [1, 1]} : vector<64x64xf32> to vector<32x64xf32>
    %205 = vector.extract_strided_slice %197 {offsets = [0, 0], sizes = [32, 64], strides = [1, 1]} : vector<64x64xf32> to vector<32x64xf32>
    %206 = vector.extract_strided_slice %197 {offsets = [32, 0], sizes = [32, 64], strides = [1, 1]} : vector<64x64xf32> to vector<32x64xf32>
    %207 = vector.extract_strided_slice %202 {offsets = [0, 0], sizes = [32, 64], strides = [1, 1]} : vector<64x64xf32> to vector<32x64xf32>
    %208 = vector.extract_strided_slice %202 {offsets = [32, 0], sizes = [32, 64], strides = [1, 1]} : vector<64x64xf32> to vector<32x64xf32>
    %209 = arith.mulf %203, %205 : vector<32x64xf32>
    %210 = arith.truncf %209 : vector<32x64xf32> to vector<32x64xbf16>
    %cst_84 = arith.constant dense<0.000000e+00> : vector<32x64xf32>
    %211 = tpu.matmul %210, %33, %cst_84 {dimension_numbers = #tpu.dot_dimension_numbers<[1], [0], [0], [1], [0, 0, 1, 1], [], []>} : vector<32x64xbf16>, vector<64x64xbf16>, vector<32x64xf32> -> vector<32x64xf32>
    %212 = arith.mulf %203, %206 : vector<32x64xf32>
    %213 = arith.truncf %212 : vector<32x64xf32> to vector<32x64xbf16>
    %cst_85 = arith.constant dense<0.000000e+00> : vector<32x64xf32>
    %214 = tpu.matmul %213, %33, %cst_85 {dimension_numbers = #tpu.dot_dimension_numbers<[1], [0], [0], [1], [0, 0, 1, 1], [], []>} : vector<32x64xbf16>, vector<64x64xbf16>, vector<32x64xf32> -> vector<32x64xf32>
    %215 = arith.maximumf %211, %214 : vector<32x64xf32>
    %216 = arith.subf %211, %215 : vector<32x64xf32>
    %217 = math.exp %216 : vector<32x64xf32>
    %218 = arith.subf %214, %215 : vector<32x64xf32>
    %219 = math.exp %218 : vector<32x64xf32>
    %220 = arith.addf %217, %219 : vector<32x64xf32>
    %221 = tpu.reciprocal %220 : vector<32x64xf32> -> vector<32x64xf32>
    %cst_86 = arith.constant 0.000000e+00 : f32
    %222 = vector.broadcast %cst_86 : f32 to vector<32x64xf32>
    %223 = arith.mulf %217, %221 : vector<32x64xf32>
    %224 = arith.mulf %223, %207 : vector<32x64xf32>
    %225 = arith.addf %222, %224 : vector<32x64xf32>
    %226 = arith.mulf %219, %221 : vector<32x64xf32>
    %227 = arith.mulf %226, %208 : vector<32x64xf32>
    %228 = arith.addf %225, %227 : vector<32x64xf32>
    %229 = arith.mulf %204, %205 : vector<32x64xf32>
    %230 = arith.truncf %229 : vector<32x64xf32> to vector<32x64xbf16>
    %cst_87 = arith.constant dense<0.000000e+00> : vector<32x64xf32>
    %231 = tpu.matmul %230, %33, %cst_87 {dimension_numbers = #tpu.dot_dimension_numbers<[1], [0], [0], [1], [0, 0, 1, 1], [], []>} : vector<32x64xbf16>, vector<64x64xbf16>, vector<32x64xf32> -> vector<32x64xf32>
    %232 = arith.mulf %204, %206 : vector<32x64xf32>
    %233 = arith.truncf %232 : vector<32x64xf32> to vector<32x64xbf16>
    %cst_88 = arith.constant dense<0.000000e+00> : vector<32x64xf32>
    %234 = tpu.matmul %233, %33, %cst_88 {dimension_numbers = #tpu.dot_dimension_numbers<[1], [0], [0], [1], [0, 0, 1, 1], [], []>} : vector<32x64xbf16>, vector<64x64xbf16>, vector<32x64xf32> -> vector<32x64xf32>
    %235 = arith.maximumf %231, %234 : vector<32x64xf32>
    %236 = arith.subf %231, %235 : vector<32x64xf32>
    %237 = math.exp %236 : vector<32x64xf32>
    %238 = arith.subf %234, %235 : vector<32x64xf32>
    %239 = math.exp %238 : vector<32x64xf32>
    %240 = arith.addf %237, %239 : vector<32x64xf32>
    %241 = tpu.reciprocal %240 : vector<32x64xf32> -> vector<32x64xf32>
    %cst_89 = arith.constant 0.000000e+00 : f32
    %242 = vector.broadcast %cst_89 : f32 to vector<32x64xf32>
    %243 = arith.mulf %237, %241 : vector<32x64xf32>
    %244 = arith.mulf %243, %207 : vector<32x64xf32>
    %245 = arith.addf %242, %244 : vector<32x64xf32>
    %246 = arith.mulf %239, %241 : vector<32x64xf32>
    %247 = arith.mulf %246, %208 : vector<32x64xf32>
    %248 = arith.addf %245, %247 : vector<32x64xf32>
    %249 = tpu.concatenate %228, %248 in 0 : vector<32x64xf32>, vector<32x64xf32> -> vector<64x64xf32>
    %250 = arith.truncf %249 : vector<64x64xf32> to vector<64x64xbf16>
    %c1_90 = arith.constant 1 : index
    %c3_91 = arith.constant 3 : index
    %c0_92 = arith.constant 0 : index
    %c0_93 = arith.constant 0 : index
    %251 = vector.load %arg5[%c1_90, %c3_91, %c0_92, %c0_93] : memref<2x4x64x64xbf16, #tpu.memory_space<vmem>>, vector<1x1x64x64xbf16>
    %252 = vector.shape_cast %251 : vector<1x1x64x64xbf16> to vector<64x64xbf16>
    %cst_94 = arith.constant dense<0.000000e+00> : vector<64x64xf32>
    %253 = tpu.matmul %250, %252, %cst_94 {dimension_numbers = #tpu.dot_dimension_numbers<[1], [0], [0], [1], [0, 0, 1, 1], [], []>} : vector<64x64xbf16>, vector<64x64xbf16>, vector<64x64xf32> -> vector<64x64xf32>
    %254 = vector.broadcast %181 : vector<1x64xf32> to vector<64x64xf32>
    %255 = arith.addf %253, %254 : vector<64x64xf32>
    %256 = arith.addf %175, %255 : vector<64x64xf32>
    %cst_95 = arith.constant dense<0.000000e+00> : vector<64xf32>
    %257 = vector.multi_reduction <add>, %256, %cst_95 [1] : vector<64x64xf32> to vector<64xf32>
    %258 = vector.shape_cast %257 : vector<64xf32> to vector<64x1xf32>
    %cst_96 = arith.constant 6.400000e+01 : f32
    %259 = vector.broadcast %cst_96 : f32 to vector<64x1xf32>
    %260 = arith.divf %258, %259 : vector<64x1xf32>
    %261 = vector.broadcast %260 : vector<64x1xf32> to vector<64x64xf32>
    %262 = arith.subf %256, %261 : vector<64x64xf32>
    %263 = arith.mulf %262, %262 : vector<64x64xf32>
    %cst_97 = arith.constant dense<0.000000e+00> : vector<64xf32>
    %264 = vector.multi_reduction <add>, %263, %cst_97 [1] : vector<64x64xf32> to vector<64xf32>
    %265 = vector.shape_cast %264 : vector<64xf32> to vector<64x1xf32>
    %cst_98 = arith.constant 6.400000e+01 : f32
    %266 = vector.broadcast %cst_98 : f32 to vector<64x1xf32>
    %267 = arith.divf %265, %266 : vector<64x1xf32>
    %268 = vector.broadcast %260 : vector<64x1xf32> to vector<64x64xf32>
    %269 = arith.subf %256, %268 : vector<64x64xf32>
    %cst_99 = arith.constant 9.99999974E-6 : f32
    %270 = vector.broadcast %cst_99 : f32 to vector<64x1xf32>
    %271 = arith.addf %267, %270 : vector<64x1xf32>
    %272 = math.rsqrt %271 : vector<64x1xf32>
    %273 = vector.broadcast %272 : vector<64x1xf32> to vector<64x64xf32>
    %274 = arith.mulf %269, %273 : vector<64x64xf32>
    %275 = vector.broadcast %182 : vector<1x64xf32> to vector<64x64xf32>
    %276 = arith.mulf %274, %275 : vector<64x64xf32>
    %277 = vector.broadcast %183 : vector<1x64xf32> to vector<64x64xf32>
    %278 = arith.addf %276, %277 : vector<64x64xf32>
    %279 = arith.truncf %278 : vector<64x64xf32> to vector<64x64xbf16>
    %c1_100 = arith.constant 1 : index
    %c0_101 = arith.constant 0 : index
    %c0_102 = arith.constant 0 : index
    %280 = vector.load %arg7[%c1_100, %c0_101, %c0_102] : memref<2x64x2048xbf16, #tpu.memory_space<vmem>>, vector<1x64x2048xbf16>
    %281 = vector.shape_cast %280 : vector<1x64x2048xbf16> to vector<64x2048xbf16>
    %cst_103 = arith.constant dense<0.000000e+00> : vector<64x2048xf32>
    %282 = tpu.matmul %279, %281, %cst_103 {dimension_numbers = #tpu.dot_dimension_numbers<[1], [0], [0], [1], [0, 0, 1, 1], [], []>} : vector<64x64xbf16>, vector<64x2048xbf16>, vector<64x2048xf32> -> vector<64x2048xf32>
    %c1_104 = arith.constant 1 : index
    %c0_105 = arith.constant 0 : index
    %c0_106 = arith.constant 0 : index
    %283 = vector.load %arg8[%c1_104, %c0_105, %c0_106] : memref<2x1x2048xf32, #tpu.memory_space<vmem>>, vector<1x1x2048xf32>
    %284 = vector.shape_cast %283 : vector<1x1x2048xf32> to vector<1x2048xf32>
    %285 = vector.broadcast %284 : vector<1x2048xf32> to vector<64x2048xf32>
    %286 = arith.addf %282, %285 : vector<64x2048xf32>
    %cst_107 = arith.constant 0.000000e+00 : f32
    %287 = vector.broadcast %cst_107 : f32 to vector<64x2048xf32>
    %288 = arith.maximumf %286, %287 : vector<64x2048xf32>
    %289 = arith.truncf %288 : vector<64x2048xf32> to vector<64x2048xbf16>
    %c1_108 = arith.constant 1 : index
    %c0_109 = arith.constant 0 : index
    %c0_110 = arith.constant 0 : index
    %290 = vector.load %arg9[%c1_108, %c0_109, %c0_110] : memref<2x2048x64xbf16, #tpu.memory_space<vmem>>, vector<1x2048x64xbf16>
    %291 = vector.shape_cast %290 : vector<1x2048x64xbf16> to vector<2048x64xbf16>
    %cst_111 = arith.constant dense<0.000000e+00> : vector<64x64xf32>
    %292 = tpu.matmul %289, %291, %cst_111 {dimension_numbers = #tpu.dot_dimension_numbers<[1], [0], [0], [1], [0, 0, 1, 1], [], []>} : vector<64x2048xbf16>, vector<2048x64xbf16>, vector<64x64xf32> -> vector<64x64xf32>
    %293 = vector.broadcast %184 : vector<1x64xf32> to vector<64x64xf32>
    %294 = arith.addf %292, %293 : vector<64x64xf32>
    %295 = arith.addf %278, %294 : vector<64x64xf32>
    %cst_112 = arith.constant dense<0.000000e+00> : vector<64xf32>
    %296 = vector.multi_reduction <add>, %295, %cst_112 [1] : vector<64x64xf32> to vector<64xf32>
    %297 = vector.shape_cast %296 : vector<64xf32> to vector<64x1xf32>
    %cst_113 = arith.constant 6.400000e+01 : f32
    %298 = vector.broadcast %cst_113 : f32 to vector<64x1xf32>
    %299 = arith.divf %297, %298 : vector<64x1xf32>
    %300 = vector.broadcast %299 : vector<64x1xf32> to vector<64x64xf32>
    %301 = arith.subf %295, %300 : vector<64x64xf32>
    %302 = arith.mulf %301, %301 : vector<64x64xf32>
    %cst_114 = arith.constant dense<0.000000e+00> : vector<64xf32>
    %303 = vector.multi_reduction <add>, %302, %cst_114 [1] : vector<64x64xf32> to vector<64xf32>
    %304 = vector.shape_cast %303 : vector<64xf32> to vector<64x1xf32>
    %cst_115 = arith.constant 6.400000e+01 : f32
    %305 = vector.broadcast %cst_115 : f32 to vector<64x1xf32>
    %306 = arith.divf %304, %305 : vector<64x1xf32>
    %307 = vector.broadcast %299 : vector<64x1xf32> to vector<64x64xf32>
    %308 = arith.subf %295, %307 : vector<64x64xf32>
    %cst_116 = arith.constant 9.99999974E-6 : f32
    %309 = vector.broadcast %cst_116 : f32 to vector<64x1xf32>
    %310 = arith.addf %306, %309 : vector<64x1xf32>
    %311 = math.rsqrt %310 : vector<64x1xf32>
    %312 = vector.broadcast %311 : vector<64x1xf32> to vector<64x64xf32>
    %313 = arith.mulf %308, %312 : vector<64x64xf32>
    %314 = vector.broadcast %185 : vector<1x64xf32> to vector<64x64xf32>
    %315 = arith.mulf %313, %314 : vector<64x64xf32>
    %316 = vector.broadcast %186 : vector<1x64xf32> to vector<64x64xf32>
    %317 = arith.addf %315, %316 : vector<64x64xf32>
    %318 = vector.extract_strided_slice %317 {offsets = [0, 0], sizes = [32, 64], strides = [1, 1]} : vector<64x64xf32> to vector<32x64xf32>
    %cst_117 = arith.constant dense<0xFF800000> : vector<64xf32>
    %319 = vector.multi_reduction <maximumf>, %318, %cst_117 [0] : vector<32x64xf32> to vector<64xf32>
    %320 = vector.shape_cast %319 : vector<64xf32> to vector<1x64xf32>
    %321 = vector.extract_strided_slice %317 {offsets = [32, 0], sizes = [32, 64], strides = [1, 1]} : vector<64x64xf32> to vector<32x64xf32>
    %cst_118 = arith.constant dense<0xFF800000> : vector<64xf32>
    %322 = vector.multi_reduction <maximumf>, %321, %cst_118 [0] : vector<32x64xf32> to vector<64xf32>
    %323 = vector.shape_cast %322 : vector<64xf32> to vector<1x64xf32>
    %324 = tpu.concatenate %320, %323 in 0 : vector<1x64xf32>, vector<1x64xf32> -> vector<2x64xf32>
    %325 = vector.shape_cast %324 : vector<2x64xf32> to vector<1x2x64xf32>
    %c0_119 = arith.constant 0 : index
    %c0_120 = arith.constant 0 : index
    %c0_121 = arith.constant 0 : index
    %326 = vector.load %arg10[%c0_119, %c0_120, %c0_121] : memref<1x2x64xf32, #tpu.memory_space<vmem>>, vector<1x2x64xf32>
    tpu.vector_store %arg10[%c0_119, %c0_120, %c0_121], %325 {strides = array<i32>} : memref<1x2x64xf32, #tpu.memory_space<vmem>>, vector<1x2x64xf32>,
    return
  }
  func.func @transform_0(%arg0: i32) -> (i32, i32, i32) {
    %c0_i32 = arith.constant 0 : i32
    %c0_i32_0 = arith.constant 0 : i32
    %c0_i32_1 = arith.constant 0 : i32
    %c0_i32_2 = arith.constant 0 : i32
    return %c0_i32, %c0_i32_0, %c0_i32_1 : i32, i32, i32
  }
  func.func @transform_1(%arg0: i32) -> (i32, i32) {
    %c0_i32 = arith.constant 0 : i32
    %c0_i32_0 = arith.constant 0 : i32
    return %arg0, %c0_i32 : i32, i32
  }
  func.func @transform_2(%arg0: i32) -> (i32, i32) {
    %c0_i32 = arith.constant 0 : i32
    %c0_i32_0 = arith.constant 0 : i32
    return %arg0, %c0_i32 : i32, i32
  }
  func.func @transform_3(%arg0: i32) -> (i32, i32) {
    %c0_i32 = arith.constant 0 : i32
    %c0_i32_0 = arith.constant 0 : i32
    %c0_i32_1 = arith.constant 0 : i32
    return %c0_i32, %c0_i32_0 : i32, i32
  }
  func.func @transform_4(%arg0: i32) -> (i32, i32, i32, i32) {
    %c0_i32 = arith.constant 0 : i32
    %c0_i32_0 = arith.constant 0 : i32
    %c0_i32_1 = arith.constant 0 : i32
    %c0_i32_2 = arith.constant 0 : i32
    %c0_i32_3 = arith.constant 0 : i32
    return %c0_i32, %c0_i32_0, %c0_i32_1, %c0_i32_2 : i32, i32, i32, i32
  }
  func.func @transform_5(%arg0: i32) -> (i32, i32, i32) {
    %c0_i32 = arith.constant 0 : i32
    %c0_i32_0 = arith.constant 0 : i32
    %c0_i32_1 = arith.constant 0 : i32
    %c0_i32_2 = arith.constant 0 : i32
    return %c0_i32, %c0_i32_0, %c0_i32_1 : i32, i32, i32
  }
  func.func @transform_6(%arg0: i32) -> (i32, i32, i32) {
    %c0_i32 = arith.constant 0 : i32
    %c0_i32_0 = arith.constant 0 : i32
    %c0_i32_1 = arith.constant 0 : i32
    %c0_i32_2 = arith.constant 0 : i32
    return %c0_i32, %c0_i32_0, %c0_i32_1 : i32, i32, i32
  }
  func.func @transform_7(%arg0: i32) -> (i32, i32, i32) {
    %c0_i32 = arith.constant 0 : i32
    %c0_i32_0 = arith.constant 0 : i32
    %c0_i32_1 = arith.constant 0 : i32
    %c0_i32_2 = arith.constant 0 : i32
    return %c0_i32, %c0_i32_0, %c0_i32_1 : i32, i32, i32
  }
  func.func @transform_8(%arg0: i32) -> (i32, i32, i32) {
    %c0_i32 = arith.constant 0 : i32
    %c0_i32_0 = arith.constant 0 : i32
    %c0_i32_1 = arith.constant 0 : i32
    %c0_i32_2 = arith.constant 0 : i32
    return %c0_i32, %c0_i32_0, %c0_i32_1 : i32, i32, i32
  }
  func.func @transform_9(%arg0: i32) -> (i32, i32, i32) {
    %c0_i32 = arith.constant 0 : i32
    %c0_i32_0 = arith.constant 0 : i32
    %c0_i32_1 = arith.constant 0 : i32
    return %arg0, %c0_i32, %c0_i32_0 : i32, i32, i32
  }
}

</mosaic_0001>

<llo_original>
// kernel: coatnet_forward.1
$region0: #{coatnet_forward.1}
  #allocation0 [shape = 'u32[]', space=smem, size = 0x4, offset = 0x4, fixed_abs, tag = 'smem constant byte address 0x4 - core index']
  #allocation1 [shape = 'u32[144,128]{1,0:T(1,128)}', space=vmem, size = 0x12000, scoped, tag = 'internal scratch']
  %s0 = inlined_call_operand.vmem [shape: f32[2,36,256], index: 0, kind: input, shape index: {}]
  %s1 = inlined_call_operand.vmem [shape: f32[64,36], index: 1, kind: input, shape index: {}]
  %s2 = inlined_call_operand.vmem [shape: f32[64,1], index: 2, kind: input, shape index: {}]
  %s3 = inlined_call_operand.vmem [shape: bf16[64,64], index: 3, kind: input, shape index: {}]
  %s4 = inlined_call_operand.vmem [shape: bf16[2,4,64,64], index: 4, kind: input, shape index: {}]
  %s5 = inlined_call_operand.vmem [shape: f32[2,9,64], index: 5, kind: input, shape index: {}]
  %s6 = inlined_call_operand.vmem [shape: bf16[2,64,2048], index: 6, kind: input, shape index: {}]
  %s7 = inlined_call_operand.vmem [shape: f32[2,1,2048], index: 7, kind: input, shape index: {}]
  %s8 = inlined_call_operand.vmem [shape: bf16[2,2048,64], index: 8, kind: input, shape index: {}]
  %s9 = inlined_call_operand.vmem [shape: f32[2,2,64], index: 9, kind: output, shape index: {}]
  %s10 = sld [smem:[#allocation0]]
  $region69: #{coatnet_forward.1} parent=0
    _
  %s12 = ssub.s32 1, %s10
  %s13 = scalar_select 0, %s12, %s10
  loop: start=0, step=1, limit=4
  $region2: #{coatnet_forward.1} parent=0 // loop_pre_header
    _
  $region3: #{coatnet_forward.1} parent=0 // loop_header
    %s15 = sphi 0, %s19
    %p16 = scmp.ge.s32.totalorder %s15, 4
    %s23 = sphi 0, %s23
    %s25 = sphi 0, %s23
    %s26 = sphi 0, %s25
    %s40 = sphi 0, %s26
    %s46 = sphi 0, %s48
    %s49 = sphi 0, %s46
    %s50 = sphi 0, %s49
    %s66 = sphi 0, %s50
    %s72 = sphi 0, %s74
    %s75 = sphi 0, %s72
    %s76 = sphi 0, %s75
    %s92 = sphi 0, %s76
    %s96 = sphi 0, %s96
    %s98 = sphi 0, %s96
    %s99 = sphi 0, %s98
    %s113 = sphi 0, %s99
    %s117 = sphi 0, %s117
    %s119 = sphi 0, %s117
    %s120 = sphi 0, %s119
    %s134 = sphi 0, %s120
    %s138 = sphi 0, %s138
    %s140 = sphi 0, %s138
    %s141 = sphi 0, %s140
    %s155 = sphi 0, %s141
    %s159 = sphi 0, %s159
    %s161 = sphi 0, %s159
    %s162 = sphi 0, %s161
    %s176 = sphi 0, %s162
    %s180 = sphi 0, %s180
    %s182 = sphi 0, %s180
    %s183 = sphi 0, %s182
    %s197 = sphi 0, %s183
    %s201 = sphi 0, %s201
    %s203 = sphi 0, %s201
    %s204 = sphi 0, %s203
    %s218 = sphi 0, %s204
    %s224 = sphi 0, %s226
    %s227 = sphi 0, %s224
    %s228 = sphi 0, %s227
    %s244 = sphi 0, %s228
  $region4: #{coatnet_forward.1} parent=0 // loop_header_branch
    %18 = sbr.rel (%p16) target = $region8
  $region5: #{coatnet_forward.1} parent=0 // loop_body
    %s20 = ssub.s32 %s15, 1
    %s21 = ssub.s32 %s15, 2
    %s22 = sadd.s32 %s15, 1
    %s24 = sadd.s32 %s23, 1
    %p27 = scmp.eq.s32.totalorder %s15, 1
    %p28 = scmp.ne.s32.totalorder %s23, %s25
    %p29 = scmp.eq.s32.totalorder %s15, 0
    %p30 = por %p28, %p29
    %p31 = scmp.ne.s32.totalorder %s23, %s25
    %p32 = scmp.eq.s32.totalorder %s20, 1
    %p33 = por %p31, %p32
    %p34 = scmp.ne.s32.totalorder %s25, %s26
    %p35 = scmp.eq.s32.totalorder %s20, 0
    %p36 = por %p34, %p35
    %p37 = scmp.ne.s32.totalorder %s25, %s26
    %p38 = scmp.eq.s32.totalorder %s21, 1
    %p39 = por %p37, %p38
    %p41 = scmp.ne.s32.totalorder %s26, %s40
    %p42 = scmp.eq.s32.totalorder %s21, 0
    %p43 = por %p41, %p42
    %s44 = ssub.s32 %s15, %s22
    %p45 = scmp.eq.s32.totalorder %s44, 0
    %s47 = sadd.s32 %s46, 1
    %s48 = scalar_select %p45, %s46, %s47
    %p51 = pneg %p45
    %p52 = scmp.eq.s32.totalorder %s15, 1
    %p53 = por %p51, %p52
    %p54 = scmp.ne.s32.totalorder %s46, %s49
    %p55 = scmp.eq.s32.totalorder %s15, 0
    %p56 = por %p54, %p55
    %p57 = scmp.ne.s32.totalorder %s46, %s49
    %p58 = scmp.eq.s32.totalorder %s20, 1
    %p59 = por %p57, %p58
    %p60 = scmp.ne.s32.totalorder %s49, %s50
    %p61 = scmp.eq.s32.totalorder %s20, 0
    %p62 = por %p60, %p61
    %p63 = scmp.ne.s32.totalorder %s49, %s50
    %p64 = scmp.eq.s32.totalorder %s21, 1
    %p65 = por %p63, %p64
    %p67 = scmp.ne.s32.totalorder %s50, %s66
    %p68 = scmp.eq.s32.totalorder %s21, 0
    %p69 = por %p67, %p68
    %s70 = ssub.s32 %s15, %s22
    %p71 = scmp.eq.s32.totalorder %s70, 0
    %s73 = sadd.s32 %s72, 1
    %s74 = scalar_select %p71, %s72, %s73
    %p77 = pneg %p71
    %p78 = scmp.eq.s32.totalorder %s15, 1
    %p79 = por %p77, %p78
    %p80 = scmp.ne.s32.totalorder %s72, %s75
    %p81 = scmp.eq.s32.totalorder %s15, 0
    %p82 = por %p80, %p81
    %p83 = scmp.ne.s32.totalorder %s72, %s75
    %p84 = scmp.eq.s32.totalorder %s20, 1
    %p85 = por %p83, %p84
    %p86 = scmp.ne.s32.totalorder %s75, %s76
    %p87 = scmp.eq.s32.totalorder %s20, 0
    %p88 = por %p86, %p87
    %p89 = scmp.ne.s32.totalorder %s75, %s76
    %p90 = scmp.eq.s32.totalorder %s21, 1
    %p91 = por %p89, %p90
    %p93 = scmp.ne.s32.totalorder %s76, %s92
    %p94 = scmp.eq.s32.totalorder %s21, 0
    %p95 = por %p93, %p94
    %s97 = sadd.s32 %s96, 1
    %p100 = scmp.eq.s32.totalorder %s15, 1
    %p101 = scmp.ne.s32.totalorder %s96, %s98
    %p102 = scmp.eq.s32.totalorder %s15, 0
    %p103 = por %p101, %p102
    %p104 = scmp.ne.s32.totalorder %s96, %s98
    %p105 = scmp.eq.s32.totalorder %s20, 1
    %p106 = por %p104, %p105
    %p107 = scmp.ne.s32.totalorder %s98, %s99
    %p108 = scmp.eq.s32.totalorder %s20, 0
    %p109 = por %p107, %p108
    %p110 = scmp.ne.s32.totalorder %s98, %s99
    %p111 = scmp.eq.s32.totalorder %s21, 1
    %p112 = por %p110, %p111
    %p114 = scmp.ne.s32.totalorder %s99, %s113
    %p115 = scmp.eq.s32.totalorder %s21, 0
    %p116 = por %p114, %p115
    %s118 = sadd.s32 %s117, 1
    %p121 = scmp.eq.s32.totalorder %s15, 1
    %p122 = scmp.ne.s32.totalorder %s117, %s119
    %p123 = scmp.eq.s32.totalorder %s15, 0
    %p124 = por %p122, %p123
    %p125 = scmp.ne.s32.totalorder %s117, %s119
    %p126 = scmp.eq.s32.totalorder %s20, 1
    %p127 = por %p125, %p126
    %p128 = scmp.ne.s32.totalorder %s119, %s120
    %p129 = scmp.eq.s32.totalorder %s20, 0
    %p130 = por %p128, %p129
    %p131 = scmp.ne.s32.totalorder %s119, %s120
    %p132 = scmp.eq.s32.totalorder %s21, 1
    %p133 = por %p131, %p132
    %p135 = scmp.ne.s32.totalorder %s120, %s134
    %p136 = scmp.eq.s32.totalorder %s21, 0
    %p137 = por %p135, %p136
    %s139 = sadd.s32 %s138, 1
    %p142 = scmp.eq.s32.totalorder %s15, 1
    %p143 = scmp.ne.s32.totalorder %s138, %s140
    %p144 = scmp.eq.s32.totalorder %s15, 0
    %p145 = por %p143, %p144
    %p146 = scmp.ne.s32.totalorder %s138, %s140
    %p147 = scmp.eq.s32.totalorder %s20, 1
    %p148 = por %p146, %p147
    %p149 = scmp.ne.s32.totalorder %s140, %s141
    %p150 = scmp.eq.s32.totalorder %s20, 0
    %p151 = por %p149, %p150
    %p152 = scmp.ne.s32.totalorder %s140, %s141
    %p153 = scmp.eq.s32.totalorder %s21, 1
    %p154 = por %p152, %p153
    %p156 = scmp.ne.s32.totalorder %s141, %s155
    %p157 = scmp.eq.s32.totalorder %s21, 0
    %p158 = por %p156, %p157
    %s160 = sadd.s32 %s159, 1
    %p163 = scmp.eq.s32.totalorder %s15, 1
    %p164 = scmp.ne.s32.totalorder %s159, %s161
    %p165 = scmp.eq.s32.totalorder %s15, 0
    %p166 = por %p164, %p165
    %p167 = scmp.ne.s32.totalorder %s159, %s161
    %p168 = scmp.eq.s32.totalorder %s20, 1
    %p169 = por %p167, %p168
    %p170 = scmp.ne.s32.totalorder %s161, %s162
    %p171 = scmp.eq.s32.totalorder %s20, 0
    %p172 = por %p170, %p171
    %p173 = scmp.ne.s32.totalorder %s161, %s162
    %p174 = scmp.eq.s32.totalorder %s21, 1
    %p175 = por %p173, %p174
    %p177 = scmp.ne.s32.totalorder %s162, %s176
    %p178 = scmp.eq.s32.totalorder %s21, 0
    %p179 = por %p177, %p178
    %s181 = sadd.s32 %s180, 1
    %p184 = scmp.eq.s32.totalorder %s15, 1
    %p185 = scmp.ne.s32.totalorder %s180, %s182
    %p186 = scmp.eq.s32.totalorder %s15, 0
    %p187 = por %p185, %p186
    %p188 = scmp.ne.s32.totalorder %s180, %s182
    %p189 = scmp.eq.s32.totalorder %s20, 1
    %p190 = por %p188, %p189
    %p191 = scmp.ne.s32.totalorder %s182, %s183
    %p192 = scmp.eq.s32.totalorder %s20, 0
    %p193 = por %p191, %p192
    %p194 = scmp.ne.s32.totalorder %s182, %s183
    %p195 = scmp.eq.s32.totalorder %s21, 1
    %p196 = por %p194, %p195
    %p198 = scmp.ne.s32.totalorder %s183, %s197
    %p199 = scmp.eq.s32.totalorder %s21, 0
    %p200 = por %p198, %p199
    %s202 = sadd.s32 %s201, 1
    %p205 = scmp.eq.s32.totalorder %s15, 1
    %p206 = scmp.ne.s32.totalorder %s201, %s203
    %p207 = scmp.eq.s32.totalorder %s15, 0
    %p208 = por %p206, %p207
    %p209 = scmp.ne.s32.totalorder %s201, %s203
    %p210 = scmp.eq.s32.totalorder %s20, 1
    %p211 = por %p209, %p210
    %p212 = scmp.ne.s32.totalorder %s203, %s204
    %p213 = scmp.eq.s32.totalorder %s20, 0
    %p214 = por %p212, %p213
    %p215 = scmp.ne.s32.totalorder %s203, %s204
    %p216 = scmp.eq.s32.totalorder %s21, 1
    %p217 = por %p215, %p216
    %p219 = scmp.ne.s32.totalorder %s204, %s218
    %p220 = scmp.eq.s32.totalorder %s21, 0
    %p221 = por %p219, %p220
    %s222 = ssub.s32 %s15, %s22
    %p223 = scmp.eq.s32.totalorder %s222, 0
    %s225 = sadd.s32 %s224, 1
    %s226 = scalar_select %p223, %s224, %s225
    %p229 = pneg %p223
    %p230 = scmp.eq.s32.totalorder %s15, 1
    %p231 = por %p229, %p230
    %p232 = scmp.ne.s32.totalorder %s224, %s227
    %p233 = scmp.eq.s32.totalorder %s15, 0
    %p234 = por %p232, %p233
    %p235 = scmp.ne.s32.totalorder %s224, %s227
    %p236 = scmp.eq.s32.totalorder %s20, 1
    %p237 = por %p235, %p236
    %p238 = scmp.ne.s32.totalorder %s227, %s228
    %p239 = scmp.eq.s32.totalorder %s20, 0
    %p240 = por %p238, %p239
    %p241 = scmp.ne.s32.totalorder %s227, %s228
    %p242 = scmp.eq.s32.totalorder %s21, 1
    %p243 = por %p241, %p242
    %p245 = scmp.ne.s32.totalorder %s228, %s244
    %p246 = scmp.eq.s32.totalorder %s21, 0
    %p247 = por %p245, %p246
    %p248 = scmp.le.s32.totalorder 1, %s15
    %p249 = scmp.lt.s32.totalorder %s15, 3
    %p250 = pnand %p248, %p249
    %p251 = pneg %p250
    // Predicated region
    $region9: #{coatnet_forward.1} parent=5 // pred_check
      _
    $region10: #{coatnet_forward.1} parent=5 // pred_check_branch
      %253 = sbr.rel (%p250) target = $region12
    $region11: #{coatnet_forward.1} parent=5 // pred_region
      %s254 = ssub.s32 %s15, 1
      // Predicated region
      $region13: #{coatnet_forward.1} parent=11 // pred_check
        %p255 = pneg %p36
      $region14: #{coatnet_forward.1} parent=11 // pred_check_branch
        %257 = sbr.rel (%p255) target = $region16
      $region15: #{coatnet_forward.1} parent=11 // pred_region
        _
      $region16: #{coatnet_forward.1} parent=11 // pred_fallthru
        _
      // Predicated region
      $region17: #{coatnet_forward.1} parent=11 // pred_check
        %p258 = pneg %p109
      $region18: #{coatnet_forward.1} parent=11 // pred_check_branch
        %260 = sbr.rel (%p258) target = $region20
      $region19: #{coatnet_forward.1} parent=11 // pred_region
        _
      $region20: #{coatnet_forward.1} parent=11 // pred_fallthru
        _
      // Predicated region
      $region21: #{coatnet_forward.1} parent=11 // pred_check
        %p261 = pneg %p130
      $region22: #{coatnet_forward.1} parent=11 // pred_check_branch
        %263 = sbr.rel (%p261) target = $region24
      $region23: #{coatnet_forward.1} parent=11 // pred_region
        _
      $region24: #{coatnet_forward.1} parent=11 // pred_fallthru
        _
      // Predicated region
      $region25: #{coatnet_forward.1} parent=11 // pred_check
        %p264 = pneg %p151
      $region26: #{coatnet_forward.1} parent=11 // pred_check_branch
        %266 = sbr.rel (%p264) target = $region28
      $region27: #{coatnet_forward.1} parent=11 // pred_region
        _
      $region28: #{coatnet_forward.1} parent=11 // pred_fallthru
        _
      // Predicated region
      $region29: #{coatnet_forward.1} parent=11 // pred_check
        %p267 = pneg %p172
      $region30: #{coatnet_forward.1} parent=11 // pred_check_branch
        %269 = sbr.rel (%p267) target = $region32
      $region31: #{coatnet_forward.1} parent=11 // pred_region
        _
      $region32: #{coatnet_forward.1} parent=11 // pred_fallthru
        _
      // Predicated region
      $region33: #{coatnet_forward.1} parent=11 // pred_check
        %p270 = pneg %p193
      $region34: #{coatnet_forward.1} parent=11 // pred_check_branch
        %272 = sbr.rel (%p270) target = $region36
      $region35: #{coatnet_forward.1} parent=11 // pred_region
        _
      $region36: #{coatnet_forward.1} parent=11 // pred_fallthru
        _
      // Predicated region
      $region37: #{coatnet_forward.1} parent=11 // pred_check
        %p273 = pneg %p214
      $region38: #{coatnet_forward.1} parent=11 // pred_check_branch
        %275 = sbr.rel (%p273) target = $region40
      $region39: #{coatnet_forward.1} parent=11 // pred_region
        _
      $region40: #{coatnet_forward.1} parent=11 // pred_fallthru
        _
    $region12: #{coatnet_forward.1} parent=5 // pred_fallthru
      _
    %p276 = scmp.lt.s32.totalorder %s15, 2
    // Predicated region
    $region41: #{coatnet_forward.1} parent=5 // pred_check
      %p277 = pneg %p276
    $region42: #{coatnet_forward.1} parent=5 // pred_check_branch
      %279 = sbr.rel (%p277) target = $region44
    $region43: #{coatnet_forward.1} parent=5 // pred_region
      // Predicated region
      $region45: #{coatnet_forward.1} parent=43 // pred_check
        %p280 = pneg %p56
      $region46: #{coatnet_forward.1} parent=43 // pred_check_branch
        %282 = sbr.rel (%p280) target = $region48
      $region47: #{coatnet_forward.1} parent=43 // pred_region
        %s283 = smul.u32 4, %s15
        %p284 = scmp.lt.s32.totalorder %s283, 7
        %s285 = scalar_select %p284, %s283, 7
        %s286 = smul.addr %s285, 8
        %s287 = scalar_lea.vmem %s1, %s286
        %s288 = smul.u32 4, %s15
      $region48: #{coatnet_forward.1} parent=43 // pred_fallthru
        _
      // Predicated region
      $region49: #{coatnet_forward.1} parent=43 // pred_check
        %p289 = pneg %p82
      $region50: #{coatnet_forward.1} parent=43 // pred_check_branch
        %291 = sbr.rel (%p289) target = $region52
      $region51: #{coatnet_forward.1} parent=43 // pred_region
        %s292 = smul.u32 4, %s15
        %p293 = scmp.lt.s32.totalorder %s292, 7
        %s294 = scalar_select %p293, %s292, 7
        %s295 = smul.addr %s294, 8
        %s296 = scalar_lea.vmem %s2, %s295
        %s297 = smul.u32 4, %s15
      $region52: #{coatnet_forward.1} parent=43 // pred_fallthru
        _
    $region44: #{coatnet_forward.1} parent=5 // pred_fallthru
      _
    %p298 = scmp.le.s32.totalorder 1, %s15
    %p299 = scmp.lt.s32.totalorder %s15, 3
    %p300 = pnand %p298, %p299
    %p301 = pneg %p300
    // Predicated region
    $region53: #{coatnet_forward.1} parent=5 // pred_check
      _
    $region54: #{coatnet_forward.1} parent=5 // pred_check_branch
      %303 = sbr.rel (%p300) target = $region56
    $region55: #{coatnet_forward.1} parent=5 // pred_region
      %s304 = ssub.s32 %s15, 1
      %p305 = pneg %p36
      %p306 = pneg %p33
      %s307 = smul.u32 4, %s20
      %p308 = scmp.lt.s32.totalorder %s307, 7
      %s309 = scalar_select %p308, %s307, 7
      %s310 = smul.addr %s309, 8
      %s311 = scalar_lea.vmem %s1, %s310
      %p312 = pneg %p62
      %p313 = pneg %p59
      %s314 = smul.u32 4, %s20
      %p315 = scmp.lt.s32.totalorder %s314, 7
      %s316 = scalar_select %p315, %s314, 7
      %s317 = smul.addr %s316, 8
      %s318 = scalar_lea.vmem %s2, %s317
      %p319 = pneg %p88
      %p320 = pneg %p85
      %p321 = pneg %p109
      %p322 = pneg %p106
      %p323 = pneg %p130
      %p324 = pneg %p127
      %p325 = pneg %p151
      %p326 = pneg %p148
      %p327 = pneg %p172
      %p328 = pneg %p169
      %p329 = pneg %p193
      %p330 = pneg %p190
      %p331 = pneg %p214
      %p332 = pneg %p211
      %p333 = pneg %p240
      %p334 = pneg %p237
      %p335 = scmp.lt.s32.totalorder %s20, 1
      %s336 = scalar_select %p335, %s20, 1
      %s337 = smul.addr %s336, 2
      %s338 = scalar_lea.vmem %s9, %s337
      %s339 = smul.u32 4, %s20
      %p340 = scmp.lt.s32.totalorder %s339, 7
      %s341 = scalar_select %p340, %s339, 7
      %s342 = smul.addr %s341, 8
      %s343 = scalar_lea.vmem %s1, %s342
      %s344 = smul.u32 4, %s20
      %s345 = smul.u32 4, %s20
      %p346 = scmp.lt.s32.totalorder %s345, 7
      %s347 = scalar_select %p346, %s345, 7
      %s348 = smul.addr %s347, 8
      %s349 = scalar_lea.vmem %s2, %s348
      %s350 = smul.u32 4, %s20
      %p351 = scmp.lt.s32.totalorder %s20, 1
      %s352 = scalar_select %p351, %s20, 1
      %s353 = smul.addr %s352, 2
      %s354 = scalar_lea.vmem %s9, %s353
      %v356 = vld [vmem:[%s343] sm:$0xff]
      %v357 = vld [vmem:[%s343 + $0x8] sm:$0xff]
      %v358 = vld [vmem:[%s343 + $0x10] sm:$0xff]
      %v359 = vld [vmem:[%s343 + $0x18] sm:$0xff]
      %v360 = vld [vmem:[%s0] sm:$0xff]
      %v361 = vld [vmem:[%s0 + $0x8] sm:$0xff]
      %v362 = vld [vmem:[%s0 + $0x10] sm:$0xff]
      %v363 = vld [vmem:[%s0 + $0x18] sm:$0xff]
      %v364 = vld [vmem:[%s0 + $0x20] sm:$0xff]
      %v365 = vld [vmem:[%s0 + $0x28] sm:$0xff]
      %v366 = vld [vmem:[%s0 + $0x30] sm:$0xff]
      %v367 = vld [vmem:[%s0 + $0x38] sm:$0xff]
      %v368 = vld [vmem:[%s0 + $0x40] sm:$0xf]
      %v369 = vld [vmem:[%s0 + $0x48] sm:$0xf]
      %vm370 = vcmask 293888
      %v372 = vsel %vm370, %v356, 0
      %v375 = vsel %vm370, %v357, 0
      %v378 = vsel %vm370, %v358, 0
      %v381 = vsel %vm370, %v359, 0
      %vm383 = vcmask 1043456
      %v385 = vsel %vm383, %v368, 0
      %v388 = vsel %vm383, %v369, 0
      %390 = vmatprep.subr.mxu0 0.0
      %391 = vmatpush1.msra.mxu0 0.0
      %392 = vmatprep.subr.mxu0 0.0
      %393 = vmatpush1.msra.mxu0 0.0
      %394 = vmatprep.subr.mxu0 0.0
      %395 = vmatpush1.msra.mxu0 0.0
      %396 = vmatprep.subr.mxu0 0.0
      %397 = vmatpush1.msra.mxu0 0.0
      %398 = vmatprep.subr.mxu0 0.0
      %399 = vmatpush1.msra.mxu0 0.0
      %400 = vmatprep.subr.mxu0 0.0
      %401 = vmatpush1.msra.mxu0 0.0
      %402 = vmatprep.subr.mxu0 0.0
      %403 = vmatpush1.msra.mxu0 0.0
      %404 = vmatprep.subr.mxu0 0.0
      %405 = vmatpush1.msra.mxu0 0.0
      %406 = vmatprep.subr.mxu0 0.0
      %407 = vmatpush1.msra.mxu0 0.0
      %408 = vmatprep.subr.mxu0 0.0
      %409 = vmatpush1.msra.mxu0 0.0
      %410 = vmatprep.subr.mxu0 0.0
      %411 = vmatpush1.msra.mxu0 0.0
      %412 = vmatprep.subr.mxu0 %v388
      %413 = vmatpush1.msra.mxu0 %v385
      %414 = vmatprep.subr.mxu0 %v367
      %415 = vmatpush1.msra.mxu0 %v366
      %416 = vmatprep.subr.mxu0 %v365
      %417 = vmatpush1.msra.mxu0 %v364
      %418 = vmatprep.subr.mxu0 %v363
      %419 = vmatpush1.msra.mxu0 %v362
      %420 = vmatprep.subr.mxu0 %v361
      %421 = vmatpush1.msra.mxu0 %v360
      %422 = vmatprep.subr.mxu0 0.0
      %423 = vmatpush2.msra.mxu0 0.0
      %424 = vmatprep.subr.mxu0 0.0
      %425 = vmatpush2.msra.mxu0 0.0
      %426 = vmatprep.subr.mxu0 0.0
      %427 = vmatpush2.msra.mxu0 0.0
      %428 = vmatprep.subr.mxu0 0.0
      %429 = vmatpush2.msra.mxu0 0.0
      %430 = vmatprep.subr.mxu0 0.0
      %431 = vmatpush2.msra.mxu0 0.0
      %432 = vmatprep.subr.mxu0 0.0
      %433 = vmatpush2.msra.mxu0 0.0
      %434 = vmatprep.subr.mxu0 0.0
      %435 = vmatpush2.msra.mxu0 0.0
      %436 = vmatprep.subr.mxu0 0.0
      %437 = vmatpush2.msra.mxu0 0.0
      %438 = vmatprep.subr.mxu0 0.0
      %439 = vmatpush2.msra.mxu0 0.0
      %440 = vmatprep.subr.mxu0 0.0
      %441 = vmatpush2.msra.mxu0 0.0
      %442 = vmatprep.subr.mxu0 0.0
      %443 = vmatpush2.msra.mxu0 0.0
      %444 = vmatprep.subr.mxu0 0.0
      %445 = vmatpush2.msra.mxu0 0.0
      %446 = vmatprep.subr.mxu0 0.0
      %447 = vmatpush2.msra.mxu0 0.0
      %448 = vmatprep.subr.mxu0 0.0
      %449 = vmatpush2.msra.mxu0 0.0
      %450 = vmatprep.subr.mxu0 0.0
      %451 = vmatpush2.msra.mxu0 0.0
      %452 = vmatprep.subr.mxu0 0.0
      %453 = vmatpush2.msra.mxu0 0.0
      %454 = vmatprep.mubr.f32.mxu0 0.0
      %455 = vmatmul.mubr.f32.gmra.mxu0 %v372
      %v456 = vpop.f32.mrf.mxu0
      %v457 = vadd.f32 0.0, %v456
      %v458 = vpop.f32.mrf.mxu0
      %v459 = vadd.f32 0.0, %v458
      %460 = vmatprep.mubr.f32.mxu0 0.0
      %461 = vmatmul.mubr.f32.gmra.mxu0 %v375
      %v462 = vpop.f32.mrf.mxu0
      %v463 = vadd.f32 0.0, %v462
      %v464 = vpop.f32.mrf.mxu0
      %v465 = vadd.f32 0.0, %v464
      %466 = vmatprep.mubr.f32.mxu0 0.0
      %467 = vmatmul.mubr.f32.gmra.mxu0 %v378
      %v468 = vpop.f32.mrf.mxu0
      %v469 = vadd.f32 0.0, %v468
      %v470 = vpop.f32.mrf.mxu0
      %v471 = vadd.f32 0.0, %v470
      %472 = vmatprep.mubr.f32.mxu0 0.0
      %473 = vmatmul.mubr.f32.gmra.mxu0 %v381
      %v474 = vpop.f32.mrf.mxu0
      %v475 = vadd.f32 0.0, %v474
      %v476 = vpop.f32.mrf.mxu0
      %v477 = vadd.f32 0.0, %v476
      %478 = vdwg.mxu0
      %483 = vrot.lane.b32.xlu0 %v457, 64
      %v484 = vpop.permute.xlu0 %483
      %485 = vrot.lane.b32.xlu0 %v463, 64
      %v486 = vpop.permute.xlu0 %485
      %487 = vrot.lane.b32.xlu0 %v469, 64
      %v488 = vpop.permute.xlu0 %487
      %489 = vrot.lane.b32.xlu0 %v475, 64
      %v490 = vpop.permute.xlu0 %489
      %v495 = vmax.f32 %v457, %v484
      %v496 = vmax.f32 %v463, %v486
      %v497 = vmax.f32 %v469, %v488
      %v498 = vmax.f32 %v475, %v490
      %v499 = vmax.f32 %v495, %v459
      %v500 = vmax.f32 %v496, %v465
      %v501 = vmax.f32 %v497, %v471
      %v502 = vmax.f32 %v498, %v477
      %507 = vrot.lane.b32.xlu0 %v459, 64
      %v508 = vpop.permute.xlu0 %507
      %509 = vrot.lane.b32.xlu0 %v465, 64
      %v510 = vpop.permute.xlu0 %509
      %511 = vrot.lane.b32.xlu0 %v471, 64
      %v512 = vpop.permute.xlu0 %511
      %513 = vrot.lane.b32.xlu0 %v477, 64
      %v514 = vpop.permute.xlu0 %513
      %v519 = vmax.f32 %v499, %v508
      %v520 = vmax.f32 %v500, %v510
      %v521 = vmax.f32 %v501, %v512
      %v522 = vmax.f32 %v502, %v514
      %v523 = vld [vmem:[%s349] sm:$0xff]
      %v524 = vld [vmem:[%s349 + $0x8] sm:$0xff]
      %v525 = vld [vmem:[%s349 + $0x10] sm:$0xff]
      %v526 = vld [vmem:[%s349 + $0x18] sm:$0xff]
      %528 = vset.pattern.permute.xlu0 0
      %529 = vperm.xlu0 %528, %v523
      %v530 = vpop.permute.xlu0 %529
      %533 = vset.pattern.permute.xlu0 0
      %534 = vperm.xlu0 %533, %v524
      %v535 = vpop.permute.xlu0 %534
      %538 = vset.pattern.permute.xlu0 0
      %539 = vperm.xlu0 %538, %v525
      %v540 = vpop.permute.xlu0 %539
      %543 = vset.pattern.permute.xlu0 0
      %544 = vperm.xlu0 %543, %v526
      %v545 = vpop.permute.xlu0 %544
      %v547 = vadd.f32 %v519, %v530
      %v548 = vadd.f32 %v520, %v535
      %v549 = vadd.f32 %v521, %v540
      %v550 = vadd.f32 %v522, %v545
      %v551 = vmax.f32 %v547, 0.0
      %v552 = vmax.f32 %v548, 0.0
      %v553 = vmax.f32 %v549, 0.0
      %v554 = vmax.f32 %v550, 0.0
      %s555 = scalar_lea.vmem %s0, 80
      %v556 = vld [vmem:[%s555] sm:$0xff]
      %v557 = vld [vmem:[%s555 + $0x8] sm:$0xff]
      %v558 = vld [vmem:[%s555 + $0x10] sm:$0xff]
      %v559 = vld [vmem:[%s555 + $0x18] sm:$0xff]
      %v560 = vld [vmem:[%s555 + $0x20] sm:$0xff]
      %v561 = vld [vmem:[%s555 + $0x28] sm:$0xff]
      %v562 = vld [vmem:[%s555 + $0x30] sm:$0xff]
      %v563 = vld [vmem:[%s555 + $0x38] sm:$0xff]
      %v564 = vld [vmem:[%s555 + $0x40] sm:$0xf]
      %v565 = vld [vmem:[%s555 + $0x48] sm:$0xf]
      %v567 = vsel %vm383, %v564, 0
      %v570 = vsel %vm383, %v565, 0
      %572 = vmatprep.subr.mxu0 0.0
      %573 = vmatpush1.msra.mxu0 0.0
      %574 = vmatprep.subr.mxu0 0.0
      %575 = vmatpush1.msra.mxu0 0.0
      %576 = vmatprep.subr.mxu0 0.0
      %577 = vmatpush1.msra.mxu0 0.0
      %578 = vmatprep.subr.mxu0 0.0
      %579 = vmatpush1.msra.mxu0 0.0
      %580 = vmatprep.subr.mxu0 0.0
      %581 = vmatpush1.msra.mxu0 0.0
      %582 = vmatprep.subr.mxu0 0.0
      %583 = vmatpush1.msra.mxu0 0.0
      %584 = vmatprep.subr.mxu0 0.0
      %585 = vmatpush1.msra.mxu0 0.0
      %586 = vmatprep.subr.mxu0 0.0
      %587 = vmatpush1.msra.mxu0 0.0
      %588 = vmatprep.subr.mxu0 0.0
      %589 = vmatpush1.msra.mxu0 0.0
      %590 = vmatprep.subr.mxu0 0.0
      %591 = vmatpush1.msra.mxu0 0.0
      %592 = vmatprep.subr.mxu0 0.0
      %593 = vmatpush1.msra.mxu0 0.0
      %594 = vmatprep.subr.mxu0 %v570
      %595 = vmatpush1.msra.mxu0 %v567
      %596 = vmatprep.subr.mxu0 %v563
      %597 = vmatpush1.msra.mxu0 %v562
      %598 = vmatprep.subr.mxu0 %v561
      %599 = vmatpush1.msra.mxu0 %v560
      %600 = vmatprep.subr.mxu0 %v559
      %601 = vmatpush1.msra.mxu0 %v558
      %602 = vmatprep.subr.mxu0 %v557
      %603 = vmatpush1.msra.mxu0 %v556
      %604 = vmatprep.subr.mxu0 0.0
      %605 = vmatpush2.msra.mxu0 0.0
      %606 = vmatprep.subr.mxu0 0.0
      %607 = vmatpush2.msra.mxu0 0.0
      %608 = vmatprep.subr.mxu0 0.0
      %609 = vmatpush2.msra.mxu0 0.0
      %610 = vmatprep.subr.mxu0 0.0
      %611 = vmatpush2.msra.mxu0 0.0
      %612 = vmatprep.subr.mxu0 0.0
      %613 = vmatpush2.msra.mxu0 0.0
      %614 = vmatprep.subr.mxu0 0.0
      %615 = vmatpush2.msra.mxu0 0.0
      %616 = vmatprep.subr.mxu0 0.0
      %617 = vmatpush2.msra.mxu0 0.0
      %618 = vmatprep.subr.mxu0 0.0
      %619 = vmatpush2.msra.mxu0 0.0
      %620 = vmatprep.subr.mxu0 0.0
      %621 = vmatpush2.msra.mxu0 0.0
      %622 = vmatprep.subr.mxu0 0.0
      %623 = vmatpush2.msra.mxu0 0.0
      %624 = vmatprep.subr.mxu0 0.0
      %625 = vmatpush2.msra.mxu0 0.0
      %626 = vmatprep.subr.mxu0 0.0
      %627 = vmatpush2.msra.mxu0 0.0
      %628 = vmatprep.subr.mxu0 0.0
      %629 = vmatpush2.msra.mxu0 0.0
      %630 = vmatprep.subr.mxu0 0.0
      %631 = vmatpush2.msra.mxu0 0.0
      %632 = vmatprep.subr.mxu0 0.0
      %633 = vmatpush2.msra.mxu0 0.0
      %634 = vmatprep.subr.mxu0 0.0
      %635 = vmatpush2.msra.mxu0 0.0
      %636 = vmatprep.mubr.f32.mxu0 0.0
      %637 = vmatmul.mubr.f32.gmra.mxu0 %v372
      %v638 = vpop.f32.mrf.mxu0
      %v639 = vadd.f32 0.0, %v638
      %v640 = vpop.f32.mrf.mxu0
      %v641 = vadd.f32 0.0, %v640
      %642 = vmatprep.mubr.f32.mxu0 0.0
      %643 = vmatmul.mubr.f32.gmra.mxu0 %v375
      %v644 = vpop.f32.mrf.mxu0
      %v645 = vadd.f32 0.0, %v644
      %v646 = vpop.f32.mrf.mxu0
      %v647 = vadd.f32 0.0, %v646
      %648 = vmatprep.mubr.f32.mxu0 0.0
      %649 = vmatmul.mubr.f32.gmra.mxu0 %v378
      %v650 = vpop.f32.mrf.mxu0
      %v651 = vadd.f32 0.0, %v650
      %v652 = vpop.f32.mrf.mxu0
      %v653 = vadd.f32 0.0, %v652
      %654 = vmatprep.mubr.f32.mxu0 0.0
      %655 = vmatmul.mubr.f32.gmra.mxu0 %v381
      %v656 = vpop.f32.mrf.mxu0
      %v657 = vadd.f32 0.0, %v656
      %v658 = vpop.f32.mrf.mxu0
      %v659 = vadd.f32 0.0, %v658
      %660 = vdwg.mxu0
      %665 = vrot.lane.b32.xlu0 %v639, 64
      %v666 = vpop.permute.xlu0 %665
      %667 = vrot.lane.b32.xlu0 %v645, 64
      %v668 = vpop.permute.xlu0 %667
      %669 = vrot.lane.b32.xlu0 %v651, 64
      %v670 = vpop.permute.xlu0 %669
      %671 = vrot.lane.b32.xlu0 %v657, 64
      %v672 = vpop.permute.xlu0 %671
      %v677 = vmax.f32 %v639, %v666
      %v678 = vmax.f32 %v645, %v668
      %v679 = vmax.f32 %v651, %v670
      %v680 = vmax.f32 %v657, %v672
      %v681 = vmax.f32 %v677, %v641
      %v682 = vmax.f32 %v678, %v647
      %v683 = vmax.f32 %v679, %v653
      %v684 = vmax.f32 %v680, %v659
      %689 = vrot.lane.b32.xlu0 %v641, 64
      %v690 = vpop.permute.xlu0 %689
      %691 = vrot.lane.b32.xlu0 %v647, 64
      %v692 = vpop.permute.xlu0 %691
      %693 = vrot.lane.b32.xlu0 %v653, 64
      %v694 = vpop.permute.xlu0 %693
      %695 = vrot.lane.b32.xlu0 %v659, 64
      %v696 = vpop.permute.xlu0 %695
      %v701 = vmax.f32 %v681, %v690
      %v702 = vmax.f32 %v682, %v692
      %v703 = vmax.f32 %v683, %v694
      %v704 = vmax.f32 %v684, %v696
      %v705 = vadd.f32 %v701, %v530
      %v706 = vadd.f32 %v702, %v535
      %v707 = vadd.f32 %v703, %v540
      %v708 = vadd.f32 %v704, %v545
      %v709 = vmax.f32 %v705, 0.0
      %v710 = vmax.f32 %v706, 0.0
      %v711 = vmax.f32 %v707, 0.0
      %v712 = vmax.f32 %v708, 0.0
      %v713 = vld [vmem:[%s3] sm:$0xf]
      %v714 = vld [vmem:[%s3 + $0x4] sm:$0xf]
      %v715 = vld [vmem:[%s3 + $0x8] sm:$0xf]
      %v716 = vld [vmem:[%s3 + $0xc] sm:$0xf]
      %v717 = vld [vmem:[%s3 + $0x10] sm:$0xf]
      %v718 = vld [vmem:[%s3 + $0x14] sm:$0xf]
      %v719 = vld [vmem:[%s3 + $0x18] sm:$0xf]
      %v720 = vld [vmem:[%s3 + $0x1c] sm:$0xf]
      %v721 = vld [vmem:[%s5] sm:$0xff]
      %v722 = vld [vmem:[%s5 + $0x8] sm:$0x1]
      %v723 = vpack.c.bf16 %v552, %v551
      %v724 = vpack.c.bf16 %v554, %v553
      %v725 = vpack.c.bf16 %v710, %v709
      %v726 = vpack.c.bf16 %v712, %v711
      %v727 = vld [vmem:[%s4] sm:$0xf]
      %v728 = vld [vmem:[%s4 + $0x4] sm:$0xf]
      %v729 = vld [vmem:[%s4 + $0x8] sm:$0xf]
      %v730 = vld [vmem:[%s4 + $0xc] sm:$0xf]
      %v731 = vld [vmem:[%s4 + $0x10] sm:$0xf]
      %v732 = vld [vmem:[%s4 + $0x14] sm:$0xf]
      %v733 = vld [vmem:[%s4 + $0x18] sm:$0xf]
      %v734 = vld [vmem:[%s4 + $0x1c] sm:$0xf]
      %v735 = vlaneseq
      %v736 = vshrl.u32 %v735, 7
      %v737 = vsub.s32 0, %v736
      %v738 = vrot.slane %v721, %v737
      %v747 = vunpack.c.l.b16 %v727
      %v748 = vunpack.c.l.b16 %v728
      %v749 = vunpack.c.l.b16 %v729
      %v750 = vunpack.c.l.b16 %v730
      %v751 = vunpack.c.l.b16 %v731
      %v752 = vunpack.c.l.b16 %v732
      %v753 = vunpack.c.l.b16 %v733
      %v754 = vunpack.c.l.b16 %v734
      %v755 = vpack.c.b16 %v748, %v747
      %v756 = vpack.c.b16 %v750, %v749
      %v757 = vpack.c.b16 %v752, %v751
      %v758 = vpack.c.b16 %v754, %v753
      %vm763 = vcmask 523264
      %v765 = vsel %vm763, %v723, 0
      %v768 = vsel %vm763, %v724, 0
      %v771 = vsel %vm763, %v725, 0
      %v774 = vsel %vm763, %v726, 0
      %776 = vmatprep.subr.bf16.mxu0 0
      %777 = vmatpush1.bf16.msra.mxu0 0
      %778 = vmatprep.subr.bf16.mxu0 0
      %779 = vmatpush1.bf16.msra.mxu0 0
      %780 = vmatprep.subr.bf16.mxu0 0
      %781 = vmatpush1.bf16.msra.mxu0 0
      %782 = vmatprep.subr.bf16.mxu0 0
      %783 = vmatpush1.bf16.msra.mxu0 0
      %784 = vmatprep.subr.bf16.mxu0 0
      %785 = vmatpush1.bf16.msra.mxu0 %v758
      %786 = vmatprep.subr.bf16.mxu0 0
      %787 = vmatpush1.bf16.msra.mxu0 %v757
      %788 = vmatprep.subr.bf16.mxu0 0
      %789 = vmatpush1.bf16.msra.mxu0 %v756
      %790 = vmatprep.subr.bf16.mxu0 0
      %791 = vmatpush1.bf16.msra.mxu0 %v755
      %792 = vmatprep.subr.bf16.mxu0 0
      %793 = vmatpush2.bf16.msra.mxu0 0
      %794 = vmatprep.subr.bf16.mxu0 0
      %795 = vmatpush2.bf16.msra.mxu0 0
      %796 = vmatprep.subr.bf16.mxu0 0
      %797 = vmatpush2.bf16.msra.mxu0 0
      %798 = vmatprep.subr.bf16.mxu0 0
      %799 = vmatpush2.bf16.msra.mxu0 0
      %800 = vmatprep.subr.bf16.mxu0 0
      %801 = vmatpush2.bf16.msra.mxu0 0
      %802 = vmatprep.subr.bf16.mxu0 0
      %803 = vmatpush2.bf16.msra.mxu0 0
      %804 = vmatprep.subr.bf16.mxu0 0
      %805 = vmatpush2.bf16.msra.mxu0 0
      %806 = vmatprep.subr.bf16.mxu0 0
      %807 = vmatpush2.bf16.msra.mxu0 0
      %808 = vmatprep.mubr.bf16.mxu0 0
      %809 = vmatmul.mubr.bf16.gmra.mxu0 %v765
      %v810 = vpop.f32.mrf.mxu0
      %v811 = vadd.f32 %v738, %v810
      %v812 = vpop.f32.mrf.mxu0
      %v813 = vpop.f32.mrf.mxu0
      %v814 = vadd.f32 %v738, %v813
      %v815 = vpop.f32.mrf.mxu0
      %816 = vmatprep.mubr.bf16.mxu0 0
      %817 = vmatmul.mubr.bf16.gmra.mxu0 %v768
      %v818 = vpop.f32.mrf.mxu0
      %v819 = vadd.f32 %v738, %v818
      %v820 = vpop.f32.mrf.mxu0
      %v821 = vpop.f32.mrf.mxu0
      %v822 = vadd.f32 %v738, %v821
      %v823 = vpop.f32.mrf.mxu0
      %824 = vmatprep.mubr.bf16.mxu0 0
      %825 = vmatmul.mubr.bf16.gmra.mxu0 %v771
      %v826 = vpop.f32.mrf.mxu0
      %v827 = vadd.f32 %v738, %v826
      %v828 = vpop.f32.mrf.mxu0
      %v829 = vpop.f32.mrf.mxu0
      %v830 = vadd.f32 %v738, %v829
      %v831 = vpop.f32.mrf.mxu0
      %832 = vmatprep.mubr.bf16.mxu0 0
      %833 = vmatmul.mubr.bf16.gmra.mxu0 %v774
      %v834 = vpop.f32.mrf.mxu0
      %v835 = vadd.f32 %v738, %v834
      %v836 = vpop.f32.mrf.mxu0
      %v837 = vpop.f32.mrf.mxu0
      %v838 = vadd.f32 %v738, %v837
      %v839 = vpop.f32.mrf.mxu0
      %840 = vdwg.mxu0
      %s841 = scalar_lea.vmem %s4, 32
      %v842 = vld [vmem:[%s841] sm:$0xf]
      %v843 = vld [vmem:[%s841 + $0x4] sm:$0xf]
      %v844 = vld [vmem:[%s841 + $0x8] sm:$0xf]
      %v845 = vld [vmem:[%s841 + $0xc] sm:$0xf]
      %v846 = vld [vmem:[%s841 + $0x10] sm:$0xf]
      %v847 = vld [vmem:[%s841 + $0x14] sm:$0xf]
      %v848 = vld [vmem:[%s841 + $0x18] sm:$0xf]
      %v849 = vld [vmem:[%s841 + $0x1c] sm:$0xf]
      %v850 = vlaneseq
      %v851 = vshrl.u32 %v850, 7
      %v852 = vsub.s32 1, %v851
      %v853 = vrot.slane %v721, %v852
      %v862 = vunpack.c.l.b16 %v842
      %v863 = vunpack.c.l.b16 %v843
      %v864 = vunpack.c.l.b16 %v844
      %v865 = vunpack.c.l.b16 %v845
      %v866 = vunpack.c.l.b16 %v846
      %v867 = vunpack.c.l.b16 %v847
      %v868 = vunpack.c.l.b16 %v848
      %v869 = vunpack.c.l.b16 %v849
      %v870 = vpack.c.b16 %v863, %v862
      %v871 = vpack.c.b16 %v865, %v864
      %v872 = vpack.c.b16 %v867, %v866
      %v873 = vpack.c.b16 %v869, %v868
      %878 = vmatprep.subr.bf16.mxu0 0
      %879 = vmatpush1.bf16.msra.mxu0 0
      %880 = vmatprep.subr.bf16.mxu0 0
      %881 = vmatpush1.bf16.msra.mxu0 0
      %882 = vmatprep.subr.bf16.mxu0 0
      %883 = vmatpush1.bf16.msra.mxu0 0
      %884 = vmatprep.subr.bf16.mxu0 0
      %885 = vmatpush1.bf16.msra.mxu0 0
      %886 = vmatprep.subr.bf16.mxu0 0
      %887 = vmatpush1.bf16.msra.mxu0 %v873
      %888 = vmatprep.subr.bf16.mxu0 0
      %889 = vmatpush1.bf16.msra.mxu0 %v872
      %890 = vmatprep.subr.bf16.mxu0 0
      %891 = vmatpush1.bf16.msra.mxu0 %v871
      %892 = vmatprep.subr.bf16.mxu0 0
      %893 = vmatpush1.bf16.msra.mxu0 %v870
      %894 = vmatprep.subr.bf16.mxu0 0
      %895 = vmatpush2.bf16.msra.mxu0 0
      %896 = vmatprep.subr.bf16.mxu0 0
      %897 = vmatpush2.bf16.msra.mxu0 0
      %898 = vmatprep.subr.bf16.mxu0 0
      %899 = vmatpush2.bf16.msra.mxu0 0
      %900 = vmatprep.subr.bf16.mxu0 0
      %901 = vmatpush2.bf16.msra.mxu0 0
      %902 = vmatprep.subr.bf16.mxu0 0
      %903 = vmatpush2.bf16.msra.mxu0 0
      %904 = vmatprep.subr.bf16.mxu0 0
      %905 = vmatpush2.bf16.msra.mxu0 0
      %906 = vmatprep.subr.bf16.mxu0 0
      %907 = vmatpush2.bf16.msra.mxu0 0
      %908 = vmatprep.subr.bf16.mxu0 0
      %909 = vmatpush2.bf16.msra.mxu0 0
      %910 = vmatprep.mubr.bf16.mxu0 0
      %911 = vmatmul.mubr.bf16.gmra.mxu0 %v765
      %v912 = vpop.f32.mrf.mxu0
      %v913 = vadd.f32 %v853, %v912
      %v914 = vpop.f32.mrf.mxu0
      %v915 = vpop.f32.mrf.mxu0
      %v916 = vadd.f32 %v853, %v915
      %v917 = vpop.f32.mrf.mxu0
      %918 = vmatprep.mubr.bf16.mxu0 0
      %919 = vmatmul.mubr.bf16.gmra.mxu0 %v768
      %v920 = vpop.f32.mrf.mxu0
      %v921 = vadd.f32 %v853, %v920
      %v922 = vpop.f32.mrf.mxu0
      %v923 = vpop.f32.mrf.mxu0
      %v924 = vadd.f32 %v853, %v923
      %v925 = vpop.f32.mrf.mxu0
      %926 = vmatprep.mubr.bf16.mxu0 0
      %927 = vmatmul.mubr.bf16.gmra.mxu0 %v771
      %v928 = vpop.f32.mrf.mxu0
      %v929 = vadd.f32 %v853, %v928
      %v930 = vpop.f32.mrf.mxu0
      %v931 = vpop.f32.mrf.mxu0
      %v932 = vadd.f32 %v853, %v931
      %v933 = vpop.f32.mrf.mxu0
      %934 = vmatprep.mubr.bf16.mxu0 0
      %935 = vmatmul.mubr.bf16.gmra.mxu0 %v774
      %v936 = vpop.f32.mrf.mxu0
      %v937 = vadd.f32 %v853, %v936
      %v938 = vpop.f32.mrf.mxu0
      %v939 = vpop.f32.mrf.mxu0
      %v940 = vadd.f32 %v853, %v939
      %v941 = vpop.f32.mrf.mxu0
      %942 = vdwg.mxu0
      %s943 = scalar_lea.vmem %s4, 64
      %v944 = vld [vmem:[%s943] sm:$0xf]
      %v945 = vld [vmem:[%s943 + $0x4] sm:$0xf]
      %v946 = vld [vmem:[%s943 + $0x8] sm:$0xf]
      %v947 = vld [vmem:[%s943 + $0xc] sm:$0xf]
      %v948 = vld [vmem:[%s943 + $0x10] sm:$0xf]
      %v949 = vld [vmem:[%s943 + $0x14] sm:$0xf]
      %v950 = vld [vmem:[%s943 + $0x18] sm:$0xf]
      %v951 = vld [vmem:[%s943 + $0x1c] sm:$0xf]
      %v952 = vlaneseq
      %v953 = vshrl.u32 %v952, 7
      %v954 = vsub.s32 2, %v953
      %v955 = vrot.slane %v721, %v954
      %v964 = vunpack.c.l.b16 %v944
      %v965 = vunpack.c.l.b16 %v945
      %v966 = vunpack.c.l.b16 %v946
      %v967 = vunpack.c.l.b16 %v947
      %v968 = vunpack.c.l.b16 %v948
      %v969 = vunpack.c.l.b16 %v949
      %v970 = vunpack.c.l.b16 %v950
      %v971 = vunpack.c.l.b16 %v951
      %v972 = vpack.c.b16 %v965, %v964
      %v973 = vpack.c.b16 %v967, %v966
      %v974 = vpack.c.b16 %v969, %v968
      %v975 = vpack.c.b16 %v971, %v970
      %980 = vmatprep.subr.bf16.mxu0 0
      %981 = vmatpush1.bf16.msra.mxu0 0
      %982 = vmatprep.subr.bf16.mxu0 0
      %983 = vmatpush1.bf16.msra.mxu0 0
      %984 = vmatprep.subr.bf16.mxu0 0
      %985 = vmatpush1.bf16.msra.mxu0 0
      %986 = vmatprep.subr.bf16.mxu0 0
      %987 = vmatpush1.bf16.msra.mxu0 0
      %988 = vmatprep.subr.bf16.mxu0 0
      %989 = vmatpush1.bf16.msra.mxu0 %v975
      %990 = vmatprep.subr.bf16.mxu0 0
      %991 = vmatpush1.bf16.msra.mxu0 %v974
      %992 = vmatprep.subr.bf16.mxu0 0
      %993 = vmatpush1.bf16.msra.mxu0 %v973
      %994 = vmatprep.subr.bf16.mxu0 0
      %995 = vmatpush1.bf16.msra.mxu0 %v972
      %996 = vmatprep.subr.bf16.mxu0 0
      %997 = vmatpush2.bf16.msra.mxu0 0
      %998 = vmatprep.subr.bf16.mxu0 0
      %999 = vmatpush2.bf16.msra.mxu0 0
      %1000 = vmatprep.subr.bf16.mxu0 0
      %1001 = vmatpush2.bf16.msra.mxu0 0
      %1002 = vmatprep.subr.bf16.mxu0 0
      %1003 = vmatpush2.bf16.msra.mxu0 0
      %1004 = vmatprep.subr.bf16.mxu0 0
      %1005 = vmatpush2.bf16.msra.mxu0 0
      %1006 = vmatprep.subr.bf16.mxu0 0
      %1007 = vmatpush2.bf16.msra.mxu0 0
      %1008 = vmatprep.subr.bf16.mxu0 0
      %1009 = vmatpush2.bf16.msra.mxu0 0
      %1010 = vmatprep.subr.bf16.mxu0 0
      %1011 = vmatpush2.bf16.msra.mxu0 0
      %1012 = vmatprep.mubr.bf16.mxu0 0
      %1013 = vmatmul.mubr.bf16.gmra.mxu0 %v765
      %v1014 = vpop.f32.mrf.mxu0
      %v1015 = vadd.f32 %v955, %v1014
      %v1016 = vpop.f32.mrf.mxu0
      %v1017 = vpop.f32.mrf.mxu0
      %v1018 = vadd.f32 %v955, %v1017
      %v1019 = vpop.f32.mrf.mxu0
      %1020 = vmatprep.mubr.bf16.mxu0 0
      %1021 = vmatmul.mubr.bf16.gmra.mxu0 %v768
      %v1022 = vpop.f32.mrf.mxu0
      %v1023 = vadd.f32 %v955, %v1022
      %v1024 = vpop.f32.mrf.mxu0
      %v1025 = vpop.f32.mrf.mxu0
      %v1026 = vadd.f32 %v955, %v1025
      %v1027 = vpop.f32.mrf.mxu0
      %1028 = vmatprep.mubr.bf16.mxu0 0
      %1029 = vmatmul.mubr.bf16.gmra.mxu0 %v771
      %v1030 = vpop.f32.mrf.mxu0
      %v1031 = vadd.f32 %v955, %v1030
      %v1032 = vpop.f32.mrf.mxu0
      %v1033 = vpop.f32.mrf.mxu0
      %v1034 = vadd.f32 %v955, %v1033
      %v1035 = vpop.f32.mrf.mxu0
      %1036 = vmatprep.mubr.bf16.mxu0 0
      %1037 = vmatmul.mubr.bf16.gmra.mxu0 %v774
      %v1038 = vpop.f32.mrf.mxu0
      %v1039 = vadd.f32 %v955, %v1038
      %v1040 = vpop.f32.mrf.mxu0
      %v1041 = vpop.f32.mrf.mxu0
      %v1042 = vadd.f32 %v955, %v1041
      %v1043 = vpop.f32.mrf.mxu0
      %1044 = vdwg.mxu0
      %v1045 = vmul.f32 %v811, %v913
      %v1046 = vmul.f32 %v814, %v916
      %v1047 = vmul.f32 %v819, %v921
      %v1048 = vmul.f32 %v822, %v924
      %v1049 = vpack.c.bf16 %v1046, %v1045
      %v1050 = vpack.c.bf16 %v1048, %v1047
      %v1059 = vunpack.c.l.b16 %v713
      %v1060 = vunpack.c.l.b16 %v714
      %v1061 = vunpack.c.l.b16 %v715
      %v1062 = vunpack.c.l.b16 %v716
      %v1063 = vunpack.c.l.b16 %v717
      %v1064 = vunpack.c.l.b16 %v718
      %v1065 = vunpack.c.l.b16 %v719
      %v1066 = vunpack.c.l.b16 %v720
      %v1067 = vpack.c.b16 %v1060, %v1059
      %v1068 = vpack.c.b16 %v1062, %v1061
      %v1069 = vpack.c.b16 %v1064, %v1063
      %v1070 = vpack.c.b16 %v1066, %v1065
      %v1076 = vsel %vm763, %v1049, 0
      %v1079 = vsel %vm763, %v1050, 0
      %1081 = vmatprep.subr.bf16.mxu0 0
      %1082 = vmatpush1.bf16.msra.mxu0 0
      %1083 = vmatprep.subr.bf16.mxu0 0
      %1084 = vmatpush1.bf16.msra.mxu0 0
      %1085 = vmatprep.subr.bf16.mxu0 0
      %1086 = vmatpush1.bf16.msra.mxu0 0
      %1087 = vmatprep.subr.bf16.mxu0 0
      %1088 = vmatpush1.bf16.msra.mxu0 0
      %1089 = vmatprep.subr.bf16.mxu0 0
      %1090 = vmatpush1.bf16.msra.mxu0 %v1070
      %1091 = vmatprep.subr.bf16.mxu0 0
      %1092 = vmatpush1.bf16.msra.mxu0 %v1069
      %1093 = vmatprep.subr.bf16.mxu0 0
      %1094 = vmatpush1.bf16.msra.mxu0 %v1068
      %1095 = vmatprep.subr.bf16.mxu0 0
      %1096 = vmatpush1.bf16.msra.mxu0 %v1067
      %1097 = vmatprep.subr.bf16.mxu0 0
      %1098 = vmatpush2.bf16.msra.mxu0 0
      %1099 = vmatprep.subr.bf16.mxu0 0
      %1100 = vmatpush2.bf16.msra.mxu0 0
      %1101 = vmatprep.subr.bf16.mxu0 0
      %1102 = vmatpush2.bf16.msra.mxu0 0
      %1103 = vmatprep.subr.bf16.mxu0 0
      %1104 = vmatpush2.bf16.msra.mxu0 0
      %1105 = vmatprep.subr.bf16.mxu0 0
      %1106 = vmatpush2.bf16.msra.mxu0 0
      %1107 = vmatprep.subr.bf16.mxu0 0
      %1108 = vmatpush2.bf16.msra.mxu0 0
      %1109 = vmatprep.subr.bf16.mxu0 0
      %1110 = vmatpush2.bf16.msra.mxu0 0
      %1111 = vmatprep.subr.bf16.mxu0 0
      %1112 = vmatpush2.bf16.msra.mxu0 0
      %1113 = vmatprep.mubr.bf16.mxu0 0
      %1114 = vmatmul.mubr.bf16.gmra.mxu0 %v1076
      %v1115 = vpop.f32.mrf.mxu0
      %v1116 = vadd.f32 0.0, %v1115
      %v1117 = vpop.f32.mrf.mxu0
      %v1118 = vpop.f32.mrf.mxu0
      %v1119 = vadd.f32 0.0, %v1118
      %v1120 = vpop.f32.mrf.mxu0
      %1121 = vmatprep.mubr.bf16.mxu0 0
      %1122 = vmatmul.mubr.bf16.gmra.mxu0 %v1079
      %v1123 = vpop.f32.mrf.mxu0
      %v1124 = vadd.f32 0.0, %v1123
      %v1125 = vpop.f32.mrf.mxu0
      %v1126 = vpop.f32.mrf.mxu0
      %v1127 = vadd.f32 0.0, %v1126
      %v1128 = vpop.f32.mrf.mxu0
      %1129 = vdwg.mxu0
      %v1130 = vmul.f32 %v811, %v929
      %v1131 = vmul.f32 %v814, %v932
      %v1132 = vmul.f32 %v819, %v937
      %v1133 = vmul.f32 %v822, %v940
      %v1134 = vpack.c.bf16 %v1131, %v1130
      %v1135 = vpack.c.bf16 %v1133, %v1132
      %v1137 = vsel %vm763, %v1134, 0
      %v1140 = vsel %vm763, %v1135, 0
      %1142 = vmatprep.subr.bf16.mxu0 0
      %1143 = vmatpush1.bf16.msra.mxu0 0
      %1144 = vmatprep.subr.bf16.mxu0 0
      %1145 = vmatpush1.bf16.msra.mxu0 0
      %1146 = vmatprep.subr.bf16.mxu0 0
      %1147 = vmatpush1.bf16.msra.mxu0 0
      %1148 = vmatprep.subr.bf16.mxu0 0
      %1149 = vmatpush1.bf16.msra.mxu0 0
      %1150 = vmatprep.subr.bf16.mxu0 0
      %1151 = vmatpush1.bf16.msra.mxu0 %v1070
      %1152 = vmatprep.subr.bf16.mxu0 0
      %1153 = vmatpush1.bf16.msra.mxu0 %v1069
      %1154 = vmatprep.subr.bf16.mxu0 0
      %1155 = vmatpush1.bf16.msra.mxu0 %v1068
      %1156 = vmatprep.subr.bf16.mxu0 0
      %1157 = vmatpush1.bf16.msra.mxu0 %v1067
      %1158 = vmatprep.subr.bf16.mxu0 0
      %1159 = vmatpush2.bf16.msra.mxu0 0
      %1160 = vmatprep.subr.bf16.mxu0 0
      %1161 = vmatpush2.bf16.msra.mxu0 0
      %1162 = vmatprep.subr.bf16.mxu0 0
      %1163 = vmatpush2.bf16.msra.mxu0 0
      %1164 = vmatprep.subr.bf16.mxu0 0
      %1165 = vmatpush2.bf16.msra.mxu0 0
      %1166 = vmatprep.subr.bf16.mxu0 0
      %1167 = vmatpush2.bf16.msra.mxu0 0
      %1168 = vmatprep.subr.bf16.mxu0 0
      %1169 = vmatpush2.bf16.msra.mxu0 0
      %1170 = vmatprep.subr.bf16.mxu0 0
      %1171 = vmatpush2.bf16.msra.mxu0 0
      %1172 = vmatprep.subr.bf16.mxu0 0
      %1173 = vmatpush2.bf16.msra.mxu0 0
      %1174 = vmatprep.mubr.bf16.mxu0 0
      %1175 = vmatmul.mubr.bf16.gmra.mxu0 %v1137
      %v1176 = vpop.f32.mrf.mxu0
      %v1177 = vadd.f32 0.0, %v1176
      %v1178 = vpop.f32.mrf.mxu0
      %v1179 = vpop.f32.mrf.mxu0
      %v1180 = vadd.f32 0.0, %v1179
      %v1181 = vpop.f32.mrf.mxu0
      %1182 = vmatprep.mubr.bf16.mxu0 0
      %1183 = vmatmul.mubr.bf16.gmra.mxu0 %v1140
      %v1184 = vpop.f32.mrf.mxu0
      %v1185 = vadd.f32 0.0, %v1184
      %v1186 = vpop.f32.mrf.mxu0
      %v1187 = vpop.f32.mrf.mxu0
      %v1188 = vadd.f32 0.0, %v1187
      %v1189 = vpop.f32.mrf.mxu0
      %1190 = vdwg.mxu0
      %v1191 = vmax.f32 %v1116, %v1177
      %v1192 = vmax.f32 %v1119, %v1180
      %v1193 = vmax.f32 %v1124, %v1185
      %v1194 = vmax.f32 %v1127, %v1188
      %v1195 = vsub.f32 %v1116, %v1191
      %v1196 = vsub.f32 %v1119, %v1192
      %v1197 = vsub.f32 %v1124, %v1193
      %v1198 = vsub.f32 %v1127, %v1194
      %v1199 = vmul.f32 %v1195, 1.442695
      %v1200 = vpow.pop %v1199
      %v1201 = vmul.f32 %v1196, 1.442695
      %v1202 = vpow.pop %v1201
      %v1203 = vmul.f32 %v1197, 1.442695
      %v1204 = vpow.pop %v1203
      %v1205 = vmul.f32 %v1198, 1.442695
      %v1206 = vpow.pop %v1205
      %v1207 = vsub.f32 %v1177, %v1191
      %v1208 = vsub.f32 %v1180, %v1192
      %v1209 = vsub.f32 %v1185, %v1193
      %v1210 = vsub.f32 %v1188, %v1194
      %v1211 = vmul.f32 %v1207, 1.442695
      %v1212 = vpow.pop %v1211
      %v1213 = vmul.f32 %v1208, 1.442695
      %v1214 = vpow.pop %v1213
      %v1215 = vmul.f32 %v1209, 1.442695
      %v1216 = vpow.pop %v1215
      %v1217 = vmul.f32 %v1210, 1.442695
      %v1218 = vpow.pop %v1217
      %v1219 = vadd.f32 %v1200, %v1212
      %v1220 = vadd.f32 %v1202, %v1214
      %v1221 = vadd.f32 %v1204, %v1216
      %v1222 = vadd.f32 %v1206, %v1218
      %v1223 = vrcp.pop %v1219
      %v1224 = vrcp.pop %v1220
      %v1225 = vrcp.pop %v1221
      %v1226 = vrcp.pop %v1222
      %v1227 = vmul.f32 %v1200, %v1223
      %v1228 = vmul.f32 %v1202, %v1224
      %v1229 = vmul.f32 %v1204, %v1225
      %v1230 = vmul.f32 %v1206, %v1226
      %v1231 = vmul.f32 %v1227, %v1015
      %v1232 = vmul.f32 %v1228, %v1018
      %v1233 = vmul.f32 %v1229, %v1023
      %v1234 = vmul.f32 %v1230, %v1026
      %v1235 = vadd.f32 %v1231, 0.0
      %v1236 = vadd.f32 %v1232, 0.0
      %v1237 = vadd.f32 %v1233, 0.0
      %v1238 = vadd.f32 %v1234, 0.0
      %v1239 = vmul.f32 %v1212, %v1223
      %v1240 = vmul.f32 %v1214, %v1224
      %v1241 = vmul.f32 %v1216, %v1225
      %v1242 = vmul.f32 %v1218, %v1226
      %v1243 = vmul.f32 %v1239, %v1031
      %v1244 = vmul.f32 %v1240, %v1034
      %v1245 = vmul.f32 %v1241, %v1039
      %v1246 = vmul.f32 %v1242, %v1042
      %v1247 = vadd.f32 %v1235, %v1243
      %v1248 = vadd.f32 %v1236, %v1244
      %v1249 = vadd.f32 %v1237, %v1245
      %v1250 = vadd.f32 %v1238, %v1246
      %v1251 = vmul.f32 %v827, %v913
      %v1252 = vmul.f32 %v830, %v916
      %v1253 = vmul.f32 %v835, %v921
      %v1254 = vmul.f32 %v838, %v924
      %v1255 = vpack.c.bf16 %v1252, %v1251
      %v1256 = vpack.c.bf16 %v1254, %v1253
      %v1258 = vsel %vm763, %v1255, 0
      %v1261 = vsel %vm763, %v1256, 0
      %1263 = vmatprep.subr.bf16.mxu0 0
      %1264 = vmatpush1.bf16.msra.mxu0 0
      %1265 = vmatprep.subr.bf16.mxu0 0
      %1266 = vmatpush1.bf16.msra.mxu0 0
      %1267 = vmatprep.subr.bf16.mxu0 0
      %1268 = vmatpush1.bf16.msra.mxu0 0
      %1269 = vmatprep.subr.bf16.mxu0 0
      %1270 = vmatpush1.bf16.msra.mxu0 0
      %1271 = vmatprep.subr.bf16.mxu0 0
      %1272 = vmatpush1.bf16.msra.mxu0 %v1070
      %1273 = vmatprep.subr.bf16.mxu0 0
      %1274 = vmatpush1.bf16.msra.mxu0 %v1069
      %1275 = vmatprep.subr.bf16.mxu0 0
      %1276 = vmatpush1.bf16.msra.mxu0 %v1068
      %1277 = vmatprep.subr.bf16.mxu0 0
      %1278 = vmatpush1.bf16.msra.mxu0 %v1067
      %1279 = vmatprep.subr.bf16.mxu0 0
      %1280 = vmatpush2.bf16.msra.mxu0 0
      %1281 = vmatprep.subr.bf16.mxu0 0
      %1282 = vmatpush2.bf16.msra.mxu0 0
      %1283 = vmatprep.subr.bf16.mxu0 0
      %1284 = vmatpush2.bf16.msra.mxu0 0
      %1285 = vmatprep.subr.bf16.mxu0 0
      %1286 = vmatpush2.bf16.msra.mxu0 0
      %1287 = vmatprep.subr.bf16.mxu0 0
      %1288 = vmatpush2.bf16.msra.mxu0 0
      %1289 = vmatprep.subr.bf16.mxu0 0
      %1290 = vmatpush2.bf16.msra.mxu0 0
      %1291 = vmatprep.subr.bf16.mxu0 0
      %1292 = vmatpush2.bf16.msra.mxu0 0
      %1293 = vmatprep.subr.bf16.mxu0 0
      %1294 = vmatpush2.bf16.msra.mxu0 0
      %1295 = vmatprep.mubr.bf16.mxu0 0
      %1296 = vmatmul.mubr.bf16.gmra.mxu0 %v1258
      %v1297 = vpop.f32.mrf.mxu0
      %v1298 = vadd.f32 0.0, %v1297
      %v1299 = vpop.f32.mrf.mxu0
      %v1300 = vpop.f32.mrf.mxu0
      %v1301 = vadd.f32 0.0, %v1300
      %v1302 = vpop.f32.mrf.mxu0
      %1303 = vmatprep.mubr.bf16.mxu0 0
      %1304 = vmatmul.mubr.bf16.gmra.mxu0 %v1261
      %v1305 = vpop.f32.mrf.mxu0
      %v1306 = vadd.f32 0.0, %v1305
      %v1307 = vpop.f32.mrf.mxu0
      %v1308 = vpop.f32.mrf.mxu0
      %v1309 = vadd.f32 0.0, %v1308
      %v1310 = vpop.f32.mrf.mxu0
      %1311 = vdwg.mxu0
      %v1312 = vmul.f32 %v827, %v929
      %v1313 = vmul.f32 %v830, %v932
      %v1314 = vmul.f32 %v835, %v937
      %v1315 = vmul.f32 %v838, %v940
      %v1316 = vpack.c.bf16 %v1313, %v1312
      %v1317 = vpack.c.bf16 %v1315, %v1314
      %v1319 = vsel %vm763, %v1316, 0
      %v1322 = vsel %vm763, %v1317, 0
      %1324 = vmatprep.subr.bf16.mxu0 0
      %1325 = vmatpush1.bf16.msra.mxu0 0
      %1326 = vmatprep.subr.bf16.mxu0 0
      %1327 = vmatpush1.bf16.msra.mxu0 0
      %1328 = vmatprep.subr.bf16.mxu0 0
      %1329 = vmatpush1.bf16.msra.mxu0 0
      %1330 = vmatprep.subr.bf16.mxu0 0
      %1331 = vmatpush1.bf16.msra.mxu0 0
      %1332 = vmatprep.subr.bf16.mxu0 0
      %1333 = vmatpush1.bf16.msra.mxu0 %v1070
      %1334 = vmatprep.subr.bf16.mxu0 0
      %1335 = vmatpush1.bf16.msra.mxu0 %v1069
      %1336 = vmatprep.subr.bf16.mxu0 0
      %1337 = vmatpush1.bf16.msra.mxu0 %v1068
      %1338 = vmatprep.subr.bf16.mxu0 0
      %1339 = vmatpush1.bf16.msra.mxu0 %v1067
      %1340 = vmatprep.subr.bf16.mxu0 0
      %1341 = vmatpush2.bf16.msra.mxu0 0
      %1342 = vmatprep.subr.bf16.mxu0 0
      %1343 = vmatpush2.bf16.msra.mxu0 0
      %1344 = vmatprep.subr.bf16.mxu0 0
      %1345 = vmatpush2.bf16.msra.mxu0 0
      %1346 = vmatprep.subr.bf16.mxu0 0
      %1347 = vmatpush2.bf16.msra.mxu0 0
      %1348 = vmatprep.subr.bf16.mxu0 0
      %1349 = vmatpush2.bf16.msra.mxu0 0
      %1350 = vmatprep.subr.bf16.mxu0 0
      %1351 = vmatpush2.bf16.msra.mxu0 0
      %1352 = vmatprep.subr.bf16.mxu0 0
      %1353 = vmatpush2.bf16.msra.mxu0 0
      %1354 = vmatprep.subr.bf16.mxu0 0
      %1355 = vmatpush2.bf16.msra.mxu0 0
      %1356 = vmatprep.mubr.bf16.mxu0 0
      %1357 = vmatmul.mubr.bf16.gmra.mxu0 %v1319
      %v1358 = vpop.f32.mrf.mxu0
      %v1359 = vadd.f32 0.0, %v1358
      %v1360 = vpop.f32.mrf.mxu0
      %v1361 = vpop.f32.mrf.mxu0
      %v1362 = vadd.f32 0.0, %v1361
      %v1363 = vpop.f32.mrf.mxu0
      %1364 = vmatprep.mubr.bf16.mxu0 0
      %1365 = vmatmul.mubr.bf16.gmra.mxu0 %v1322
      %v1366 = vpop.f32.mrf.mxu0
      %v1367 = vadd.f32 0.0, %v1366
      %v1368 = vpop.f32.mrf.mxu0
      %v1369 = vpop.f32.mrf.mxu0
      %v1370 = vadd.f32 0.0, %v1369
      %v1371 = vpop.f32.mrf.mxu0
      %1372 = vdwg.mxu0
      %v1373 = vmax.f32 %v1298, %v1359
      %v1374 = vmax.f32 %v1301, %v1362
      %v1375 = vmax.f32 %v1306, %v1367
      %v1376 = vmax.f32 %v1309, %v1370
      %v1377 = vsub.f32 %v1298, %v1373
      %v1378 = vsub.f32 %v1301, %v1374
      %v1379 = vsub.f32 %v1306, %v1375
      %v1380 = vsub.f32 %v1309, %v1376
      %v1381 = vmul.f32 %v1377, 1.442695
      %v1382 = vpow.pop %v1381
      %v1383 = vmul.f32 %v1378, 1.442695
      %v1384 = vpow.pop %v1383
      %v1385 = vmul.f32 %v1379, 1.442695
      %v1386 = vpow.pop %v1385
      %v1387 = vmul.f32 %v1380, 1.442695
      %v1388 = vpow.pop %v1387
      %v1389 = vsub.f32 %v1359, %v1373
      %v1390 = vsub.f32 %v1362, %v1374
      %v1391 = vsub.f32 %v1367, %v1375
      %v1392 = vsub.f32 %v1370, %v1376
      %v1393 = vmul.f32 %v1389, 1.442695
      %v1394 = vpow.pop %v1393
      %v1395 = vmul.f32 %v1390, 1.442695
      %v1396 = vpow.pop %v1395
      %v1397 = vmul.f32 %v1391, 1.442695
      %v1398 = vpow.pop %v1397
      %v1399 = vmul.f32 %v1392, 1.442695
      %v1400 = vpow.pop %v1399
      %v1401 = vadd.f32 %v1382, %v1394
      %v1402 = vadd.f32 %v1384, %v1396
      %v1403 = vadd.f32 %v1386, %v1398
      %v1404 = vadd.f32 %v1388, %v1400
      %v1405 = vrcp.pop %v1401
      %v1406 = vrcp.pop %v1402
      %v1407 = vrcp.pop %v1403
      %v1408 = vrcp.pop %v1404
      %v1409 = vmul.f32 %v1382, %v1405
      %v1410 = vmul.f32 %v1384, %v1406
      %v1411 = vmul.f32 %v1386, %v1407
      %v1412 = vmul.f32 %v1388, %v1408
      %v1413 = vmul.f32 %v1409, %v1015
      %v1414 = vmul.f32 %v1410, %v1018
      %v1415 = vmul.f32 %v1411, %v1023
      %v1416 = vmul.f32 %v1412, %v1026
      %v1417 = vadd.f32 %v1413, 0.0
      %v1418 = vadd.f32 %v1414, 0.0
      %v1419 = vadd.f32 %v1415, 0.0
      %v1420 = vadd.f32 %v1416, 0.0
      %v1421 = vmul.f32 %v1394, %v1405
      %v1422 = vmul.f32 %v1396, %v1406
      %v1423 = vmul.f32 %v1398, %v1407
      %v1424 = vmul.f32 %v1400, %v1408
      %v1425 = vmul.f32 %v1421, %v1031
      %v1426 = vmul.f32 %v1422, %v1034
      %v1427 = vmul.f32 %v1423, %v1039
      %v1428 = vmul.f32 %v1424, %v1042
      %v1429 = vadd.f32 %v1417, %v1425
      %v1430 = vadd.f32 %v1418, %v1426
      %v1431 = vadd.f32 %v1419, %v1427
      %v1432 = vadd.f32 %v1420, %v1428
      %v1433 = vpack.c.bf16 %v1248, %v1247
      %v1434 = vpack.c.bf16 %v1250, %v1249
      %v1435 = vpack.c.bf16 %v1430, %v1429
      %v1436 = vpack.c.bf16 %v1432, %v1431
      %s1437 = scalar_lea.vmem %s4, 96
      %v1438 = vld [vmem:[%s1437] sm:$0xf]
      %v1439 = vld [vmem:[%s1437 + $0x4] sm:$0xf]
      %v1440 = vld [vmem:[%s1437 + $0x8] sm:$0xf]
      %v1441 = vld [vmem:[%s1437 + $0xc] sm:$0xf]
      %v1442 = vld [vmem:[%s1437 + $0x10] sm:$0xf]
      %v1443 = vld [vmem:[%s1437 + $0x14] sm:$0xf]
      %v1444 = vld [vmem:[%s1437 + $0x18] sm:$0xf]
      %v1445 = vld [vmem:[%s1437 + $0x1c] sm:$0xf]
      %v1446 = vlaneseq
      %v1447 = vshrl.u32 %v1446, 7
      %v1448 = vsub.s32 3, %v1447
      %v1449 = vrot.slane %v721, %v1448
      %v1458 = vunpack.c.l.b16 %v1438
      %v1459 = vunpack.c.l.b16 %v1439
      %v1460 = vunpack.c.l.b16 %v1440
      %v1461 = vunpack.c.l.b16 %v1441
      %v1462 = vunpack.c.l.b16 %v1442
      %v1463 = vunpack.c.l.b16 %v1443
      %v1464 = vunpack.c.l.b16 %v1444
      %v1465 = vunpack.c.l.b16 %v1445
      %v1466 = vpack.c.b16 %v1459, %v1458
      %v1467 = vpack.c.b16 %v1461, %v1460
      %v1468 = vpack.c.b16 %v1463, %v1462
      %v1469 = vpack.c.b16 %v1465, %v1464
      %v1475 = vsel %vm763, %v1433, 0
      %v1478 = vsel %vm763, %v1434, 0
      %v1481 = vsel %vm763, %v1435, 0
      %v1484 = vsel %vm763, %v1436, 0
      %1486 = vmatprep.subr.bf16.mxu0 0
      %1487 = vmatpush1.bf16.msra.mxu0 0
      %1488 = vmatprep.subr.bf16.mxu0 0
      %1489 = vmatpush1.bf16.msra.mxu0 0
      %1490 = vmatprep.subr.bf16.mxu0 0
      %1491 = vmatpush1.bf16.msra.mxu0 0
      %1492 = vmatprep.subr.bf16.mxu0 0
      %1493 = vmatpush1.bf16.msra.mxu0 0
      %1494 = vmatprep.subr.bf16.mxu0 0
      %1495 = vmatpush1.bf16.msra.mxu0 %v1469
      %1496 = vmatprep.subr.bf16.mxu0 0
      %1497 = vmatpush1.bf16.msra.mxu0 %v1468
      %1498 = vmatprep.subr.bf16.mxu0 0
      %1499 = vmatpush1.bf16.msra.mxu0 %v1467
      %1500 = vmatprep.subr.bf16.mxu0 0
      %1501 = vmatpush1.bf16.msra.mxu0 %v1466
      %1502 = vmatprep.subr.bf16.mxu0 0
      %1503 = vmatpush2.bf16.msra.mxu0 0
      %1504 = vmatprep.subr.bf16.mxu0 0
      %1505 = vmatpush2.bf16.msra.mxu0 0
      %1506 = vmatprep.subr.bf16.mxu0 0
      %1507 = vmatpush2.bf16.msra.mxu0 0
      %1508 = vmatprep.subr.bf16.mxu0 0
      %1509 = vmatpush2.bf16.msra.mxu0 0
      %1510 = vmatprep.subr.bf16.mxu0 0
      %1511 = vmatpush2.bf16.msra.mxu0 0
      %1512 = vmatprep.subr.bf16.mxu0 0
      %1513 = vmatpush2.bf16.msra.mxu0 0
      %1514 = vmatprep.subr.bf16.mxu0 0
      %1515 = vmatpush2.bf16.msra.mxu0 0
      %1516 = vmatprep.subr.bf16.mxu0 0
      %1517 = vmatpush2.bf16.msra.mxu0 0
      %1518 = vmatprep.mubr.bf16.mxu0 0
      %1519 = vmatmul.mubr.bf16.gmra.mxu0 %v1475
      %v1520 = vpop.f32.mrf.mxu0
      %v1521 = vadd.f32 %v1449, %v1520
      %v1522 = vpop.f32.mrf.mxu0
      %v1523 = vpop.f32.mrf.mxu0
      %v1524 = vadd.f32 %v1449, %v1523
      %v1525 = vpop.f32.mrf.mxu0
      %1526 = vmatprep.mubr.bf16.mxu0 0
      %1527 = vmatmul.mubr.bf16.gmra.mxu0 %v1478
      %v1528 = vpop.f32.mrf.mxu0
      %v1529 = vadd.f32 %v1449, %v1528
      %v1530 = vpop.f32.mrf.mxu0
      %v1531 = vpop.f32.mrf.mxu0
      %v1532 = vadd.f32 %v1449, %v1531
      %v1533 = vpop.f32.mrf.mxu0
      %1534 = vmatprep.mubr.bf16.mxu0 0
      %1535 = vmatmul.mubr.bf16.gmra.mxu0 %v1481
      %v1536 = vpop.f32.mrf.mxu0
      %v1537 = vadd.f32 %v1449, %v1536
      %v1538 = vpop.f32.mrf.mxu0
      %v1539 = vpop.f32.mrf.mxu0
      %v1540 = vadd.f32 %v1449, %v1539
      %v1541 = vpop.f32.mrf.mxu0
      %1542 = vmatprep.mubr.bf16.mxu0 0
      %1543 = vmatmul.mubr.bf16.gmra.mxu0 %v1484
      %v1544 = vpop.f32.mrf.mxu0
      %v1545 = vadd.f32 %v1449, %v1544
      %v1546 = vpop.f32.mrf.mxu0
      %v1547 = vpop.f32.mrf.mxu0
      %v1548 = vadd.f32 %v1449, %v1547
      %v1549 = vpop.f32.mrf.mxu0
      %1550 = vdwg.mxu0
      %v1551 = vadd.f32 %v551, %v1521
      %v1552 = vadd.f32 %v552, %v1524
      %v1553 = vadd.f32 %v553, %v1529
      %v1554 = vadd.f32 %v554, %v1532
      %v1555 = vadd.f32 %v709, %v1537
      %v1556 = vadd.f32 %v710, %v1540
      %v1557 = vadd.f32 %v711, %v1545
      %v1558 = vadd.f32 %v712, %v1548
      %v1559 = vsel %vm763, %v1551, 0.0
      %1560 = vadd.xlane.f32.xlu0 %v1559
      %v1561 = vpop.xlane.xlu0 %1560
      %v1562 = vsel %vm763, %v1552, 0.0
      %1563 = vadd.xlane.f32.xlu0 %v1562
      %v1564 = vpop.xlane.xlu0 %1563
      %v1565 = vsel %vm763, %v1553, 0.0
      %1566 = vadd.xlane.f32.xlu0 %v1565
      %v1567 = vpop.xlane.xlu0 %1566
      %v1568 = vsel %vm763, %v1554, 0.0
      %1569 = vadd.xlane.f32.xlu0 %v1568
      %v1570 = vpop.xlane.xlu0 %1569
      %v1571 = vsel %vm763, %v1555, 0.0
      %1572 = vadd.xlane.f32.xlu0 %v1571
      %v1573 = vpop.xlane.xlu0 %1572
      %v1574 = vsel %vm763, %v1556, 0.0
      %1575 = vadd.xlane.f32.xlu0 %v1574
      %v1576 = vpop.xlane.xlu0 %1575
      %v1577 = vsel %vm763, %v1557, 0.0
      %1578 = vadd.xlane.f32.xlu0 %v1577
      %v1579 = vpop.xlane.xlu0 %1578
      %v1580 = vsel %vm763, %v1558, 0.0
      %1581 = vadd.xlane.f32.xlu0 %v1580
      %v1582 = vpop.xlane.xlu0 %1581
      %v1583 = vrcp.pop 64.0
      %v1584 = vmul.f32 %v1561, %v1583
      %v1585 = vmul.f32 %v1564, %v1583
      %v1586 = vmul.f32 %v1567, %v1583
      %v1587 = vmul.f32 %v1570, %v1583
      %v1588 = vmul.f32 %v1573, %v1583
      %v1589 = vmul.f32 %v1576, %v1583
      %v1590 = vmul.f32 %v1579, %v1583
      %v1591 = vmul.f32 %v1582, %v1583
      %v1592 = vsub.f32 %v1551, %v1584
      %v1593 = vsub.f32 %v1552, %v1585
      %v1594 = vsub.f32 %v1553, %v1586
      %v1595 = vsub.f32 %v1554, %v1587
      %v1596 = vsub.f32 %v1555, %v1588
      %v1597 = vsub.f32 %v1556, %v1589
      %v1598 = vsub.f32 %v1557, %v1590
      %v1599 = vsub.f32 %v1558, %v1591
      %v1600 = vmul.f32 %v1592, %v1592
      %v1601 = vmul.f32 %v1593, %v1593
      %v1602 = vmul.f32 %v1594, %v1594
      %v1603 = vmul.f32 %v1595, %v1595
      %v1604 = vmul.f32 %v1596, %v1596
      %v1605 = vmul.f32 %v1597, %v1597
      %v1606 = vmul.f32 %v1598, %v1598
      %v1607 = vmul.f32 %v1599, %v1599
      %v1608 = vsel %vm763, %v1600, 0.0
      %1609 = vadd.xlane.f32.xlu0 %v1608
      %v1610 = vpop.xlane.xlu0 %1609
      %v1611 = vsel %vm763, %v1601, 0.0
      %1612 = vadd.xlane.f32.xlu0 %v1611
      %v1613 = vpop.xlane.xlu0 %1612
      %v1614 = vsel %vm763, %v1602, 0.0
      %1615 = vadd.xlane.f32.xlu0 %v1614
      %v1616 = vpop.xlane.xlu0 %1615
      %v1617 = vsel %vm763, %v1603, 0.0
      %1618 = vadd.xlane.f32.xlu0 %v1617
      %v1619 = vpop.xlane.xlu0 %1618
      %v1620 = vsel %vm763, %v1604, 0.0
      %1621 = vadd.xlane.f32.xlu0 %v1620
      %v1622 = vpop.xlane.xlu0 %1621
      %v1623 = vsel %vm763, %v1605, 0.0
      %1624 = vadd.xlane.f32.xlu0 %v1623
      %v1625 = vpop.xlane.xlu0 %1624
      %v1626 = vsel %vm763, %v1606, 0.0
      %1627 = vadd.xlane.f32.xlu0 %v1626
      %v1628 = vpop.xlane.xlu0 %1627
      %v1629 = vsel %vm763, %v1607, 0.0
      %1630 = vadd.xlane.f32.xlu0 %v1629
      %v1631 = vpop.xlane.xlu0 %1630
      %v1632 = vmul.f32 %v1610, %v1583
      %v1633 = vmul.f32 %v1613, %v1583
      %v1634 = vmul.f32 %v1616, %v1583
      %v1635 = vmul.f32 %v1619, %v1583
      %v1636 = vmul.f32 %v1622, %v1583
      %v1637 = vmul.f32 %v1625, %v1583
      %v1638 = vmul.f32 %v1628, %v1583
      %v1639 = vmul.f32 %v1631, %v1583
      %v1640 = vadd.f32 %v1632, 1e-05
      %v1641 = vadd.f32 %v1633, 1e-05
      %v1642 = vadd.f32 %v1634, 1e-05
      %v1643 = vadd.f32 %v1635, 1e-05
      %v1644 = vadd.f32 %v1636, 1e-05
      %v1645 = vadd.f32 %v1637, 1e-05
      %v1646 = vadd.f32 %v1638, 1e-05
      %v1647 = vadd.f32 %v1639, 1e-05
      %v1648 = vrsqrt.pop %v1640
      %v1649 = vrsqrt.pop %v1641
      %v1650 = vrsqrt.pop %v1642
      %v1651 = vrsqrt.pop %v1643
      %v1652 = vrsqrt.pop %v1644
      %v1653 = vrsqrt.pop %v1645
      %v1654 = vrsqrt.pop %v1646
      %v1655 = vrsqrt.pop %v1647
      %v1656 = vmul.f32 %v1592, %v1648
      %v1657 = vmul.f32 %v1593, %v1649
      %v1658 = vmul.f32 %v1594, %v1650
      %v1659 = vmul.f32 %v1595, %v1651
      %v1660 = vmul.f32 %v1596, %v1652
      %v1661 = vmul.f32 %v1597, %v1653
      %v1662 = vmul.f32 %v1598, %v1654
      %v1663 = vmul.f32 %v1599, %v1655
      %v1664 = vlaneseq
      %v1665 = vshrl.u32 %v1664, 7
      %v1666 = vsub.s32 4, %v1665
      %v1667 = vrot.slane %v721, %v1666
      %v1668 = vmul.f32 %v1656, %v1667
      %v1669 = vmul.f32 %v1657, %v1667
      %v1670 = vmul.f32 %v1658, %v1667
      %v1671 = vmul.f32 %v1659, %v1667
      %v1672 = vmul.f32 %v1660, %v1667
      %v1673 = vmul.f32 %v1661, %v1667
      %v1674 = vmul.f32 %v1662, %v1667
      %v1675 = vmul.f32 %v1663, %v1667
      %v1676 = vlaneseq
      %v1677 = vshrl.u32 %v1676, 7
      %v1678 = vsub.s32 5, %v1677
      %v1679 = vrot.slane %v721, %v1678
      %v1680 = vadd.f32 %v1668, %v1679
      %v1681 = vadd.f32 %v1669, %v1679
      %v1682 = vadd.f32 %v1670, %v1679
      %v1683 = vadd.f32 %v1671, %v1679
      %v1684 = vadd.f32 %v1672, %v1679
      %v1685 = vadd.f32 %v1673, %v1679
      %v1686 = vadd.f32 %v1674, %v1679
      %v1687 = vadd.f32 %v1675, %v1679
      %v1688 = vpack.c.bf16 %v1681, %v1680
      %v1689 = vpack.c.bf16 %v1683, %v1682
      %v1690 = vpack.c.bf16 %v1685, %v1684
      %v1691 = vpack.c.bf16 %v1687, %v1686
      %v1692 = vld [vmem:[%s6] sm:$0xff]
      %v1693 = vld [vmem:[%s6 + $0x8] sm:$0xff]
      %v1694 = vld [vmem:[%s6 + $0x10] sm:$0xff]
      %v1695 = vld [vmem:[%s6 + $0x18] sm:$0xff]
      %v1696 = vld [vmem:[%s6 + $0x20] sm:$0xff]
      %v1697 = vld [vmem:[%s6 + $0x28] sm:$0xff]
      %v1698 = vld [vmem:[%s6 + $0x30] sm:$0xff]
      %v1699 = vld [vmem:[%s6 + $0x38] sm:$0xff]
      %v1700 = vld [vmem:[%s6 + $0x40] sm:$0xff]
      %v1701 = vld [vmem:[%s6 + $0x48] sm:$0xff]
      %v1702 = vld [vmem:[%s6 + $0x50] sm:$0xff]
      %v1703 = vld [vmem:[%s6 + $0x58] sm:$0xff]
      %v1704 = vld [vmem:[%s6 + $0x60] sm:$0xff]
      %v1705 = vld [vmem:[%s6 + $0x68] sm:$0xff]
      %v1706 = vld [vmem:[%s6 + $0x70] sm:$0xff]
      %v1707 = vld [vmem:[%s6 + $0x78] sm:$0xff]
      %v1708 = vld [vmem:[%s6 + $0x80] sm:$0xff]
      %v1709 = vld [vmem:[%s6 + $0x88] sm:$0xff]
      %v1710 = vld [vmem:[%s6 + $0x90] sm:$0xff]
      %v1711 = vld [vmem:[%s6 + $0x98] sm:$0xff]
      %v1712 = vld [vmem:[%s6 + $0xa0] sm:$0xff]
      %v1713 = vld [vmem:[%s6 + $0xa8] sm:$0xff]
      %v1714 = vld [vmem:[%s6 + $0xb0] sm:$0xff]
      %v1715 = vld [vmem:[%s6 + $0xb8] sm:$0xff]
      %v1716 = vld [vmem:[%s6 + $0xc0] sm:$0xff]
      %v1717 = vld [vmem:[%s6 + $0xc8] sm:$0xff]
      %v1718 = vld [vmem:[%s6 + $0xd0] sm:$0xff]
      %v1719 = vld [vmem:[%s6 + $0xd8] sm:$0xff]
      %v1720 = vld [vmem:[%s6 + $0xe0] sm:$0xff]
      %v1721 = vld [vmem:[%s6 + $0xe8] sm:$0xff]
      %v1722 = vld [vmem:[%s6 + $0xf0] sm:$0xff]
      %v1723 = vld [vmem:[%s6 + $0xf8] sm:$0xff]
      %v1724 = vld [vmem:[%s6 + $0x100] sm:$0xff]
      %v1725 = vld [vmem:[%s6 + $0x108] sm:$0xff]
      %v1726 = vld [vmem:[%s6 + $0x110] sm:$0xff]
      %v1727 = vld [vmem:[%s6 + $0x118] sm:$0xff]
      %v1728 = vld [vmem:[%s6 + $0x120] sm:$0xff]
      %v1729 = vld [vmem:[%s6 + $0x128] sm:$0xff]
      %v1730 = vld [vmem:[%s6 + $0x130] sm:$0xff]
      %v1731 = vld [vmem:[%s6 + $0x138] sm:$0xff]
      %v1732 = vld [vmem:[%s6 + $0x140] sm:$0xff]
      %v1733 = vld [vmem:[%s6 + $0x148] sm:$0xff]
      %v1734 = vld [vmem:[%s6 + $0x150] sm:$0xff]
      %v1735 = vld [vmem:[%s6 + $0x158] sm:$0xff]
      %v1736 = vld [vmem:[%s6 + $0x160] sm:$0xff]
      %v1737 = vld [vmem:[%s6 + $0x168] sm:$0xff]
      %v1738 = vld [vmem:[%s6 + $0x170] sm:$0xff]
      %v1739 = vld [vmem:[%s6 + $0x178] sm:$0xff]
      %v1740 = vld [vmem:[%s6 + $0x180] sm:$0xff]
      %v1741 = vld [vmem:[%s6 + $0x188] sm:$0xff]
      %v1742 = vld [vmem:[%s6 + $0x190] sm:$0xff]
      %v1743 = vld [vmem:[%s6 + $0x198] sm:$0xff]
      %v1744 = vld [vmem:[%s6 + $0x1a0] sm:$0xff]
      %v1745 = vld [vmem:[%s6 + $0x1a8] sm:$0xff]
      %v1746 = vld [vmem:[%s6 + $0x1b0] sm:$0xff]
      %v1747 = vld [vmem:[%s6 + $0x1b8] sm:$0xff]
      %v1748 = vld [vmem:[%s6 + $0x1c0] sm:$0xff]
      %v1749 = vld [vmem:[%s6 + $0x1c8] sm:$0xff]
      %v1750 = vld [vmem:[%s6 + $0x1d0] sm:$0xff]
      %v1751 = vld [vmem:[%s6 + $0x1d8] sm:$0xff]
      %v1752 = vld [vmem:[%s6 + $0x1e0] sm:$0xff]
      %v1753 = vld [vmem:[%s6 + $0x1e8] sm:$0xff]
      %v1754 = vld [vmem:[%s6 + $0x1f0] sm:$0xff]
      %v1755 = vld [vmem:[%s6 + $0x1f8] sm:$0xff]
      %v1756 = vld [vmem:[%s7] sm:$0xff]
      %v1757 = vld [vmem:[%s7 + $0x8] sm:$0xff]
      %v1760 = vlaneseq
      %v1761 = vshrl.u32 %v1760, 7
      %v1762 = vsub.s32 0, %v1761
      %v1763 = vrot.slane %v1756, %v1762
      %v1764 = vlaneseq
      %v1765 = vshrl.u32 %v1764, 7
      %v1766 = vsub.s32 1, %v1765
      %v1767 = vrot.slane %v1756, %v1766
      %v1768 = vlaneseq
      %v1769 = vshrl.u32 %v1768, 7
      %v1770 = vsub.s32 2, %v1769
      %v1771 = vrot.slane %v1756, %v1770
      %v1772 = vlaneseq
      %v1773 = vshrl.u32 %v1772, 7
      %v1774 = vsub.s32 3, %v1773
      %v1775 = vrot.slane %v1756, %v1774
      %v1776 = vlaneseq
      %v1777 = vshrl.u32 %v1776, 7
      %v1778 = vsub.s32 4, %v1777
      %v1779 = vrot.slane %v1756, %v1778
      %v1780 = vlaneseq
      %v1781 = vshrl.u32 %v1780, 7
      %v1782 = vsub.s32 5, %v1781
      %v1783 = vrot.slane %v1756, %v1782
      %v1784 = vlaneseq
      %v1785 = vshrl.u32 %v1784, 7
      %v1786 = vsub.s32 6, %v1785
      %v1787 = vrot.slane %v1756, %v1786
      %v1788 = vlaneseq
      %v1789 = vshrl.u32 %v1788, 7
      %v1790 = vsub.s32 7, %v1789
      %v1791 = vrot.slane %v1756, %v1790
      %v1792 = vlaneseq
      %v1793 = vshrl.u32 %v1792, 7
      %v1794 = vsub.s32 0, %v1793
      %v1795 = vrot.slane %v1757, %v1794
      %v1796 = vlaneseq
      %v1797 = vshrl.u32 %v1796, 7
      %v1798 = vsub.s32 1, %v1797
      %v1799 = vrot.slane %v1757, %v1798
      %v1800 = vlaneseq
      %v1801 = vshrl.u32 %v1800, 7
      %v1802 = vsub.s32 2, %v1801
      %v1803 = vrot.slane %v1757, %v1802
      %v1804 = vlaneseq
      %v1805 = vshrl.u32 %v1804, 7
      %v1806 = vsub.s32 3, %v1805
      %v1807 = vrot.slane %v1757, %v1806
      %v1808 = vlaneseq
      %v1809 = vshrl.u32 %v1808, 7
      %v1810 = vsub.s32 4, %v1809
      %v1811 = vrot.slane %v1757, %v1810
      %v1812 = vlaneseq
      %v1813 = vshrl.u32 %v1812, 7
      %v1814 = vsub.s32 5, %v1813
      %v1815 = vrot.slane %v1757, %v1814
      %v1816 = vlaneseq
      %v1817 = vshrl.u32 %v1816, 7
      %v1818 = vsub.s32 6, %v1817
      %v1819 = vrot.slane %v1757, %v1818
      %v1820 = vlaneseq
      %v1821 = vshrl.u32 %v1820, 7
      %v1822 = vsub.s32 7, %v1821
      %v1823 = vrot.slane %v1757, %v1822
      %v1904 = vunpack.c.l.b16 %v1692
      %v1905 = vunpack.c.h.b16 %v1692
      %v1906 = vunpack.c.l.b16 %v1693
      %v1907 = vunpack.c.h.b16 %v1693
      %v1908 = vunpack.c.l.b16 %v1694
      %v1909 = vunpack.c.h.b16 %v1694
      %v1910 = vunpack.c.l.b16 %v1695
      %v1911 = vunpack.c.h.b16 %v1695
      %v1912 = vunpack.c.l.b16 %v1696
      %v1913 = vunpack.c.h.b16 %v1696
      %v1914 = vunpack.c.l.b16 %v1697
      %v1915 = vunpack.c.h.b16 %v1697
      %v1916 = vunpack.c.l.b16 %v1698
      %v1917 = vunpack.c.h.b16 %v1698
      %v1918 = vunpack.c.l.b16 %v1699
      %v1919 = vunpack.c.h.b16 %v1699
      %v1920 = vunpack.c.l.b16 %v1700
      %v1921 = vunpack.c.h.b16 %v1700
      %v1922 = vunpack.c.l.b16 %v1701
      %v1923 = vunpack.c.h.b16 %v1701
      %v1924 = vunpack.c.l.b16 %v1702
      %v1925 = vunpack.c.h.b16 %v1702
      %v1926 = vunpack.c.l.b16 %v1703
      %v1927 = vunpack.c.h.b16 %v1703
      %v1928 = vunpack.c.l.b16 %v1704
      %v1929 = vunpack.c.h.b16 %v1704
      %v1930 = vunpack.c.l.b16 %v1705
      %v1931 = vunpack.c.h.b16 %v1705
      %v1932 = vunpack.c.l.b16 %v1706
      %v1933 = vunpack.c.h.b16 %v1706
      %v1934 = vunpack.c.l.b16 %v1707
      %v1935 = vunpack.c.h.b16 %v1707
      %v1936 = vunpack.c.l.b16 %v1708
      %v1937 = vunpack.c.h.b16 %v1708
      %v1938 = vunpack.c.l.b16 %v1709
      %v1939 = vunpack.c.h.b16 %v1709
      %v1940 = vunpack.c.l.b16 %v1710
      %v1941 = vunpack.c.h.b16 %v1710
      %v1942 = vunpack.c.l.b16 %v1711
      %v1943 = vunpack.c.h.b16 %v1711
      %v1944 = vunpack.c.l.b16 %v1712
      %v1945 = vunpack.c.h.b16 %v1712
      %v1946 = vunpack.c.l.b16 %v1713
      %v1947 = vunpack.c.h.b16 %v1713
      %v1948 = vunpack.c.l.b16 %v1714
      %v1949 = vunpack.c.h.b16 %v1714
      %v1950 = vunpack.c.l.b16 %v1715
      %v1951 = vunpack.c.h.b16 %v1715
      %v1952 = vunpack.c.l.b16 %v1716
      %v1953 = vunpack.c.h.b16 %v1716
      %v1954 = vunpack.c.l.b16 %v1717
      %v1955 = vunpack.c.h.b16 %v1717
      %v1956 = vunpack.c.l.b16 %v1718
      %v1957 = vunpack.c.h.b16 %v1718
      %v1958 = vunpack.c.l.b16 %v1719
      %v1959 = vunpack.c.h.b16 %v1719
      %v1960 = vunpack.c.l.b16 %v1720
      %v1961 = vunpack.c.h.b16 %v1720
      %v1962 = vunpack.c.l.b16 %v1721
      %v1963 = vunpack.c.h.b16 %v1721
      %v1964 = vunpack.c.l.b16 %v1722
      %v1965 = vunpack.c.h.b16 %v1722
      %v1966 = vunpack.c.l.b16 %v1723
      %v1967 = vunpack.c.h.b16 %v1723
      %v1968 = vunpack.c.l.b16 %v1724
      %v1969 = vunpack.c.h.b16 %v1724
      %v1970 = vunpack.c.l.b16 %v1725
      %v1971 = vunpack.c.h.b16 %v1725
      %v1972 = vunpack.c.l.b16 %v1726
      %v1973 = vunpack.c.h.b16 %v1726
      %v1974 = vunpack.c.l.b16 %v1727
      %v1975 = vunpack.c.h.b16 %v1727
      %v1976 = vunpack.c.l.b16 %v1728
      %v1977 = vunpack.c.h.b16 %v1728
      %v1978 = vunpack.c.l.b16 %v1729
      %v1979 = vunpack.c.h.b16 %v1729
      %v1980 = vunpack.c.l.b16 %v1730
      %v1981 = vunpack.c.h.b16 %v1730
      %v1982 = vunpack.c.l.b16 %v1731
      %v1983 = vunpack.c.h.b16 %v1731
      %v1984 = vunpack.c.l.b16 %v1732
      %v1985 = vunpack.c.h.b16 %v1732
      %v1986 = vunpack.c.l.b16 %v1733
      %v1987 = vunpack.c.h.b16 %v1733
      %v1988 = vunpack.c.l.b16 %v1734
      %v1989 = vunpack.c.h.b16 %v1734
      %v1990 = vunpack.c.l.b16 %v1735
      %v1991 = vunpack.c.h.b16 %v1735
      %v1992 = vunpack.c.l.b16 %v1736
      %v1993 = vunpack.c.h.b16 %v1736
      %v1994 = vunpack.c.l.b16 %v1737
      %v1995 = vunpack.c.h.b16 %v1737
      %v1996 = vunpack.c.l.b16 %v1738
      %v1997 = vunpack.c.h.b16 %v1738
      %v1998 = vunpack.c.l.b16 %v1739
      %v1999 = vunpack.c.h.b16 %v1739
      %v2000 = vunpack.c.l.b16 %v1740
      %v2001 = vunpack.c.h.b16 %v1740
      %v2002 = vunpack.c.l.b16 %v1741
      %v2003 = vunpack.c.h.b16 %v1741
      %v2004 = vunpack.c.l.b16 %v1742
      %v2005 = vunpack.c.h.b16 %v1742
      %v2006 = vunpack.c.l.b16 %v1743
      %v2007 = vunpack.c.h.b16 %v1743
      %v2008 = vunpack.c.l.b16 %v1744
      %v2009 = vunpack.c.h.b16 %v1744
      %v2010 = vunpack.c.l.b16 %v1745
      %v2011 = vunpack.c.h.b16 %v1745
      %v2012 = vunpack.c.l.b16 %v1746
      %v2013 = vunpack.c.h.b16 %v1746
      %v2014 = vunpack.c.l.b16 %v1747
      %v2015 = vunpack.c.h.b16 %v1747
      %v2016 = vunpack.c.l.b16 %v1748
      %v2017 = vunpack.c.h.b16 %v1748
      %v2018 = vunpack.c.l.b16 %v1749
      %v2019 = vunpack.c.h.b16 %v1749
      %v2020 = vunpack.c.l.b16 %v1750
      %v2021 = vunpack.c.h.b16 %v1750
      %v2022 = vunpack.c.l.b16 %v1751
      %v2023 = vunpack.c.h.b16 %v1751
      %v2024 = vunpack.c.l.b16 %v1752
      %v2025 = vunpack.c.h.b16 %v1752
      %v2026 = vunpack.c.l.b16 %v1753
      %v2027 = vunpack.c.h.b16 %v1753
      %v2028 = vunpack.c.l.b16 %v1754
      %v2029 = vunpack.c.h.b16 %v1754
      %v2030 = vunpack.c.l.b16 %v1755
      %v2031 = vunpack.c.h.b16 %v1755
      %v2032 = vpack.c.b16 %v1920, %v1904
      %v2033 = vpack.c.b16 %v1921, %v1905
      %v2034 = vpack.c.b16 %v1922, %v1906
      %v2035 = vpack.c.b16 %v1923, %v1907
      %v2036 = vpack.c.b16 %v1924, %v1908
      %v2037 = vpack.c.b16 %v1925, %v1909
      %v2038 = vpack.c.b16 %v1926, %v1910
      %v2039 = vpack.c.b16 %v1927, %v1911
      %v2040 = vpack.c.b16 %v1928, %v1912
      %v2041 = vpack.c.b16 %v1929, %v1913
      %v2042 = vpack.c.b16 %v1930, %v1914
      %v2043 = vpack.c.b16 %v1931, %v1915
      %v2044 = vpack.c.b16 %v1932, %v1916
      %v2045 = vpack.c.b16 %v1933, %v1917
      %v2046 = vpack.c.b16 %v1934, %v1918
      %v2047 = vpack.c.b16 %v1935, %v1919
      %v2048 = vpack.c.b16 %v1952, %v1936
      %v2049 = vpack.c.b16 %v1953, %v1937
      %v2050 = vpack.c.b16 %v1954, %v1938
      %v2051 = vpack.c.b16 %v1955, %v1939
      %v2052 = vpack.c.b16 %v1956, %v1940
      %v2053 = vpack.c.b16 %v1957, %v1941
      %v2054 = vpack.c.b16 %v1958, %v1942
      %v2055 = vpack.c.b16 %v1959, %v1943
      %v2056 = vpack.c.b16 %v1960, %v1944
      %v2057 = vpack.c.b16 %v1961, %v1945
      %v2058 = vpack.c.b16 %v1962, %v1946
      %v2059 = vpack.c.b16 %v1963, %v1947
      %v2060 = vpack.c.b16 %v1964, %v1948
      %v2061 = vpack.c.b16 %v1965, %v1949
      %v2062 = vpack.c.b16 %v1966, %v1950
      %v2063 = vpack.c.b16 %v1967, %v1951
      %v2064 = vpack.c.b16 %v1984, %v1968
      %v2065 = vpack.c.b16 %v1985, %v1969
      %v2066 = vpack.c.b16 %v1986, %v1970
      %v2067 = vpack.c.b16 %v1987, %v1971
      %v2068 = vpack.c.b16 %v1988, %v1972
      %v2069 = vpack.c.b16 %v1989, %v1973
      %v2070 = vpack.c.b16 %v1990, %v1974
      %v2071 = vpack.c.b16 %v1991, %v1975
      %v2072 = vpack.c.b16 %v1992, %v1976
      %v2073 = vpack.c.b16 %v1993, %v1977
      %v2074 = vpack.c.b16 %v1994, %v1978
      %v2075 = vpack.c.b16 %v1995, %v1979
      %v2076 = vpack.c.b16 %v1996, %v1980
      %v2077 = vpack.c.b16 %v1997, %v1981
      %v2078 = vpack.c.b16 %v1998, %v1982
      %v2079 = vpack.c.b16 %v1999, %v1983
      %v2080 = vpack.c.b16 %v2016, %v2000
      %v2081 = vpack.c.b16 %v2017, %v2001
      %v2082 = vpack.c.b16 %v2018, %v2002
      %v2083 = vpack.c.b16 %v2019, %v2003
      %v2084 = vpack.c.b16 %v2020, %v2004
      %v2085 = vpack.c.b16 %v2021, %v2005
      %v2086 = vpack.c.b16 %v2022, %v2006
      %v2087 = vpack.c.b16 %v2023, %v2007
      %v2088 = vpack.c.b16 %v2024, %v2008
      %v2089 = vpack.c.b16 %v2025, %v2009
      %v2090 = vpack.c.b16 %v2026, %v2010
      %v2091 = vpack.c.b16 %v2027, %v2011
      %v2092 = vpack.c.b16 %v2028, %v2012
      %v2093 = vpack.c.b16 %v2029, %v2013
      %v2094 = vpack.c.b16 %v2030, %v2014
      %v2095 = vpack.c.b16 %v2031, %v2015
      %v2161 = vsel %vm763, %v1688, 0
      %v2164 = vsel %vm763, %v1689, 0
      %v2167 = vsel %vm763, %v1690, 0
      %v2170 = vsel %vm763, %v1691, 0
      %2172 = vmatprep.subr.bf16.mxu0 0
      %2173 = vmatpush1.bf16.msra.mxu0 0
      %2174 = vmatprep.subr.bf16.mxu0 0
      %2175 = vmatpush1.bf16.msra.mxu0 0
      %2176 = vmatprep.subr.bf16.mxu0 0
      %2177 = vmatpush1.bf16.msra.mxu0 0
      %2178 = vmatprep.subr.bf16.mxu0 0
      %2179 = vmatpush1.bf16.msra.mxu0 0
      %2180 = vmatprep.subr.bf16.mxu0 %v2081
      %2181 = vmatpush1.bf16.msra.mxu0 %v2080
      %2182 = vmatprep.subr.bf16.mxu0 %v2065
      %2183 = vmatpush1.bf16.msra.mxu0 %v2064
      %2184 = vmatprep.subr.bf16.mxu0 %v2049
      %2185 = vmatpush1.bf16.msra.mxu0 %v2048
      %2186 = vmatprep.subr.bf16.mxu0 %v2033
      %2187 = vmatpush1.bf16.msra.mxu0 %v2032
      %2188 = vmatprep.subr.bf16.mxu0 0
      %2189 = vmatpush2.bf16.msra.mxu0 0
      %2190 = vmatprep.subr.bf16.mxu0 0
      %2191 = vmatpush2.bf16.msra.mxu0 0
      %2192 = vmatprep.subr.bf16.mxu0 0
      %2193 = vmatpush2.bf16.msra.mxu0 0
      %2194 = vmatprep.subr.bf16.mxu0 0
      %2195 = vmatpush2.bf16.msra.mxu0 0
      %2196 = vmatprep.subr.bf16.mxu0 0
      %2197 = vmatpush2.bf16.msra.mxu0 0
      %2198 = vmatprep.subr.bf16.mxu0 0
      %2199 = vmatpush2.bf16.msra.mxu0 0
      %2200 = vmatprep.subr.bf16.mxu0 0
      %2201 = vmatpush2.bf16.msra.mxu0 0
      %2202 = vmatprep.subr.bf16.mxu0 0
      %2203 = vmatpush2.bf16.msra.mxu0 0
      %2204 = vmatprep.mubr.bf16.mxu0 0
      %2205 = vmatmul.mubr.bf16.gmra.mxu0 %v2161
      %v2206 = vpop.f32.mrf.mxu0
      %v2207 = vadd.f32 %v1763, %v2206
      %v2208 = vpop.f32.mrf.mxu0
      %v2209 = vadd.f32 %v1767, %v2208
      %v2210 = vpop.f32.mrf.mxu0
      %v2211 = vadd.f32 %v1763, %v2210
      %v2212 = vpop.f32.mrf.mxu0
      %v2213 = vadd.f32 %v1767, %v2212
      %2214 = vmatprep.mubr.bf16.mxu0 0
      %2215 = vmatmul.mubr.bf16.gmra.mxu0 %v2164
      %v2216 = vpop.f32.mrf.mxu0
      %v2217 = vadd.f32 %v1763, %v2216
      %v2218 = vpop.f32.mrf.mxu0
      %v2219 = vadd.f32 %v1767, %v2218
      %v2220 = vpop.f32.mrf.mxu0
      %v2221 = vadd.f32 %v1763, %v2220
      %v2222 = vpop.f32.mrf.mxu0
      %v2223 = vadd.f32 %v1767, %v2222
      %2224 = vmatprep.mubr.bf16.mxu0 0
      %2225 = vmatmul.mubr.bf16.gmra.mxu0 %v2167
      %v2226 = vpop.f32.mrf.mxu0
      %v2227 = vadd.f32 %v1763, %v2226
      %v2228 = vpop.f32.mrf.mxu0
      %v2229 = vadd.f32 %v1767, %v2228
      %v2230 = vpop.f32.mrf.mxu0
      %v2231 = vadd.f32 %v1763, %v2230
      %v2232 = vpop.f32.mrf.mxu0
      %v2233 = vadd.f32 %v1767, %v2232
      %2234 = vmatprep.mubr.bf16.mxu0 0
      %2235 = vmatmul.mubr.bf16.gmra.mxu0 %v2170
      %v2236 = vpop.f32.mrf.mxu0
      %v2237 = vadd.f32 %v1763, %v2236
      %v2238 = vpop.f32.mrf.mxu0
      %v2239 = vadd.f32 %v1767, %v2238
      %v2240 = vpop.f32.mrf.mxu0
      %v2241 = vadd.f32 %v1763, %v2240
      %v2242 = vpop.f32.mrf.mxu0
      %v2243 = vadd.f32 %v1767, %v2242
      %2244 = vdwg.mxu0
      %2245 = vmatprep.subr.bf16.mxu0 0
      %2246 = vmatpush1.bf16.msra.mxu0 0
      %2247 = vmatprep.subr.bf16.mxu0 0
      %2248 = vmatpush1.bf16.msra.mxu0 0
      %2249 = vmatprep.subr.bf16.mxu0 0
      %2250 = vmatpush1.bf16.msra.mxu0 0
      %2251 = vmatprep.subr.bf16.mxu0 0
      %2252 = vmatpush1.bf16.msra.mxu0 0
      %2253 = vmatprep.subr.bf16.mxu0 %v2083
      %2254 = vmatpush1.bf16.msra.mxu0 %v2082
      %2255 = vmatprep.subr.bf16.mxu0 %v2067
      %2256 = vmatpush1.bf16.msra.mxu0 %v2066
      %2257 = vmatprep.subr.bf16.mxu0 %v2051
      %2258 = vmatpush1.bf16.msra.mxu0 %v2050
      %2259 = vmatprep.subr.bf16.mxu0 %v2035
      %2260 = vmatpush1.bf16.msra.mxu0 %v2034
      %2261 = vmatprep.subr.bf16.mxu0 0
      %2262 = vmatpush2.bf16.msra.mxu0 0
      %2263 = vmatprep.subr.bf16.mxu0 0
      %2264 = vmatpush2.bf16.msra.mxu0 0
      %2265 = vmatprep.subr.bf16.mxu0 0
      %2266 = vmatpush2.bf16.msra.mxu0 0
      %2267 = vmatprep.subr.bf16.mxu0 0
      %2268 = vmatpush2.bf16.msra.mxu0 0
      %2269 = vmatprep.subr.bf16.mxu0 0
      %2270 = vmatpush2.bf16.msra.mxu0 0
      %2271 = vmatprep.subr.bf16.mxu0 0
      %2272 = vmatpush2.bf16.msra.mxu0 0
      %2273 = vmatprep.subr.bf16.mxu0 0
      %2274 = vmatpush2.bf16.msra.mxu0 0
      %2275 = vmatprep.subr.bf16.mxu0 0
      %2276 = vmatpush2.bf16.msra.mxu0 0
      %2277 = vmatprep.mubr.bf16.mxu0 0
      %2278 = vmatmul.mubr.bf16.gmra.mxu0 %v2161
      %v2279 = vpop.f32.mrf.mxu0
      %v2280 = vadd.f32 %v1771, %v2279
      %v2281 = vpop.f32.mrf.mxu0
      %v2282 = vadd.f32 %v1775, %v2281
      %v2283 = vpop.f32.mrf.mxu0
      %v2284 = vadd.f32 %v1771, %v2283
      %v2285 = vpop.f32.mrf.mxu0
      %v2286 = vadd.f32 %v1775, %v2285
      %2287 = vmatprep.mubr.bf16.mxu0 0
      %2288 = vmatmul.mubr.bf16.gmra.mxu0 %v2164
      %v2289 = vpop.f32.mrf.mxu0
      %v2290 = vadd.f32 %v1771, %v2289
      %v2291 = vpop.f32.mrf.mxu0
      %v2292 = vadd.f32 %v1775, %v2291
      %v2293 = vpop.f32.mrf.mxu0
      %v2294 = vadd.f32 %v1771, %v2293
      %v2295 = vpop.f32.mrf.mxu0
      %v2296 = vadd.f32 %v1775, %v2295
      %2297 = vmatprep.mubr.bf16.mxu0 0
      %2298 = vmatmul.mubr.bf16.gmra.mxu0 %v2167
      %v2299 = vpop.f32.mrf.mxu0
      %v2300 = vadd.f32 %v1771, %v2299
      %v2301 = vpop.f32.mrf.mxu0
      %v2302 = vadd.f32 %v1775, %v2301
      %v2303 = vpop.f32.mrf.mxu0
      %v2304 = vadd.f32 %v1771, %v2303
      %v2305 = vpop.f32.mrf.mxu0
      %v2306 = vadd.f32 %v1775, %v2305
      %2307 = vmatprep.mubr.bf16.mxu0 0
      %2308 = vmatmul.mubr.bf16.gmra.mxu0 %v2170
      %v2309 = vpop.f32.mrf.mxu0
      %v2310 = vadd.f32 %v1771, %v2309
      %v2311 = vpop.f32.mrf.mxu0
      %v2312 = vadd.f32 %v1775, %v2311
      %v2313 = vpop.f32.mrf.mxu0
      %v2314 = vadd.f32 %v1771, %v2313
      %v2315 = vpop.f32.mrf.mxu0
      %v2316 = vadd.f32 %v1775, %v2315
      %2317 = vdwg.mxu0
      %2318 = vmatprep.subr.bf16.mxu0 0
      %2319 = vmatpush1.bf16.msra.mxu0 0
      %2320 = vmatprep.subr.bf16.mxu0 0
      %2321 = vmatpush1.bf16.msra.mxu0 0
      %2322 = vmatprep.subr.bf16.mxu0 0
      %2323 = vmatpush1.bf16.msra.mxu0 0
      %2324 = vmatprep.subr.bf16.mxu0 0
      %2325 = vmatpush1.bf16.msra.mxu0 0
      %2326 = vmatprep.subr.bf16.mxu0 %v2085
      %2327 = vmatpush1.bf16.msra.mxu0 %v2084
      %2328 = vmatprep.subr.bf16.mxu0 %v2069
      %2329 = vmatpush1.bf16.msra.mxu0 %v2068
      %2330 = vmatprep.subr.bf16.mxu0 %v2053
      %2331 = vmatpush1.bf16.msra.mxu0 %v2052
      %2332 = vmatprep.subr.bf16.mxu0 %v2037
      %2333 = vmatpush1.bf16.msra.mxu0 %v2036
      %2334 = vmatprep.subr.bf16.mxu0 0
      %2335 = vmatpush2.bf16.msra.mxu0 0
      %2336 = vmatprep.subr.bf16.mxu0 0
      %2337 = vmatpush2.bf16.msra.mxu0 0
      %2338 = vmatprep.subr.bf16.mxu0 0
      %2339 = vmatpush2.bf16.msra.mxu0 0
      %2340 = vmatprep.subr.bf16.mxu0 0
      %2341 = vmatpush2.bf16.msra.mxu0 0
      %2342 = vmatprep.subr.bf16.mxu0 0
      %2343 = vmatpush2.bf16.msra.mxu0 0
      %2344 = vmatprep.subr.bf16.mxu0 0
      %2345 = vmatpush2.bf16.msra.mxu0 0
      %2346 = vmatprep.subr.bf16.mxu0 0
      %2347 = vmatpush2.bf16.msra.mxu0 0
      %2348 = vmatprep.subr.bf16.mxu0 0
      %2349 = vmatpush2.bf16.msra.mxu0 0
      %2350 = vmatprep.mubr.bf16.mxu0 0
      %2351 = vmatmul.mubr.bf16.gmra.mxu0 %v2161
      %v2352 = vpop.f32.mrf.mxu0
      %v2353 = vadd.f32 %v1779, %v2352
      %v2354 = vpop.f32.mrf.mxu0
      %v2355 = vadd.f32 %v1783, %v2354
      %v2356 = vpop.f32.mrf.mxu0
      %v2357 = vadd.f32 %v1779, %v2356
      %v2358 = vpop.f32.mrf.mxu0
      %v2359 = vadd.f32 %v1783, %v2358
      %2360 = vmatprep.mubr.bf16.mxu0 0
      %2361 = vmatmul.mubr.bf16.gmra.mxu0 %v2164
      %v2362 = vpop.f32.mrf.mxu0
      %v2363 = vadd.f32 %v1779, %v2362
      %v2364 = vpop.f32.mrf.mxu0
      %v2365 = vadd.f32 %v1783, %v2364
      %v2366 = vpop.f32.mrf.mxu0
      %v2367 = vadd.f32 %v1779, %v2366
      %v2368 = vpop.f32.mrf.mxu0
      %v2369 = vadd.f32 %v1783, %v2368
      %2370 = vmatprep.mubr.bf16.mxu0 0
      %2371 = vmatmul.mubr.bf16.gmra.mxu0 %v2167
      %v2372 = vpop.f32.mrf.mxu0
      %v2373 = vadd.f32 %v1779, %v2372
      %v2374 = vpop.f32.mrf.mxu0
      %v2375 = vadd.f32 %v1783, %v2374
      %v2376 = vpop.f32.mrf.mxu0
      %v2377 = vadd.f32 %v1779, %v2376
      %v2378 = vpop.f32.mrf.mxu0
      %v2379 = vadd.f32 %v1783, %v2378
      %2380 = vmatprep.mubr.bf16.mxu0 0
      %2381 = vmatmul.mubr.bf16.gmra.mxu0 %v2170
      %v2382 = vpop.f32.mrf.mxu0
      %v2383 = vadd.f32 %v1779, %v2382
      %v2384 = vpop.f32.mrf.mxu0
      %v2385 = vadd.f32 %v1783, %v2384
      %v2386 = vpop.f32.mrf.mxu0
      %v2387 = vadd.f32 %v1779, %v2386
      %v2388 = vpop.f32.mrf.mxu0
      %v2389 = vadd.f32 %v1783, %v2388
      %2390 = vdwg.mxu0
      %2391 = vmatprep.subr.bf16.mxu0 0
      %2392 = vmatpush1.bf16.msra.mxu0 0
      %2393 = vmatprep.subr.bf16.mxu0 0
      %2394 = vmatpush1.bf16.msra.mxu0 0
      %2395 = vmatprep.subr.bf16.mxu0 0
      %2396 = vmatpush1.bf16.msra.mxu0 0
      %2397 = vmatprep.subr.bf16.mxu0 0
      %2398 = vmatpush1.bf16.msra.mxu0 0
      %2399 = vmatprep.subr.bf16.mxu0 %v2087
      %2400 = vmatpush1.bf16.msra.mxu0 %v2086
      %2401 = vmatprep.subr.bf16.mxu0 %v2071
      %2402 = vmatpush1.bf16.msra.mxu0 %v2070
      %2403 = vmatprep.subr.bf16.mxu0 %v2055
      %2404 = vmatpush1.bf16.msra.mxu0 %v2054
      %2405 = vmatprep.subr.bf16.mxu0 %v2039
      %2406 = vmatpush1.bf16.msra.mxu0 %v2038
      %2407 = vmatprep.subr.bf16.mxu0 0
      %2408 = vmatpush2.bf16.msra.mxu0 0
      %2409 = vmatprep.subr.bf16.mxu0 0
      %2410 = vmatpush2.bf16.msra.mxu0 0
      %2411 = vmatprep.subr.bf16.mxu0 0
      %2412 = vmatpush2.bf16.msra.mxu0 0
      %2413 = vmatprep.subr.bf16.mxu0 0
      %2414 = vmatpush2.bf16.msra.mxu0 0
      %2415 = vmatprep.subr.bf16.mxu0 0
      %2416 = vmatpush2.bf16.msra.mxu0 0
      %2417 = vmatprep.subr.bf16.mxu0 0
      %2418 = vmatpush2.bf16.msra.mxu0 0
      %2419 = vmatprep.subr.bf16.mxu0 0
      %2420 = vmatpush2.bf16.msra.mxu0 0
      %2421 = vmatprep.subr.bf16.mxu0 0
      %2422 = vmatpush2.bf16.msra.mxu0 0
      %2423 = vmatprep.mubr.bf16.mxu0 0
      %2424 = vmatmul.mubr.bf16.gmra.mxu0 %v2161
      %v2425 = vpop.f32.mrf.mxu0
      %v2426 = vadd.f32 %v1787, %v2425
      %v2427 = vpop.f32.mrf.mxu0
      %v2428 = vadd.f32 %v1791, %v2427
      %v2429 = vpop.f32.mrf.mxu0
      %v2430 = vadd.f32 %v1787, %v2429
      %v2431 = vpop.f32.mrf.mxu0
      %v2432 = vadd.f32 %v1791, %v2431
      %2433 = vmatprep.mubr.bf16.mxu0 0
      %2434 = vmatmul.mubr.bf16.gmra.mxu0 %v2164
      %v2435 = vpop.f32.mrf.mxu0
      %v2436 = vadd.f32 %v1787, %v2435
      %v2437 = vpop.f32.mrf.mxu0
      %v2438 = vadd.f32 %v1791, %v2437
      %v2439 = vpop.f32.mrf.mxu0
      %v2440 = vadd.f32 %v1787, %v2439
      %v2441 = vpop.f32.mrf.mxu0
      %v2442 = vadd.f32 %v1791, %v2441
      %2443 = vmatprep.mubr.bf16.mxu0 0
      %2444 = vmatmul.mubr.bf16.gmra.mxu0 %v2167
      %v2445 = vpop.f32.mrf.mxu0
      %v2446 = vadd.f32 %v1787, %v2445
      %v2447 = vpop.f32.mrf.mxu0
      %v2448 = vadd.f32 %v1791, %v2447
      %v2449 = vpop.f32.mrf.mxu0
      %v2450 = vadd.f32 %v1787, %v2449
      %v2451 = vpop.f32.mrf.mxu0
      %v2452 = vadd.f32 %v1791, %v2451
      %2453 = vmatprep.mubr.bf16.mxu0 0
      %2454 = vmatmul.mubr.bf16.gmra.mxu0 %v2170
      %v2455 = vpop.f32.mrf.mxu0
      %v2456 = vadd.f32 %v1787, %v2455
      %v2457 = vpop.f32.mrf.mxu0
      %v2458 = vadd.f32 %v1791, %v2457
      %v2459 = vpop.f32.mrf.mxu0
      %v2460 = vadd.f32 %v1787, %v2459
      %v2461 = vpop.f32.mrf.mxu0
      %v2462 = vadd.f32 %v1791, %v2461
      %2463 = vdwg.mxu0
      %2464 = vmatprep.subr.bf16.mxu0 0
      %2465 = vmatpush1.bf16.msra.mxu0 0
      %2466 = vmatprep.subr.bf16.mxu0 0
      %2467 = vmatpush1.bf16.msra.mxu0 0
      %2468 = vmatprep.subr.bf16.mxu0 0
      %2469 = vmatpush1.bf16.msra.mxu0 0
      %2470 = vmatprep.subr.bf16.mxu0 0
      %2471 = vmatpush1.bf16.msra.mxu0 0
      %2472 = vmatprep.subr.bf16.mxu0 %v2089
      %2473 = vmatpush1.bf16.msra.mxu0 %v2088
      %2474 = vmatprep.subr.bf16.mxu0 %v2073
      %2475 = vmatpush1.bf16.msra.mxu0 %v2072
      %2476 = vmatprep.subr.bf16.mxu0 %v2057
      %2477 = vmatpush1.bf16.msra.mxu0 %v2056
      %2478 = vmatprep.subr.bf16.mxu0 %v2041
      %2479 = vmatpush1.bf16.msra.mxu0 %v2040
      %2480 = vmatprep.subr.bf16.mxu0 0
      %2481 = vmatpush2.bf16.msra.mxu0 0
      %2482 = vmatprep.subr.bf16.mxu0 0
      %2483 = vmatpush2.bf16.msra.mxu0 0
      %2484 = vmatprep.subr.bf16.mxu0 0
      %2485 = vmatpush2.bf16.msra.mxu0 0
      %2486 = vmatprep.subr.bf16.mxu0 0
      %2487 = vmatpush2.bf16.msra.mxu0 0
      %2488 = vmatprep.subr.bf16.mxu0 0
      %2489 = vmatpush2.bf16.msra.mxu0 0
      %2490 = vmatprep.subr.bf16.mxu0 0
      %2491 = vmatpush2.bf16.msra.mxu0 0
      %2492 = vmatprep.subr.bf16.mxu0 0
      %2493 = vmatpush2.bf16.msra.mxu0 0
      %2494 = vmatprep.subr.bf16.mxu0 0
      %2495 = vmatpush2.bf16.msra.mxu0 0
      %2496 = vmatprep.mubr.bf16.mxu0 0
      %2497 = vmatmul.mubr.bf16.gmra.mxu0 %v2161
      %v2498 = vpop.f32.mrf.mxu0
      %v2499 = vadd.f32 %v1795, %v2498
      %v2500 = vpop.f32.mrf.mxu0
      %v2501 = vadd.f32 %v1799, %v2500
      %v2502 = vpop.f32.mrf.mxu0
      %v2503 = vadd.f32 %v1795, %v2502
      %v2504 = vpop.f32.mrf.mxu0
      %v2505 = vadd.f32 %v1799, %v2504
      %2506 = vmatprep.mubr.bf16.mxu0 0
      %2507 = vmatmul.mubr.bf16.gmra.mxu0 %v2164
      %v2508 = vpop.f32.mrf.mxu0
      %v2509 = vadd.f32 %v1795, %v2508
      %v2510 = vpop.f32.mrf.mxu0
      %v2511 = vadd.f32 %v1799, %v2510
      %v2512 = vpop.f32.mrf.mxu0
      %v2513 = vadd.f32 %v1795, %v2512
      %v2514 = vpop.f32.mrf.mxu0
      %v2515 = vadd.f32 %v1799, %v2514
      %2516 = vmatprep.mubr.bf16.mxu0 0
      %2517 = vmatmul.mubr.bf16.gmra.mxu0 %v2167
      %v2518 = vpop.f32.mrf.mxu0
      %v2519 = vadd.f32 %v1795, %v2518
      %v2520 = vpop.f32.mrf.mxu0
      %v2521 = vadd.f32 %v1799, %v2520
      %v2522 = vpop.f32.mrf.mxu0
      %v2523 = vadd.f32 %v1795, %v2522
      %v2524 = vpop.f32.mrf.mxu0
      %v2525 = vadd.f32 %v1799, %v2524
      %2526 = vmatprep.mubr.bf16.mxu0 0
      %2527 = vmatmul.mubr.bf16.gmra.mxu0 %v2170
      %v2528 = vpop.f32.mrf.mxu0
      %v2529 = vadd.f32 %v1795, %v2528
      %v2530 = vpop.f32.mrf.mxu0
      %v2531 = vadd.f32 %v1799, %v2530
      %v2532 = vpop.f32.mrf.mxu0
      %v2533 = vadd.f32 %v1795, %v2532
      %v2534 = vpop.f32.mrf.mxu0
      %v2535 = vadd.f32 %v1799, %v2534
      %2536 = vdwg.mxu0
      %2537 = vmatprep.subr.bf16.mxu0 0
      %2538 = vmatpush1.bf16.msra.mxu0 0
      %2539 = vmatprep.subr.bf16.mxu0 0
      %2540 = vmatpush1.bf16.msra.mxu0 0
      %2541 = vmatprep.subr.bf16.mxu0 0
      %2542 = vmatpush1.bf16.msra.mxu0 0
      %2543 = vmatprep.subr.bf16.mxu0 0
      %2544 = vmatpush1.bf16.msra.mxu0 0
      %2545 = vmatprep.subr.bf16.mxu0 %v2091
      %2546 = vmatpush1.bf16.msra.mxu0 %v2090
      %2547 = vmatprep.subr.bf16.mxu0 %v2075
      %2548 = vmatpush1.bf16.msra.mxu0 %v2074
      %2549 = vmatprep.subr.bf16.mxu0 %v2059
      %2550 = vmatpush1.bf16.msra.mxu0 %v2058
      %2551 = vmatprep.subr.bf16.mxu0 %v2043
      %2552 = vmatpush1.bf16.msra.mxu0 %v2042
      %2553 = vmatprep.subr.bf16.mxu0 0
      %2554 = vmatpush2.bf16.msra.mxu0 0
      %2555 = vmatprep.subr.bf16.mxu0 0
      %2556 = vmatpush2.bf16.msra.mxu0 0
      %2557 = vmatprep.subr.bf16.mxu0 0
      %2558 = vmatpush2.bf16.msra.mxu0 0
      %2559 = vmatprep.subr.bf16.mxu0 0
      %2560 = vmatpush2.bf16.msra.mxu0 0
      %2561 = vmatprep.subr.bf16.mxu0 0
      %2562 = vmatpush2.bf16.msra.mxu0 0
      %2563 = vmatprep.subr.bf16.mxu0 0
      %2564 = vmatpush2.bf16.msra.mxu0 0
      %2565 = vmatprep.subr.bf16.mxu0 0
      %2566 = vmatpush2.bf16.msra.mxu0 0
      %2567 = vmatprep.subr.bf16.mxu0 0
      %2568 = vmatpush2.bf16.msra.mxu0 0
      %2569 = vmatprep.mubr.bf16.mxu0 0
      %2570 = vmatmul.mubr.bf16.gmra.mxu0 %v2161
      %v2571 = vpop.f32.mrf.mxu0
      %v2572 = vadd.f32 %v1803, %v2571
      %v2573 = vpop.f32.mrf.mxu0
      %v2574 = vadd.f32 %v1807, %v2573
      %v2575 = vpop.f32.mrf.mxu0
      %v2576 = vadd.f32 %v1803, %v2575
      %v2577 = vpop.f32.mrf.mxu0
      %v2578 = vadd.f32 %v1807, %v2577
      %2579 = vmatprep.mubr.bf16.mxu0 0
      %2580 = vmatmul.mubr.bf16.gmra.mxu0 %v2164
      %v2581 = vpop.f32.mrf.mxu0
      %v2582 = vadd.f32 %v1803, %v2581
      %v2583 = vpop.f32.mrf.mxu0
      %v2584 = vadd.f32 %v1807, %v2583
      %v2585 = vpop.f32.mrf.mxu0
      %v2586 = vadd.f32 %v1803, %v2585
      %v2587 = vpop.f32.mrf.mxu0
      %v2588 = vadd.f32 %v1807, %v2587
      %2589 = vmatprep.mubr.bf16.mxu0 0
      %2590 = vmatmul.mubr.bf16.gmra.mxu0 %v2167
      %v2591 = vpop.f32.mrf.mxu0
      %v2592 = vadd.f32 %v1803, %v2591
      %v2593 = vpop.f32.mrf.mxu0
      %v2594 = vadd.f32 %v1807, %v2593
      %v2595 = vpop.f32.mrf.mxu0
      %v2596 = vadd.f32 %v1803, %v2595
      %v2597 = vpop.f32.mrf.mxu0
      %v2598 = vadd.f32 %v1807, %v2597
      %2599 = vmatprep.mubr.bf16.mxu0 0
      %2600 = vmatmul.mubr.bf16.gmra.mxu0 %v2170
      %v2601 = vpop.f32.mrf.mxu0
      %v2602 = vadd.f32 %v1803, %v2601
      %v2603 = vpop.f32.mrf.mxu0
      %v2604 = vadd.f32 %v1807, %v2603
      %v2605 = vpop.f32.mrf.mxu0
      %v2606 = vadd.f32 %v1803, %v2605
      %v2607 = vpop.f32.mrf.mxu0
      %v2608 = vadd.f32 %v1807, %v2607
      %2609 = vdwg.mxu0
      %2610 = vmatprep.subr.bf16.mxu0 0
      %2611 = vmatpush1.bf16.msra.mxu0 0
      %2612 = vmatprep.subr.bf16.mxu0 0
      %2613 = vmatpush1.bf16.msra.mxu0 0
      %2614 = vmatprep.subr.bf16.mxu0 0
      %2615 = vmatpush1.bf16.msra.mxu0 0
      %2616 = vmatprep.subr.bf16.mxu0 0
      %2617 = vmatpush1.bf16.msra.mxu0 0
      %2618 = vmatprep.subr.bf16.mxu0 %v2093
      %2619 = vmatpush1.bf16.msra.mxu0 %v2092
      %2620 = vmatprep.subr.bf16.mxu0 %v2077
      %2621 = vmatpush1.bf16.msra.mxu0 %v2076
      %2622 = vmatprep.subr.bf16.mxu0 %v2061
      %2623 = vmatpush1.bf16.msra.mxu0 %v2060
      %2624 = vmatprep.subr.bf16.mxu0 %v2045
      %2625 = vmatpush1.bf16.msra.mxu0 %v2044
      %2626 = vmatprep.subr.bf16.mxu0 0
      %2627 = vmatpush2.bf16.msra.mxu0 0
      %2628 = vmatprep.subr.bf16.mxu0 0
      %2629 = vmatpush2.bf16.msra.mxu0 0
      %2630 = vmatprep.subr.bf16.mxu0 0
      %2631 = vmatpush2.bf16.msra.mxu0 0
      %2632 = vmatprep.subr.bf16.mxu0 0
      %2633 = vmatpush2.bf16.msra.mxu0 0
      %2634 = vmatprep.subr.bf16.mxu0 0
      %2635 = vmatpush2.bf16.msra.mxu0 0
      %2636 = vmatprep.subr.bf16.mxu0 0
      %2637 = vmatpush2.bf16.msra.mxu0 0
      %2638 = vmatprep.subr.bf16.mxu0 0
      %2639 = vmatpush2.bf16.msra.mxu0 0
      %2640 = vmatprep.subr.bf16.mxu0 0
      %2641 = vmatpush2.bf16.msra.mxu0 0
      %2642 = vmatprep.mubr.bf16.mxu0 0
      %2643 = vmatmul.mubr.bf16.gmra.mxu0 %v2161
      %v2644 = vpop.f32.mrf.mxu0
      %v2645 = vadd.f32 %v1811, %v2644
      %v2646 = vpop.f32.mrf.mxu0
      %v2647 = vadd.f32 %v1815, %v2646
      %v2648 = vpop.f32.mrf.mxu0
      %v2649 = vadd.f32 %v1811, %v2648
      %v2650 = vpop.f32.mrf.mxu0
      %v2651 = vadd.f32 %v1815, %v2650
      %2652 = vmatprep.mubr.bf16.mxu0 0
      %2653 = vmatmul.mubr.bf16.gmra.mxu0 %v2164
      %v2654 = vpop.f32.mrf.mxu0
      %v2655 = vadd.f32 %v1811, %v2654
      %v2656 = vpop.f32.mrf.mxu0
      %v2657 = vadd.f32 %v1815, %v2656
      %v2658 = vpop.f32.mrf.mxu0
      %v2659 = vadd.f32 %v1811, %v2658
      %v2660 = vpop.f32.mrf.mxu0
      %v2661 = vadd.f32 %v1815, %v2660
      %2662 = vmatprep.mubr.bf16.mxu0 0
      %2663 = vmatmul.mubr.bf16.gmra.mxu0 %v2167
      %v2664 = vpop.f32.mrf.mxu0
      %v2665 = vadd.f32 %v1811, %v2664
      %v2666 = vpop.f32.mrf.mxu0
      %v2667 = vadd.f32 %v1815, %v2666
      %v2668 = vpop.f32.mrf.mxu0
      %v2669 = vadd.f32 %v1811, %v2668
      %v2670 = vpop.f32.mrf.mxu0
      %v2671 = vadd.f32 %v1815, %v2670
      %2672 = vmatprep.mubr.bf16.mxu0 0
      %2673 = vmatmul.mubr.bf16.gmra.mxu0 %v2170
      %v2674 = vpop.f32.mrf.mxu0
      %v2675 = vadd.f32 %v1811, %v2674
      %v2676 = vpop.f32.mrf.mxu0
      %v2677 = vadd.f32 %v1815, %v2676
      %v2678 = vpop.f32.mrf.mxu0
      %v2679 = vadd.f32 %v1811, %v2678
      %v2680 = vpop.f32.mrf.mxu0
      %v2681 = vadd.f32 %v1815, %v2680
      %2682 = vdwg.mxu0
      %2683 = vmatprep.subr.bf16.mxu0 0
      %2684 = vmatpush1.bf16.msra.mxu0 0
      %2685 = vmatprep.subr.bf16.mxu0 0
      %2686 = vmatpush1.bf16.msra.mxu0 0
      %2687 = vmatprep.subr.bf16.mxu0 0
      %2688 = vmatpush1.bf16.msra.mxu0 0
      %2689 = vmatprep.subr.bf16.mxu0 0
      %2690 = vmatpush1.bf16.msra.mxu0 0
      %2691 = vmatprep.subr.bf16.mxu0 %v2095
      %2692 = vmatpush1.bf16.msra.mxu0 %v2094
      %2693 = vmatprep.subr.bf16.mxu0 %v2079
      %2694 = vmatpush1.bf16.msra.mxu0 %v2078
      %2695 = vmatprep.subr.bf16.mxu0 %v2063
      %2696 = vmatpush1.bf16.msra.mxu0 %v2062
      %2697 = vmatprep.subr.bf16.mxu0 %v2047
      %2698 = vmatpush1.bf16.msra.mxu0 %v2046
      %2699 = vmatprep.subr.bf16.mxu0 0
      %2700 = vmatpush2.bf16.msra.mxu0 0
      %2701 = vmatprep.subr.bf16.mxu0 0
      %2702 = vmatpush2.bf16.msra.mxu0 0
      %2703 = vmatprep.subr.bf16.mxu0 0
      %2704 = vmatpush2.bf16.msra.mxu0 0
      %2705 = vmatprep.subr.bf16.mxu0 0
      %2706 = vmatpush2.bf16.msra.mxu0 0
      %2707 = vmatprep.subr.bf16.mxu0 0
      %2708 = vmatpush2.bf16.msra.mxu0 0
      %2709 = vmatprep.subr.bf16.mxu0 0
      %2710 = vmatpush2.bf16.msra.mxu0 0
      %2711 = vmatprep.subr.bf16.mxu0 0
      %2712 = vmatpush2.bf16.msra.mxu0 0
      %2713 = vmatprep.subr.bf16.mxu0 0
      %2714 = vmatpush2.bf16.msra.mxu0 0
      %2715 = vmatprep.mubr.bf16.mxu0 0
      %2716 = vmatmul.mubr.bf16.gmra.mxu0 %v2161
      %v2717 = vpop.f32.mrf.mxu0
      %v2718 = vadd.f32 %v1819, %v2717
      %v2719 = vpop.f32.mrf.mxu0
      %v2720 = vadd.f32 %v1823, %v2719
      %v2721 = vpop.f32.mrf.mxu0
      %v2722 = vadd.f32 %v1819, %v2721
      %v2723 = vpop.f32.mrf.mxu0
      %v2724 = vadd.f32 %v1823, %v2723
      %2725 = vmatprep.mubr.bf16.mxu0 0
      %2726 = vmatmul.mubr.bf16.gmra.mxu0 %v2164
      %v2727 = vpop.f32.mrf.mxu0
      %v2728 = vadd.f32 %v1819, %v2727
      %v2729 = vpop.f32.mrf.mxu0
      %v2730 = vadd.f32 %v1823, %v2729
      %v2731 = vpop.f32.mrf.mxu0
      %v2732 = vadd.f32 %v1819, %v2731
      %v2733 = vpop.f32.mrf.mxu0
      %v2734 = vadd.f32 %v1823, %v2733
      %2735 = vmatprep.mubr.bf16.mxu0 0
      %2736 = vmatmul.mubr.bf16.gmra.mxu0 %v2167
      %v2737 = vpop.f32.mrf.mxu0
      %v2738 = vadd.f32 %v1819, %v2737
      %v2739 = vpop.f32.mrf.mxu0
      %v2740 = vadd.f32 %v1823, %v2739
      %v2741 = vpop.f32.mrf.mxu0
      %v2742 = vadd.f32 %v1819, %v2741
      %v2743 = vpop.f32.mrf.mxu0
      %v2744 = vadd.f32 %v1823, %v2743
      %2745 = vmatprep.mubr.bf16.mxu0 0
      %2746 = vmatmul.mubr.bf16.gmra.mxu0 %v2170
      %v2747 = vpop.f32.mrf.mxu0
      %v2748 = vadd.f32 %v1819, %v2747
      %v2749 = vpop.f32.mrf.mxu0
      %v2750 = vadd.f32 %v1823, %v2749
      %v2751 = vpop.f32.mrf.mxu0
      %v2752 = vadd.f32 %v1819, %v2751
      %v2753 = vpop.f32.mrf.mxu0
      %v2754 = vadd.f32 %v1823, %v2753
      %2755 = vdwg.mxu0
      %v2756 = vmax.f32 %v2207, 0.0
      %v2757 = vmax.f32 %v2209, 0.0
      %v2758 = vmax.f32 %v2280, 0.0
      %v2759 = vmax.f32 %v2282, 0.0
      %v2760 = vmax.f32 %v2353, 0.0
      %v2761 = vmax.f32 %v2355, 0.0
      %v2762 = vmax.f32 %v2426, 0.0
      %v2763 = vmax.f32 %v2428, 0.0
      %v2764 = vmax.f32 %v2499, 0.0
      %v2765 = vmax.f32 %v2501, 0.0
      %v2766 = vmax.f32 %v2572, 0.0
      %v2767 = vmax.f32 %v2574, 0.0
      %v2768 = vmax.f32 %v2645, 0.0
      %v2769 = vmax.f32 %v2647, 0.0
      %v2770 = vmax.f32 %v2718, 0.0
      %v2771 = vmax.f32 %v2720, 0.0
      %v2772 = vmax.f32 %v2211, 0.0
      %v2773 = vmax.f32 %v2213, 0.0
      %v2774 = vmax.f32 %v2284, 0.0
      %v2775 = vmax.f32 %v2286, 0.0
      %v2776 = vmax.f32 %v2357, 0.0
      %v2777 = vmax.f32 %v2359, 0.0
      %v2778 = vmax.f32 %v2430, 0.0
      %v2779 = vmax.f32 %v2432, 0.0
      %v2780 = vmax.f32 %v2503, 0.0
      %v2781 = vmax.f32 %v2505, 0.0
      %v2782 = vmax.f32 %v2576, 0.0
      %v2783 = vmax.f32 %v2578, 0.0
      %v2784 = vmax.f32 %v2649, 0.0
      %v2785 = vmax.f32 %v2651, 0.0
      %v2786 = vmax.f32 %v2722, 0.0
      %v2787 = vmax.f32 %v2724, 0.0
      %v2788 = vmax.f32 %v2217, 0.0
      %v2789 = vmax.f32 %v2219, 0.0
      %v2790 = vmax.f32 %v2290, 0.0
      %v2791 = vmax.f32 %v2292, 0.0
      %v2792 = vmax.f32 %v2363, 0.0
      %v2793 = vmax.f32 %v2365, 0.0
      %v2794 = vmax.f32 %v2436, 0.0
      %v2795 = vmax.f32 %v2438, 0.0
      %v2796 = vmax.f32 %v2509, 0.0
      %v2797 = vmax.f32 %v2511, 0.0
      %v2798 = vmax.f32 %v2582, 0.0
      %v2799 = vmax.f32 %v2584, 0.0
      %v2800 = vmax.f32 %v2655, 0.0
      %v2801 = vmax.f32 %v2657, 0.0
      %v2802 = vmax.f32 %v2728, 0.0
      %v2803 = vmax.f32 %v2730, 0.0
      %v2804 = vmax.f32 %v2221, 0.0
      %v2805 = vmax.f32 %v2223, 0.0
      %v2806 = vmax.f32 %v2294, 0.0
      %v2807 = vmax.f32 %v2296, 0.0
      %v2808 = vmax.f32 %v2367, 0.0
      %v2809 = vmax.f32 %v2369, 0.0
      %v2810 = vmax.f32 %v2440, 0.0
      %v2811 = vmax.f32 %v2442, 0.0
      %v2812 = vmax.f32 %v2513, 0.0
      %v2813 = vmax.f32 %v2515, 0.0
      %v2814 = vmax.f32 %v2586, 0.0
      %v2815 = vmax.f32 %v2588, 0.0
      %v2816 = vmax.f32 %v2659, 0.0
      %v2817 = vmax.f32 %v2661, 0.0
      %v2818 = vmax.f32 %v2732, 0.0
      %v2819 = vmax.f32 %v2734, 0.0
      %v2820 = vmax.f32 %v2227, 0.0
      %v2821 = vmax.f32 %v2229, 0.0
      %v2822 = vmax.f32 %v2300, 0.0
      %v2823 = vmax.f32 %v2302, 0.0
      %v2824 = vmax.f32 %v2373, 0.0
      %v2825 = vmax.f32 %v2375, 0.0
      %v2826 = vmax.f32 %v2446, 0.0
      %v2827 = vmax.f32 %v2448, 0.0
      %v2828 = vmax.f32 %v2519, 0.0
      %v2829 = vmax.f32 %v2521, 0.0
      %v2830 = vmax.f32 %v2592, 0.0
      %v2831 = vmax.f32 %v2594, 0.0
      %v2832 = vmax.f32 %v2665, 0.0
      %v2833 = vmax.f32 %v2667, 0.0
      %v2834 = vmax.f32 %v2738, 0.0
      %v2835 = vmax.f32 %v2740, 0.0
      %v2836 = vmax.f32 %v2231, 0.0
      %v2837 = vmax.f32 %v2233, 0.0
      %v2838 = vmax.f32 %v2304, 0.0
      %v2839 = vmax.f32 %v2306, 0.0
      %v2840 = vmax.f32 %v2377, 0.0
      %v2841 = vmax.f32 %v2379, 0.0
      %v2842 = vmax.f32 %v2450, 0.0
      %v2843 = vmax.f32 %v2452, 0.0
      %v2844 = vmax.f32 %v2523, 0.0
      %v2845 = vmax.f32 %v2525, 0.0
      %v2846 = vmax.f32 %v2596, 0.0
      %v2847 = vmax.f32 %v2598, 0.0
      %v2848 = vmax.f32 %v2669, 0.0
      %v2849 = vmax.f32 %v2671, 0.0
      %v2850 = vmax.f32 %v2742, 0.0
      %v2851 = vmax.f32 %v2744, 0.0
      %v2852 = vmax.f32 %v2237, 0.0
      %v2853 = vmax.f32 %v2239, 0.0
      %v2854 = vmax.f32 %v2310, 0.0
      %v2855 = vmax.f32 %v2312, 0.0
      %v2856 = vmax.f32 %v2383, 0.0
      %v2857 = vmax.f32 %v2385, 0.0
      %v2858 = vmax.f32 %v2456, 0.0
      %v2859 = vmax.f32 %v2458, 0.0
      %v2860 = vmax.f32 %v2529, 0.0
      %v2861 = vmax.f32 %v2531, 0.0
      %v2862 = vmax.f32 %v2602, 0.0
      %v2863 = vmax.f32 %v2604, 0.0
      %v2864 = vmax.f32 %v2675, 0.0
      %v2865 = vmax.f32 %v2677, 0.0
      %v2866 = vmax.f32 %v2748, 0.0
      %v2867 = vmax.f32 %v2750, 0.0
      %v2868 = vmax.f32 %v2241, 0.0
      %v2869 = vmax.f32 %v2243, 0.0
      %v2870 = vmax.f32 %v2314, 0.0
      %v2871 = vmax.f32 %v2316, 0.0
      %v2872 = vmax.f32 %v2387, 0.0
      %v2873 = vmax.f32 %v2389, 0.0
      %v2874 = vmax.f32 %v2460, 0.0
      %v2875 = vmax.f32 %v2462, 0.0
      %v2876 = vmax.f32 %v2533, 0.0
      %v2877 = vmax.f32 %v2535, 0.0
      %v2878 = vmax.f32 %v2606, 0.0
      %v2879 = vmax.f32 %v2608, 0.0
      %v2880 = vmax.f32 %v2679, 0.0
      %v2881 = vmax.f32 %v2681, 0.0
      %v2882 = vmax.f32 %v2752, 0.0
      %v2883 = vmax.f32 %v2754, 0.0
      %v2884 = vpack.c.bf16 %v2772, %v2756
      %v2885 = vpack.c.bf16 %v2773, %v2757
      %v2886 = vpack.c.bf16 %v2774, %v2758
      %v2887 = vpack.c.bf16 %v2775, %v2759
      %v2888 = vpack.c.bf16 %v2776, %v2760
      %v2889 = vpack.c.bf16 %v2777, %v2761
      %v2890 = vpack.c.bf16 %v2778, %v2762
      %v2891 = vpack.c.bf16 %v2779, %v2763
      %v2892 = vpack.c.bf16 %v2780, %v2764
      %v2893 = vpack.c.bf16 %v2781, %v2765
      %v2894 = vpack.c.bf16 %v2782, %v2766
      %v2895 = vpack.c.bf16 %v2783, %v2767
      %v2896 = vpack.c.bf16 %v2784, %v2768
      %v2897 = vpack.c.bf16 %v2785, %v2769
      %v2898 = vpack.c.bf16 %v2786, %v2770
      %v2899 = vpack.c.bf16 %v2787, %v2771
      %v2900 = vpack.c.bf16 %v2804, %v2788
      %v2901 = vpack.c.bf16 %v2805, %v2789
      %v2902 = vpack.c.bf16 %v2806, %v2790
      %v2903 = vpack.c.bf16 %v2807, %v2791
      %v2904 = vpack.c.bf16 %v2808, %v2792
      %v2905 = vpack.c.bf16 %v2809, %v2793
      %v2906 = vpack.c.bf16 %v2810, %v2794
      %v2907 = vpack.c.bf16 %v2811, %v2795
      %v2908 = vpack.c.bf16 %v2812, %v2796
      %v2909 = vpack.c.bf16 %v2813, %v2797
      %v2910 = vpack.c.bf16 %v2814, %v2798
      %v2911 = vpack.c.bf16 %v2815, %v2799
      %v2912 = vpack.c.bf16 %v2816, %v2800
      %v2913 = vpack.c.bf16 %v2817, %v2801
      %v2914 = vpack.c.bf16 %v2818, %v2802
      %v2915 = vpack.c.bf16 %v2819, %v2803
      %v2916 = vpack.c.bf16 %v2836, %v2820
      %v2917 = vpack.c.bf16 %v2837, %v2821
      %v2918 = vpack.c.bf16 %v2838, %v2822
      %v2919 = vpack.c.bf16 %v2839, %v2823
      %v2920 = vpack.c.bf16 %v2840, %v2824
      %v2921 = vpack.c.bf16 %v2841, %v2825
      %v2922 = vpack.c.bf16 %v2842, %v2826
      %v2923 = vpack.c.bf16 %v2843, %v2827
      %v2924 = vpack.c.bf16 %v2844, %v2828
      %v2925 = vpack.c.bf16 %v2845, %v2829
      %v2926 = vpack.c.bf16 %v2846, %v2830
      %v2927 = vpack.c.bf16 %v2847, %v2831
      %v2928 = vpack.c.bf16 %v2848, %v2832
      %v2929 = vpack.c.bf16 %v2849, %v2833
      %v2930 = vpack.c.bf16 %v2850, %v2834
      %v2931 = vpack.c.bf16 %v2851, %v2835
      %v2932 = vpack.c.bf16 %v2868, %v2852
      %v2933 = vpack.c.bf16 %v2869, %v2853
      %v2934 = vpack.c.bf16 %v2870, %v2854
      %v2935 = vpack.c.bf16 %v2871, %v2855
      %v2936 = vpack.c.bf16 %v2872, %v2856
      %v2937 = vpack.c.bf16 %v2873, %v2857
      %v2938 = vpack.c.bf16 %v2874, %v2858
      %v2939 = vpack.c.bf16 %v2875, %v2859
      %v2940 = vpack.c.bf16 %v2876, %v2860
      %v2941 = vpack.c.bf16 %v2877, %v2861
      %v2942 = vpack.c.bf16 %v2878, %v2862
      %v2943 = vpack.c.bf16 %v2879, %v2863
      %v2944 = vpack.c.bf16 %v2880, %v2864
      %v2945 = vpack.c.bf16 %v2881, %v2865
      %v2946 = vpack.c.bf16 %v2882, %v2866
      %v2947 = vpack.c.bf16 %v2883, %v2867
      %v2948 = vld [vmem:[%s8] sm:$0xf]
      %v2949 = vld [vmem:[%s8 + $0x4] sm:$0xf]
      %v2950 = vld [vmem:[%s8 + $0x8] sm:$0xf]
      %v2951 = vld [vmem:[%s8 + $0xc] sm:$0xf]
      %v2952 = vld [vmem:[%s8 + $0x10] sm:$0xf]
      %v2953 = vld [vmem:[%s8 + $0x14] sm:$0xf]
      %v2954 = vld [vmem:[%s8 + $0x18] sm:$0xf]
      %v2955 = vld [vmem:[%s8 + $0x1c] sm:$0xf]
      %v2956 = vld [vmem:[%s8 + $0x20] sm:$0xf]
      %v2957 = vld [vmem:[%s8 + $0x24] sm:$0xf]
      %v2958 = vld [vmem:[%s8 + $0x28] sm:$0xf]
      %v2959 = vld [vmem:[%s8 + $0x2c] sm:$0xf]
      %v2960 = vld [vmem:[%s8 + $0x30] sm:$0xf]
      %v2961 = vld [vmem:[%s8 + $0x34] sm:$0xf]
      %v2962 = vld [vmem:[%s8 + $0x38] sm:$0xf]
      %v2963 = vld [vmem:[%s8 + $0x3c] sm:$0xf]
      %v2964 = vld [vmem:[%s8 + $0x40] sm:$0xf]
      %v2965 = vld [vmem:[%s8 + $0x44] sm:$0xf]
      %v2966 = vld [vmem:[%s8 + $0x48] sm:$0xf]
      %v2967 = vld [vmem:[%s8 + $0x4c] sm:$0xf]
      %v2968 = vld [vmem:[%s8 + $0x50] sm:$0xf]
      %v2969 = vld [vmem:[%s8 + $0x54] sm:$0xf]
      %v2970 = vld [vmem:[%s8 + $0x58] sm:$0xf]
      %v2971 = vld [vmem:[%s8 + $0x5c] sm:$0xf]
      %v2972 = vld [vmem:[%s8 + $0x60] sm:$0xf]
      %v2973 = vld [vmem:[%s8 + $0x64] sm:$0xf]
      %v2974 = vld [vmem:[%s8 + $0x68] sm:$0xf]
      %v2975 = vld [vmem:[%s8 + $0x6c] sm:$0xf]
      %v2976 = vld [vmem:[%s8 + $0x70] sm:$0xf]
      %v2977 = vld [vmem:[%s8 + $0x74] sm:$0xf]
      %v2978 = vld [vmem:[%s8 + $0x78] sm:$0xf]
      %v2979 = vld [vmem:[%s8 + $0x7c] sm:$0xf]
      %v2980 = vld [vmem:[%s8 + $0x80] sm:$0xf]
      %v2981 = vld [vmem:[%s8 + $0x84] sm:$0xf]
      %v2982 = vld [vmem:[%s8 + $0x88] sm:$0xf]
      %v2983 = vld [vmem:[%s8 + $0x8c] sm:$0xf]
      %v2984 = vld [vmem:[%s8 + $0x90] sm:$0xf]
      %v2985 = vld [vmem:[%s8 + $0x94] sm:$0xf]
      %v2986 = vld [vmem:[%s8 + $0x98] sm:$0xf]
      %v2987 = vld [vmem:[%s8 + $0x9c] sm:$0xf]
      %v2988 = vld [vmem:[%s8 + $0xa0] sm:$0xf]
      %v2989 = vld [vmem:[%s8 + $0xa4] sm:$0xf]
      %v2990 = vld [vmem:[%s8 + $0xa8] sm:$0xf]
      %v2991 = vld [vmem:[%s8 + $0xac] sm:$0xf]
      %v2992 = vld [vmem:[%s8 + $0xb0] sm:$0xf]
      %v2993 = vld [vmem:[%s8 + $0xb4] sm:$0xf]
      %v2994 = vld [vmem:[%s8 + $0xb8] sm:$0xf]
      %v2995 = vld [vmem:[%s8 + $0xbc] sm:$0xf]
      %v2996 = vld [vmem:[%s8 + $0xc0] sm:$0xf]
      %v2997 = vld [vmem:[%s8 + $0xc4] sm:$0xf]
      %v2998 = vld [vmem:[%s8 + $0xc8] sm:$0xf]
      %v2999 = vld [vmem:[%s8 + $0xcc] sm:$0xf]
      %v3000 = vld [vmem:[%s8 + $0xd0] sm:$0xf]
      %v3001 = vld [vmem:[%s8 + $0xd4] sm:$0xf]
      %v3002 = vld [vmem:[%s8 + $0xd8] sm:$0xf]
      %v3003 = vld [vmem:[%s8 + $0xdc] sm:$0xf]
      %v3004 = vld [vmem:[%s8 + $0xe0] sm:$0xf]
      %v3005 = vld [vmem:[%s8 + $0xe4] sm:$0xf]
      %v3006 = vld [vmem:[%s8 + $0xe8] sm:$0xf]
      %v3007 = vld [vmem:[%s8 + $0xec] sm:$0xf]
      %v3008 = vld [vmem:[%s8 + $0xf0] sm:$0xf]
      %v3009 = vld [vmem:[%s8 + $0xf4] sm:$0xf]
      %v3010 = vld [vmem:[%s8 + $0xf8] sm:$0xf]
      %v3011 = vld [vmem:[%s8 + $0xfc] sm:$0xf]
      %v3012 = vld [vmem:[%s8 + $0x100] sm:$0xf]
      %v3013 = vld [vmem:[%s8 + $0x104] sm:$0xf]
      %v3014 = vld [vmem:[%s8 + $0x108] sm:$0xf]
      %v3015 = vld [vmem:[%s8 + $0x10c] sm:$0xf]
      %v3016 = vld [vmem:[%s8 + $0x110] sm:$0xf]
      %v3017 = vld [vmem:[%s8 + $0x114] sm:$0xf]
      %v3018 = vld [vmem:[%s8 + $0x118] sm:$0xf]
      %v3019 = vld [vmem:[%s8 + $0x11c] sm:$0xf]
      %v3020 = vld [vmem:[%s8 + $0x120] sm:$0xf]
      %v3021 = vld [vmem:[%s8 + $0x124] sm:$0xf]
      %v3022 = vld [vmem:[%s8 + $0x128] sm:$0xf]
      %v3023 = vld [vmem:[%s8 + $0x12c] sm:$0xf]
      %v3024 = vld [vmem:[%s8 + $0x130] sm:$0xf]
      %v3025 = vld [vmem:[%s8 + $0x134] sm:$0xf]
      %v3026 = vld [vmem:[%s8 + $0x138] sm:$0xf]
      %v3027 = vld [vmem:[%s8 + $0x13c] sm:$0xf]
      %v3028 = vld [vmem:[%s8 + $0x140] sm:$0xf]
      %v3029 = vld [vmem:[%s8 + $0x144] sm:$0xf]
      %v3030 = vld [vmem:[%s8 + $0x148] sm:$0xf]
      %v3031 = vld [vmem:[%s8 + $0x14c] sm:$0xf]
      %v3032 = vld [vmem:[%s8 + $0x150] sm:$0xf]
      %v3033 = vld [vmem:[%s8 + $0x154] sm:$0xf]
      %v3034 = vld [vmem:[%s8 + $0x158] sm:$0xf]
      %v3035 = vld [vmem:[%s8 + $0x15c] sm:$0xf]
      %v3036 = vld [vmem:[%s8 + $0x160] sm:$0xf]
      %v3037 = vld [vmem:[%s8 + $0x164] sm:$0xf]
      %v3038 = vld [vmem:[%s8 + $0x168] sm:$0xf]
      %v3039 = vld [vmem:[%s8 + $0x16c] sm:$0xf]
      %v3040 = vld [vmem:[%s8 + $0x170] sm:$0xf]
      %v3041 = vld [vmem:[%s8 + $0x174] sm:$0xf]
      %v3042 = vld [vmem:[%s8 + $0x178] sm:$0xf]
      %v3043 = vld [vmem:[%s8 + $0x17c] sm:$0xf]
      %v3044 = vld [vmem:[%s8 + $0x180] sm:$0xf]
      %v3045 = vld [vmem:[%s8 + $0x184] sm:$0xf]
      %v3046 = vld [vmem:[%s8 + $0x188] sm:$0xf]
      %v3047 = vld [vmem:[%s8 + $0x18c] sm:$0xf]
      %v3048 = vld [vmem:[%s8 + $0x190] sm:$0xf]
      %v3049 = vld [vmem:[%s8 + $0x194] sm:$0xf]
      %v3050 = vld [vmem:[%s8 + $0x198] sm:$0xf]
      %v3051 = vld [vmem:[%s8 + $0x19c] sm:$0xf]
      %v3052 = vld [vmem:[%s8 + $0x1a0] sm:$0xf]
      %v3053 = vld [vmem:[%s8 + $0x1a4] sm:$0xf]
      %v3054 = vld [vmem:[%s8 + $0x1a8] sm:$0xf]
      %v3055 = vld [vmem:[%s8 + $0x1ac] sm:$0xf]
      %v3056 = vld [vmem:[%s8 + $0x1b0] sm:$0xf]
      %v3057 = vld [vmem:[%s8 + $0x1b4] sm:$0xf]
      %v3058 = vld [vmem:[%s8 + $0x1b8] sm:$0xf]
      %v3059 = vld [vmem:[%s8 + $0x1bc] sm:$0xf]
      %v3060 = vld [vmem:[%s8 + $0x1c0] sm:$0xf]
      %v3061 = vld [vmem:[%s8 + $0x1c4] sm:$0xf]
      %v3062 = vld [vmem:[%s8 + $0x1c8] sm:$0xf]
      %v3063 = vld [vmem:[%s8 + $0x1cc] sm:$0xf]
      %v3064 = vld [vmem:[%s8 + $0x1d0] sm:$0xf]
      %v3065 = vld [vmem:[%s8 + $0x1d4] sm:$0xf]
      %v3066 = vld [vmem:[%s8 + $0x1d8] sm:$0xf]
      %v3067 = vld [vmem:[%s8 + $0x1dc] sm:$0xf]
      %v3068 = vld [vmem:[%s8 + $0x1e0] sm:$0xf]
      %v3069 = vld [vmem:[%s8 + $0x1e4] sm:$0xf]
      %v3070 = vld [vmem:[%s8 + $0x1e8] sm:$0xf]
      %v3071 = vld [vmem:[%s8 + $0x1ec] sm:$0xf]
      %v3072 = vld [vmem:[%s8 + $0x1f0] sm:$0xf]
      %v3073 = vld [vmem:[%s8 + $0x1f4] sm:$0xf]
      %v3074 = vld [vmem:[%s8 + $0x1f8] sm:$0xf]
      %v3075 = vld [vmem:[%s8 + $0x1fc] sm:$0xf]
      %v3076 = vld [vmem:[%s8 + $0x200] sm:$0xf]
      %v3077 = vld [vmem:[%s8 + $0x204] sm:$0xf]
      %v3078 = vld [vmem:[%s8 + $0x208] sm:$0xf]
      %v3079 = vld [vmem:[%s8 + $0x20c] sm:$0xf]
      %v3080 = vld [vmem:[%s8 + $0x210] sm:$0xf]
      %v3081 = vld [vmem:[%s8 + $0x214] sm:$0xf]
      %v3082 = vld [vmem:[%s8 + $0x218] sm:$0xf]
      %v3083 = vld [vmem:[%s8 + $0x21c] sm:$0xf]
      %v3084 = vld [vmem:[%s8 + $0x220] sm:$0xf]
      %v3085 = vld [vmem:[%s8 + $0x224] sm:$0xf]
      %v3086 = vld [vmem:[%s8 + $0x228] sm:$0xf]
      %v3087 = vld [vmem:[%s8 + $0x22c] sm:$0xf]
      %v3088 = vld [vmem:[%s8 + $0x230] sm:$0xf]
      %v3089 = vld [vmem:[%s8 + $0x234] sm:$0xf]
      %v3090 = vld [vmem:[%s8 + $0x238] sm:$0xf]
      %v3091 = vld [vmem:[%s8 + $0x23c] sm:$0xf]
      %v3092 = vld [vmem:[%s8 + $0x240] sm:$0xf]
      %v3093 = vld [vmem:[%s8 + $0x244] sm:$0xf]
      %v3094 = vld [vmem:[%s8 + $0x248] sm:$0xf]
      %v3095 = vld [vmem:[%s8 + $0x24c] sm:$0xf]
      %v3096 = vld [vmem:[%s8 + $0x250] sm:$0xf]
      %v3097 = vld [vmem:[%s8 + $0x254] sm:$0xf]
      %v3098 = vld [vmem:[%s8 + $0x258] sm:$0xf]
      %v3099 = vld [vmem:[%s8 + $0x25c] sm:$0xf]
      %v3100 = vld [vmem:[%s8 + $0x260] sm:$0xf]
      %v3101 = vld [vmem:[%s8 + $0x264] sm:$0xf]
      %v3102 = vld [vmem:[%s8 + $0x268] sm:$0xf]
      %v3103 = vld [vmem:[%s8 + $0x26c] sm:$0xf]
      %v3104 = vld [vmem:[%s8 + $0x270] sm:$0xf]
      %v3105 = vld [vmem:[%s8 + $0x274] sm:$0xf]
      %v3106 = vld [vmem:[%s8 + $0x278] sm:$0xf]
      %v3107 = vld [vmem:[%s8 + $0x27c] sm:$0xf]
      %v3108 = vld [vmem:[%s8 + $0x280] sm:$0xf]
      %v3109 = vld [vmem:[%s8 + $0x284] sm:$0xf]
      %v3110 = vld [vmem:[%s8 + $0x288] sm:$0xf]
      %v3111 = vld [vmem:[%s8 + $0x28c] sm:$0xf]
      %v3112 = vld [vmem:[%s8 + $0x290] sm:$0xf]
      %v3113 = vld [vmem:[%s8 + $0x294] sm:$0xf]
      %v3114 = vld [vmem:[%s8 + $0x298] sm:$0xf]
      %v3115 = vld [vmem:[%s8 + $0x29c] sm:$0xf]
      %v3116 = vld [vmem:[%s8 + $0x2a0] sm:$0xf]
      %v3117 = vld [vmem:[%s8 + $0x2a4] sm:$0xf]
      %v3118 = vld [vmem:[%s8 + $0x2a8] sm:$0xf]
      %v3119 = vld [vmem:[%s8 + $0x2ac] sm:$0xf]
      %v3120 = vld [vmem:[%s8 + $0x2b0] sm:$0xf]
      %v3121 = vld [vmem:[%s8 + $0x2b4] sm:$0xf]
      %v3122 = vld [vmem:[%s8 + $0x2b8] sm:$0xf]
      %v3123 = vld [vmem:[%s8 + $0x2bc] sm:$0xf]
      %v3124 = vld [vmem:[%s8 + $0x2c0] sm:$0xf]
      %v3125 = vld [vmem:[%s8 + $0x2c4] sm:$0xf]
      %v3126 = vld [vmem:[%s8 + $0x2c8] sm:$0xf]
      %v3127 = vld [vmem:[%s8 + $0x2cc] sm:$0xf]
      %v3128 = vld [vmem:[%s8 + $0x2d0] sm:$0xf]
      %v3129 = vld [vmem:[%s8 + $0x2d4] sm:$0xf]
      %v3130 = vld [vmem:[%s8 + $0x2d8] sm:$0xf]
      %v3131 = vld [vmem:[%s8 + $0x2dc] sm:$0xf]
      %v3132 = vld [vmem:[%s8 + $0x2e0] sm:$0xf]
      %v3133 = vld [vmem:[%s8 + $0x2e4] sm:$0xf]
      %v3134 = vld [vmem:[%s8 + $0x2e8] sm:$0xf]
      %v3135 = vld [vmem:[%s8 + $0x2ec] sm:$0xf]
      %v3136 = vld [vmem:[%s8 + $0x2f0] sm:$0xf]
      %v3137 = vld [vmem:[%s8 + $0x2f4] sm:$0xf]
      %v3138 = vld [vmem:[%s8 + $0x2f8] sm:$0xf]
      %v3139 = vld [vmem:[%s8 + $0x2fc] sm:$0xf]
      %v3140 = vld [vmem:[%s8 + $0x300] sm:$0xf]
      %v3141 = vld [vmem:[%s8 + $0x304] sm:$0xf]
      %v3142 = vld [vmem:[%s8 + $0x308] sm:$0xf]
      %v3143 = vld [vmem:[%s8 + $0x30c] sm:$0xf]
      %v3144 = vld [vmem:[%s8 + $0x310] sm:$0xf]
      %v3145 = vld [vmem:[%s8 + $0x314] sm:$0xf]
      %v3146 = vld [vmem:[%s8 + $0x318] sm:$0xf]
      %v3147 = vld [vmem:[%s8 + $0x31c] sm:$0xf]
      %v3148 = vld [vmem:[%s8 + $0x320] sm:$0xf]
      %v3149 = vld [vmem:[%s8 + $0x324] sm:$0xf]
      %v3150 = vld [vmem:[%s8 + $0x328] sm:$0xf]
      %v3151 = vld [vmem:[%s8 + $0x32c] sm:$0xf]
      %v3152 = vld [vmem:[%s8 + $0x330] sm:$0xf]
      %v3153 = vld [vmem:[%s8 + $0x334] sm:$0xf]
      %v3154 = vld [vmem:[%s8 + $0x338] sm:$0xf]
      %v3155 = vld [vmem:[%s8 + $0x33c] sm:$0xf]
      %v3156 = vld [vmem:[%s8 + $0x340] sm:$0xf]
      %v3157 = vld [vmem:[%s8 + $0x344] sm:$0xf]
      %v3158 = vld [vmem:[%s8 + $0x348] sm:$0xf]
      %v3159 = vld [vmem:[%s8 + $0x34c] sm:$0xf]
      %v3160 = vld [vmem:[%s8 + $0x350] sm:$0xf]
      %v3161 = vld [vmem:[%s8 + $0x354] sm:$0xf]
      %v3162 = vld [vmem:[%s8 + $0x358] sm:$0xf]
      %v3163 = vld [vmem:[%s8 + $0x35c] sm:$0xf]
      %v3164 = vld [vmem:[%s8 + $0x360] sm:$0xf]
      %v3165 = vld [vmem:[%s8 + $0x364] sm:$0xf]
      %v3166 = vld [vmem:[%s8 + $0x368] sm:$0xf]
      %v3167 = vld [vmem:[%s8 + $0x36c] sm:$0xf]
      %v3168 = vld [vmem:[%s8 + $0x370] sm:$0xf]
      %v3169 = vld [vmem:[%s8 + $0x374] sm:$0xf]
      %v3170 = vld [vmem:[%s8 + $0x378] sm:$0xf]
      %v3171 = vld [vmem:[%s8 + $0x37c] sm:$0xf]
      %v3172 = vld [vmem:[%s8 + $0x380] sm:$0xf]
      %v3173 = vld [vmem:[%s8 + $0x384] sm:$0xf]
      %v3174 = vld [vmem:[%s8 + $0x388] sm:$0xf]
      %v3175 = vld [vmem:[%s8 + $0x38c] sm:$0xf]
      %v3176 = vld [vmem:[%s8 + $0x390] sm:$0xf]
      %v3177 = vld [vmem:[%s8 + $0x394] sm:$0xf]
      %v3178 = vld [vmem:[%s8 + $0x398] sm:$0xf]
      %v3179 = vld [vmem:[%s8 + $0x39c] sm:$0xf]
      %v3180 = vld [vmem:[%s8 + $0x3a0] sm:$0xf]
      %v3181 = vld [vmem:[%s8 + $0x3a4] sm:$0xf]
      %v3182 = vld [vmem:[%s8 + $0x3a8] sm:$0xf]
      %v3183 = vld [vmem:[%s8 + $0x3ac] sm:$0xf]
      %v3184 = vld [vmem:[%s8 + $0x3b0] sm:$0xf]
      %v3185 = vld [vmem:[%s8 + $0x3b4] sm:$0xf]
      %v3186 = vld [vmem:[%s8 + $0x3b8] sm:$0xf]
      %v3187 = vld [vmem:[%s8 + $0x3bc] sm:$0xf]
      %v3188 = vld [vmem:[%s8 + $0x3c0] sm:$0xf]
      %v3189 = vld [vmem:[%s8 + $0x3c4] sm:$0xf]
      %v3190 = vld [vmem:[%s8 + $0x3c8] sm:$0xf]
      %v3191 = vld [vmem:[%s8 + $0x3cc] sm:$0xf]
      %v3192 = vld [vmem:[%s8 + $0x3d0] sm:$0xf]
      %v3193 = vld [vmem:[%s8 + $0x3d4] sm:$0xf]
      %v3194 = vld [vmem:[%s8 + $0x3d8] sm:$0xf]
      %v3195 = vld [vmem:[%s8 + $0x3dc] sm:$0xf]
      %v3196 = vld [vmem:[%s8 + $0x3e0] sm:$0xf]
      %v3197 = vld [vmem:[%s8 + $0x3e4] sm:$0xf]
      %v3198 = vld [vmem:[%s8 + $0x3e8] sm:$0xf]
      %v3199 = vld [vmem:[%s8 + $0x3ec] sm:$0xf]
      %v3200 = vld [vmem:[%s8 + $0x3f0] sm:$0xf]
      %v3201 = vld [vmem:[%s8 + $0x3f4] sm:$0xf]
      %v3202 = vld [vmem:[%s8 + $0x3f8] sm:$0xf]
      %v3203 = vld [vmem:[%s8 + $0x3fc] sm:$0xf]
      %v3204 = vlaneseq
      %v3205 = vshrl.u32 %v3204, 7
      %v3206 = vsub.s32 6, %v3205
      %v3207 = vrot.slane %v721, %v3206
      %v3464 = vunpack.c.l.b16 %v2948
      %v3465 = vunpack.c.l.b16 %v2949
      %v3466 = vunpack.c.l.b16 %v2950
      %v3467 = vunpack.c.l.b16 %v2951
      %v3468 = vunpack.c.l.b16 %v2952
      %v3469 = vunpack.c.l.b16 %v2953
      %v3470 = vunpack.c.l.b16 %v2954
      %v3471 = vunpack.c.l.b16 %v2955
      %v3472 = vunpack.c.l.b16 %v2956
      %v3473 = vunpack.c.l.b16 %v2957
      %v3474 = vunpack.c.l.b16 %v2958
      %v3475 = vunpack.c.l.b16 %v2959
      %v3476 = vunpack.c.l.b16 %v2960
      %v3477 = vunpack.c.l.b16 %v2961
      %v3478 = vunpack.c.l.b16 %v2962
      %v3479 = vunpack.c.l.b16 %v2963
      %v3480 = vunpack.c.l.b16 %v2964
      %v3481 = vunpack.c.l.b16 %v2965
      %v3482 = vunpack.c.l.b16 %v2966
      %v3483 = vunpack.c.l.b16 %v2967
      %v3484 = vunpack.c.l.b16 %v2968
      %v3485 = vunpack.c.l.b16 %v2969
      %v3486 = vunpack.c.l.b16 %v2970
      %v3487 = vunpack.c.l.b16 %v2971
      %v3488 = vunpack.c.l.b16 %v2972
      %v3489 = vunpack.c.l.b16 %v2973
      %v3490 = vunpack.c.l.b16 %v2974
      %v3491 = vunpack.c.l.b16 %v2975
      %v3492 = vunpack.c.l.b16 %v2976
      %v3493 = vunpack.c.l.b16 %v2977
      %v3494 = vunpack.c.l.b16 %v2978
      %v3495 = vunpack.c.l.b16 %v2979
      %v3496 = vunpack.c.l.b16 %v2980
      %v3497 = vunpack.c.l.b16 %v2981
      %v3498 = vunpack.c.l.b16 %v2982
      %v3499 = vunpack.c.l.b16 %v2983
      %v3500 = vunpack.c.l.b16 %v2984
      %v3501 = vunpack.c.l.b16 %v2985
      %v3502 = vunpack.c.l.b16 %v2986
      %v3503 = vunpack.c.l.b16 %v2987
      %v3504 = vunpack.c.l.b16 %v2988
      %v3505 = vunpack.c.l.b16 %v2989
      %v3506 = vunpack.c.l.b16 %v2990
      %v3507 = vunpack.c.l.b16 %v2991
      %v3508 = vunpack.c.l.b16 %v2992
      %v3509 = vunpack.c.l.b16 %v2993
      %v3510 = vunpack.c.l.b16 %v2994
      %v3511 = vunpack.c.l.b16 %v2995
      %v3512 = vunpack.c.l.b16 %v2996
      %v3513 = vunpack.c.l.b16 %v2997
      %v3514 = vunpack.c.l.b16 %v2998
      %v3515 = vunpack.c.l.b16 %v2999
      %v3516 = vunpack.c.l.b16 %v3000
      %v3517 = vunpack.c.l.b16 %v3001
      %v3518 = vunpack.c.l.b16 %v3002
      %v3519 = vunpack.c.l.b16 %v3003
      %v3520 = vunpack.c.l.b16 %v3004
      %v3521 = vunpack.c.l.b16 %v3005
      %v3522 = vunpack.c.l.b16 %v3006
      %v3523 = vunpack.c.l.b16 %v3007
      %v3524 = vunpack.c.l.b16 %v3008
      %v3525 = vunpack.c.l.b16 %v3009
      %v3526 = vunpack.c.l.b16 %v3010
      %v3527 = vunpack.c.l.b16 %v3011
      %v3528 = vunpack.c.l.b16 %v3012
      %v3529 = vunpack.c.l.b16 %v3013
      %v3530 = vunpack.c.l.b16 %v3014
      %v3531 = vunpack.c.l.b16 %v3015
      %v3532 = vunpack.c.l.b16 %v3016
      %v3533 = vunpack.c.l.b16 %v3017
      %v3534 = vunpack.c.l.b16 %v3018
      %v3535 = vunpack.c.l.b16 %v3019
      %v3536 = vunpack.c.l.b16 %v3020
      %v3537 = vunpack.c.l.b16 %v3021
      %v3538 = vunpack.c.l.b16 %v3022
      %v3539 = vunpack.c.l.b16 %v3023
      %v3540 = vunpack.c.l.b16 %v3024
      %v3541 = vunpack.c.l.b16 %v3025
      %v3542 = vunpack.c.l.b16 %v3026
      %v3543 = vunpack.c.l.b16 %v3027
      %v3544 = vunpack.c.l.b16 %v3028
      %v3545 = vunpack.c.l.b16 %v3029
      %v3546 = vunpack.c.l.b16 %v3030
      %v3547 = vunpack.c.l.b16 %v3031
      %v3548 = vunpack.c.l.b16 %v3032
      %v3549 = vunpack.c.l.b16 %v3033
      %v3550 = vunpack.c.l.b16 %v3034
      %v3551 = vunpack.c.l.b16 %v3035
      %v3552 = vunpack.c.l.b16 %v3036
      %v3553 = vunpack.c.l.b16 %v3037
      %v3554 = vunpack.c.l.b16 %v3038
      %v3555 = vunpack.c.l.b16 %v3039
      %v3556 = vunpack.c.l.b16 %v3040
      %v3557 = vunpack.c.l.b16 %v3041
      %v3558 = vunpack.c.l.b16 %v3042
      %v3559 = vunpack.c.l.b16 %v3043
      %v3560 = vunpack.c.l.b16 %v3044
      %v3561 = vunpack.c.l.b16 %v3045
      %v3562 = vunpack.c.l.b16 %v3046
      %v3563 = vunpack.c.l.b16 %v3047
      %v3564 = vunpack.c.l.b16 %v3048
      %v3565 = vunpack.c.l.b16 %v3049
      %v3566 = vunpack.c.l.b16 %v3050
      %v3567 = vunpack.c.l.b16 %v3051
      %v3568 = vunpack.c.l.b16 %v3052
      %v3569 = vunpack.c.l.b16 %v3053
      %v3570 = vunpack.c.l.b16 %v3054
      %v3571 = vunpack.c.l.b16 %v3055
      %v3572 = vunpack.c.l.b16 %v3056
      %v3573 = vunpack.c.l.b16 %v3057
      %v3574 = vunpack.c.l.b16 %v3058
      %v3575 = vunpack.c.l.b16 %v3059
      %v3576 = vunpack.c.l.b16 %v3060
      %v3577 = vunpack.c.l.b16 %v3061
      %v3578 = vunpack.c.l.b16 %v3062
      %v3579 = vunpack.c.l.b16 %v3063
      %v3580 = vunpack.c.l.b16 %v3064
      %v3581 = vunpack.c.l.b16 %v3065
      %v3582 = vunpack.c.l.b16 %v3066
      %v3583 = vunpack.c.l.b16 %v3067
      %v3584 = vunpack.c.l.b16 %v3068
      %v3585 = vunpack.c.l.b16 %v3069
      %v3586 = vunpack.c.l.b16 %v3070
      %v3587 = vunpack.c.l.b16 %v3071
      %v3588 = vunpack.c.l.b16 %v3072
      %v3589 = vunpack.c.l.b16 %v3073
      %v3590 = vunpack.c.l.b16 %v3074
      %v3591 = vunpack.c.l.b16 %v3075
      %v3592 = vunpack.c.l.b16 %v3076
      %v3593 = vunpack.c.l.b16 %v3077
      %v3594 = vunpack.c.l.b16 %v3078
      %v3595 = vunpack.c.l.b16 %v3079
      %v3596 = vunpack.c.l.b16 %v3080
      %v3597 = vunpack.c.l.b16 %v3081
      %v3598 = vunpack.c.l.b16 %v3082
      %v3599 = vunpack.c.l.b16 %v3083
      %v3600 = vunpack.c.l.b16 %v3084
      %v3601 = vunpack.c.l.b16 %v3085
      %v3602 = vunpack.c.l.b16 %v3086
      %v3603 = vunpack.c.l.b16 %v3087
      %v3604 = vunpack.c.l.b16 %v3088
      %v3605 = vunpack.c.l.b16 %v3089
      %v3606 = vunpack.c.l.b16 %v3090
      %v3607 = vunpack.c.l.b16 %v3091
      %v3608 = vunpack.c.l.b16 %v3092
      %v3609 = vunpack.c.l.b16 %v3093
      %v3610 = vunpack.c.l.b16 %v3094
      %v3611 = vunpack.c.l.b16 %v3095
      %v3612 = vunpack.c.l.b16 %v3096
      %v3613 = vunpack.c.l.b16 %v3097
      %v3614 = vunpack.c.l.b16 %v3098
      %v3615 = vunpack.c.l.b16 %v3099
      %v3616 = vunpack.c.l.b16 %v3100
      %v3617 = vunpack.c.l.b16 %v3101
      %v3618 = vunpack.c.l.b16 %v3102
      %v3619 = vunpack.c.l.b16 %v3103
      %v3620 = vunpack.c.l.b16 %v3104
      %v3621 = vunpack.c.l.b16 %v3105
      %v3622 = vunpack.c.l.b16 %v3106
      %v3623 = vunpack.c.l.b16 %v3107
      %v3624 = vunpack.c.l.b16 %v3108
      %v3625 = vunpack.c.l.b16 %v3109
      %v3626 = vunpack.c.l.b16 %v3110
      %v3627 = vunpack.c.l.b16 %v3111
      %v3628 = vunpack.c.l.b16 %v3112
      %v3629 = vunpack.c.l.b16 %v3113
      %v3630 = vunpack.c.l.b16 %v3114
      %v3631 = vunpack.c.l.b16 %v3115
      %v3632 = vunpack.c.l.b16 %v3116
      %v3633 = vunpack.c.l.b16 %v3117
      %v3634 = vunpack.c.l.b16 %v3118
      %v3635 = vunpack.c.l.b16 %v3119
      %v3636 = vunpack.c.l.b16 %v3120
      %v3637 = vunpack.c.l.b16 %v3121
      %v3638 = vunpack.c.l.b16 %v3122
      %v3639 = vunpack.c.l.b16 %v3123
      %v3640 = vunpack.c.l.b16 %v3124
      %v3641 = vunpack.c.l.b16 %v3125
      %v3642 = vunpack.c.l.b16 %v3126
      %v3643 = vunpack.c.l.b16 %v3127
      %v3644 = vunpack.c.l.b16 %v3128
      %v3645 = vunpack.c.l.b16 %v3129
      %v3646 = vunpack.c.l.b16 %v3130
      %v3647 = vunpack.c.l.b16 %v3131
      %v3648 = vunpack.c.l.b16 %v3132
      %v3649 = vunpack.c.l.b16 %v3133
      %v3650 = vunpack.c.l.b16 %v3134
      %v3651 = vunpack.c.l.b16 %v3135
      %v3652 = vunpack.c.l.b16 %v3136
      %v3653 = vunpack.c.l.b16 %v3137
      %v3654 = vunpack.c.l.b16 %v3138
      %v3655 = vunpack.c.l.b16 %v3139
      %v3656 = vunpack.c.l.b16 %v3140
      %v3657 = vunpack.c.l.b16 %v3141
      %v3658 = vunpack.c.l.b16 %v3142
      %v3659 = vunpack.c.l.b16 %v3143
      %v3660 = vunpack.c.l.b16 %v3144
      %v3661 = vunpack.c.l.b16 %v3145
      %v3662 = vunpack.c.l.b16 %v3146
      %v3663 = vunpack.c.l.b16 %v3147
      %v3664 = vunpack.c.l.b16 %v3148
      %v3665 = vunpack.c.l.b16 %v3149
      %v3666 = vunpack.c.l.b16 %v3150
      %v3667 = vunpack.c.l.b16 %v3151
      %v3668 = vunpack.c.l.b16 %v3152
      %v3669 = vunpack.c.l.b16 %v3153
      %v3670 = vunpack.c.l.b16 %v3154
      %v3671 = vunpack.c.l.b16 %v3155
      %v3672 = vunpack.c.l.b16 %v3156
      %v3673 = vunpack.c.l.b16 %v3157
      %v3674 = vunpack.c.l.b16 %v3158
      %v3675 = vunpack.c.l.b16 %v3159
      %v3676 = vunpack.c.l.b16 %v3160
      %v3677 = vunpack.c.l.b16 %v3161
      %v3678 = vunpack.c.l.b16 %v3162
      %v3679 = vunpack.c.l.b16 %v3163
      %v3680 = vunpack.c.l.b16 %v3164
      %v3681 = vunpack.c.l.b16 %v3165
      %v3682 = vunpack.c.l.b16 %v3166
      %v3683 = vunpack.c.l.b16 %v3167
      %v3684 = vunpack.c.l.b16 %v3168
      %v3685 = vunpack.c.l.b16 %v3169
      %v3686 = vunpack.c.l.b16 %v3170
      %v3687 = vunpack.c.l.b16 %v3171
      %v3688 = vunpack.c.l.b16 %v3172
      %v3689 = vunpack.c.l.b16 %v3173
      %v3690 = vunpack.c.l.b16 %v3174
      %v3691 = vunpack.c.l.b16 %v3175
      %v3692 = vunpack.c.l.b16 %v3176
      %v3693 = vunpack.c.l.b16 %v3177
      %v3694 = vunpack.c.l.b16 %v3178
      %v3695 = vunpack.c.l.b16 %v3179
      %v3696 = vunpack.c.l.b16 %v3180
      %v3697 = vunpack.c.l.b16 %v3181
      %v3698 = vunpack.c.l.b16 %v3182
      %v3699 = vunpack.c.l.b16 %v3183
      %v3700 = vunpack.c.l.b16 %v3184
      %v3701 = vunpack.c.l.b16 %v3185
      %v3702 = vunpack.c.l.b16 %v3186
      %v3703 = vunpack.c.l.b16 %v3187
      %v3704 = vunpack.c.l.b16 %v3188
      %v3705 = vunpack.c.l.b16 %v3189
      %v3706 = vunpack.c.l.b16 %v3190
      %v3707 = vunpack.c.l.b16 %v3191
      %v3708 = vunpack.c.l.b16 %v3192
      %v3709 = vunpack.c.l.b16 %v3193
      %v3710 = vunpack.c.l.b16 %v3194
      %v3711 = vunpack.c.l.b16 %v3195
      %v3712 = vunpack.c.l.b16 %v3196
      %v3713 = vunpack.c.l.b16 %v3197
      %v3714 = vunpack.c.l.b16 %v3198
      %v3715 = vunpack.c.l.b16 %v3199
      %v3716 = vunpack.c.l.b16 %v3200
      %v3717 = vunpack.c.l.b16 %v3201
      %v3718 = vunpack.c.l.b16 %v3202
      %v3719 = vunpack.c.l.b16 %v3203
      %v3720 = vpack.c.b16 %v3465, %v3464
      %v3721 = vpack.c.b16 %v3467, %v3466
      %v3722 = vpack.c.b16 %v3469, %v3468
      %v3723 = vpack.c.b16 %v3471, %v3470
      %v3724 = vpack.c.b16 %v3473, %v3472
      %v3725 = vpack.c.b16 %v3475, %v3474
      %v3726 = vpack.c.b16 %v3477, %v3476
      %v3727 = vpack.c.b16 %v3479, %v3478
      %v3728 = vpack.c.b16 %v3481, %v3480
      %v3729 = vpack.c.b16 %v3483, %v3482
      %v3730 = vpack.c.b16 %v3485, %v3484
      %v3731 = vpack.c.b16 %v3487, %v3486
      %v3732 = vpack.c.b16 %v3489, %v3488
      %v3733 = vpack.c.b16 %v3491, %v3490
      %v3734 = vpack.c.b16 %v3493, %v3492
      %v3735 = vpack.c.b16 %v3495, %v3494
      %v3736 = vpack.c.b16 %v3497, %v3496
      %v3737 = vpack.c.b16 %v3499, %v3498
      %v3738 = vpack.c.b16 %v3501, %v3500
      %v3739 = vpack.c.b16 %v3503, %v3502
      %v3740 = vpack.c.b16 %v3505, %v3504
      %v3741 = vpack.c.b16 %v3507, %v3506
      %v3742 = vpack.c.b16 %v3509, %v3508
      %v3743 = vpack.c.b16 %v3511, %v3510
      %v3744 = vpack.c.b16 %v3513, %v3512
      %v3745 = vpack.c.b16 %v3515, %v3514
      %v3746 = vpack.c.b16 %v3517, %v3516
      %v3747 = vpack.c.b16 %v3519, %v3518
      %v3748 = vpack.c.b16 %v3521, %v3520
      %v3749 = vpack.c.b16 %v3523, %v3522
      %v3750 = vpack.c.b16 %v3525, %v3524
      %v3751 = vpack.c.b16 %v3527, %v3526
      %v3752 = vpack.c.b16 %v3529, %v3528
      %v3753 = vpack.c.b16 %v3531, %v3530
      %v3754 = vpack.c.b16 %v3533, %v3532
      %v3755 = vpack.c.b16 %v3535, %v3534
      %v3756 = vpack.c.b16 %v3537, %v3536
      %v3757 = vpack.c.b16 %v3539, %v3538
      %v3758 = vpack.c.b16 %v3541, %v3540
      %v3759 = vpack.c.b16 %v3543, %v3542
      %v3760 = vpack.c.b16 %v3545, %v3544
      %v3761 = vpack.c.b16 %v3547, %v3546
      %v3762 = vpack.c.b16 %v3549, %v3548
      %v3763 = vpack.c.b16 %v3551, %v3550
      %v3764 = vpack.c.b16 %v3553, %v3552
      %v3765 = vpack.c.b16 %v3555, %v3554
      %v3766 = vpack.c.b16 %v3557, %v3556
      %v3767 = vpack.c.b16 %v3559, %v3558
      %v3768 = vpack.c.b16 %v3561, %v3560
      %v3769 = vpack.c.b16 %v3563, %v3562
      %v3770 = vpack.c.b16 %v3565, %v3564
      %v3771 = vpack.c.b16 %v3567, %v3566
      %v3772 = vpack.c.b16 %v3569, %v3568
      %v3773 = vpack.c.b16 %v3571, %v3570
      %v3774 = vpack.c.b16 %v3573, %v3572
      %v3775 = vpack.c.b16 %v3575, %v3574
      %v3776 = vpack.c.b16 %v3577, %v3576
      %v3777 = vpack.c.b16 %v3579, %v3578
      %v3778 = vpack.c.b16 %v3581, %v3580
      %v3779 = vpack.c.b16 %v3583, %v3582
      %v3780 = vpack.c.b16 %v3585, %v3584
      %v3781 = vpack.c.b16 %v3587, %v3586
      %v3782 = vpack.c.b16 %v3589, %v3588
      %v3783 = vpack.c.b16 %v3591, %v3590
      %v3784 = vpack.c.b16 %v3593, %v3592
      %v3785 = vpack.c.b16 %v3595, %v3594
      %v3786 = vpack.c.b16 %v3597, %v3596
      %v3787 = vpack.c.b16 %v3599, %v3598
      %v3788 = vpack.c.b16 %v3601, %v3600
      %v3789 = vpack.c.b16 %v3603, %v3602
      %v3790 = vpack.c.b16 %v3605, %v3604
      %v3791 = vpack.c.b16 %v3607, %v3606
      %v3792 = vpack.c.b16 %v3609, %v3608
      %v3793 = vpack.c.b16 %v3611, %v3610
      %v3794 = vpack.c.b16 %v3613, %v3612
      %v3795 = vpack.c.b16 %v3615, %v3614
      %v3796 = vpack.c.b16 %v3617, %v3616
      %v3797 = vpack.c.b16 %v3619, %v3618
      %v3798 = vpack.c.b16 %v3621, %v3620
      %v3799 = vpack.c.b16 %v3623, %v3622
      %v3800 = vpack.c.b16 %v3625, %v3624
      %v3801 = vpack.c.b16 %v3627, %v3626
      %v3802 = vpack.c.b16 %v3629, %v3628
      %v3803 = vpack.c.b16 %v3631, %v3630
      %v3804 = vpack.c.b16 %v3633, %v3632
      %v3805 = vpack.c.b16 %v3635, %v3634
      %v3806 = vpack.c.b16 %v3637, %v3636
      %v3807 = vpack.c.b16 %v3639, %v3638
      %v3808 = vpack.c.b16 %v3641, %v3640
      %v3809 = vpack.c.b16 %v3643, %v3642
      %v3810 = vpack.c.b16 %v3645, %v3644
      %v3811 = vpack.c.b16 %v3647, %v3646
      %v3812 = vpack.c.b16 %v3649, %v3648
      %v3813 = vpack.c.b16 %v3651, %v3650
      %v3814 = vpack.c.b16 %v3653, %v3652
      %v3815 = vpack.c.b16 %v3655, %v3654
      %v3816 = vpack.c.b16 %v3657, %v3656
      %v3817 = vpack.c.b16 %v3659, %v3658
      %v3818 = vpack.c.b16 %v3661, %v3660
      %v3819 = vpack.c.b16 %v3663, %v3662
      %v3820 = vpack.c.b16 %v3665, %v3664
      %v3821 = vpack.c.b16 %v3667, %v3666
      %v3822 = vpack.c.b16 %v3669, %v3668
      %v3823 = vpack.c.b16 %v3671, %v3670
      %v3824 = vpack.c.b16 %v3673, %v3672
      %v3825 = vpack.c.b16 %v3675, %v3674
      %v3826 = vpack.c.b16 %v3677, %v3676
      %v3827 = vpack.c.b16 %v3679, %v3678
      %v3828 = vpack.c.b16 %v3681, %v3680
      %v3829 = vpack.c.b16 %v3683, %v3682
      %v3830 = vpack.c.b16 %v3685, %v3684
      %v3831 = vpack.c.b16 %v3687, %v3686
      %v3832 = vpack.c.b16 %v3689, %v3688
      %v3833 = vpack.c.b16 %v3691, %v3690
      %v3834 = vpack.c.b16 %v3693, %v3692
      %v3835 = vpack.c.b16 %v3695, %v3694
      %v3836 = vpack.c.b16 %v3697, %v3696
      %v3837 = vpack.c.b16 %v3699, %v3698
      %v3838 = vpack.c.b16 %v3701, %v3700
      %v3839 = vpack.c.b16 %v3703, %v3702
      %v3840 = vpack.c.b16 %v3705, %v3704
      %v3841 = vpack.c.b16 %v3707, %v3706
      %v3842 = vpack.c.b16 %v3709, %v3708
      %v3843 = vpack.c.b16 %v3711, %v3710
      %v3844 = vpack.c.b16 %v3713, %v3712
      %v3845 = vpack.c.b16 %v3715, %v3714
      %v3846 = vpack.c.b16 %v3717, %v3716
      %v3847 = vpack.c.b16 %v3719, %v3718
      %3976 = vmatprep.subr.bf16.mxu0 0
      %3977 = vmatpush1.bf16.msra.mxu0 %v3727
      %3978 = vmatprep.subr.bf16.mxu0 0
      %3979 = vmatpush1.bf16.msra.mxu0 %v3726
      %3980 = vmatprep.subr.bf16.mxu0 0
      %3981 = vmatpush1.bf16.msra.mxu0 %v3725
      %3982 = vmatprep.subr.bf16.mxu0 0
      %3983 = vmatpush1.bf16.msra.mxu0 %v3724
      %3984 = vmatprep.subr.bf16.mxu0 0
      %3985 = vmatpush1.bf16.msra.mxu0 %v3723
      %3986 = vmatprep.subr.bf16.mxu0 0
      %3987 = vmatpush1.bf16.msra.mxu0 %v3722
      %3988 = vmatprep.subr.bf16.mxu0 0
      %3989 = vmatpush1.bf16.msra.mxu0 %v3721
      %3990 = vmatprep.subr.bf16.mxu0 0
      %3991 = vmatpush1.bf16.msra.mxu0 %v3720
      %3992 = vmatprep.subr.bf16.mxu0 0
      %3993 = vmatpush2.bf16.msra.mxu0 %v3735
      %3994 = vmatprep.subr.bf16.mxu0 0
      %3995 = vmatpush2.bf16.msra.mxu0 %v3734
      %3996 = vmatprep.subr.bf16.mxu0 0
      %3997 = vmatpush2.bf16.msra.mxu0 %v3733
      %3998 = vmatprep.subr.bf16.mxu0 0
      %3999 = vmatpush2.bf16.msra.mxu0 %v3732
      %4000 = vmatprep.subr.bf16.mxu0 0
      %4001 = vmatpush2.bf16.msra.mxu0 %v3731
      %4002 = vmatprep.subr.bf16.mxu0 0
      %4003 = vmatpush2.bf16.msra.mxu0 %v3730
      %4004 = vmatprep.subr.bf16.mxu0 0
      %4005 = vmatpush2.bf16.msra.mxu0 %v3729
      %4006 = vmatprep.subr.bf16.mxu0 0
      %4007 = vmatpush2.bf16.msra.mxu0 %v3728
      %4008 = vmatprep.mubr.bf16.mxu0 %v2885
      %4009 = vmatmul.mubr.bf16.gmra.mxu0 %v2884
      %v4010 = vpop.f32.mrf.mxu0
      %v4011 = vadd.f32 %v3207, %v4010
      %v4012 = vpop.f32.mrf.mxu0
      %v4013 = vpop.f32.mrf.mxu0
      %v4014 = vadd.f32 %v3207, %v4013
      %v4015 = vpop.f32.mrf.mxu0
      %4016 = vmatprep.mubr.bf16.mxu0 %v2901
      %4017 = vmatmul.mubr.bf16.gmra.mxu0 %v2900
      %v4018 = vpop.f32.mrf.mxu0
      %v4019 = vadd.f32 %v3207, %v4018
      %v4020 = vpop.f32.mrf.mxu0
      %v4021 = vpop.f32.mrf.mxu0
      %v4022 = vadd.f32 %v3207, %v4021
      %v4023 = vpop.f32.mrf.mxu0
      %4024 = vmatprep.mubr.bf16.mxu0 %v2917
      %4025 = vmatmul.mubr.bf16.gmra.mxu0 %v2916
      %v4026 = vpop.f32.mrf.mxu0
      %v4027 = vadd.f32 %v3207, %v4026
      %v4028 = vpop.f32.mrf.mxu0
      %v4029 = vpop.f32.mrf.mxu0
      %v4030 = vadd.f32 %v3207, %v4029
      %v4031 = vpop.f32.mrf.mxu0
      %4032 = vmatprep.mubr.bf16.mxu0 %v2933
      %4033 = vmatmul.mubr.bf16.gmra.mxu0 %v2932
      %v4034 = vpop.f32.mrf.mxu0
      %v4035 = vadd.f32 %v3207, %v4034
      %v4036 = vpop.f32.mrf.mxu0
      %v4037 = vpop.f32.mrf.mxu0
      %v4038 = vadd.f32 %v3207, %v4037
      %v4039 = vpop.f32.mrf.mxu0
      %4040 = vdwg.mxu0
      %4041 = vmatprep.subr.bf16.mxu0 0
      %4042 = vmatpush1.bf16.msra.mxu0 %v3743
      %4043 = vmatprep.subr.bf16.mxu0 0
      %4044 = vmatpush1.bf16.msra.mxu0 %v3742
      %4045 = vmatprep.subr.bf16.mxu0 0
      %4046 = vmatpush1.bf16.msra.mxu0 %v3741
      %4047 = vmatprep.subr.bf16.mxu0 0
      %4048 = vmatpush1.bf16.msra.mxu0 %v3740
      %4049 = vmatprep.subr.bf16.mxu0 0
      %4050 = vmatpush1.bf16.msra.mxu0 %v3739
      %4051 = vmatprep.subr.bf16.mxu0 0
      %4052 = vmatpush1.bf16.msra.mxu0 %v3738
      %4053 = vmatprep.subr.bf16.mxu0 0
      %4054 = vmatpush1.bf16.msra.mxu0 %v3737
      %4055 = vmatprep.subr.bf16.mxu0 0
      %4056 = vmatpush1.bf16.msra.mxu0 %v3736
      %4057 = vmatprep.subr.bf16.mxu0 0
      %4058 = vmatpush2.bf16.msra.mxu0 %v3751
      %4059 = vmatprep.subr.bf16.mxu0 0
      %4060 = vmatpush2.bf16.msra.mxu0 %v3750
      %4061 = vmatprep.subr.bf16.mxu0 0
      %4062 = vmatpush2.bf16.msra.mxu0 %v3749
      %4063 = vmatprep.subr.bf16.mxu0 0
      %4064 = vmatpush2.bf16.msra.mxu0 %v3748
      %4065 = vmatprep.subr.bf16.mxu0 0
      %4066 = vmatpush2.bf16.msra.mxu0 %v3747
      %4067 = vmatprep.subr.bf16.mxu0 0
      %4068 = vmatpush2.bf16.msra.mxu0 %v3746
      %4069 = vmatprep.subr.bf16.mxu0 0
      %4070 = vmatpush2.bf16.msra.mxu0 %v3745
      %4071 = vmatprep.subr.bf16.mxu0 0
      %4072 = vmatpush2.bf16.msra.mxu0 %v3744
      %4073 = vmatprep.mubr.bf16.mxu0 %v2887
      %4074 = vmatmul.mubr.bf16.gmra.mxu0 %v2886
      %v4075 = vpop.f32.mrf.mxu0
      %v4076 = vadd.f32 %v4011, %v4075
      %v4077 = vpop.f32.mrf.mxu0
      %v4078 = vpop.f32.mrf.mxu0
      %v4079 = vadd.f32 %v4014, %v4078
      %v4080 = vpop.f32.mrf.mxu0
      %4081 = vmatprep.mubr.bf16.mxu0 %v2903
      %4082 = vmatmul.mubr.bf16.gmra.mxu0 %v2902
      %v4083 = vpop.f32.mrf.mxu0
      %v4084 = vadd.f32 %v4019, %v4083
      %v4085 = vpop.f32.mrf.mxu0
      %v4086 = vpop.f32.mrf.mxu0
      %v4087 = vadd.f32 %v4022, %v4086
      %v4088 = vpop.f32.mrf.mxu0
      %4089 = vmatprep.mubr.bf16.mxu0 %v2919
      %4090 = vmatmul.mubr.bf16.gmra.mxu0 %v2918
      %v4091 = vpop.f32.mrf.mxu0
      %v4092 = vadd.f32 %v4027, %v4091
      %v4093 = vpop.f32.mrf.mxu0
      %v4094 = vpop.f32.mrf.mxu0
      %v4095 = vadd.f32 %v4030, %v4094
      %v4096 = vpop.f32.mrf.mxu0
      %4097 = vmatprep.mubr.bf16.mxu0 %v2935
      %4098 = vmatmul.mubr.bf16.gmra.mxu0 %v2934
      %v4099 = vpop.f32.mrf.mxu0
      %v4100 = vadd.f32 %v4035, %v4099
      %v4101 = vpop.f32.mrf.mxu0
      %v4102 = vpop.f32.mrf.mxu0
      %v4103 = vadd.f32 %v4038, %v4102
      %v4104 = vpop.f32.mrf.mxu0
      %4105 = vdwg.mxu0
      %4106 = vmatprep.subr.bf16.mxu0 0
      %4107 = vmatpush1.bf16.msra.mxu0 %v3759
      %4108 = vmatprep.subr.bf16.mxu0 0
      %4109 = vmatpush1.bf16.msra.mxu0 %v3758
      %4110 = vmatprep.subr.bf16.mxu0 0
      %4111 = vmatpush1.bf16.msra.mxu0 %v3757
      %4112 = vmatprep.subr.bf16.mxu0 0
      %4113 = vmatpush1.bf16.msra.mxu0 %v3756
      %4114 = vmatprep.subr.bf16.mxu0 0
      %4115 = vmatpush1.bf16.msra.mxu0 %v3755
      %4116 = vmatprep.subr.bf16.mxu0 0
      %4117 = vmatpush1.bf16.msra.mxu0 %v3754
      %4118 = vmatprep.subr.bf16.mxu0 0
      %4119 = vmatpush1.bf16.msra.mxu0 %v3753
      %4120 = vmatprep.subr.bf16.mxu0 0
      %4121 = vmatpush1.bf16.msra.mxu0 %v3752
      %4122 = vmatprep.subr.bf16.mxu0 0
      %4123 = vmatpush2.bf16.msra.mxu0 %v3767
      %4124 = vmatprep.subr.bf16.mxu0 0
      %4125 = vmatpush2.bf16.msra.mxu0 %v3766
      %4126 = vmatprep.subr.bf16.mxu0 0
      %4127 = vmatpush2.bf16.msra.mxu0 %v3765
      %4128 = vmatprep.subr.bf16.mxu0 0
      %4129 = vmatpush2.bf16.msra.mxu0 %v3764
      %4130 = vmatprep.subr.bf16.mxu0 0
      %4131 = vmatpush2.bf16.msra.mxu0 %v3763
      %4132 = vmatprep.subr.bf16.mxu0 0
      %4133 = vmatpush2.bf16.msra.mxu0 %v3762
      %4134 = vmatprep.subr.bf16.mxu0 0
      %4135 = vmatpush2.bf16.msra.mxu0 %v3761
      %4136 = vmatprep.subr.bf16.mxu0 0
      %4137 = vmatpush2.bf16.msra.mxu0 %v3760
      %4138 = vmatprep.mubr.bf16.mxu0 %v2889
      %4139 = vmatmul.mubr.bf16.gmra.mxu0 %v2888
      %v4140 = vpop.f32.mrf.mxu0
      %v4141 = vadd.f32 %v4076, %v4140
      %v4142 = vpop.f32.mrf.mxu0
      %v4143 = vpop.f32.mrf.mxu0
      %v4144 = vadd.f32 %v4079, %v4143
      %v4145 = vpop.f32.mrf.mxu0
      %4146 = vmatprep.mubr.bf16.mxu0 %v2905
      %4147 = vmatmul.mubr.bf16.gmra.mxu0 %v2904
      %v4148 = vpop.f32.mrf.mxu0
      %v4149 = vadd.f32 %v4084, %v4148
      %v4150 = vpop.f32.mrf.mxu0
      %v4151 = vpop.f32.mrf.mxu0
      %v4152 = vadd.f32 %v4087, %v4151
      %v4153 = vpop.f32.mrf.mxu0
      %4154 = vmatprep.mubr.bf16.mxu0 %v2921
      %4155 = vmatmul.mubr.bf16.gmra.mxu0 %v2920
      %v4156 = vpop.f32.mrf.mxu0
      %v4157 = vadd.f32 %v4092, %v4156
      %v4158 = vpop.f32.mrf.mxu0
      %v4159 = vpop.f32.mrf.mxu0
      %v4160 = vadd.f32 %v4095, %v4159
      %v4161 = vpop.f32.mrf.mxu0
      %4162 = vmatprep.mubr.bf16.mxu0 %v2937
      %4163 = vmatmul.mubr.bf16.gmra.mxu0 %v2936
      %v4164 = vpop.f32.mrf.mxu0
      %v4165 = vadd.f32 %v4100, %v4164
      %v4166 = vpop.f32.mrf.mxu0
      %v4167 = vpop.f32.mrf.mxu0
      %v4168 = vadd.f32 %v4103, %v4167
      %v4169 = vpop.f32.mrf.mxu0
      %4170 = vdwg.mxu0
      %4171 = vmatprep.subr.bf16.mxu0 0
      %4172 = vmatpush1.bf16.msra.mxu0 %v3775
      %4173 = vmatprep.subr.bf16.mxu0 0
      %4174 = vmatpush1.bf16.msra.mxu0 %v3774
      %4175 = vmatprep.subr.bf16.mxu0 0
      %4176 = vmatpush1.bf16.msra.mxu0 %v3773
      %4177 = vmatprep.subr.bf16.mxu0 0
      %4178 = vmatpush1.bf16.msra.mxu0 %v3772
      %4179 = vmatprep.subr.bf16.mxu0 0
      %4180 = vmatpush1.bf16.msra.mxu0 %v3771
      %4181 = vmatprep.subr.bf16.mxu0 0
      %4182 = vmatpush1.bf16.msra.mxu0 %v3770
      %4183 = vmatprep.subr.bf16.mxu0 0
      %4184 = vmatpush1.bf16.msra.mxu0 %v3769
      %4185 = vmatprep.subr.bf16.mxu0 0
      %4186 = vmatpush1.bf16.msra.mxu0 %v3768
      %4187 = vmatprep.subr.bf16.mxu0 0
      %4188 = vmatpush2.bf16.msra.mxu0 %v3783
      %4189 = vmatprep.subr.bf16.mxu0 0
      %4190 = vmatpush2.bf16.msra.mxu0 %v3782
      %4191 = vmatprep.subr.bf16.mxu0 0
      %4192 = vmatpush2.bf16.msra.mxu0 %v3781
      %4193 = vmatprep.subr.bf16.mxu0 0
      %4194 = vmatpush2.bf16.msra.mxu0 %v3780
      %4195 = vmatprep.subr.bf16.mxu0 0
      %4196 = vmatpush2.bf16.msra.mxu0 %v3779
      %4197 = vmatprep.subr.bf16.mxu0 0
      %4198 = vmatpush2.bf16.msra.mxu0 %v3778
      %4199 = vmatprep.subr.bf16.mxu0 0
      %4200 = vmatpush2.bf16.msra.mxu0 %v3777
      %4201 = vmatprep.subr.bf16.mxu0 0
      %4202 = vmatpush2.bf16.msra.mxu0 %v3776
      %4203 = vmatprep.mubr.bf16.mxu0 %v2891
      %4204 = vmatmul.mubr.bf16.gmra.mxu0 %v2890
      %v4205 = vpop.f32.mrf.mxu0
      %v4206 = vadd.f32 %v4141, %v4205
      %v4207 = vpop.f32.mrf.mxu0
      %v4208 = vpop.f32.mrf.mxu0
      %v4209 = vadd.f32 %v4144, %v4208
      %v4210 = vpop.f32.mrf.mxu0
      %4211 = vmatprep.mubr.bf16.mxu0 %v2907
      %4212 = vmatmul.mubr.bf16.gmra.mxu0 %v2906
      %v4213 = vpop.f32.mrf.mxu0
      %v4214 = vadd.f32 %v4149, %v4213
      %v4215 = vpop.f32.mrf.mxu0
      %v4216 = vpop.f32.mrf.mxu0
      %v4217 = vadd.f32 %v4152, %v4216
      %v4218 = vpop.f32.mrf.mxu0
      %4219 = vmatprep.mubr.bf16.mxu0 %v2923
      %4220 = vmatmul.mubr.bf16.gmra.mxu0 %v2922
      %v4221 = vpop.f32.mrf.mxu0
      %v4222 = vadd.f32 %v4157, %v4221
      %v4223 = vpop.f32.mrf.mxu0
      %v4224 = vpop.f32.mrf.mxu0
      %v4225 = vadd.f32 %v4160, %v4224
      %v4226 = vpop.f32.mrf.mxu0
      %4227 = vmatprep.mubr.bf16.mxu0 %v2939
      %4228 = vmatmul.mubr.bf16.gmra.mxu0 %v2938
      %v4229 = vpop.f32.mrf.mxu0
      %v4230 = vadd.f32 %v4165, %v4229
      %v4231 = vpop.f32.mrf.mxu0
      %v4232 = vpop.f32.mrf.mxu0
      %v4233 = vadd.f32 %v4168, %v4232
      %v4234 = vpop.f32.mrf.mxu0
      %4235 = vdwg.mxu0
      %4236 = vmatprep.subr.bf16.mxu0 0
      %4237 = vmatpush1.bf16.msra.mxu0 %v3791
      %4238 = vmatprep.subr.bf16.mxu0 0
      %4239 = vmatpush1.bf16.msra.mxu0 %v3790
      %4240 = vmatprep.subr.bf16.mxu0 0
      %4241 = vmatpush1.bf16.msra.mxu0 %v3789
      %4242 = vmatprep.subr.bf16.mxu0 0
      %4243 = vmatpush1.bf16.msra.mxu0 %v3788
      %4244 = vmatprep.subr.bf16.mxu0 0
      %4245 = vmatpush1.bf16.msra.mxu0 %v3787
      %4246 = vmatprep.subr.bf16.mxu0 0
      %4247 = vmatpush1.bf16.msra.mxu0 %v3786
      %4248 = vmatprep.subr.bf16.mxu0 0
      %4249 = vmatpush1.bf16.msra.mxu0 %v3785
      %4250 = vmatprep.subr.bf16.mxu0 0
      %4251 = vmatpush1.bf16.msra.mxu0 %v3784
      %4252 = vmatprep.subr.bf16.mxu0 0
      %4253 = vmatpush2.bf16.msra.mxu0 %v3799
      %4254 = vmatprep.subr.bf16.mxu0 0
      %4255 = vmatpush2.bf16.msra.mxu0 %v3798
      %4256 = vmatprep.subr.bf16.mxu0 0
      %4257 = vmatpush2.bf16.msra.mxu0 %v3797
      %4258 = vmatprep.subr.bf16.mxu0 0
      %4259 = vmatpush2.bf16.msra.mxu0 %v3796
      %4260 = vmatprep.subr.bf16.mxu0 0
      %4261 = vmatpush2.bf16.msra.mxu0 %v3795
      %4262 = vmatprep.subr.bf16.mxu0 0
      %4263 = vmatpush2.bf16.msra.mxu0 %v3794
      %4264 = vmatprep.subr.bf16.mxu0 0
      %4265 = vmatpush2.bf16.msra.mxu0 %v3793
      %4266 = vmatprep.subr.bf16.mxu0 0
      %4267 = vmatpush2.bf16.msra.mxu0 %v3792
      %4268 = vmatprep.mubr.bf16.mxu0 %v2893
      %4269 = vmatmul.mubr.bf16.gmra.mxu0 %v2892
      %v4270 = vpop.f32.mrf.mxu0
      %v4271 = vadd.f32 %v4206, %v4270
      %v4272 = vpop.f32.mrf.mxu0
      %v4273 = vpop.f32.mrf.mxu0
      %v4274 = vadd.f32 %v4209, %v4273
      %v4275 = vpop.f32.mrf.mxu0
      %4276 = vmatprep.mubr.bf16.mxu0 %v2909
      %4277 = vmatmul.mubr.bf16.gmra.mxu0 %v2908
      %v4278 = vpop.f32.mrf.mxu0
      %v4279 = vadd.f32 %v4214, %v4278
      %v4280 = vpop.f32.mrf.mxu0
      %v4281 = vpop.f32.mrf.mxu0
      %v4282 = vadd.f32 %v4217, %v4281
      %v4283 = vpop.f32.mrf.mxu0
      %4284 = vmatprep.mubr.bf16.mxu0 %v2925
      %4285 = vmatmul.mubr.bf16.gmra.mxu0 %v2924
      %v4286 = vpop.f32.mrf.mxu0
      %v4287 = vadd.f32 %v4222, %v4286
      %v4288 = vpop.f32.mrf.mxu0
      %v4289 = vpop.f32.mrf.mxu0
      %v4290 = vadd.f32 %v4225, %v4289
      %v4291 = vpop.f32.mrf.mxu0
      %4292 = vmatprep.mubr.bf16.mxu0 %v2941
      %4293 = vmatmul.mubr.bf16.gmra.mxu0 %v2940
      %v4294 = vpop.f32.mrf.mxu0
      %v4295 = vadd.f32 %v4230, %v4294
      %v4296 = vpop.f32.mrf.mxu0
      %v4297 = vpop.f32.mrf.mxu0
      %v4298 = vadd.f32 %v4233, %v4297
      %v4299 = vpop.f32.mrf.mxu0
      %4300 = vdwg.mxu0
      %4301 = vmatprep.subr.bf16.mxu0 0
      %4302 = vmatpush1.bf16.msra.mxu0 %v3807
      %4303 = vmatprep.subr.bf16.mxu0 0
      %4304 = vmatpush1.bf16.msra.mxu0 %v3806
      %4305 = vmatprep.subr.bf16.mxu0 0
      %4306 = vmatpush1.bf16.msra.mxu0 %v3805
      %4307 = vmatprep.subr.bf16.mxu0 0
      %4308 = vmatpush1.bf16.msra.mxu0 %v3804
      %4309 = vmatprep.subr.bf16.mxu0 0
      %4310 = vmatpush1.bf16.msra.mxu0 %v3803
      %4311 = vmatprep.subr.bf16.mxu0 0
      %4312 = vmatpush1.bf16.msra.mxu0 %v3802
      %4313 = vmatprep.subr.bf16.mxu0 0
      %4314 = vmatpush1.bf16.msra.mxu0 %v3801
      %4315 = vmatprep.subr.bf16.mxu0 0
      %4316 = vmatpush1.bf16.msra.mxu0 %v3800
      %4317 = vmatprep.subr.bf16.mxu0 0
      %4318 = vmatpush2.bf16.msra.mxu0 %v3815
      %4319 = vmatprep.subr.bf16.mxu0 0
      %4320 = vmatpush2.bf16.msra.mxu0 %v3814
      %4321 = vmatprep.subr.bf16.mxu0 0
      %4322 = vmatpush2.bf16.msra.mxu0 %v3813
      %4323 = vmatprep.subr.bf16.mxu0 0
      %4324 = vmatpush2.bf16.msra.mxu0 %v3812
      %4325 = vmatprep.subr.bf16.mxu0 0
      %4326 = vmatpush2.bf16.msra.mxu0 %v3811
      %4327 = vmatprep.subr.bf16.mxu0 0
      %4328 = vmatpush2.bf16.msra.mxu0 %v3810
      %4329 = vmatprep.subr.bf16.mxu0 0
      %4330 = vmatpush2.bf16.msra.mxu0 %v3809
      %4331 = vmatprep.subr.bf16.mxu0 0
      %4332 = vmatpush2.bf16.msra.mxu0 %v3808
      %4333 = vmatprep.mubr.bf16.mxu0 %v2895
      %4334 = vmatmul.mubr.bf16.gmra.mxu0 %v2894
      %v4335 = vpop.f32.mrf.mxu0
      %v4336 = vadd.f32 %v4271, %v4335
      %v4337 = vpop.f32.mrf.mxu0
      %v4338 = vpop.f32.mrf.mxu0
      %v4339 = vadd.f32 %v4274, %v4338
      %v4340 = vpop.f32.mrf.mxu0
      %4341 = vmatprep.mubr.bf16.mxu0 %v2911
      %4342 = vmatmul.mubr.bf16.gmra.mxu0 %v2910
      %v4343 = vpop.f32.mrf.mxu0
      %v4344 = vadd.f32 %v4279, %v4343
      %v4345 = vpop.f32.mrf.mxu0
      %v4346 = vpop.f32.mrf.mxu0
      %v4347 = vadd.f32 %v4282, %v4346
      %v4348 = vpop.f32.mrf.mxu0
      %4349 = vmatprep.mubr.bf16.mxu0 %v2927
      %4350 = vmatmul.mubr.bf16.gmra.mxu0 %v2926
      %v4351 = vpop.f32.mrf.mxu0
      %v4352 = vadd.f32 %v4287, %v4351
      %v4353 = vpop.f32.mrf.mxu0
      %v4354 = vpop.f32.mrf.mxu0
      %v4355 = vadd.f32 %v4290, %v4354
      %v4356 = vpop.f32.mrf.mxu0
      %4357 = vmatprep.mubr.bf16.mxu0 %v2943
      %4358 = vmatmul.mubr.bf16.gmra.mxu0 %v2942
      %v4359 = vpop.f32.mrf.mxu0
      %v4360 = vadd.f32 %v4295, %v4359
      %v4361 = vpop.f32.mrf.mxu0
      %v4362 = vpop.f32.mrf.mxu0
      %v4363 = vadd.f32 %v4298, %v4362
      %v4364 = vpop.f32.mrf.mxu0
      %4365 = vdwg.mxu0
      %4366 = vmatprep.subr.bf16.mxu0 0
      %4367 = vmatpush1.bf16.msra.mxu0 %v3823
      %4368 = vmatprep.subr.bf16.mxu0 0
      %4369 = vmatpush1.bf16.msra.mxu0 %v3822
      %4370 = vmatprep.subr.bf16.mxu0 0
      %4371 = vmatpush1.bf16.msra.mxu0 %v3821
      %4372 = vmatprep.subr.bf16.mxu0 0
      %4373 = vmatpush1.bf16.msra.mxu0 %v3820
      %4374 = vmatprep.subr.bf16.mxu0 0
      %4375 = vmatpush1.bf16.msra.mxu0 %v3819
      %4376 = vmatprep.subr.bf16.mxu0 0
      %4377 = vmatpush1.bf16.msra.mxu0 %v3818
      %4378 = vmatprep.subr.bf16.mxu0 0
      %4379 = vmatpush1.bf16.msra.mxu0 %v3817
      %4380 = vmatprep.subr.bf16.mxu0 0
      %4381 = vmatpush1.bf16.msra.mxu0 %v3816
      %4382 = vmatprep.subr.bf16.mxu0 0
      %4383 = vmatpush2.bf16.msra.mxu0 %v3831
      %4384 = vmatprep.subr.bf16.mxu0 0
      %4385 = vmatpush2.bf16.msra.mxu0 %v3830
      %4386 = vmatprep.subr.bf16.mxu0 0
      %4387 = vmatpush2.bf16.msra.mxu0 %v3829
      %4388 = vmatprep.subr.bf16.mxu0 0
      %4389 = vmatpush2.bf16.msra.mxu0 %v3828
      %4390 = vmatprep.subr.bf16.mxu0 0
      %4391 = vmatpush2.bf16.msra.mxu0 %v3827
      %4392 = vmatprep.subr.bf16.mxu0 0
      %4393 = vmatpush2.bf16.msra.mxu0 %v3826
      %4394 = vmatprep.subr.bf16.mxu0 0
      %4395 = vmatpush2.bf16.msra.mxu0 %v3825
      %4396 = vmatprep.subr.bf16.mxu0 0
      %4397 = vmatpush2.bf16.msra.mxu0 %v3824
      %4398 = vmatprep.mubr.bf16.mxu0 %v2897
      %4399 = vmatmul.mubr.bf16.gmra.mxu0 %v2896
      %v4400 = vpop.f32.mrf.mxu0
      %v4401 = vadd.f32 %v4336, %v4400
      %v4402 = vpop.f32.mrf.mxu0
      %v4403 = vpop.f32.mrf.mxu0
      %v4404 = vadd.f32 %v4339, %v4403
      %v4405 = vpop.f32.mrf.mxu0
      %4406 = vmatprep.mubr.bf16.mxu0 %v2913
      %4407 = vmatmul.mubr.bf16.gmra.mxu0 %v2912
      %v4408 = vpop.f32.mrf.mxu0
      %v4409 = vadd.f32 %v4344, %v4408
      %v4410 = vpop.f32.mrf.mxu0
      %v4411 = vpop.f32.mrf.mxu0
      %v4412 = vadd.f32 %v4347, %v4411
      %v4413 = vpop.f32.mrf.mxu0
      %4414 = vmatprep.mubr.bf16.mxu0 %v2929
      %4415 = vmatmul.mubr.bf16.gmra.mxu0 %v2928
      %v4416 = vpop.f32.mrf.mxu0
      %v4417 = vadd.f32 %v4352, %v4416
      %v4418 = vpop.f32.mrf.mxu0
      %v4419 = vpop.f32.mrf.mxu0
      %v4420 = vadd.f32 %v4355, %v4419
      %v4421 = vpop.f32.mrf.mxu0
      %4422 = vmatprep.mubr.bf16.mxu0 %v2945
      %4423 = vmatmul.mubr.bf16.gmra.mxu0 %v2944
      %v4424 = vpop.f32.mrf.mxu0
      %v4425 = vadd.f32 %v4360, %v4424
      %v4426 = vpop.f32.mrf.mxu0
      %v4427 = vpop.f32.mrf.mxu0
      %v4428 = vadd.f32 %v4363, %v4427
      %v4429 = vpop.f32.mrf.mxu0
      %4430 = vdwg.mxu0
      %4431 = vmatprep.subr.bf16.mxu0 0
      %4432 = vmatpush1.bf16.msra.mxu0 %v3839
      %4433 = vmatprep.subr.bf16.mxu0 0
      %4434 = vmatpush1.bf16.msra.mxu0 %v3838
      %4435 = vmatprep.subr.bf16.mxu0 0
      %4436 = vmatpush1.bf16.msra.mxu0 %v3837
      %4437 = vmatprep.subr.bf16.mxu0 0
      %4438 = vmatpush1.bf16.msra.mxu0 %v3836
      %4439 = vmatprep.subr.bf16.mxu0 0
      %4440 = vmatpush1.bf16.msra.mxu0 %v3835
      %4441 = vmatprep.subr.bf16.mxu0 0
      %4442 = vmatpush1.bf16.msra.mxu0 %v3834
      %4443 = vmatprep.subr.bf16.mxu0 0
      %4444 = vmatpush1.bf16.msra.mxu0 %v3833
      %4445 = vmatprep.subr.bf16.mxu0 0
      %4446 = vmatpush1.bf16.msra.mxu0 %v3832
      %4447 = vmatprep.subr.bf16.mxu0 0
      %4448 = vmatpush2.bf16.msra.mxu0 %v3847
      %4449 = vmatprep.subr.bf16.mxu0 0
      %4450 = vmatpush2.bf16.msra.mxu0 %v3846
      %4451 = vmatprep.subr.bf16.mxu0 0
      %4452 = vmatpush2.bf16.msra.mxu0 %v3845
      %4453 = vmatprep.subr.bf16.mxu0 0
      %4454 = vmatpush2.bf16.msra.mxu0 %v3844
      %4455 = vmatprep.subr.bf16.mxu0 0
      %4456 = vmatpush2.bf16.msra.mxu0 %v3843
      %4457 = vmatprep.subr.bf16.mxu0 0
      %4458 = vmatpush2.bf16.msra.mxu0 %v3842
      %4459 = vmatprep.subr.bf16.mxu0 0
      %4460 = vmatpush2.bf16.msra.mxu0 %v3841
      %4461 = vmatprep.subr.bf16.mxu0 0
      %4462 = vmatpush2.bf16.msra.mxu0 %v3840
      %4463 = vmatprep.mubr.bf16.mxu0 %v2899
      %4464 = vmatmul.mubr.bf16.gmra.mxu0 %v2898
      %v4465 = vpop.f32.mrf.mxu0
      %v4466 = vadd.f32 %v4401, %v4465
      %v4467 = vpop.f32.mrf.mxu0
      %v4468 = vpop.f32.mrf.mxu0
      %v4469 = vadd.f32 %v4404, %v4468
      %v4470 = vpop.f32.mrf.mxu0
      %4471 = vmatprep.mubr.bf16.mxu0 %v2915
      %4472 = vmatmul.mubr.bf16.gmra.mxu0 %v2914
      %v4473 = vpop.f32.mrf.mxu0
      %v4474 = vadd.f32 %v4409, %v4473
      %v4475 = vpop.f32.mrf.mxu0
      %v4476 = vpop.f32.mrf.mxu0
      %v4477 = vadd.f32 %v4412, %v4476
      %v4478 = vpop.f32.mrf.mxu0
      %4479 = vmatprep.mubr.bf16.mxu0 %v2931
      %4480 = vmatmul.mubr.bf16.gmra.mxu0 %v2930
      %v4481 = vpop.f32.mrf.mxu0
      %v4482 = vadd.f32 %v4417, %v4481
      %v4483 = vpop.f32.mrf.mxu0
      %v4484 = vpop.f32.mrf.mxu0
      %v4485 = vadd.f32 %v4420, %v4484
      %v4486 = vpop.f32.mrf.mxu0
      %4487 = vmatprep.mubr.bf16.mxu0 %v2947
      %4488 = vmatmul.mubr.bf16.gmra.mxu0 %v2946
      %v4489 = vpop.f32.mrf.mxu0
      %v4490 = vadd.f32 %v4425, %v4489
      %v4491 = vpop.f32.mrf.mxu0
      %v4492 = vpop.f32.mrf.mxu0
      %v4493 = vadd.f32 %v4428, %v4492
      %v4494 = vpop.f32.mrf.mxu0
      %4495 = vdwg.mxu0
      %v4496 = vadd.f32 %v1680, %v4466
      %v4497 = vadd.f32 %v1681, %v4469
      %v4498 = vadd.f32 %v1682, %v4474
      %v4499 = vadd.f32 %v1683, %v4477
      %v4500 = vadd.f32 %v1684, %v4482
      %v4501 = vadd.f32 %v1685, %v4485
      %v4502 = vadd.f32 %v1686, %v4490
      %v4503 = vadd.f32 %v1687, %v4493
      %v4504 = vsel %vm763, %v4496, 0.0
      %4505 = vadd.xlane.f32.xlu0 %v4504
      %v4506 = vpop.xlane.xlu0 %4505
      %v4507 = vsel %vm763, %v4497, 0.0
      %4508 = vadd.xlane.f32.xlu0 %v4507
      %v4509 = vpop.xlane.xlu0 %4508
      %v4510 = vsel %vm763, %v4498, 0.0
      %4511 = vadd.xlane.f32.xlu0 %v4510
      %v4512 = vpop.xlane.xlu0 %4511
      %v4513 = vsel %vm763, %v4499, 0.0
      %4514 = vadd.xlane.f32.xlu0 %v4513
      %v4515 = vpop.xlane.xlu0 %4514
      %v4516 = vsel %vm763, %v4500, 0.0
      %4517 = vadd.xlane.f32.xlu0 %v4516
      %v4518 = vpop.xlane.xlu0 %4517
      %v4519 = vsel %vm763, %v4501, 0.0
      %4520 = vadd.xlane.f32.xlu0 %v4519
      %v4521 = vpop.xlane.xlu0 %4520
      %v4522 = vsel %vm763, %v4502, 0.0
      %4523 = vadd.xlane.f32.xlu0 %v4522
      %v4524 = vpop.xlane.xlu0 %4523
      %v4525 = vsel %vm763, %v4503, 0.0
      %4526 = vadd.xlane.f32.xlu0 %v4525
      %v4527 = vpop.xlane.xlu0 %4526
      %v4528 = vmul.f32 %v4506, %v1583
      %v4529 = vmul.f32 %v4509, %v1583
      %v4530 = vmul.f32 %v4512, %v1583
      %v4531 = vmul.f32 %v4515, %v1583
      %v4532 = vmul.f32 %v4518, %v1583
      %v4533 = vmul.f32 %v4521, %v1583
      %v4534 = vmul.f32 %v4524, %v1583
      %v4535 = vmul.f32 %v4527, %v1583
      %v4536 = vsub.f32 %v4496, %v4528
      %v4537 = vsub.f32 %v4497, %v4529
      %v4538 = vsub.f32 %v4498, %v4530
      %v4539 = vsub.f32 %v4499, %v4531
      %v4540 = vsub.f32 %v4500, %v4532
      %v4541 = vsub.f32 %v4501, %v4533
      %v4542 = vsub.f32 %v4502, %v4534
      %v4543 = vsub.f32 %v4503, %v4535
      %v4544 = vmul.f32 %v4536, %v4536
      %v4545 = vmul.f32 %v4537, %v4537
      %v4546 = vmul.f32 %v4538, %v4538
      %v4547 = vmul.f32 %v4539, %v4539
      %v4548 = vmul.f32 %v4540, %v4540
      %v4549 = vmul.f32 %v4541, %v4541
      %v4550 = vmul.f32 %v4542, %v4542
      %v4551 = vmul.f32 %v4543, %v4543
      %v4552 = vsel %vm763, %v4544, 0.0
      %4553 = vadd.xlane.f32.xlu0 %v4552
      %v4554 = vpop.xlane.xlu0 %4553
      %v4555 = vsel %vm763, %v4545, 0.0
      %4556 = vadd.xlane.f32.xlu0 %v4555
      %v4557 = vpop.xlane.xlu0 %4556
      %v4558 = vsel %vm763, %v4546, 0.0
      %4559 = vadd.xlane.f32.xlu0 %v4558
      %v4560 = vpop.xlane.xlu0 %4559
      %v4561 = vsel %vm763, %v4547, 0.0
      %4562 = vadd.xlane.f32.xlu0 %v4561
      %v4563 = vpop.xlane.xlu0 %4562
      %v4564 = vsel %vm763, %v4548, 0.0
      %4565 = vadd.xlane.f32.xlu0 %v4564
      %v4566 = vpop.xlane.xlu0 %4565
      %v4567 = vsel %vm763, %v4549, 0.0
      %4568 = vadd.xlane.f32.xlu0 %v4567
      %v4569 = vpop.xlane.xlu0 %4568
      %v4570 = vsel %vm763, %v4550, 0.0
      %4571 = vadd.xlane.f32.xlu0 %v4570
      %v4572 = vpop.xlane.xlu0 %4571
      %v4573 = vsel %vm763, %v4551, 0.0
      %4574 = vadd.xlane.f32.xlu0 %v4573
      %v4575 = vpop.xlane.xlu0 %4574
      %v4576 = vmul.f32 %v4554, %v1583
      %v4577 = vmul.f32 %v4557, %v1583
      %v4578 = vmul.f32 %v4560, %v1583
      %v4579 = vmul.f32 %v4563, %v1583
      %v4580 = vmul.f32 %v4566, %v1583
      %v4581 = vmul.f32 %v4569, %v1583
      %v4582 = vmul.f32 %v4572, %v1583
      %v4583 = vmul.f32 %v4575, %v1583
      %v4584 = vadd.f32 %v4576, 1e-05
      %v4585 = vadd.f32 %v4577, 1e-05
      %v4586 = vadd.f32 %v4578, 1e-05
      %v4587 = vadd.f32 %v4579, 1e-05
      %v4588 = vadd.f32 %v4580, 1e-05
      %v4589 = vadd.f32 %v4581, 1e-05
      %v4590 = vadd.f32 %v4582, 1e-05
      %v4591 = vadd.f32 %v4583, 1e-05
      %v4592 = vrsqrt.pop %v4584
      %v4593 = vrsqrt.pop %v4585
      %v4594 = vrsqrt.pop %v4586
      %v4595 = vrsqrt.pop %v4587
      %v4596 = vrsqrt.pop %v4588
      %v4597 = vrsqrt.pop %v4589
      %v4598 = vrsqrt.pop %v4590
      %v4599 = vrsqrt.pop %v4591
      %v4600 = vmul.f32 %v4536, %v4592
      %v4601 = vmul.f32 %v4537, %v4593
      %v4602 = vmul.f32 %v4538, %v4594
      %v4603 = vmul.f32 %v4539, %v4595
      %v4604 = vmul.f32 %v4540, %v4596
      %v4605 = vmul.f32 %v4541, %v4597
      %v4606 = vmul.f32 %v4542, %v4598
      %v4607 = vmul.f32 %v4543, %v4599
      %v4608 = vlaneseq
      %v4609 = vshrl.u32 %v4608, 7
      %v4610 = vsub.s32 7, %v4609
      %v4611 = vrot.slane %v721, %v4610
      %v4612 = vmul.f32 %v4600, %v4611
      %v4613 = vmul.f32 %v4601, %v4611
      %v4614 = vmul.f32 %v4602, %v4611
      %v4615 = vmul.f32 %v4603, %v4611
      %v4616 = vmul.f32 %v4604, %v4611
      %v4617 = vmul.f32 %v4605, %v4611
      %v4618 = vmul.f32 %v4606, %v4611
      %v4619 = vmul.f32 %v4607, %v4611
      %v4620 = vlaneseq
      %v4621 = vshrl.u32 %v4620, 7
      %v4622 = vsub.s32 0, %v4621
      %v4623 = vrot.slane %v722, %v4622
      %v4624 = vadd.f32 %v4612, %v4623
      %v4625 = vadd.f32 %v4613, %v4623
      %v4626 = vadd.f32 %v4614, %v4623
      %v4627 = vadd.f32 %v4615, %v4623
      %v4628 = vadd.f32 %v4616, %v4623
      %v4629 = vadd.f32 %v4617, %v4623
      %v4630 = vadd.f32 %v4618, %v4623
      %v4631 = vadd.f32 %v4619, %v4623
      %s4632 = scalar_lea.vmem %s5, 16
      %v4633 = vld [vmem:[%s4632] sm:$0xff]
      %v4634 = vld [vmem:[%s4632 + $0x8] sm:$0x1]
      %v4635 = vpack.c.bf16 %v4625, %v4624
      %v4636 = vpack.c.bf16 %v4627, %v4626
      %v4637 = vpack.c.bf16 %v4629, %v4628
      %v4638 = vpack.c.bf16 %v4631, %v4630
      %s4639 = scalar_lea.vmem %s4, 128
      %v4640 = vld [vmem:[%s4639] sm:$0xf]
      %v4641 = vld [vmem:[%s4639 + $0x4] sm:$0xf]
      %v4642 = vld [vmem:[%s4639 + $0x8] sm:$0xf]
      %v4643 = vld [vmem:[%s4639 + $0xc] sm:$0xf]
      %v4644 = vld [vmem:[%s4639 + $0x10] sm:$0xf]
      %v4645 = vld [vmem:[%s4639 + $0x14] sm:$0xf]
      %v4646 = vld [vmem:[%s4639 + $0x18] sm:$0xf]
      %v4647 = vld [vmem:[%s4639 + $0x1c] sm:$0xf]
      %v4648 = vlaneseq
      %v4649 = vshrl.u32 %v4648, 7
      %v4650 = vsub.s32 0, %v4649
      %v4651 = vrot.slane %v4633, %v4650
      %v4660 = vunpack.c.l.b16 %v4640
      %v4661 = vunpack.c.l.b16 %v4641
      %v4662 = vunpack.c.l.b16 %v4642
      %v4663 = vunpack.c.l.b16 %v4643
      %v4664 = vunpack.c.l.b16 %v4644
      %v4665 = vunpack.c.l.b16 %v4645
      %v4666 = vunpack.c.l.b16 %v4646
      %v4667 = vunpack.c.l.b16 %v4647
      %v4668 = vpack.c.b16 %v4661, %v4660
      %v4669 = vpack.c.b16 %v4663, %v4662
      %v4670 = vpack.c.b16 %v4665, %v4664
      %v4671 = vpack.c.b16 %v4667, %v4666
      %v4677 = vsel %vm763, %v4635, 0
      %v4680 = vsel %vm763, %v4636, 0
      %v4683 = vsel %vm763, %v4637, 0
      %v4686 = vsel %vm763, %v4638, 0
      %4688 = vmatprep.subr.bf16.mxu0 0
      %4689 = vmatpush1.bf16.msra.mxu0 0
      %4690 = vmatprep.subr.bf16.mxu0 0
      %4691 = vmatpush1.bf16.msra.mxu0 0
      %4692 = vmatprep.subr.bf16.mxu0 0
      %4693 = vmatpush1.bf16.msra.mxu0 0
      %4694 = vmatprep.subr.bf16.mxu0 0
      %4695 = vmatpush1.bf16.msra.mxu0 0
      %4696 = vmatprep.subr.bf16.mxu0 0
      %4697 = vmatpush1.bf16.msra.mxu0 %v4671
      %4698 = vmatprep.subr.bf16.mxu0 0
      %4699 = vmatpush1.bf16.msra.mxu0 %v4670
      %4700 = vmatprep.subr.bf16.mxu0 0
      %4701 = vmatpush1.bf16.msra.mxu0 %v4669
      %4702 = vmatprep.subr.bf16.mxu0 0
      %4703 = vmatpush1.bf16.msra.mxu0 %v4668
      %4704 = vmatprep.subr.bf16.mxu0 0
      %4705 = vmatpush2.bf16.msra.mxu0 0
      %4706 = vmatprep.subr.bf16.mxu0 0
      %4707 = vmatpush2.bf16.msra.mxu0 0
      %4708 = vmatprep.subr.bf16.mxu0 0
      %4709 = vmatpush2.bf16.msra.mxu0 0
      %4710 = vmatprep.subr.bf16.mxu0 0
      %4711 = vmatpush2.bf16.msra.mxu0 0
      %4712 = vmatprep.subr.bf16.mxu0 0
      %4713 = vmatpush2.bf16.msra.mxu0 0
      %4714 = vmatprep.subr.bf16.mxu0 0
      %4715 = vmatpush2.bf16.msra.mxu0 0
      %4716 = vmatprep.subr.bf16.mxu0 0
      %4717 = vmatpush2.bf16.msra.mxu0 0
      %4718 = vmatprep.subr.bf16.mxu0 0
      %4719 = vmatpush2.bf16.msra.mxu0 0
      %4720 = vmatprep.mubr.bf16.mxu0 0
      %4721 = vmatmul.mubr.bf16.gmra.mxu0 %v4677
      %v4722 = vpop.f32.mrf.mxu0
      %v4723 = vadd.f32 %v4651, %v4722
      %v4724 = vpop.f32.mrf.mxu0
      %v4725 = vpop.f32.mrf.mxu0
      %v4726 = vadd.f32 %v4651, %v4725
      %v4727 = vpop.f32.mrf.mxu0
      %4728 = vmatprep.mubr.bf16.mxu0 0
      %4729 = vmatmul.mubr.bf16.gmra.mxu0 %v4680
      %v4730 = vpop.f32.mrf.mxu0
      %v4731 = vadd.f32 %v4651, %v4730
      %v4732 = vpop.f32.mrf.mxu0
      %v4733 = vpop.f32.mrf.mxu0
      %v4734 = vadd.f32 %v4651, %v4733
      %v4735 = vpop.f32.mrf.mxu0
      %4736 = vmatprep.mubr.bf16.mxu0 0
      %4737 = vmatmul.mubr.bf16.gmra.mxu0 %v4683
      %v4738 = vpop.f32.mrf.mxu0
      %v4739 = vadd.f32 %v4651, %v4738
      %v4740 = vpop.f32.mrf.mxu0
      %v4741 = vpop.f32.mrf.mxu0
      %v4742 = vadd.f32 %v4651, %v4741
      %v4743 = vpop.f32.mrf.mxu0
      %4744 = vmatprep.mubr.bf16.mxu0 0
      %4745 = vmatmul.mubr.bf16.gmra.mxu0 %v4686
      %v4746 = vpop.f32.mrf.mxu0
      %v4747 = vadd.f32 %v4651, %v4746
      %v4748 = vpop.f32.mrf.mxu0
      %v4749 = vpop.f32.mrf.mxu0
      %v4750 = vadd.f32 %v4651, %v4749
      %v4751 = vpop.f32.mrf.mxu0
      %4752 = vdwg.mxu0
      %s4753 = scalar_lea.vmem %s4, 160
      %v4754 = vld [vmem:[%s4753] sm:$0xf]
      %v4755 = vld [vmem:[%s4753 + $0x4] sm:$0xf]
      %v4756 = vld [vmem:[%s4753 + $0x8] sm:$0xf]
      %v4757 = vld [vmem:[%s4753 + $0xc] sm:$0xf]
      %v4758 = vld [vmem:[%s4753 + $0x10] sm:$0xf]
      %v4759 = vld [vmem:[%s4753 + $0x14] sm:$0xf]
      %v4760 = vld [vmem:[%s4753 + $0x18] sm:$0xf]
      %v4761 = vld [vmem:[%s4753 + $0x1c] sm:$0xf]
      %v4762 = vlaneseq
      %v4763 = vshrl.u32 %v4762, 7
      %v4764 = vsub.s32 1, %v4763
      %v4765 = vrot.slane %v4633, %v4764
      %v4774 = vunpack.c.l.b16 %v4754
      %v4775 = vunpack.c.l.b16 %v4755
      %v4776 = vunpack.c.l.b16 %v4756
      %v4777 = vunpack.c.l.b16 %v4757
      %v4778 = vunpack.c.l.b16 %v4758
      %v4779 = vunpack.c.l.b16 %v4759
      %v4780 = vunpack.c.l.b16 %v4760
      %v4781 = vunpack.c.l.b16 %v4761
      %v4782 = vpack.c.b16 %v4775, %v4774
      %v4783 = vpack.c.b16 %v4777, %v4776
      %v4784 = vpack.c.b16 %v4779, %v4778
      %v4785 = vpack.c.b16 %v4781, %v4780
      %4790 = vmatprep.subr.bf16.mxu0 0
      %4791 = vmatpush1.bf16.msra.mxu0 0
      %4792 = vmatprep.subr.bf16.mxu0 0
      %4793 = vmatpush1.bf16.msra.mxu0 0
      %4794 = vmatprep.subr.bf16.mxu0 0
      %4795 = vmatpush1.bf16.msra.mxu0 0
      %4796 = vmatprep.subr.bf16.mxu0 0
      %4797 = vmatpush1.bf16.msra.mxu0 0
      %4798 = vmatprep.subr.bf16.mxu0 0
      %4799 = vmatpush1.bf16.msra.mxu0 %v4785
      %4800 = vmatprep.subr.bf16.mxu0 0
      %4801 = vmatpush1.bf16.msra.mxu0 %v4784
      %4802 = vmatprep.subr.bf16.mxu0 0
      %4803 = vmatpush1.bf16.msra.mxu0 %v4783
      %4804 = vmatprep.subr.bf16.mxu0 0
      %4805 = vmatpush1.bf16.msra.mxu0 %v4782
      %4806 = vmatprep.subr.bf16.mxu0 0
      %4807 = vmatpush2.bf16.msra.mxu0 0
      %4808 = vmatprep.subr.bf16.mxu0 0
      %4809 = vmatpush2.bf16.msra.mxu0 0
      %4810 = vmatprep.subr.bf16.mxu0 0
      %4811 = vmatpush2.bf16.msra.mxu0 0
      %4812 = vmatprep.subr.bf16.mxu0 0
      %4813 = vmatpush2.bf16.msra.mxu0 0
      %4814 = vmatprep.subr.bf16.mxu0 0
      %4815 = vmatpush2.bf16.msra.mxu0 0
      %4816 = vmatprep.subr.bf16.mxu0 0
      %4817 = vmatpush2.bf16.msra.mxu0 0
      %4818 = vmatprep.subr.bf16.mxu0 0
      %4819 = vmatpush2.bf16.msra.mxu0 0
      %4820 = vmatprep.subr.bf16.mxu0 0
      %4821 = vmatpush2.bf16.msra.mxu0 0
      %4822 = vmatprep.mubr.bf16.mxu0 0
      %4823 = vmatmul.mubr.bf16.gmra.mxu0 %v4677
      %v4824 = vpop.f32.mrf.mxu0
      %v4825 = vadd.f32 %v4765, %v4824
      %v4826 = vpop.f32.mrf.mxu0
      %v4827 = vpop.f32.mrf.mxu0
      %v4828 = vadd.f32 %v4765, %v4827
      %v4829 = vpop.f32.mrf.mxu0
      %4830 = vmatprep.mubr.bf16.mxu0 0
      %4831 = vmatmul.mubr.bf16.gmra.mxu0 %v4680
      %v4832 = vpop.f32.mrf.mxu0
      %v4833 = vadd.f32 %v4765, %v4832
      %v4834 = vpop.f32.mrf.mxu0
      %v4835 = vpop.f32.mrf.mxu0
      %v4836 = vadd.f32 %v4765, %v4835
      %v4837 = vpop.f32.mrf.mxu0
      %4838 = vmatprep.mubr.bf16.mxu0 0
      %4839 = vmatmul.mubr.bf16.gmra.mxu0 %v4683
      %v4840 = vpop.f32.mrf.mxu0
      %v4841 = vadd.f32 %v4765, %v4840
      %v4842 = vpop.f32.mrf.mxu0
      %v4843 = vpop.f32.mrf.mxu0
      %v4844 = vadd.f32 %v4765, %v4843
      %v4845 = vpop.f32.mrf.mxu0
      %4846 = vmatprep.mubr.bf16.mxu0 0
      %4847 = vmatmul.mubr.bf16.gmra.mxu0 %v4686
      %v4848 = vpop.f32.mrf.mxu0
      %v4849 = vadd.f32 %v4765, %v4848
      %v4850 = vpop.f32.mrf.mxu0
      %v4851 = vpop.f32.mrf.mxu0
      %v4852 = vadd.f32 %v4765, %v4851
      %v4853 = vpop.f32.mrf.mxu0
      %4854 = vdwg.mxu0
      %s4855 = scalar_lea.vmem %s4, 192
      %v4856 = vld [vmem:[%s4855] sm:$0xf]
      %v4857 = vld [vmem:[%s4855 + $0x4] sm:$0xf]
      %v4858 = vld [vmem:[%s4855 + $0x8] sm:$0xf]
      %v4859 = vld [vmem:[%s4855 + $0xc] sm:$0xf]
      %v4860 = vld [vmem:[%s4855 + $0x10] sm:$0xf]
      %v4861 = vld [vmem:[%s4855 + $0x14] sm:$0xf]
      %v4862 = vld [vmem:[%s4855 + $0x18] sm:$0xf]
      %v4863 = vld [vmem:[%s4855 + $0x1c] sm:$0xf]
      %v4864 = vlaneseq
      %v4865 = vshrl.u32 %v4864, 7
      %v4866 = vsub.s32 2, %v4865
      %v4867 = vrot.slane %v4633, %v4866
      %v4876 = vunpack.c.l.b16 %v4856
      %v4877 = vunpack.c.l.b16 %v4857
      %v4878 = vunpack.c.l.b16 %v4858
      %v4879 = vunpack.c.l.b16 %v4859
      %v4880 = vunpack.c.l.b16 %v4860
      %v4881 = vunpack.c.l.b16 %v4861
      %v4882 = vunpack.c.l.b16 %v4862
      %v4883 = vunpack.c.l.b16 %v4863
      %v4884 = vpack.c.b16 %v4877, %v4876
      %v4885 = vpack.c.b16 %v4879, %v4878
      %v4886 = vpack.c.b16 %v4881, %v4880
      %v4887 = vpack.c.b16 %v4883, %v4882
      %4892 = vmatprep.subr.bf16.mxu0 0
      %4893 = vmatpush1.bf16.msra.mxu0 0
      %4894 = vmatprep.subr.bf16.mxu0 0
      %4895 = vmatpush1.bf16.msra.mxu0 0
      %4896 = vmatprep.subr.bf16.mxu0 0
      %4897 = vmatpush1.bf16.msra.mxu0 0
      %4898 = vmatprep.subr.bf16.mxu0 0
      %4899 = vmatpush1.bf16.msra.mxu0 0
      %4900 = vmatprep.subr.bf16.mxu0 0
      %4901 = vmatpush1.bf16.msra.mxu0 %v4887
      %4902 = vmatprep.subr.bf16.mxu0 0
      %4903 = vmatpush1.bf16.msra.mxu0 %v4886
      %4904 = vmatprep.subr.bf16.mxu0 0
      %4905 = vmatpush1.bf16.msra.mxu0 %v4885
      %4906 = vmatprep.subr.bf16.mxu0 0
      %4907 = vmatpush1.bf16.msra.mxu0 %v4884
      %4908 = vmatprep.subr.bf16.mxu0 0
      %4909 = vmatpush2.bf16.msra.mxu0 0
      %4910 = vmatprep.subr.bf16.mxu0 0
      %4911 = vmatpush2.bf16.msra.mxu0 0
      %4912 = vmatprep.subr.bf16.mxu0 0
      %4913 = vmatpush2.bf16.msra.mxu0 0
      %4914 = vmatprep.subr.bf16.mxu0 0
      %4915 = vmatpush2.bf16.msra.mxu0 0
      %4916 = vmatprep.subr.bf16.mxu0 0
      %4917 = vmatpush2.bf16.msra.mxu0 0
      %4918 = vmatprep.subr.bf16.mxu0 0
      %4919 = vmatpush2.bf16.msra.mxu0 0
      %4920 = vmatprep.subr.bf16.mxu0 0
      %4921 = vmatpush2.bf16.msra.mxu0 0
      %4922 = vmatprep.subr.bf16.mxu0 0
      %4923 = vmatpush2.bf16.msra.mxu0 0
      %4924 = vmatprep.mubr.bf16.mxu0 0
      %4925 = vmatmul.mubr.bf16.gmra.mxu0 %v4677
      %v4926 = vpop.f32.mrf.mxu0
      %v4927 = vadd.f32 %v4867, %v4926
      %v4928 = vpop.f32.mrf.mxu0
      %v4929 = vpop.f32.mrf.mxu0
      %v4930 = vadd.f32 %v4867, %v4929
      %v4931 = vpop.f32.mrf.mxu0
      %4932 = vmatprep.mubr.bf16.mxu0 0
      %4933 = vmatmul.mubr.bf16.gmra.mxu0 %v4680
      %v4934 = vpop.f32.mrf.mxu0
      %v4935 = vadd.f32 %v4867, %v4934
      %v4936 = vpop.f32.mrf.mxu0
      %v4937 = vpop.f32.mrf.mxu0
      %v4938 = vadd.f32 %v4867, %v4937
      %v4939 = vpop.f32.mrf.mxu0
      %4940 = vmatprep.mubr.bf16.mxu0 0
      %4941 = vmatmul.mubr.bf16.gmra.mxu0 %v4683
      %v4942 = vpop.f32.mrf.mxu0
      %v4943 = vadd.f32 %v4867, %v4942
      %v4944 = vpop.f32.mrf.mxu0
      %v4945 = vpop.f32.mrf.mxu0
      %v4946 = vadd.f32 %v4867, %v4945
      %v4947 = vpop.f32.mrf.mxu0
      %4948 = vmatprep.mubr.bf16.mxu0 0
      %4949 = vmatmul.mubr.bf16.gmra.mxu0 %v4686
      %v4950 = vpop.f32.mrf.mxu0
      %v4951 = vadd.f32 %v4867, %v4950
      %v4952 = vpop.f32.mrf.mxu0
      %v4953 = vpop.f32.mrf.mxu0
      %v4954 = vadd.f32 %v4867, %v4953
      %v4955 = vpop.f32.mrf.mxu0
      %4956 = vdwg.mxu0
      %v4957 = vmul.f32 %v4723, %v4825
      %v4958 = vmul.f32 %v4726, %v4828
      %v4959 = vmul.f32 %v4731, %v4833
      %v4960 = vmul.f32 %v4734, %v4836
      %v4961 = vpack.c.bf16 %v4958, %v4957
      %v4962 = vpack.c.bf16 %v4960, %v4959
      %v4964 = vsel %vm763, %v4961, 0
      %v4967 = vsel %vm763, %v4962, 0
      %4969 = vmatprep.subr.bf16.mxu0 0
      %4970 = vmatpush1.bf16.msra.mxu0 0
      %4971 = vmatprep.subr.bf16.mxu0 0
      %4972 = vmatpush1.bf16.msra.mxu0 0
      %4973 = vmatprep.subr.bf16.mxu0 0
      %4974 = vmatpush1.bf16.msra.mxu0 0
      %4975 = vmatprep.subr.bf16.mxu0 0
      %4976 = vmatpush1.bf16.msra.mxu0 0
      %4977 = vmatprep.subr.bf16.mxu0 0
      %4978 = vmatpush1.bf16.msra.mxu0 %v1070
      %4979 = vmatprep.subr.bf16.mxu0 0
      %4980 = vmatpush1.bf16.msra.mxu0 %v1069
      %4981 = vmatprep.subr.bf16.mxu0 0
      %4982 = vmatpush1.bf16.msra.mxu0 %v1068
      %4983 = vmatprep.subr.bf16.mxu0 0
      %4984 = vmatpush1.bf16.msra.mxu0 %v1067
      %4985 = vmatprep.subr.bf16.mxu0 0
      %4986 = vmatpush2.bf16.msra.mxu0 0
      %4987 = vmatprep.subr.bf16.mxu0 0
      %4988 = vmatpush2.bf16.msra.mxu0 0
      %4989 = vmatprep.subr.bf16.mxu0 0
      %4990 = vmatpush2.bf16.msra.mxu0 0
      %4991 = vmatprep.subr.bf16.mxu0 0
      %4992 = vmatpush2.bf16.msra.mxu0 0
      %4993 = vmatprep.subr.bf16.mxu0 0
      %4994 = vmatpush2.bf16.msra.mxu0 0
      %4995 = vmatprep.subr.bf16.mxu0 0
      %4996 = vmatpush2.bf16.msra.mxu0 0
      %4997 = vmatprep.subr.bf16.mxu0 0
      %4998 = vmatpush2.bf16.msra.mxu0 0
      %4999 = vmatprep.subr.bf16.mxu0 0
      %5000 = vmatpush2.bf16.msra.mxu0 0
      %5001 = vmatprep.mubr.bf16.mxu0 0
      %5002 = vmatmul.mubr.bf16.gmra.mxu0 %v4964
      %v5003 = vpop.f32.mrf.mxu0
      %v5004 = vadd.f32 0.0, %v5003
      %v5005 = vpop.f32.mrf.mxu0
      %v5006 = vpop.f32.mrf.mxu0
      %v5007 = vadd.f32 0.0, %v5006
      %v5008 = vpop.f32.mrf.mxu0
      %5009 = vmatprep.mubr.bf16.mxu0 0
      %5010 = vmatmul.mubr.bf16.gmra.mxu0 %v4967
      %v5011 = vpop.f32.mrf.mxu0
      %v5012 = vadd.f32 0.0, %v5011
      %v5013 = vpop.f32.mrf.mxu0
      %v5014 = vpop.f32.mrf.mxu0
      %v5015 = vadd.f32 0.0, %v5014
      %v5016 = vpop.f32.mrf.mxu0
      %5017 = vdwg.mxu0
      %v5018 = vmul.f32 %v4723, %v4841
      %v5019 = vmul.f32 %v4726, %v4844
      %v5020 = vmul.f32 %v4731, %v4849
      %v5021 = vmul.f32 %v4734, %v4852
      %v5022 = vpack.c.bf16 %v5019, %v5018
      %v5023 = vpack.c.bf16 %v5021, %v5020
      %v5025 = vsel %vm763, %v5022, 0
      %v5028 = vsel %vm763, %v5023, 0
      %5030 = vmatprep.subr.bf16.mxu0 0
      %5031 = vmatpush1.bf16.msra.mxu0 0
      %5032 = vmatprep.subr.bf16.mxu0 0
      %5033 = vmatpush1.bf16.msra.mxu0 0
      %5034 = vmatprep.subr.bf16.mxu0 0
      %5035 = vmatpush1.bf16.msra.mxu0 0
      %5036 = vmatprep.subr.bf16.mxu0 0
      %5037 = vmatpush1.bf16.msra.mxu0 0
      %5038 = vmatprep.subr.bf16.mxu0 0
      %5039 = vmatpush1.bf16.msra.mxu0 %v1070
      %5040 = vmatprep.subr.bf16.mxu0 0
      %5041 = vmatpush1.bf16.msra.mxu0 %v1069
      %5042 = vmatprep.subr.bf16.mxu0 0
      %5043 = vmatpush1.bf16.msra.mxu0 %v1068
      %5044 = vmatprep.subr.bf16.mxu0 0
      %5045 = vmatpush1.bf16.msra.mxu0 %v1067
      %5046 = vmatprep.subr.bf16.mxu0 0
      %5047 = vmatpush2.bf16.msra.mxu0 0
      %5048 = vmatprep.subr.bf16.mxu0 0
      %5049 = vmatpush2.bf16.msra.mxu0 0
      %5050 = vmatprep.subr.bf16.mxu0 0
      %5051 = vmatpush2.bf16.msra.mxu0 0
      %5052 = vmatprep.subr.bf16.mxu0 0
      %5053 = vmatpush2.bf16.msra.mxu0 0
      %5054 = vmatprep.subr.bf16.mxu0 0
      %5055 = vmatpush2.bf16.msra.mxu0 0
      %5056 = vmatprep.subr.bf16.mxu0 0
      %5057 = vmatpush2.bf16.msra.mxu0 0
      %5058 = vmatprep.subr.bf16.mxu0 0
      %5059 = vmatpush2.bf16.msra.mxu0 0
      %5060 = vmatprep.subr.bf16.mxu0 0
      %5061 = vmatpush2.bf16.msra.mxu0 0
      %5062 = vmatprep.mubr.bf16.mxu0 0
      %5063 = vmatmul.mubr.bf16.gmra.mxu0 %v5025
      %v5064 = vpop.f32.mrf.mxu0
      %v5065 = vadd.f32 0.0, %v5064
      %v5066 = vpop.f32.mrf.mxu0
      %v5067 = vpop.f32.mrf.mxu0
      %v5068 = vadd.f32 0.0, %v5067
      %v5069 = vpop.f32.mrf.mxu0
      %5070 = vmatprep.mubr.bf16.mxu0 0
      %5071 = vmatmul.mubr.bf16.gmra.mxu0 %v5028
      %v5072 = vpop.f32.mrf.mxu0
      %v5073 = vadd.f32 0.0, %v5072
      %v5074 = vpop.f32.mrf.mxu0
      %v5075 = vpop.f32.mrf.mxu0
      %v5076 = vadd.f32 0.0, %v5075
      %v5077 = vpop.f32.mrf.mxu0
      %5078 = vdwg.mxu0
      %v5079 = vmax.f32 %v5004, %v5065
      %v5080 = vmax.f32 %v5007, %v5068
      %v5081 = vmax.f32 %v5012, %v5073
      %v5082 = vmax.f32 %v5015, %v5076
      %v5083 = vsub.f32 %v5004, %v5079
      %v5084 = vsub.f32 %v5007, %v5080
      %v5085 = vsub.f32 %v5012, %v5081
      %v5086 = vsub.f32 %v5015, %v5082
      %v5087 = vmul.f32 %v5083, 1.442695
      %v5088 = vpow.pop %v5087
      %v5089 = vmul.f32 %v5084, 1.442695
      %v5090 = vpow.pop %v5089
      %v5091 = vmul.f32 %v5085, 1.442695
      %v5092 = vpow.pop %v5091
      %v5093 = vmul.f32 %v5086, 1.442695
      %v5094 = vpow.pop %v5093
      %v5095 = vsub.f32 %v5065, %v5079
      %v5096 = vsub.f32 %v5068, %v5080
      %v5097 = vsub.f32 %v5073, %v5081
      %v5098 = vsub.f32 %v5076, %v5082
      %v5099 = vmul.f32 %v5095, 1.442695
      %v5100 = vpow.pop %v5099
      %v5101 = vmul.f32 %v5096, 1.442695
      %v5102 = vpow.pop %v5101
      %v5103 = vmul.f32 %v5097, 1.442695
      %v5104 = vpow.pop %v5103
      %v5105 = vmul.f32 %v5098, 1.442695
      %v5106 = vpow.pop %v5105
      %v5107 = vadd.f32 %v5088, %v5100
      %v5108 = vadd.f32 %v5090, %v5102
      %v5109 = vadd.f32 %v5092, %v5104
      %v5110 = vadd.f32 %v5094, %v5106
      %v5111 = vrcp.pop %v5107
      %v5112 = vrcp.pop %v5108
      %v5113 = vrcp.pop %v5109
      %v5114 = vrcp.pop %v5110
      %v5115 = vmul.f32 %v5088, %v5111
      %v5116 = vmul.f32 %v5090, %v5112
      %v5117 = vmul.f32 %v5092, %v5113
      %v5118 = vmul.f32 %v5094, %v5114
      %v5119 = vmul.f32 %v5115, %v4927
      %v5120 = vmul.f32 %v5116, %v4930
      %v5121 = vmul.f32 %v5117, %v4935
      %v5122 = vmul.f32 %v5118, %v4938
      %v5123 = vadd.f32 %v5119, 0.0
      %v5124 = vadd.f32 %v5120, 0.0
      %v5125 = vadd.f32 %v5121, 0.0
      %v5126 = vadd.f32 %v5122, 0.0
      %v5127 = vmul.f32 %v5100, %v5111
      %v5128 = vmul.f32 %v5102, %v5112
      %v5129 = vmul.f32 %v5104, %v5113
      %v5130 = vmul.f32 %v5106, %v5114
      %v5131 = vmul.f32 %v5127, %v4943
      %v5132 = vmul.f32 %v5128, %v4946
      %v5133 = vmul.f32 %v5129, %v4951
      %v5134 = vmul.f32 %v5130, %v4954
      %v5135 = vadd.f32 %v5123, %v5131
      %v5136 = vadd.f32 %v5124, %v5132
      %v5137 = vadd.f32 %v5125, %v5133
      %v5138 = vadd.f32 %v5126, %v5134
      %v5139 = vmul.f32 %v4739, %v4825
      %v5140 = vmul.f32 %v4742, %v4828
      %v5141 = vmul.f32 %v4747, %v4833
      %v5142 = vmul.f32 %v4750, %v4836
      %v5143 = vpack.c.bf16 %v5140, %v5139
      %v5144 = vpack.c.bf16 %v5142, %v5141
      %v5146 = vsel %vm763, %v5143, 0
      %v5149 = vsel %vm763, %v5144, 0
      %5151 = vmatprep.subr.bf16.mxu0 0
      %5152 = vmatpush1.bf16.msra.mxu0 0
      %5153 = vmatprep.subr.bf16.mxu0 0
      %5154 = vmatpush1.bf16.msra.mxu0 0
      %5155 = vmatprep.subr.bf16.mxu0 0
      %5156 = vmatpush1.bf16.msra.mxu0 0
      %5157 = vmatprep.subr.bf16.mxu0 0
      %5158 = vmatpush1.bf16.msra.mxu0 0
      %5159 = vmatprep.subr.bf16.mxu0 0
      %5160 = vmatpush1.bf16.msra.mxu0 %v1070
      %5161 = vmatprep.subr.bf16.mxu0 0
      %5162 = vmatpush1.bf16.msra.mxu0 %v1069
      %5163 = vmatprep.subr.bf16.mxu0 0
      %5164 = vmatpush1.bf16.msra.mxu0 %v1068
      %5165 = vmatprep.subr.bf16.mxu0 0
      %5166 = vmatpush1.bf16.msra.mxu0 %v1067
      %5167 = vmatprep.subr.bf16.mxu0 0
      %5168 = vmatpush2.bf16.msra.mxu0 0
      %5169 = vmatprep.subr.bf16.mxu0 0
      %5170 = vmatpush2.bf16.msra.mxu0 0
      %5171 = vmatprep.subr.bf16.mxu0 0
      %5172 = vmatpush2.bf16.msra.mxu0 0
      %5173 = vmatprep.subr.bf16.mxu0 0
      %5174 = vmatpush2.bf16.msra.mxu0 0
      %5175 = vmatprep.subr.bf16.mxu0 0
      %5176 = vmatpush2.bf16.msra.mxu0 0
      %5177 = vmatprep.subr.bf16.mxu0 0
      %5178 = vmatpush2.bf16.msra.mxu0 0
      %5179 = vmatprep.subr.bf16.mxu0 0
      %5180 = vmatpush2.bf16.msra.mxu0 0
      %5181 = vmatprep.subr.bf16.mxu0 0
      %5182 = vmatpush2.bf16.msra.mxu0 0
      %5183 = vmatprep.mubr.bf16.mxu0 0
      %5184 = vmatmul.mubr.bf16.gmra.mxu0 %v5146
      %v5185 = vpop.f32.mrf.mxu0
      %v5186 = vadd.f32 0.0, %v5185
      %v5187 = vpop.f32.mrf.mxu0
      %v5188 = vpop.f32.mrf.mxu0
      %v5189 = vadd.f32 0.0, %v5188
      %v5190 = vpop.f32.mrf.mxu0
      %5191 = vmatprep.mubr.bf16.mxu0 0
      %5192 = vmatmul.mubr.bf16.gmra.mxu0 %v5149
      %v5193 = vpop.f32.mrf.mxu0
      %v5194 = vadd.f32 0.0, %v5193
      %v5195 = vpop.f32.mrf.mxu0
      %v5196 = vpop.f32.mrf.mxu0
      %v5197 = vadd.f32 0.0, %v5196
      %v5198 = vpop.f32.mrf.mxu0
      %5199 = vdwg.mxu0
      %v5200 = vmul.f32 %v4739, %v4841
      %v5201 = vmul.f32 %v4742, %v4844
      %v5202 = vmul.f32 %v4747, %v4849
      %v5203 = vmul.f32 %v4750, %v4852
      %v5204 = vpack.c.bf16 %v5201, %v5200
      %v5205 = vpack.c.bf16 %v5203, %v5202
      %v5207 = vsel %vm763, %v5204, 0
      %v5210 = vsel %vm763, %v5205, 0
      %5212 = vmatprep.subr.bf16.mxu0 0
      %5213 = vmatpush1.bf16.msra.mxu0 0
      %5214 = vmatprep.subr.bf16.mxu0 0
      %5215 = vmatpush1.bf16.msra.mxu0 0
      %5216 = vmatprep.subr.bf16.mxu0 0
      %5217 = vmatpush1.bf16.msra.mxu0 0
      %5218 = vmatprep.subr.bf16.mxu0 0
      %5219 = vmatpush1.bf16.msra.mxu0 0
      %5220 = vmatprep.subr.bf16.mxu0 0
      %5221 = vmatpush1.bf16.msra.mxu0 %v1070
      %5222 = vmatprep.subr.bf16.mxu0 0
      %5223 = vmatpush1.bf16.msra.mxu0 %v1069
      %5224 = vmatprep.subr.bf16.mxu0 0
      %5225 = vmatpush1.bf16.msra.mxu0 %v1068
      %5226 = vmatprep.subr.bf16.mxu0 0
      %5227 = vmatpush1.bf16.msra.mxu0 %v1067
      %5228 = vmatprep.subr.bf16.mxu0 0
      %5229 = vmatpush2.bf16.msra.mxu0 0
      %5230 = vmatprep.subr.bf16.mxu0 0
      %5231 = vmatpush2.bf16.msra.mxu0 0
      %5232 = vmatprep.subr.bf16.mxu0 0
      %5233 = vmatpush2.bf16.msra.mxu0 0
      %5234 = vmatprep.subr.bf16.mxu0 0
      %5235 = vmatpush2.bf16.msra.mxu0 0
      %5236 = vmatprep.subr.bf16.mxu0 0
      %5237 = vmatpush2.bf16.msra.mxu0 0
      %5238 = vmatprep.subr.bf16.mxu0 0
      %5239 = vmatpush2.bf16.msra.mxu0 0
      %5240 = vmatprep.subr.bf16.mxu0 0
      %5241 = vmatpush2.bf16.msra.mxu0 0
      %5242 = vmatprep.subr.bf16.mxu0 0
      %5243 = vmatpush2.bf16.msra.mxu0 0
      %5244 = vmatprep.mubr.bf16.mxu0 0
      %5245 = vmatmul.mubr.bf16.gmra.mxu0 %v5207
      %v5246 = vpop.f32.mrf.mxu0
      %v5247 = vadd.f32 0.0, %v5246
      %v5248 = vpop.f32.mrf.mxu0
      %v5249 = vpop.f32.mrf.mxu0
      %v5250 = vadd.f32 0.0, %v5249
      %v5251 = vpop.f32.mrf.mxu0
      %5252 = vmatprep.mubr.bf16.mxu0 0
      %5253 = vmatmul.mubr.bf16.gmra.mxu0 %v5210
      %v5254 = vpop.f32.mrf.mxu0
      %v5255 = vadd.f32 0.0, %v5254
      %v5256 = vpop.f32.mrf.mxu0
      %v5257 = vpop.f32.mrf.mxu0
      %v5258 = vadd.f32 0.0, %v5257
      %v5259 = vpop.f32.mrf.mxu0
      %5260 = vdwg.mxu0
      %v5261 = vmax.f32 %v5186, %v5247
      %v5262 = vmax.f32 %v5189, %v5250
      %v5263 = vmax.f32 %v5194, %v5255
      %v5264 = vmax.f32 %v5197, %v5258
      %v5265 = vsub.f32 %v5186, %v5261
      %v5266 = vsub.f32 %v5189, %v5262
      %v5267 = vsub.f32 %v5194, %v5263
      %v5268 = vsub.f32 %v5197, %v5264
      %v5269 = vmul.f32 %v5265, 1.442695
      %v5270 = vpow.pop %v5269
      %v5271 = vmul.f32 %v5266, 1.442695
      %v5272 = vpow.pop %v5271
      %v5273 = vmul.f32 %v5267, 1.442695
      %v5274 = vpow.pop %v5273
      %v5275 = vmul.f32 %v5268, 1.442695
      %v5276 = vpow.pop %v5275
      %v5277 = vsub.f32 %v5247, %v5261
      %v5278 = vsub.f32 %v5250, %v5262
      %v5279 = vsub.f32 %v5255, %v5263
      %v5280 = vsub.f32 %v5258, %v5264
      %v5281 = vmul.f32 %v5277, 1.442695
      %v5282 = vpow.pop %v5281
      %v5283 = vmul.f32 %v5278, 1.442695
      %v5284 = vpow.pop %v5283
      %v5285 = vmul.f32 %v5279, 1.442695
      %v5286 = vpow.pop %v5285
      %v5287 = vmul.f32 %v5280, 1.442695
      %v5288 = vpow.pop %v5287
      %v5289 = vadd.f32 %v5270, %v5282
      %v5290 = vadd.f32 %v5272, %v5284
      %v5291 = vadd.f32 %v5274, %v5286
      %v5292 = vadd.f32 %v5276, %v5288
      %v5293 = vrcp.pop %v5289
      %v5294 = vrcp.pop %v5290
      %v5295 = vrcp.pop %v5291
      %v5296 = vrcp.pop %v5292
      %v5297 = vmul.f32 %v5270, %v5293
      %v5298 = vmul.f32 %v5272, %v5294
      %v5299 = vmul.f32 %v5274, %v5295
      %v5300 = vmul.f32 %v5276, %v5296
      %v5301 = vmul.f32 %v5297, %v4927
      %v5302 = vmul.f32 %v5298, %v4930
      %v5303 = vmul.f32 %v5299, %v4935
      %v5304 = vmul.f32 %v5300, %v4938
      %v5305 = vadd.f32 %v5301, 0.0
      %v5306 = vadd.f32 %v5302, 0.0
      %v5307 = vadd.f32 %v5303, 0.0
      %v5308 = vadd.f32 %v5304, 0.0
      %v5309 = vmul.f32 %v5282, %v5293
      %v5310 = vmul.f32 %v5284, %v5294
      %v5311 = vmul.f32 %v5286, %v5295
      %v5312 = vmul.f32 %v5288, %v5296
      %v5313 = vmul.f32 %v5309, %v4943
      %v5314 = vmul.f32 %v5310, %v4946
      %v5315 = vmul.f32 %v5311, %v4951
      %v5316 = vmul.f32 %v5312, %v4954
      %v5317 = vadd.f32 %v5305, %v5313
      %v5318 = vadd.f32 %v5306, %v5314
      %v5319 = vadd.f32 %v5307, %v5315
      %v5320 = vadd.f32 %v5308, %v5316
      %v5321 = vpack.c.bf16 %v5136, %v5135
      %v5322 = vpack.c.bf16 %v5138, %v5137
      %v5323 = vpack.c.bf16 %v5318, %v5317
      %v5324 = vpack.c.bf16 %v5320, %v5319
      %s5325 = scalar_lea.vmem %s4, 224
      %v5326 = vld [vmem:[%s5325] sm:$0xf]
      %v5327 = vld [vmem:[%s5325 + $0x4] sm:$0xf]
      %v5328 = vld [vmem:[%s5325 + $0x8] sm:$0xf]
      %v5329 = vld [vmem:[%s5325 + $0xc] sm:$0xf]
      %v5330 = vld [vmem:[%s5325 + $0x10] sm:$0xf]
      %v5331 = vld [vmem:[%s5325 + $0x14] sm:$0xf]
      %v5332 = vld [vmem:[%s5325 + $0x18] sm:$0xf]
      %v5333 = vld [vmem:[%s5325 + $0x1c] sm:$0xf]
      %v5334 = vlaneseq
      %v5335 = vshrl.u32 %v5334, 7
      %v5336 = vsub.s32 3, %v5335
      %v5337 = vrot.slane %v4633, %v5336
      %v5346 = vunpack.c.l.b16 %v5326
      %v5347 = vunpack.c.l.b16 %v5327
      %v5348 = vunpack.c.l.b16 %v5328
      %v5349 = vunpack.c.l.b16 %v5329
      %v5350 = vunpack.c.l.b16 %v5330
      %v5351 = vunpack.c.l.b16 %v5331
      %v5352 = vunpack.c.l.b16 %v5332
      %v5353 = vunpack.c.l.b16 %v5333
      %v5354 = vpack.c.b16 %v5347, %v5346
      %v5355 = vpack.c.b16 %v5349, %v5348
      %v5356 = vpack.c.b16 %v5351, %v5350
      %v5357 = vpack.c.b16 %v5353, %v5352
      %v5363 = vsel %vm763, %v5321, 0
      %v5366 = vsel %vm763, %v5322, 0
      %v5369 = vsel %vm763, %v5323, 0
      %v5372 = vsel %vm763, %v5324, 0
      %5374 = vmatprep.subr.bf16.mxu0 0
      %5375 = vmatpush1.bf16.msra.mxu0 0
      %5376 = vmatprep.subr.bf16.mxu0 0
      %5377 = vmatpush1.bf16.msra.mxu0 0
      %5378 = vmatprep.subr.bf16.mxu0 0
      %5379 = vmatpush1.bf16.msra.mxu0 0
      %5380 = vmatprep.subr.bf16.mxu0 0
      %5381 = vmatpush1.bf16.msra.mxu0 0
      %5382 = vmatprep.subr.bf16.mxu0 0
      %5383 = vmatpush1.bf16.msra.mxu0 %v5357
      %5384 = vmatprep.subr.bf16.mxu0 0
      %5385 = vmatpush1.bf16.msra.mxu0 %v5356
      %5386 = vmatprep.subr.bf16.mxu0 0
      %5387 = vmatpush1.bf16.msra.mxu0 %v5355
      %5388 = vmatprep.subr.bf16.mxu0 0
      %5389 = vmatpush1.bf16.msra.mxu0 %v5354
      %5390 = vmatprep.subr.bf16.mxu0 0
      %5391 = vmatpush2.bf16.msra.mxu0 0
      %5392 = vmatprep.subr.bf16.mxu0 0
      %5393 = vmatpush2.bf16.msra.mxu0 0
      %5394 = vmatprep.subr.bf16.mxu0 0
      %5395 = vmatpush2.bf16.msra.mxu0 0
      %5396 = vmatprep.subr.bf16.mxu0 0
      %5397 = vmatpush2.bf16.msra.mxu0 0
      %5398 = vmatprep.subr.bf16.mxu0 0
      %5399 = vmatpush2.bf16.msra.mxu0 0
      %5400 = vmatprep.subr.bf16.mxu0 0
      %5401 = vmatpush2.bf16.msra.mxu0 0
      %5402 = vmatprep.subr.bf16.mxu0 0
      %5403 = vmatpush2.bf16.msra.mxu0 0
      %5404 = vmatprep.subr.bf16.mxu0 0
      %5405 = vmatpush2.bf16.msra.mxu0 0
      %5406 = vmatprep.mubr.bf16.mxu0 0
      %5407 = vmatmul.mubr.bf16.gmra.mxu0 %v5363
      %v5408 = vpop.f32.mrf.mxu0
      %v5409 = vadd.f32 %v5337, %v5408
      %v5410 = vpop.f32.mrf.mxu0
      %v5411 = vpop.f32.mrf.mxu0
      %v5412 = vadd.f32 %v5337, %v5411
      %v5413 = vpop.f32.mrf.mxu0
      %5414 = vmatprep.mubr.bf16.mxu0 0
      %5415 = vmatmul.mubr.bf16.gmra.mxu0 %v5366
      %v5416 = vpop.f32.mrf.mxu0
      %v5417 = vadd.f32 %v5337, %v5416
      %v5418 = vpop.f32.mrf.mxu0
      %v5419 = vpop.f32.mrf.mxu0
      %v5420 = vadd.f32 %v5337, %v5419
      %v5421 = vpop.f32.mrf.mxu0
      %5422 = vmatprep.mubr.bf16.mxu0 0
      %5423 = vmatmul.mubr.bf16.gmra.mxu0 %v5369
      %v5424 = vpop.f32.mrf.mxu0
      %v5425 = vadd.f32 %v5337, %v5424
      %v5426 = vpop.f32.mrf.mxu0
      %v5427 = vpop.f32.mrf.mxu0
      %v5428 = vadd.f32 %v5337, %v5427
      %v5429 = vpop.f32.mrf.mxu0
      %5430 = vmatprep.mubr.bf16.mxu0 0
      %5431 = vmatmul.mubr.bf16.gmra.mxu0 %v5372
      %v5432 = vpop.f32.mrf.mxu0
      %v5433 = vadd.f32 %v5337, %v5432
      %v5434 = vpop.f32.mrf.mxu0
      %v5435 = vpop.f32.mrf.mxu0
      %v5436 = vadd.f32 %v5337, %v5435
      %v5437 = vpop.f32.mrf.mxu0
      %5438 = vdwg.mxu0
      %v5439 = vadd.f32 %v4624, %v5409
      %v5440 = vadd.f32 %v4625, %v5412
      %v5441 = vadd.f32 %v4626, %v5417
      %v5442 = vadd.f32 %v4627, %v5420
      %v5443 = vadd.f32 %v4628, %v5425
      %v5444 = vadd.f32 %v4629, %v5428
      %v5445 = vadd.f32 %v4630, %v5433
      %v5446 = vadd.f32 %v4631, %v5436
      %v5447 = vsel %vm763, %v5439, 0.0
      %5448 = vadd.xlane.f32.xlu0 %v5447
      %v5449 = vpop.xlane.xlu0 %5448
      %v5450 = vsel %vm763, %v5440, 0.0
      %5451 = vadd.xlane.f32.xlu0 %v5450
      %v5452 = vpop.xlane.xlu0 %5451
      %v5453 = vsel %vm763, %v5441, 0.0
      %5454 = vadd.xlane.f32.xlu0 %v5453
      %v5455 = vpop.xlane.xlu0 %5454
      %v5456 = vsel %vm763, %v5442, 0.0
      %5457 = vadd.xlane.f32.xlu0 %v5456
      %v5458 = vpop.xlane.xlu0 %5457
      %v5459 = vsel %vm763, %v5443, 0.0
      %5460 = vadd.xlane.f32.xlu0 %v5459
      %v5461 = vpop.xlane.xlu0 %5460
      %v5462 = vsel %vm763, %v5444, 0.0
      %5463 = vadd.xlane.f32.xlu0 %v5462
      %v5464 = vpop.xlane.xlu0 %5463
      %v5465 = vsel %vm763, %v5445, 0.0
      %5466 = vadd.xlane.f32.xlu0 %v5465
      %v5467 = vpop.xlane.xlu0 %5466
      %v5468 = vsel %vm763, %v5446, 0.0
      %5469 = vadd.xlane.f32.xlu0 %v5468
      %v5470 = vpop.xlane.xlu0 %5469
      %v5471 = vmul.f32 %v5449, %v1583
      %v5472 = vmul.f32 %v5452, %v1583
      %v5473 = vmul.f32 %v5455, %v1583
      %v5474 = vmul.f32 %v5458, %v1583
      %v5475 = vmul.f32 %v5461, %v1583
      %v5476 = vmul.f32 %v5464, %v1583
      %v5477 = vmul.f32 %v5467, %v1583
      %v5478 = vmul.f32 %v5470, %v1583
      %v5479 = vsub.f32 %v5439, %v5471
      %v5480 = vsub.f32 %v5440, %v5472
      %v5481 = vsub.f32 %v5441, %v5473
      %v5482 = vsub.f32 %v5442, %v5474
      %v5483 = vsub.f32 %v5443, %v5475
      %v5484 = vsub.f32 %v5444, %v5476
      %v5485 = vsub.f32 %v5445, %v5477
      %v5486 = vsub.f32 %v5446, %v5478
      %v5487 = vmul.f32 %v5479, %v5479
      %v5488 = vmul.f32 %v5480, %v5480
      %v5489 = vmul.f32 %v5481, %v5481
      %v5490 = vmul.f32 %v5482, %v5482
      %v5491 = vmul.f32 %v5483, %v5483
      %v5492 = vmul.f32 %v5484, %v5484
      %v5493 = vmul.f32 %v5485, %v5485
      %v5494 = vmul.f32 %v5486, %v5486
      %v5495 = vsel %vm763, %v5487, 0.0
      %5496 = vadd.xlane.f32.xlu0 %v5495
      %v5497 = vpop.xlane.xlu0 %5496
      %v5498 = vsel %vm763, %v5488, 0.0
      %5499 = vadd.xlane.f32.xlu0 %v5498
      %v5500 = vpop.xlane.xlu0 %5499
      %v5501 = vsel %vm763, %v5489, 0.0
      %5502 = vadd.xlane.f32.xlu0 %v5501
      %v5503 = vpop.xlane.xlu0 %5502
      %v5504 = vsel %vm763, %v5490, 0.0
      %5505 = vadd.xlane.f32.xlu0 %v5504
      %v5506 = vpop.xlane.xlu0 %5505
      %v5507 = vsel %vm763, %v5491, 0.0
      %5508 = vadd.xlane.f32.xlu0 %v5507
      %v5509 = vpop.xlane.xlu0 %5508
      %v5510 = vsel %vm763, %v5492, 0.0
      %5511 = vadd.xlane.f32.xlu0 %v5510
      %v5512 = vpop.xlane.xlu0 %5511
      %v5513 = vsel %vm763, %v5493, 0.0
      %5514 = vadd.xlane.f32.xlu0 %v5513
      %v5515 = vpop.xlane.xlu0 %5514
      %v5516 = vsel %vm763, %v5494, 0.0
      %5517 = vadd.xlane.f32.xlu0 %v5516
      %v5518 = vpop.xlane.xlu0 %5517
      %v5519 = vmul.f32 %v5497, %v1583
      %v5520 = vmul.f32 %v5500, %v1583
      %v5521 = vmul.f32 %v5503, %v1583
      %v5522 = vmul.f32 %v5506, %v1583
      %v5523 = vmul.f32 %v5509, %v1583
      %v5524 = vmul.f32 %v5512, %v1583
      %v5525 = vmul.f32 %v5515, %v1583
      %v5526 = vmul.f32 %v5518, %v1583
      %v5527 = vadd.f32 %v5519, 1e-05
      %v5528 = vadd.f32 %v5520, 1e-05
      %v5529 = vadd.f32 %v5521, 1e-05
      %v5530 = vadd.f32 %v5522, 1e-05
      %v5531 = vadd.f32 %v5523, 1e-05
      %v5532 = vadd.f32 %v5524, 1e-05
      %v5533 = vadd.f32 %v5525, 1e-05
      %v5534 = vadd.f32 %v5526, 1e-05
      %v5535 = vrsqrt.pop %v5527
      %v5536 = vrsqrt.pop %v5528
      %v5537 = vrsqrt.pop %v5529
      %v5538 = vrsqrt.pop %v5530
      %v5539 = vrsqrt.pop %v5531
      %v5540 = vrsqrt.pop %v5532
      %v5541 = vrsqrt.pop %v5533
      %v5542 = vrsqrt.pop %v5534
      %v5543 = vmul.f32 %v5479, %v5535
      %v5544 = vmul.f32 %v5480, %v5536
      %v5545 = vmul.f32 %v5481, %v5537
      %v5546 = vmul.f32 %v5482, %v5538
      %v5547 = vmul.f32 %v5483, %v5539
      %v5548 = vmul.f32 %v5484, %v5540
      %v5549 = vmul.f32 %v5485, %v5541
      %v5550 = vmul.f32 %v5486, %v5542
      %v5551 = vlaneseq
      %v5552 = vshrl.u32 %v5551, 7
      %v5553 = vsub.s32 4, %v5552
      %v5554 = vrot.slane %v4633, %v5553
      %v5555 = vmul.f32 %v5543, %v5554
      %v5556 = vmul.f32 %v5544, %v5554
      %v5557 = vmul.f32 %v5545, %v5554
      %v5558 = vmul.f32 %v5546, %v5554
      %v5559 = vmul.f32 %v5547, %v5554
      %v5560 = vmul.f32 %v5548, %v5554
      %v5561 = vmul.f32 %v5549, %v5554
      %v5562 = vmul.f32 %v5550, %v5554
      %v5563 = vlaneseq
      %v5564 = vshrl.u32 %v5563, 7
      %v5565 = vsub.s32 5, %v5564
      %v5566 = vrot.slane %v4633, %v5565
      %v5567 = vadd.f32 %v5555, %v5566
      %v5568 = vadd.f32 %v5556, %v5566
      %v5569 = vadd.f32 %v5557, %v5566
      %v5570 = vadd.f32 %v5558, %v5566
      %v5571 = vadd.f32 %v5559, %v5566
      %v5572 = vadd.f32 %v5560, %v5566
      %v5573 = vadd.f32 %v5561, %v5566
      %v5574 = vadd.f32 %v5562, %v5566
      %v5575 = vpack.c.bf16 %v5568, %v5567
      %v5576 = vpack.c.bf16 %v5570, %v5569
      %v5577 = vpack.c.bf16 %v5572, %v5571
      %v5578 = vpack.c.bf16 %v5574, %v5573
      %s5579 = scalar_lea.vmem %s6, 512
      %v5580 = vld [vmem:[%s5579] sm:$0xff]
      %v5581 = vld [vmem:[%s5579 + $0x8] sm:$0xff]
      %v5582 = vld [vmem:[%s5579 + $0x10] sm:$0xff]
      %v5583 = vld [vmem:[%s5579 + $0x18] sm:$0xff]
      %v5584 = vld [vmem:[%s5579 + $0x20] sm:$0xff]
      %v5585 = vld [vmem:[%s5579 + $0x28] sm:$0xff]
      %v5586 = vld [vmem:[%s5579 + $0x30] sm:$0xff]
      %v5587 = vld [vmem:[%s5579 + $0x38] sm:$0xff]
      %v5588 = vld [vmem:[%s5579 + $0x40] sm:$0xff]
      %v5589 = vld [vmem:[%s5579 + $0x48] sm:$0xff]
      %v5590 = vld [vmem:[%s5579 + $0x50] sm:$0xff]
      %v5591 = vld [vmem:[%s5579 + $0x58] sm:$0xff]
      %v5592 = vld [vmem:[%s5579 + $0x60] sm:$0xff]
      %v5593 = vld [vmem:[%s5579 + $0x68] sm:$0xff]
      %v5594 = vld [vmem:[%s5579 + $0x70] sm:$0xff]
      %v5595 = vld [vmem:[%s5579 + $0x78] sm:$0xff]
      %v5596 = vld [vmem:[%s5579 + $0x80] sm:$0xff]
      %v5597 = vld [vmem:[%s5579 + $0x88] sm:$0xff]
      %v5598 = vld [vmem:[%s5579 + $0x90] sm:$0xff]
      %v5599 = vld [vmem:[%s5579 + $0x98] sm:$0xff]
      %v5600 = vld [vmem:[%s5579 + $0xa0] sm:$0xff]
      %v5601 = vld [vmem:[%s5579 + $0xa8] sm:$0xff]
      %v5602 = vld [vmem:[%s5579 + $0xb0] sm:$0xff]
      %v5603 = vld [vmem:[%s5579 + $0xb8] sm:$0xff]
      %v5604 = vld [vmem:[%s5579 + $0xc0] sm:$0xff]
      %v5605 = vld [vmem:[%s5579 + $0xc8] sm:$0xff]
      %v5606 = vld [vmem:[%s5579 + $0xd0] sm:$0xff]
      %v5607 = vld [vmem:[%s5579 + $0xd8] sm:$0xff]
      %v5608 = vld [vmem:[%s5579 + $0xe0] sm:$0xff]
      %v5609 = vld [vmem:[%s5579 + $0xe8] sm:$0xff]
      %v5610 = vld [vmem:[%s5579 + $0xf0] sm:$0xff]
      %v5611 = vld [vmem:[%s5579 + $0xf8] sm:$0xff]
      %v5612 = vld [vmem:[%s5579 + $0x100] sm:$0xff]
      %v5613 = vld [vmem:[%s5579 + $0x108] sm:$0xff]
      %v5614 = vld [vmem:[%s5579 + $0x110] sm:$0xff]
      %v5615 = vld [vmem:[%s5579 + $0x118] sm:$0xff]
      %v5616 = vld [vmem:[%s5579 + $0x120] sm:$0xff]
      %v5617 = vld [vmem:[%s5579 + $0x128] sm:$0xff]
      %v5618 = vld [vmem:[%s5579 + $0x130] sm:$0xff]
      %v5619 = vld [vmem:[%s5579 + $0x138] sm:$0xff]
      %v5620 = vld [vmem:[%s5579 + $0x140] sm:$0xff]
      %v5621 = vld [vmem:[%s5579 + $0x148] sm:$0xff]
      %v5622 = vld [vmem:[%s5579 + $0x150] sm:$0xff]
      %v5623 = vld [vmem:[%s5579 + $0x158] sm:$0xff]
      %v5624 = vld [vmem:[%s5579 + $0x160] sm:$0xff]
      %v5625 = vld [vmem:[%s5579 + $0x168] sm:$0xff]
      %v5626 = vld [vmem:[%s5579 + $0x170] sm:$0xff]
      %v5627 = vld [vmem:[%s5579 + $0x178] sm:$0xff]
      %v5628 = vld [vmem:[%s5579 + $0x180] sm:$0xff]
      %v5629 = vld [vmem:[%s5579 + $0x188] sm:$0xff]
      %v5630 = vld [vmem:[%s5579 + $0x190] sm:$0xff]
      %v5631 = vld [vmem:[%s5579 + $0x198] sm:$0xff]
      %v5632 = vld [vmem:[%s5579 + $0x1a0] sm:$0xff]
      %v5633 = vld [vmem:[%s5579 + $0x1a8] sm:$0xff]
      %v5634 = vld [vmem:[%s5579 + $0x1b0] sm:$0xff]
      %v5635 = vld [vmem:[%s5579 + $0x1b8] sm:$0xff]
      %v5636 = vld [vmem:[%s5579 + $0x1c0] sm:$0xff]
      %v5637 = vld [vmem:[%s5579 + $0x1c8] sm:$0xff]
      %v5638 = vld [vmem:[%s5579 + $0x1d0] sm:$0xff]
      %v5639 = vld [vmem:[%s5579 + $0x1d8] sm:$0xff]
      %v5640 = vld [vmem:[%s5579 + $0x1e0] sm:$0xff]
      %v5641 = vld [vmem:[%s5579 + $0x1e8] sm:$0xff]
      %v5642 = vld [vmem:[%s5579 + $0x1f0] sm:$0xff]
      %v5643 = vld [vmem:[%s5579 + $0x1f8] sm:$0xff]
      %s5644 = scalar_lea.vmem %s7, 16
      %v5645 = vld [vmem:[%s5644] sm:$0xff]
      %v5646 = vld [vmem:[%s5644 + $0x8] sm:$0xff]
      %v5649 = vlaneseq
      %v5650 = vshrl.u32 %v5649, 7
      %v5651 = vsub.s32 0, %v5650
      %v5652 = vrot.slane %v5645, %v5651
      %v5653 = vlaneseq
      %v5654 = vshrl.u32 %v5653, 7
      %v5655 = vsub.s32 1, %v5654
      %v5656 = vrot.slane %v5645, %v5655
      %v5657 = vlaneseq
      %v5658 = vshrl.u32 %v5657, 7
      %v5659 = vsub.s32 2, %v5658
      %v5660 = vrot.slane %v5645, %v5659
      %v5661 = vlaneseq
      %v5662 = vshrl.u32 %v5661, 7
      %v5663 = vsub.s32 3, %v5662
      %v5664 = vrot.slane %v5645, %v5663
      %v5665 = vlaneseq
      %v5666 = vshrl.u32 %v5665, 7
      %v5667 = vsub.s32 4, %v5666
      %v5668 = vrot.slane %v5645, %v5667
      %v5669 = vlaneseq
      %v5670 = vshrl.u32 %v5669, 7
      %v5671 = vsub.s32 5, %v5670
      %v5672 = vrot.slane %v5645, %v5671
      %v5673 = vlaneseq
      %v5674 = vshrl.u32 %v5673, 7
      %v5675 = vsub.s32 6, %v5674
      %v5676 = vrot.slane %v5645, %v5675
      %v5677 = vlaneseq
      %v5678 = vshrl.u32 %v5677, 7
      %v5679 = vsub.s32 7, %v5678
      %v5680 = vrot.slane %v5645, %v5679
      %v5681 = vlaneseq
      %v5682 = vshrl.u32 %v5681, 7
      %v5683 = vsub.s32 0, %v5682
      %v5684 = vrot.slane %v5646, %v5683
      %v5685 = vlaneseq
      %v5686 = vshrl.u32 %v5685, 7
      %v5687 = vsub.s32 1, %v5686
      %v5688 = vrot.slane %v5646, %v5687
      %v5689 = vlaneseq
      %v5690 = vshrl.u32 %v5689, 7
      %v5691 = vsub.s32 2, %v5690
      %v5692 = vrot.slane %v5646, %v5691
      %v5693 = vlaneseq
      %v5694 = vshrl.u32 %v5693, 7
      %v5695 = vsub.s32 3, %v5694
      %v5696 = vrot.slane %v5646, %v5695
      %v5697 = vlaneseq
      %v5698 = vshrl.u32 %v5697, 7
      %v5699 = vsub.s32 4, %v5698
      %v5700 = vrot.slane %v5646, %v5699
      %v5701 = vlaneseq
      %v5702 = vshrl.u32 %v5701, 7
      %v5703 = vsub.s32 5, %v5702
      %v5704 = vrot.slane %v5646, %v5703
      %v5705 = vlaneseq
      %v5706 = vshrl.u32 %v5705, 7
      %v5707 = vsub.s32 6, %v5706
      %v5708 = vrot.slane %v5646, %v5707
      %v5709 = vlaneseq
      %v5710 = vshrl.u32 %v5709, 7
      %v5711 = vsub.s32 7, %v5710
      %v5712 = vrot.slane %v5646, %v5711
      %v5793 = vunpack.c.l.b16 %v5580
      %v5794 = vunpack.c.h.b16 %v5580
      %v5795 = vunpack.c.l.b16 %v5581
      %v5796 = vunpack.c.h.b16 %v5581
      %v5797 = vunpack.c.l.b16 %v5582
      %v5798 = vunpack.c.h.b16 %v5582
      %v5799 = vunpack.c.l.b16 %v5583
      %v5800 = vunpack.c.h.b16 %v5583
      %v5801 = vunpack.c.l.b16 %v5584
      %v5802 = vunpack.c.h.b16 %v5584
      %v5803 = vunpack.c.l.b16 %v5585
      %v5804 = vunpack.c.h.b16 %v5585
      %v5805 = vunpack.c.l.b16 %v5586
      %v5806 = vunpack.c.h.b16 %v5586
      %v5807 = vunpack.c.l.b16 %v5587
      %v5808 = vunpack.c.h.b16 %v5587
      %v5809 = vunpack.c.l.b16 %v5588
      %v5810 = vunpack.c.h.b16 %v5588
      %v5811 = vunpack.c.l.b16 %v5589
      %v5812 = vunpack.c.h.b16 %v5589
      %v5813 = vunpack.c.l.b16 %v5590
      %v5814 = vunpack.c.h.b16 %v5590
      %v5815 = vunpack.c.l.b16 %v5591
      %v5816 = vunpack.c.h.b16 %v5591
      %v5817 = vunpack.c.l.b16 %v5592
      %v5818 = vunpack.c.h.b16 %v5592
      %v5819 = vunpack.c.l.b16 %v5593
      %v5820 = vunpack.c.h.b16 %v5593
      %v5821 = vunpack.c.l.b16 %v5594
      %v5822 = vunpack.c.h.b16 %v5594
      %v5823 = vunpack.c.l.b16 %v5595
      %v5824 = vunpack.c.h.b16 %v5595
      %v5825 = vunpack.c.l.b16 %v5596
      %v5826 = vunpack.c.h.b16 %v5596
      %v5827 = vunpack.c.l.b16 %v5597
      %v5828 = vunpack.c.h.b16 %v5597
      %v5829 = vunpack.c.l.b16 %v5598
      %v5830 = vunpack.c.h.b16 %v5598
      %v5831 = vunpack.c.l.b16 %v5599
      %v5832 = vunpack.c.h.b16 %v5599
      %v5833 = vunpack.c.l.b16 %v5600
      %v5834 = vunpack.c.h.b16 %v5600
      %v5835 = vunpack.c.l.b16 %v5601
      %v5836 = vunpack.c.h.b16 %v5601
      %v5837 = vunpack.c.l.b16 %v5602
      %v5838 = vunpack.c.h.b16 %v5602
      %v5839 = vunpack.c.l.b16 %v5603
      %v5840 = vunpack.c.h.b16 %v5603
      %v5841 = vunpack.c.l.b16 %v5604
      %v5842 = vunpack.c.h.b16 %v5604
      %v5843 = vunpack.c.l.b16 %v5605
      %v5844 = vunpack.c.h.b16 %v5605
      %v5845 = vunpack.c.l.b16 %v5606
      %v5846 = vunpack.c.h.b16 %v5606
      %v5847 = vunpack.c.l.b16 %v5607
      %v5848 = vunpack.c.h.b16 %v5607
      %v5849 = vunpack.c.l.b16 %v5608
      %v5850 = vunpack.c.h.b16 %v5608
      %v5851 = vunpack.c.l.b16 %v5609
      %v5852 = vunpack.c.h.b16 %v5609
      %v5853 = vunpack.c.l.b16 %v5610
      %v5854 = vunpack.c.h.b16 %v5610
      %v5855 = vunpack.c.l.b16 %v5611
      %v5856 = vunpack.c.h.b16 %v5611
      %v5857 = vunpack.c.l.b16 %v5612
      %v5858 = vunpack.c.h.b16 %v5612
      %v5859 = vunpack.c.l.b16 %v5613
      %v5860 = vunpack.c.h.b16 %v5613
      %v5861 = vunpack.c.l.b16 %v5614
      %v5862 = vunpack.c.h.b16 %v5614
      %v5863 = vunpack.c.l.b16 %v5615
      %v5864 = vunpack.c.h.b16 %v5615
      %v5865 = vunpack.c.l.b16 %v5616
      %v5866 = vunpack.c.h.b16 %v5616
      %v5867 = vunpack.c.l.b16 %v5617
      %v5868 = vunpack.c.h.b16 %v5617
      %v5869 = vunpack.c.l.b16 %v5618
      %v5870 = vunpack.c.h.b16 %v5618
      %v5871 = vunpack.c.l.b16 %v5619
      %v5872 = vunpack.c.h.b16 %v5619
      %v5873 = vunpack.c.l.b16 %v5620
      %v5874 = vunpack.c.h.b16 %v5620
      %v5875 = vunpack.c.l.b16 %v5621
      %v5876 = vunpack.c.h.b16 %v5621
      %v5877 = vunpack.c.l.b16 %v5622
      %v5878 = vunpack.c.h.b16 %v5622
      %v5879 = vunpack.c.l.b16 %v5623
      %v5880 = vunpack.c.h.b16 %v5623
      %v5881 = vunpack.c.l.b16 %v5624
      %v5882 = vunpack.c.h.b16 %v5624
      %v5883 = vunpack.c.l.b16 %v5625
      %v5884 = vunpack.c.h.b16 %v5625
      %v5885 = vunpack.c.l.b16 %v5626
      %v5886 = vunpack.c.h.b16 %v5626
      %v5887 = vunpack.c.l.b16 %v5627
      %v5888 = vunpack.c.h.b16 %v5627
      %v5889 = vunpack.c.l.b16 %v5628
      %v5890 = vunpack.c.h.b16 %v5628
      %v5891 = vunpack.c.l.b16 %v5629
      %v5892 = vunpack.c.h.b16 %v5629
      %v5893 = vunpack.c.l.b16 %v5630
      %v5894 = vunpack.c.h.b16 %v5630
      %v5895 = vunpack.c.l.b16 %v5631
      %v5896 = vunpack.c.h.b16 %v5631
      %v5897 = vunpack.c.l.b16 %v5632
      %v5898 = vunpack.c.h.b16 %v5632
      %v5899 = vunpack.c.l.b16 %v5633
      %v5900 = vunpack.c.h.b16 %v5633
      %v5901 = vunpack.c.l.b16 %v5634
      %v5902 = vunpack.c.h.b16 %v5634
      %v5903 = vunpack.c.l.b16 %v5635
      %v5904 = vunpack.c.h.b16 %v5635
      %v5905 = vunpack.c.l.b16 %v5636
      %v5906 = vunpack.c.h.b16 %v5636
      %v5907 = vunpack.c.l.b16 %v5637
      %v5908 = vunpack.c.h.b16 %v5637
      %v5909 = vunpack.c.l.b16 %v5638
      %v5910 = vunpack.c.h.b16 %v5638
      %v5911 = vunpack.c.l.b16 %v5639
      %v5912 = vunpack.c.h.b16 %v5639
      %v5913 = vunpack.c.l.b16 %v5640
      %v5914 = vunpack.c.h.b16 %v5640
      %v5915 = vunpack.c.l.b16 %v5641
      %v5916 = vunpack.c.h.b16 %v5641
      %v5917 = vunpack.c.l.b16 %v5642
      %v5918 = vunpack.c.h.b16 %v5642
      %v5919 = vunpack.c.l.b16 %v5643
      %v5920 = vunpack.c.h.b16 %v5643
      %v5921 = vpack.c.b16 %v5809, %v5793
      %v5922 = vpack.c.b16 %v5810, %v5794
      %v5923 = vpack.c.b16 %v5811, %v5795
      %v5924 = vpack.c.b16 %v5812, %v5796
      %v5925 = vpack.c.b16 %v5813, %v5797
      %v5926 = vpack.c.b16 %v5814, %v5798
      %v5927 = vpack.c.b16 %v5815, %v5799
      %v5928 = vpack.c.b16 %v5816, %v5800
      %v5929 = vpack.c.b16 %v5817, %v5801
      %v5930 = vpack.c.b16 %v5818, %v5802
      %v5931 = vpack.c.b16 %v5819, %v5803
      %v5932 = vpack.c.b16 %v5820, %v5804
      %v5933 = vpack.c.b16 %v5821, %v5805
      %v5934 = vpack.c.b16 %v5822, %v5806
      %v5935 = vpack.c.b16 %v5823, %v5807
      %v5936 = vpack.c.b16 %v5824, %v5808
      %v5937 = vpack.c.b16 %v5841, %v5825
      %v5938 = vpack.c.b16 %v5842, %v5826
      %v5939 = vpack.c.b16 %v5843, %v5827
      %v5940 = vpack.c.b16 %v5844, %v5828
      %v5941 = vpack.c.b16 %v5845, %v5829
      %v5942 = vpack.c.b16 %v5846, %v5830
      %v5943 = vpack.c.b16 %v5847, %v5831
      %v5944 = vpack.c.b16 %v5848, %v5832
      %v5945 = vpack.c.b16 %v5849, %v5833
      %v5946 = vpack.c.b16 %v5850, %v5834
      %v5947 = vpack.c.b16 %v5851, %v5835
      %v5948 = vpack.c.b16 %v5852, %v5836
      %v5949 = vpack.c.b16 %v5853, %v5837
      %v5950 = vpack.c.b16 %v5854, %v5838
      %v5951 = vpack.c.b16 %v5855, %v5839
      %v5952 = vpack.c.b16 %v5856, %v5840
      %v5953 = vpack.c.b16 %v5873, %v5857
      %v5954 = vpack.c.b16 %v5874, %v5858
      %v5955 = vpack.c.b16 %v5875, %v5859
      %v5956 = vpack.c.b16 %v5876, %v5860
      %v5957 = vpack.c.b16 %v5877, %v5861
      %v5958 = vpack.c.b16 %v5878, %v5862
      %v5959 = vpack.c.b16 %v5879, %v5863
      %v5960 = vpack.c.b16 %v5880, %v5864
      %v5961 = vpack.c.b16 %v5881, %v5865
      %v5962 = vpack.c.b16 %v5882, %v5866
      %v5963 = vpack.c.b16 %v5883, %v5867
      %v5964 = vpack.c.b16 %v5884, %v5868
      %v5965 = vpack.c.b16 %v5885, %v5869
      %v5966 = vpack.c.b16 %v5886, %v5870
      %v5967 = vpack.c.b16 %v5887, %v5871
      %v5968 = vpack.c.b16 %v5888, %v5872
      %v5969 = vpack.c.b16 %v5905, %v5889
      %v5970 = vpack.c.b16 %v5906, %v5890
      %v5971 = vpack.c.b16 %v5907, %v5891
      %v5972 = vpack.c.b16 %v5908, %v5892
      %v5973 = vpack.c.b16 %v5909, %v5893
      %v5974 = vpack.c.b16 %v5910, %v5894
      %v5975 = vpack.c.b16 %v5911, %v5895
      %v5976 = vpack.c.b16 %v5912, %v5896
      %v5977 = vpack.c.b16 %v5913, %v5897
      %v5978 = vpack.c.b16 %v5914, %v5898
      %v5979 = vpack.c.b16 %v5915, %v5899
      %v5980 = vpack.c.b16 %v5916, %v5900
      %v5981 = vpack.c.b16 %v5917, %v5901
      %v5982 = vpack.c.b16 %v5918, %v5902
      %v5983 = vpack.c.b16 %v5919, %v5903
      %v5984 = vpack.c.b16 %v5920, %v5904
      %v6050 = vsel %vm763, %v5575, 0
      %v6053 = vsel %vm763, %v5576, 0
      %v6056 = vsel %vm763, %v5577, 0
      %v6059 = vsel %vm763, %v5578, 0
      %6061 = vmatprep.subr.bf16.mxu0 0
      %6062 = vmatpush1.bf16.msra.mxu0 0
      %6063 = vmatprep.subr.bf16.mxu0 0
      %6064 = vmatpush1.bf16.msra.mxu0 0
      %6065 = vmatprep.subr.bf16.mxu0 0
      %6066 = vmatpush1.bf16.msra.mxu0 0
      %6067 = vmatprep.subr.bf16.mxu0 0
      %6068 = vmatpush1.bf16.msra.mxu0 0
      %6069 = vmatprep.subr.bf16.mxu0 %v5970
      %6070 = vmatpush1.bf16.msra.mxu0 %v5969
      %6071 = vmatprep.subr.bf16.mxu0 %v5954
      %6072 = vmatpush1.bf16.msra.mxu0 %v5953
      %6073 = vmatprep.subr.bf16.mxu0 %v5938
      %6074 = vmatpush1.bf16.msra.mxu0 %v5937
      %6075 = vmatprep.subr.bf16.mxu0 %v5922
      %6076 = vmatpush1.bf16.msra.mxu0 %v5921
      %6077 = vmatprep.subr.bf16.mxu0 0
      %6078 = vmatpush2.bf16.msra.mxu0 0
      %6079 = vmatprep.subr.bf16.mxu0 0
      %6080 = vmatpush2.bf16.msra.mxu0 0
      %6081 = vmatprep.subr.bf16.mxu0 0
      %6082 = vmatpush2.bf16.msra.mxu0 0
      %6083 = vmatprep.subr.bf16.mxu0 0
      %6084 = vmatpush2.bf16.msra.mxu0 0
      %6085 = vmatprep.subr.bf16.mxu0 0
      %6086 = vmatpush2.bf16.msra.mxu0 0
      %6087 = vmatprep.subr.bf16.mxu0 0
      %6088 = vmatpush2.bf16.msra.mxu0 0
      %6089 = vmatprep.subr.bf16.mxu0 0
      %6090 = vmatpush2.bf16.msra.mxu0 0
      %6091 = vmatprep.subr.bf16.mxu0 0
      %6092 = vmatpush2.bf16.msra.mxu0 0
      %6093 = vmatprep.mubr.bf16.mxu0 0
      %6094 = vmatmul.mubr.bf16.gmra.mxu0 %v6050
      %v6095 = vpop.f32.mrf.mxu0
      %v6096 = vadd.f32 %v5652, %v6095
      %v6097 = vpop.f32.mrf.mxu0
      %v6098 = vadd.f32 %v5656, %v6097
      %v6099 = vpop.f32.mrf.mxu0
      %v6100 = vadd.f32 %v5652, %v6099
      %v6101 = vpop.f32.mrf.mxu0
      %v6102 = vadd.f32 %v5656, %v6101
      %6103 = vmatprep.mubr.bf16.mxu0 0
      %6104 = vmatmul.mubr.bf16.gmra.mxu0 %v6053
      %v6105 = vpop.f32.mrf.mxu0
      %v6106 = vadd.f32 %v5652, %v6105
      %v6107 = vpop.f32.mrf.mxu0
      %v6108 = vadd.f32 %v5656, %v6107
      %v6109 = vpop.f32.mrf.mxu0
      %v6110 = vadd.f32 %v5652, %v6109
      %v6111 = vpop.f32.mrf.mxu0
      %v6112 = vadd.f32 %v5656, %v6111
      %6113 = vmatprep.mubr.bf16.mxu0 0
      %6114 = vmatmul.mubr.bf16.gmra.mxu0 %v6056
      %v6115 = vpop.f32.mrf.mxu0
      %v6116 = vadd.f32 %v5652, %v6115
      %v6117 = vpop.f32.mrf.mxu0
      %v6118 = vadd.f32 %v5656, %v6117
      %v6119 = vpop.f32.mrf.mxu0
      %v6120 = vadd.f32 %v5652, %v6119
      %v6121 = vpop.f32.mrf.mxu0
      %v6122 = vadd.f32 %v5656, %v6121
      %6123 = vmatprep.mubr.bf16.mxu0 0
      %6124 = vmatmul.mubr.bf16.gmra.mxu0 %v6059
      %v6125 = vpop.f32.mrf.mxu0
      %v6126 = vadd.f32 %v5652, %v6125
      %v6127 = vpop.f32.mrf.mxu0
      %v6128 = vadd.f32 %v5656, %v6127
      %v6129 = vpop.f32.mrf.mxu0
      %v6130 = vadd.f32 %v5652, %v6129
      %v6131 = vpop.f32.mrf.mxu0
      %v6132 = vadd.f32 %v5656, %v6131
      %6133 = vdwg.mxu0
      %6134 = vmatprep.subr.bf16.mxu0 0
      %6135 = vmatpush1.bf16.msra.mxu0 0
      %6136 = vmatprep.subr.bf16.mxu0 0
      %6137 = vmatpush1.bf16.msra.mxu0 0
      %6138 = vmatprep.subr.bf16.mxu0 0
      %6139 = vmatpush1.bf16.msra.mxu0 0
      %6140 = vmatprep.subr.bf16.mxu0 0
      %6141 = vmatpush1.bf16.msra.mxu0 0
      %6142 = vmatprep.subr.bf16.mxu0 %v5972
      %6143 = vmatpush1.bf16.msra.mxu0 %v5971
      %6144 = vmatprep.subr.bf16.mxu0 %v5956
      %6145 = vmatpush1.bf16.msra.mxu0 %v5955
      %6146 = vmatprep.subr.bf16.mxu0 %v5940
      %6147 = vmatpush1.bf16.msra.mxu0 %v5939
      %6148 = vmatprep.subr.bf16.mxu0 %v5924
      %6149 = vmatpush1.bf16.msra.mxu0 %v5923
      %6150 = vmatprep.subr.bf16.mxu0 0
      %6151 = vmatpush2.bf16.msra.mxu0 0
      %6152 = vmatprep.subr.bf16.mxu0 0
      %6153 = vmatpush2.bf16.msra.mxu0 0
      %6154 = vmatprep.subr.bf16.mxu0 0
      %6155 = vmatpush2.bf16.msra.mxu0 0
      %6156 = vmatprep.subr.bf16.mxu0 0
      %6157 = vmatpush2.bf16.msra.mxu0 0
      %6158 = vmatprep.subr.bf16.mxu0 0
      %6159 = vmatpush2.bf16.msra.mxu0 0
      %6160 = vmatprep.subr.bf16.mxu0 0
      %6161 = vmatpush2.bf16.msra.mxu0 0
      %6162 = vmatprep.subr.bf16.mxu0 0
      %6163 = vmatpush2.bf16.msra.mxu0 0
      %6164 = vmatprep.subr.bf16.mxu0 0
      %6165 = vmatpush2.bf16.msra.mxu0 0
      %6166 = vmatprep.mubr.bf16.mxu0 0
      %6167 = vmatmul.mubr.bf16.gmra.mxu0 %v6050
      %v6168 = vpop.f32.mrf.mxu0
      %v6169 = vadd.f32 %v5660, %v6168
      %v6170 = vpop.f32.mrf.mxu0
      %v6171 = vadd.f32 %v5664, %v6170
      %v6172 = vpop.f32.mrf.mxu0
      %v6173 = vadd.f32 %v5660, %v6172
      %v6174 = vpop.f32.mrf.mxu0
      %v6175 = vadd.f32 %v5664, %v6174
      %6176 = vmatprep.mubr.bf16.mxu0 0
      %6177 = vmatmul.mubr.bf16.gmra.mxu0 %v6053
      %v6178 = vpop.f32.mrf.mxu0
      %v6179 = vadd.f32 %v5660, %v6178
      %v6180 = vpop.f32.mrf.mxu0
      %v6181 = vadd.f32 %v5664, %v6180
      %v6182 = vpop.f32.mrf.mxu0
      %v6183 = vadd.f32 %v5660, %v6182
      %v6184 = vpop.f32.mrf.mxu0
      %v6185 = vadd.f32 %v5664, %v6184
      %6186 = vmatprep.mubr.bf16.mxu0 0
      %6187 = vmatmul.mubr.bf16.gmra.mxu0 %v6056
      %v6188 = vpop.f32.mrf.mxu0
      %v6189 = vadd.f32 %v5660, %v6188
      %v6190 = vpop.f32.mrf.mxu0
      %v6191 = vadd.f32 %v5664, %v6190
      %v6192 = vpop.f32.mrf.mxu0
      %v6193 = vadd.f32 %v5660, %v6192
      %v6194 = vpop.f32.mrf.mxu0
      %v6195 = vadd.f32 %v5664, %v6194
      %6196 = vmatprep.mubr.bf16.mxu0 0
      %6197 = vmatmul.mubr.bf16.gmra.mxu0 %v6059
      %v6198 = vpop.f32.mrf.mxu0
      %v6199 = vadd.f32 %v5660, %v6198
      %v6200 = vpop.f32.mrf.mxu0
      %v6201 = vadd.f32 %v5664, %v6200
      %v6202 = vpop.f32.mrf.mxu0
      %v6203 = vadd.f32 %v5660, %v6202
      %v6204 = vpop.f32.mrf.mxu0
      %v6205 = vadd.f32 %v5664, %v6204
      %6206 = vdwg.mxu0
      %6207 = vmatprep.subr.bf16.mxu0 0
      %6208 = vmatpush1.bf16.msra.mxu0 0
      %6209 = vmatprep.subr.bf16.mxu0 0
      %6210 = vmatpush1.bf16.msra.mxu0 0
      %6211 = vmatprep.subr.bf16.mxu0 0
      %6212 = vmatpush1.bf16.msra.mxu0 0
      %6213 = vmatprep.subr.bf16.mxu0 0
      %6214 = vmatpush1.bf16.msra.mxu0 0
      %6215 = vmatprep.subr.bf16.mxu0 %v5974
      %6216 = vmatpush1.bf16.msra.mxu0 %v5973
      %6217 = vmatprep.subr.bf16.mxu0 %v5958
      %6218 = vmatpush1.bf16.msra.mxu0 %v5957
      %6219 = vmatprep.subr.bf16.mxu0 %v5942
      %6220 = vmatpush1.bf16.msra.mxu0 %v5941
      %6221 = vmatprep.subr.bf16.mxu0 %v5926
      %6222 = vmatpush1.bf16.msra.mxu0 %v5925
      %6223 = vmatprep.subr.bf16.mxu0 0
      %6224 = vmatpush2.bf16.msra.mxu0 0
      %6225 = vmatprep.subr.bf16.mxu0 0
      %6226 = vmatpush2.bf16.msra.mxu0 0
      %6227 = vmatprep.subr.bf16.mxu0 0
      %6228 = vmatpush2.bf16.msra.mxu0 0
      %6229 = vmatprep.subr.bf16.mxu0 0
      %6230 = vmatpush2.bf16.msra.mxu0 0
      %6231 = vmatprep.subr.bf16.mxu0 0
      %6232 = vmatpush2.bf16.msra.mxu0 0
      %6233 = vmatprep.subr.bf16.mxu0 0
      %6234 = vmatpush2.bf16.msra.mxu0 0
      %6235 = vmatprep.subr.bf16.mxu0 0
      %6236 = vmatpush2.bf16.msra.mxu0 0
      %6237 = vmatprep.subr.bf16.mxu0 0
      %6238 = vmatpush2.bf16.msra.mxu0 0
      %6239 = vmatprep.mubr.bf16.mxu0 0
      %6240 = vmatmul.mubr.bf16.gmra.mxu0 %v6050
      %v6241 = vpop.f32.mrf.mxu0
      %v6242 = vadd.f32 %v5668, %v6241
      %v6243 = vpop.f32.mrf.mxu0
      %v6244 = vadd.f32 %v5672, %v6243
      %v6245 = vpop.f32.mrf.mxu0
      %v6246 = vadd.f32 %v5668, %v6245
      %v6247 = vpop.f32.mrf.mxu0
      %v6248 = vadd.f32 %v5672, %v6247
      %6249 = vmatprep.mubr.bf16.mxu0 0
      %6250 = vmatmul.mubr.bf16.gmra.mxu0 %v6053
      %v6251 = vpop.f32.mrf.mxu0
      %v6252 = vadd.f32 %v5668, %v6251
      %v6253 = vpop.f32.mrf.mxu0
      %v6254 = vadd.f32 %v5672, %v6253
      %v6255 = vpop.f32.mrf.mxu0
      %v6256 = vadd.f32 %v5668, %v6255
      %v6257 = vpop.f32.mrf.mxu0
      %v6258 = vadd.f32 %v5672, %v6257
      %6259 = vmatprep.mubr.bf16.mxu0 0
      %6260 = vmatmul.mubr.bf16.gmra.mxu0 %v6056
      %v6261 = vpop.f32.mrf.mxu0
      %v6262 = vadd.f32 %v5668, %v6261
      %v6263 = vpop.f32.mrf.mxu0
      %v6264 = vadd.f32 %v5672, %v6263
      %v6265 = vpop.f32.mrf.mxu0
      %v6266 = vadd.f32 %v5668, %v6265
      %v6267 = vpop.f32.mrf.mxu0
      %v6268 = vadd.f32 %v5672, %v6267
      %6269 = vmatprep.mubr.bf16.mxu0 0
      %6270 = vmatmul.mubr.bf16.gmra.mxu0 %v6059
      %v6271 = vpop.f32.mrf.mxu0
      %v6272 = vadd.f32 %v5668, %v6271
      %v6273 = vpop.f32.mrf.mxu0
      %v6274 = vadd.f32 %v5672, %v6273
      %v6275 = vpop.f32.mrf.mxu0
      %v6276 = vadd.f32 %v5668, %v6275
      %v6277 = vpop.f32.mrf.mxu0
      %v6278 = vadd.f32 %v5672, %v6277
      %6279 = vdwg.mxu0
      %6280 = vmatprep.subr.bf16.mxu0 0
      %6281 = vmatpush1.bf16.msra.mxu0 0
      %6282 = vmatprep.subr.bf16.mxu0 0
      %6283 = vmatpush1.bf16.msra.mxu0 0
      %6284 = vmatprep.subr.bf16.mxu0 0
      %6285 = vmatpush1.bf16.msra.mxu0 0
      %6286 = vmatprep.subr.bf16.mxu0 0
      %6287 = vmatpush1.bf16.msra.mxu0 0
      %6288 = vmatprep.subr.bf16.mxu0 %v5976
      %6289 = vmatpush1.bf16.msra.mxu0 %v5975
      %6290 = vmatprep.subr.bf16.mxu0 %v5960
      %6291 = vmatpush1.bf16.msra.mxu0 %v5959
      %6292 = vmatprep.subr.bf16.mxu0 %v5944
      %6293 = vmatpush1.bf16.msra.mxu0 %v5943
      %6294 = vmatprep.subr.bf16.mxu0 %v5928
      %6295 = vmatpush1.bf16.msra.mxu0 %v5927
      %6296 = vmatprep.subr.bf16.mxu0 0
      %6297 = vmatpush2.bf16.msra.mxu0 0
      %6298 = vmatprep.subr.bf16.mxu0 0
      %6299 = vmatpush2.bf16.msra.mxu0 0
      %6300 = vmatprep.subr.bf16.mxu0 0
      %6301 = vmatpush2.bf16.msra.mxu0 0
      %6302 = vmatprep.subr.bf16.mxu0 0
      %6303 = vmatpush2.bf16.msra.mxu0 0
      %6304 = vmatprep.subr.bf16.mxu0 0
      %6305 = vmatpush2.bf16.msra.mxu0 0
      %6306 = vmatprep.subr.bf16.mxu0 0
      %6307 = vmatpush2.bf16.msra.mxu0 0
      %6308 = vmatprep.subr.bf16.mxu0 0
      %6309 = vmatpush2.bf16.msra.mxu0 0
      %6310 = vmatprep.subr.bf16.mxu0 0
      %6311 = vmatpush2.bf16.msra.mxu0 0
      %6312 = vmatprep.mubr.bf16.mxu0 0
      %6313 = vmatmul.mubr.bf16.gmra.mxu0 %v6050
      %v6314 = vpop.f32.mrf.mxu0
      %v6315 = vadd.f32 %v5676, %v6314
      %v6316 = vpop.f32.mrf.mxu0
      %v6317 = vadd.f32 %v5680, %v6316
      %v6318 = vpop.f32.mrf.mxu0
      %v6319 = vadd.f32 %v5676, %v6318
      %v6320 = vpop.f32.mrf.mxu0
      %v6321 = vadd.f32 %v5680, %v6320
      %6322 = vmatprep.mubr.bf16.mxu0 0
      %6323 = vmatmul.mubr.bf16.gmra.mxu0 %v6053
      %v6324 = vpop.f32.mrf.mxu0
      %v6325 = vadd.f32 %v5676, %v6324
      %v6326 = vpop.f32.mrf.mxu0
      %v6327 = vadd.f32 %v5680, %v6326
      %v6328 = vpop.f32.mrf.mxu0
      %v6329 = vadd.f32 %v5676, %v6328
      %v6330 = vpop.f32.mrf.mxu0
      %v6331 = vadd.f32 %v5680, %v6330
      %6332 = vmatprep.mubr.bf16.mxu0 0
      %6333 = vmatmul.mubr.bf16.gmra.mxu0 %v6056
      %v6334 = vpop.f32.mrf.mxu0
      %v6335 = vadd.f32 %v5676, %v6334
      %v6336 = vpop.f32.mrf.mxu0
      %v6337 = vadd.f32 %v5680, %v6336
      %v6338 = vpop.f32.mrf.mxu0
      %v6339 = vadd.f32 %v5676, %v6338
      %v6340 = vpop.f32.mrf.mxu0
      %v6341 = vadd.f32 %v5680, %v6340
      %6342 = vmatprep.mubr.bf16.mxu0 0
      %6343 = vmatmul.mubr.bf16.gmra.mxu0 %v6059
      %v6344 = vpop.f32.mrf.mxu0
      %v6345 = vadd.f32 %v5676, %v6344
      %v6346 = vpop.f32.mrf.mxu0
      %v6347 = vadd.f32 %v5680, %v6346
      %v6348 = vpop.f32.mrf.mxu0
      %v6349 = vadd.f32 %v5676, %v6348
      %v6350 = vpop.f32.mrf.mxu0
      %v6351 = vadd.f32 %v5680, %v6350
      %6352 = vdwg.mxu0
      %6353 = vmatprep.subr.bf16.mxu0 0
      %6354 = vmatpush1.bf16.msra.mxu0 0
      %6355 = vmatprep.subr.bf16.mxu0 0
      %6356 = vmatpush1.bf16.msra.mxu0 0
      %6357 = vmatprep.subr.bf16.mxu0 0
      %6358 = vmatpush1.bf16.msra.mxu0 0
      %6359 = vmatprep.subr.bf16.mxu0 0
      %6360 = vmatpush1.bf16.msra.mxu0 0
      %6361 = vmatprep.subr.bf16.mxu0 %v5978
      %6362 = vmatpush1.bf16.msra.mxu0 %v5977
      %6363 = vmatprep.subr.bf16.mxu0 %v5962
      %6364 = vmatpush1.bf16.msra.mxu0 %v5961
      %6365 = vmatprep.subr.bf16.mxu0 %v5946
      %6366 = vmatpush1.bf16.msra.mxu0 %v5945
      %6367 = vmatprep.subr.bf16.mxu0 %v5930
      %6368 = vmatpush1.bf16.msra.mxu0 %v5929
      %6369 = vmatprep.subr.bf16.mxu0 0
      %6370 = vmatpush2.bf16.msra.mxu0 0
      %6371 = vmatprep.subr.bf16.mxu0 0
      %6372 = vmatpush2.bf16.msra.mxu0 0
      %6373 = vmatprep.subr.bf16.mxu0 0
      %6374 = vmatpush2.bf16.msra.mxu0 0
      %6375 = vmatprep.subr.bf16.mxu0 0
      %6376 = vmatpush2.bf16.msra.mxu0 0
      %6377 = vmatprep.subr.bf16.mxu0 0
      %6378 = vmatpush2.bf16.msra.mxu0 0
      %6379 = vmatprep.subr.bf16.mxu0 0
      %6380 = vmatpush2.bf16.msra.mxu0 0
      %6381 = vmatprep.subr.bf16.mxu0 0
      %6382 = vmatpush2.bf16.msra.mxu0 0
      %6383 = vmatprep.subr.bf16.mxu0 0
      %6384 = vmatpush2.bf16.msra.mxu0 0
      %6385 = vmatprep.mubr.bf16.mxu0 0
      %6386 = vmatmul.mubr.bf16.gmra.mxu0 %v6050
      %v6387 = vpop.f32.mrf.mxu0
      %v6388 = vadd.f32 %v5684, %v6387
      %v6389 = vpop.f32.mrf.mxu0
      %v6390 = vadd.f32 %v5688, %v6389
      %v6391 = vpop.f32.mrf.mxu0
      %v6392 = vadd.f32 %v5684, %v6391
      %v6393 = vpop.f32.mrf.mxu0
      %v6394 = vadd.f32 %v5688, %v6393
      %6395 = vmatprep.mubr.bf16.mxu0 0
      %6396 = vmatmul.mubr.bf16.gmra.mxu0 %v6053
      %v6397 = vpop.f32.mrf.mxu0
      %v6398 = vadd.f32 %v5684, %v6397
      %v6399 = vpop.f32.mrf.mxu0
      %v6400 = vadd.f32 %v5688, %v6399
      %v6401 = vpop.f32.mrf.mxu0
      %v6402 = vadd.f32 %v5684, %v6401
      %v6403 = vpop.f32.mrf.mxu0
      %v6404 = vadd.f32 %v5688, %v6403
      %6405 = vmatprep.mubr.bf16.mxu0 0
      %6406 = vmatmul.mubr.bf16.gmra.mxu0 %v6056
      %v6407 = vpop.f32.mrf.mxu0
      %v6408 = vadd.f32 %v5684, %v6407
      %v6409 = vpop.f32.mrf.mxu0
      %v6410 = vadd.f32 %v5688, %v6409
      %v6411 = vpop.f32.mrf.mxu0
      %v6412 = vadd.f32 %v5684, %v6411
      %v6413 = vpop.f32.mrf.mxu0
      %v6414 = vadd.f32 %v5688, %v6413
      %6415 = vmatprep.mubr.bf16.mxu0 0
      %6416 = vmatmul.mubr.bf16.gmra.mxu0 %v6059
      %v6417 = vpop.f32.mrf.mxu0
      %v6418 = vadd.f32 %v5684, %v6417
      %v6419 = vpop.f32.mrf.mxu0
      %v6420 = vadd.f32 %v5688, %v6419
      %v6421 = vpop.f32.mrf.mxu0
      %v6422 = vadd.f32 %v5684, %v6421
      %v6423 = vpop.f32.mrf.mxu0
      %v6424 = vadd.f32 %v5688, %v6423
      %6425 = vdwg.mxu0
      %6426 = vmatprep.subr.bf16.mxu0 0
      %6427 = vmatpush1.bf16.msra.mxu0 0
      %6428 = vmatprep.subr.bf16.mxu0 0
      %6429 = vmatpush1.bf16.msra.mxu0 0
      %6430 = vmatprep.subr.bf16.mxu0 0
      %6431 = vmatpush1.bf16.msra.mxu0 0
      %6432 = vmatprep.subr.bf16.mxu0 0
      %6433 = vmatpush1.bf16.msra.mxu0 0
      %6434 = vmatprep.subr.bf16.mxu0 %v5980
      %6435 = vmatpush1.bf16.msra.mxu0 %v5979
      %6436 = vmatprep.subr.bf16.mxu0 %v5964
      %6437 = vmatpush1.bf16.msra.mxu0 %v5963
      %6438 = vmatprep.subr.bf16.mxu0 %v5948
      %6439 = vmatpush1.bf16.msra.mxu0 %v5947
      %6440 = vmatprep.subr.bf16.mxu0 %v5932
      %6441 = vmatpush1.bf16.msra.mxu0 %v5931
      %6442 = vmatprep.subr.bf16.mxu0 0
      %6443 = vmatpush2.bf16.msra.mxu0 0
      %6444 = vmatprep.subr.bf16.mxu0 0
      %6445 = vmatpush2.bf16.msra.mxu0 0
      %6446 = vmatprep.subr.bf16.mxu0 0
      %6447 = vmatpush2.bf16.msra.mxu0 0
      %6448 = vmatprep.subr.bf16.mxu0 0
      %6449 = vmatpush2.bf16.msra.mxu0 0
      %6450 = vmatprep.subr.bf16.mxu0 0
      %6451 = vmatpush2.bf16.msra.mxu0 0
      %6452 = vmatprep.subr.bf16.mxu0 0
      %6453 = vmatpush2.bf16.msra.mxu0 0
      %6454 = vmatprep.subr.bf16.mxu0 0
      %6455 = vmatpush2.bf16.msra.mxu0 0
      %6456 = vmatprep.subr.bf16.mxu0 0
      %6457 = vmatpush2.bf16.msra.mxu0 0
      %6458 = vmatprep.mubr.bf16.mxu0 0
      %6459 = vmatmul.mubr.bf16.gmra.mxu0 %v6050
      %v6460 = vpop.f32.mrf.mxu0
      %v6461 = vadd.f32 %v5692, %v6460
      %v6462 = vpop.f32.mrf.mxu0
      %v6463 = vadd.f32 %v5696, %v6462
      %v6464 = vpop.f32.mrf.mxu0
      %v6465 = vadd.f32 %v5692, %v6464
      %v6466 = vpop.f32.mrf.mxu0
      %v6467 = vadd.f32 %v5696, %v6466
      %6468 = vmatprep.mubr.bf16.mxu0 0
      %6469 = vmatmul.mubr.bf16.gmra.mxu0 %v6053
      %v6470 = vpop.f32.mrf.mxu0
      %v6471 = vadd.f32 %v5692, %v6470
      %v6472 = vpop.f32.mrf.mxu0
      %v6473 = vadd.f32 %v5696, %v6472
      %v6474 = vpop.f32.mrf.mxu0
      %v6475 = vadd.f32 %v5692, %v6474
      %v6476 = vpop.f32.mrf.mxu0
      %v6477 = vadd.f32 %v5696, %v6476
      %6478 = vmatprep.mubr.bf16.mxu0 0
      %6479 = vmatmul.mubr.bf16.gmra.mxu0 %v6056
      %v6480 = vpop.f32.mrf.mxu0
      %v6481 = vadd.f32 %v5692, %v6480
      %v6482 = vpop.f32.mrf.mxu0
      %v6483 = vadd.f32 %v5696, %v6482
      %v6484 = vpop.f32.mrf.mxu0
      %v6485 = vadd.f32 %v5692, %v6484
      %v6486 = vpop.f32.mrf.mxu0
      %v6487 = vadd.f32 %v5696, %v6486
      %6488 = vmatprep.mubr.bf16.mxu0 0
      %6489 = vmatmul.mubr.bf16.gmra.mxu0 %v6059
      %v6490 = vpop.f32.mrf.mxu0
      %v6491 = vadd.f32 %v5692, %v6490
      %v6492 = vpop.f32.mrf.mxu0
      %v6493 = vadd.f32 %v5696, %v6492
      %v6494 = vpop.f32.mrf.mxu0
      %v6495 = vadd.f32 %v5692, %v6494
      %v6496 = vpop.f32.mrf.mxu0
      %v6497 = vadd.f32 %v5696, %v6496
      %6498 = vdwg.mxu0
      %6499 = vmatprep.subr.bf16.mxu0 0
      %6500 = vmatpush1.bf16.msra.mxu0 0
      %6501 = vmatprep.subr.bf16.mxu0 0
      %6502 = vmatpush1.bf16.msra.mxu0 0
      %6503 = vmatprep.subr.bf16.mxu0 0
      %6504 = vmatpush1.bf16.msra.mxu0 0
      %6505 = vmatprep.subr.bf16.mxu0 0
      %6506 = vmatpush1.bf16.msra.mxu0 0
      %6507 = vmatprep.subr.bf16.mxu0 %v5982
      %6508 = vmatpush1.bf16.msra.mxu0 %v5981
      %6509 = vmatprep.subr.bf16.mxu0 %v5966
      %6510 = vmatpush1.bf16.msra.mxu0 %v5965
      %6511 = vmatprep.subr.bf16.mxu0 %v5950
      %6512 = vmatpush1.bf16.msra.mxu0 %v5949
      %6513 = vmatprep.subr.bf16.mxu0 %v5934
      %6514 = vmatpush1.bf16.msra.mxu0 %v5933
      %6515 = vmatprep.subr.bf16.mxu0 0
      %6516 = vmatpush2.bf16.msra.mxu0 0
      %6517 = vmatprep.subr.bf16.mxu0 0
      %6518 = vmatpush2.bf16.msra.mxu0 0
      %6519 = vmatprep.subr.bf16.mxu0 0
      %6520 = vmatpush2.bf16.msra.mxu0 0
      %6521 = vmatprep.subr.bf16.mxu0 0
      %6522 = vmatpush2.bf16.msra.mxu0 0
      %6523 = vmatprep.subr.bf16.mxu0 0
      %6524 = vmatpush2.bf16.msra.mxu0 0
      %6525 = vmatprep.subr.bf16.mxu0 0
      %6526 = vmatpush2.bf16.msra.mxu0 0
      %6527 = vmatprep.subr.bf16.mxu0 0
      %6528 = vmatpush2.bf16.msra.mxu0 0
      %6529 = vmatprep.subr.bf16.mxu0 0
      %6530 = vmatpush2.bf16.msra.mxu0 0
      %6531 = vmatprep.mubr.bf16.mxu0 0
      %6532 = vmatmul.mubr.bf16.gmra.mxu0 %v6050
      %v6533 = vpop.f32.mrf.mxu0
      %v6534 = vadd.f32 %v5700, %v6533
      %v6535 = vpop.f32.mrf.mxu0
      %v6536 = vadd.f32 %v5704, %v6535
      %v6537 = vpop.f32.mrf.mxu0
      %v6538 = vadd.f32 %v5700, %v6537
      %v6539 = vpop.f32.mrf.mxu0
      %v6540 = vadd.f32 %v5704, %v6539
      %6541 = vmatprep.mubr.bf16.mxu0 0
      %6542 = vmatmul.mubr.bf16.gmra.mxu0 %v6053
      %v6543 = vpop.f32.mrf.mxu0
      %v6544 = vadd.f32 %v5700, %v6543
      %v6545 = vpop.f32.mrf.mxu0
      %v6546 = vadd.f32 %v5704, %v6545
      %v6547 = vpop.f32.mrf.mxu0
      %v6548 = vadd.f32 %v5700, %v6547
      %v6549 = vpop.f32.mrf.mxu0
      %v6550 = vadd.f32 %v5704, %v6549
      %6551 = vmatprep.mubr.bf16.mxu0 0
      %6552 = vmatmul.mubr.bf16.gmra.mxu0 %v6056
      %v6553 = vpop.f32.mrf.mxu0
      %v6554 = vadd.f32 %v5700, %v6553
      %v6555 = vpop.f32.mrf.mxu0
      %v6556 = vadd.f32 %v5704, %v6555
      %v6557 = vpop.f32.mrf.mxu0
      %v6558 = vadd.f32 %v5700, %v6557
      %v6559 = vpop.f32.mrf.mxu0
      %v6560 = vadd.f32 %v5704, %v6559
      %6561 = vmatprep.mubr.bf16.mxu0 0
      %6562 = vmatmul.mubr.bf16.gmra.mxu0 %v6059
      %v6563 = vpop.f32.mrf.mxu0
      %v6564 = vadd.f32 %v5700, %v6563
      %v6565 = vpop.f32.mrf.mxu0
      %v6566 = vadd.f32 %v5704, %v6565
      %v6567 = vpop.f32.mrf.mxu0
      %v6568 = vadd.f32 %v5700, %v6567
      %v6569 = vpop.f32.mrf.mxu0
      %v6570 = vadd.f32 %v5704, %v6569
      %6571 = vdwg.mxu0
      %6572 = vmatprep.subr.bf16.mxu0 0
      %6573 = vmatpush1.bf16.msra.mxu0 0
      %6574 = vmatprep.subr.bf16.mxu0 0
      %6575 = vmatpush1.bf16.msra.mxu0 0
      %6576 = vmatprep.subr.bf16.mxu0 0
      %6577 = vmatpush1.bf16.msra.mxu0 0
      %6578 = vmatprep.subr.bf16.mxu0 0
      %6579 = vmatpush1.bf16.msra.mxu0 0
      %6580 = vmatprep.subr.bf16.mxu0 %v5984
      %6581 = vmatpush1.bf16.msra.mxu0 %v5983
      %6582 = vmatprep.subr.bf16.mxu0 %v5968
      %6583 = vmatpush1.bf16.msra.mxu0 %v5967
      %6584 = vmatprep.subr.bf16.mxu0 %v5952
      %6585 = vmatpush1.bf16.msra.mxu0 %v5951
      %6586 = vmatprep.subr.bf16.mxu0 %v5936
      %6587 = vmatpush1.bf16.msra.mxu0 %v5935
      %6588 = vmatprep.subr.bf16.mxu0 0
      %6589 = vmatpush2.bf16.msra.mxu0 0
      %6590 = vmatprep.subr.bf16.mxu0 0
      %6591 = vmatpush2.bf16.msra.mxu0 0
      %6592 = vmatprep.subr.bf16.mxu0 0
      %6593 = vmatpush2.bf16.msra.mxu0 0
      %6594 = vmatprep.subr.bf16.mxu0 0
      %6595 = vmatpush2.bf16.msra.mxu0 0
      %6596 = vmatprep.subr.bf16.mxu0 0
      %6597 = vmatpush2.bf16.msra.mxu0 0
      %6598 = vmatprep.subr.bf16.mxu0 0
      %6599 = vmatpush2.bf16.msra.mxu0 0
      %6600 = vmatprep.subr.bf16.mxu0 0
      %6601 = vmatpush2.bf16.msra.mxu0 0
      %6602 = vmatprep.subr.bf16.mxu0 0
      %6603 = vmatpush2.bf16.msra.mxu0 0
      %6604 = vmatprep.mubr.bf16.mxu0 0
      %6605 = vmatmul.mubr.bf16.gmra.mxu0 %v6050
      %v6606 = vpop.f32.mrf.mxu0
      %v6607 = vadd.f32 %v5708, %v6606
      %v6608 = vpop.f32.mrf.mxu0
      %v6609 = vadd.f32 %v5712, %v6608
      %v6610 = vpop.f32.mrf.mxu0
      %v6611 = vadd.f32 %v5708, %v6610
      %v6612 = vpop.f32.mrf.mxu0
      %v6613 = vadd.f32 %v5712, %v6612
      %6614 = vmatprep.mubr.bf16.mxu0 0
      %6615 = vmatmul.mubr.bf16.gmra.mxu0 %v6053
      %v6616 = vpop.f32.mrf.mxu0
      %v6617 = vadd.f32 %v5708, %v6616
      %v6618 = vpop.f32.mrf.mxu0
      %v6619 = vadd.f32 %v5712, %v6618
      %v6620 = vpop.f32.mrf.mxu0
      %v6621 = vadd.f32 %v5708, %v6620
      %v6622 = vpop.f32.mrf.mxu0
      %v6623 = vadd.f32 %v5712, %v6622
      %6624 = vmatprep.mubr.bf16.mxu0 0
      %6625 = vmatmul.mubr.bf16.gmra.mxu0 %v6056
      %v6626 = vpop.f32.mrf.mxu0
      %v6627 = vadd.f32 %v5708, %v6626
      %v6628 = vpop.f32.mrf.mxu0
      %v6629 = vadd.f32 %v5712, %v6628
      %v6630 = vpop.f32.mrf.mxu0
      %v6631 = vadd.f32 %v5708, %v6630
      %v6632 = vpop.f32.mrf.mxu0
      %v6633 = vadd.f32 %v5712, %v6632
      %6634 = vmatprep.mubr.bf16.mxu0 0
      %6635 = vmatmul.mubr.bf16.gmra.mxu0 %v6059
      %v6636 = vpop.f32.mrf.mxu0
      %v6637 = vadd.f32 %v5708, %v6636
      %v6638 = vpop.f32.mrf.mxu0
      %v6639 = vadd.f32 %v5712, %v6638
      %v6640 = vpop.f32.mrf.mxu0
      %v6641 = vadd.f32 %v5708, %v6640
      %v6642 = vpop.f32.mrf.mxu0
      %v6643 = vadd.f32 %v5712, %v6642
      %6644 = vdwg.mxu0
      %v6645 = vmax.f32 %v6096, 0.0
      %v6646 = vmax.f32 %v6098, 0.0
      %v6647 = vmax.f32 %v6169, 0.0
      %v6648 = vmax.f32 %v6171, 0.0
      %v6649 = vmax.f32 %v6242, 0.0
      %v6650 = vmax.f32 %v6244, 0.0
      %v6651 = vmax.f32 %v6315, 0.0
      %v6652 = vmax.f32 %v6317, 0.0
      %v6653 = vmax.f32 %v6388, 0.0
      %v6654 = vmax.f32 %v6390, 0.0
      %v6655 = vmax.f32 %v6461, 0.0
      %v6656 = vmax.f32 %v6463, 0.0
      %v6657 = vmax.f32 %v6534, 0.0
      %v6658 = vmax.f32 %v6536, 0.0
      %v6659 = vmax.f32 %v6607, 0.0
      %v6660 = vmax.f32 %v6609, 0.0
      %v6661 = vmax.f32 %v6100, 0.0
      %v6662 = vmax.f32 %v6102, 0.0
      %v6663 = vmax.f32 %v6173, 0.0
      %v6664 = vmax.f32 %v6175, 0.0
      %v6665 = vmax.f32 %v6246, 0.0
      %v6666 = vmax.f32 %v6248, 0.0
      %v6667 = vmax.f32 %v6319, 0.0
      %v6668 = vmax.f32 %v6321, 0.0
      %v6669 = vmax.f32 %v6392, 0.0
      %v6670 = vmax.f32 %v6394, 0.0
      %v6671 = vmax.f32 %v6465, 0.0
      %v6672 = vmax.f32 %v6467, 0.0
      %v6673 = vmax.f32 %v6538, 0.0
      %v6674 = vmax.f32 %v6540, 0.0
      %v6675 = vmax.f32 %v6611, 0.0
      %v6676 = vmax.f32 %v6613, 0.0
      %v6677 = vmax.f32 %v6106, 0.0
      %v6678 = vmax.f32 %v6108, 0.0
      %v6679 = vmax.f32 %v6179, 0.0
      %v6680 = vmax.f32 %v6181, 0.0
      %v6681 = vmax.f32 %v6252, 0.0
      %v6682 = vmax.f32 %v6254, 0.0
      %v6683 = vmax.f32 %v6325, 0.0
      %v6684 = vmax.f32 %v6327, 0.0
      %v6685 = vmax.f32 %v6398, 0.0
      %v6686 = vmax.f32 %v6400, 0.0
      %v6687 = vmax.f32 %v6471, 0.0
      %v6688 = vmax.f32 %v6473, 0.0
      %v6689 = vmax.f32 %v6544, 0.0
      %v6690 = vmax.f32 %v6546, 0.0
      %v6691 = vmax.f32 %v6617, 0.0
      %v6692 = vmax.f32 %v6619, 0.0
      %v6693 = vmax.f32 %v6110, 0.0
      %v6694 = vmax.f32 %v6112, 0.0
      %v6695 = vmax.f32 %v6183, 0.0
      %v6696 = vmax.f32 %v6185, 0.0
      %v6697 = vmax.f32 %v6256, 0.0
      %v6698 = vmax.f32 %v6258, 0.0
      %v6699 = vmax.f32 %v6329, 0.0
      %v6700 = vmax.f32 %v6331, 0.0
      %v6701 = vmax.f32 %v6402, 0.0
      %v6702 = vmax.f32 %v6404, 0.0
      %v6703 = vmax.f32 %v6475, 0.0
      %v6704 = vmax.f32 %v6477, 0.0
      %v6705 = vmax.f32 %v6548, 0.0
      %v6706 = vmax.f32 %v6550, 0.0
      %v6707 = vmax.f32 %v6621, 0.0
      %v6708 = vmax.f32 %v6623, 0.0
      %v6709 = vmax.f32 %v6116, 0.0
      %v6710 = vmax.f32 %v6118, 0.0
      %v6711 = vmax.f32 %v6189, 0.0
      %v6712 = vmax.f32 %v6191, 0.0
      %v6713 = vmax.f32 %v6262, 0.0
      %v6714 = vmax.f32 %v6264, 0.0
      %v6715 = vmax.f32 %v6335, 0.0
      %v6716 = vmax.f32 %v6337, 0.0
      %v6717 = vmax.f32 %v6408, 0.0
      %v6718 = vmax.f32 %v6410, 0.0
      %v6719 = vmax.f32 %v6481, 0.0
      %v6720 = vmax.f32 %v6483, 0.0
      %v6721 = vmax.f32 %v6554, 0.0
      %v6722 = vmax.f32 %v6556, 0.0
      %v6723 = vmax.f32 %v6627, 0.0
      %v6724 = vmax.f32 %v6629, 0.0
      %v6725 = vmax.f32 %v6120, 0.0
      %v6726 = vmax.f32 %v6122, 0.0
      %v6727 = vmax.f32 %v6193, 0.0
      %v6728 = vmax.f32 %v6195, 0.0
      %v6729 = vmax.f32 %v6266, 0.0
      %v6730 = vmax.f32 %v6268, 0.0
      %v6731 = vmax.f32 %v6339, 0.0
      %v6732 = vmax.f32 %v6341, 0.0
      %v6733 = vmax.f32 %v6412, 0.0
      %v6734 = vmax.f32 %v6414, 0.0
      %v6735 = vmax.f32 %v6485, 0.0
      %v6736 = vmax.f32 %v6487, 0.0
      %v6737 = vmax.f32 %v6558, 0.0
      %v6738 = vmax.f32 %v6560, 0.0
      %v6739 = vmax.f32 %v6631, 0.0
      %v6740 = vmax.f32 %v6633, 0.0
      %v6741 = vmax.f32 %v6126, 0.0
      %v6742 = vmax.f32 %v6128, 0.0
      %v6743 = vmax.f32 %v6199, 0.0
      %v6744 = vmax.f32 %v6201, 0.0
      %v6745 = vmax.f32 %v6272, 0.0
      %v6746 = vmax.f32 %v6274, 0.0
      %v6747 = vmax.f32 %v6345, 0.0
      %v6748 = vmax.f32 %v6347, 0.0
      %v6749 = vmax.f32 %v6418, 0.0
      %v6750 = vmax.f32 %v6420, 0.0
      %v6751 = vmax.f32 %v6491, 0.0
      %v6752 = vmax.f32 %v6493, 0.0
      %v6753 = vmax.f32 %v6564, 0.0
      %v6754 = vmax.f32 %v6566, 0.0
      %v6755 = vmax.f32 %v6637, 0.0
      %v6756 = vmax.f32 %v6639, 0.0
      %v6757 = vmax.f32 %v6130, 0.0
      %v6758 = vmax.f32 %v6132, 0.0
      %v6759 = vmax.f32 %v6203, 0.0
      %v6760 = vmax.f32 %v6205, 0.0
      %v6761 = vmax.f32 %v6276, 0.0
      %v6762 = vmax.f32 %v6278, 0.0
      %v6763 = vmax.f32 %v6349, 0.0
      %v6764 = vmax.f32 %v6351, 0.0
      %v6765 = vmax.f32 %v6422, 0.0
      %v6766 = vmax.f32 %v6424, 0.0
      %v6767 = vmax.f32 %v6495, 0.0
      %v6768 = vmax.f32 %v6497, 0.0
      %v6769 = vmax.f32 %v6568, 0.0
      %v6770 = vmax.f32 %v6570, 0.0
      %v6771 = vmax.f32 %v6641, 0.0
      %v6772 = vmax.f32 %v6643, 0.0
      %v6773 = vpack.c.bf16 %v6661, %v6645
      %v6774 = vpack.c.bf16 %v6662, %v6646
      %v6775 = vpack.c.bf16 %v6663, %v6647
      %v6776 = vpack.c.bf16 %v6664, %v6648
      %v6777 = vpack.c.bf16 %v6665, %v6649
      %v6778 = vpack.c.bf16 %v6666, %v6650
      %v6779 = vpack.c.bf16 %v6667, %v6651
      %v6780 = vpack.c.bf16 %v6668, %v6652
      %v6781 = vpack.c.bf16 %v6669, %v6653
      %v6782 = vpack.c.bf16 %v6670, %v6654
      %v6783 = vpack.c.bf16 %v6671, %v6655
      %v6784 = vpack.c.bf16 %v6672, %v6656
      %v6785 = vpack.c.bf16 %v6673, %v6657
      %v6786 = vpack.c.bf16 %v6674, %v6658
      %v6787 = vpack.c.bf16 %v6675, %v6659
      %v6788 = vpack.c.bf16 %v6676, %v6660
      %v6789 = vpack.c.bf16 %v6693, %v6677
      %v6790 = vpack.c.bf16 %v6694, %v6678
      %v6791 = vpack.c.bf16 %v6695, %v6679
      %v6792 = vpack.c.bf16 %v6696, %v6680
      %v6793 = vpack.c.bf16 %v6697, %v6681
      %v6794 = vpack.c.bf16 %v6698, %v6682
      %v6795 = vpack.c.bf16 %v6699, %v6683
      %v6796 = vpack.c.bf16 %v6700, %v6684
      %v6797 = vpack.c.bf16 %v6701, %v6685
      %v6798 = vpack.c.bf16 %v6702, %v6686
      %v6799 = vpack.c.bf16 %v6703, %v6687
      %v6800 = vpack.c.bf16 %v6704, %v6688
      %v6801 = vpack.c.bf16 %v6705, %v6689
      %v6802 = vpack.c.bf16 %v6706, %v6690
      %v6803 = vpack.c.bf16 %v6707, %v6691
      %v6804 = vpack.c.bf16 %v6708, %v6692
      %v6805 = vpack.c.bf16 %v6725, %v6709
      %v6806 = vpack.c.bf16 %v6726, %v6710
      %v6807 = vpack.c.bf16 %v6727, %v6711
      %v6808 = vpack.c.bf16 %v6728, %v6712
      %v6809 = vpack.c.bf16 %v6729, %v6713
      %v6810 = vpack.c.bf16 %v6730, %v6714
      %v6811 = vpack.c.bf16 %v6731, %v6715
      %v6812 = vpack.c.bf16 %v6732, %v6716
      %v6813 = vpack.c.bf16 %v6733, %v6717
      %v6814 = vpack.c.bf16 %v6734, %v6718
      %v6815 = vpack.c.bf16 %v6735, %v6719
      %v6816 = vpack.c.bf16 %v6736, %v6720
      %v6817 = vpack.c.bf16 %v6737, %v6721
      %v6818 = vpack.c.bf16 %v6738, %v6722
      %v6819 = vpack.c.bf16 %v6739, %v6723
      %v6820 = vpack.c.bf16 %v6740, %v6724
      %v6821 = vpack.c.bf16 %v6757, %v6741
      %v6822 = vpack.c.bf16 %v6758, %v6742
      %v6823 = vpack.c.bf16 %v6759, %v6743
      %v6824 = vpack.c.bf16 %v6760, %v6744
      %v6825 = vpack.c.bf16 %v6761, %v6745
      %v6826 = vpack.c.bf16 %v6762, %v6746
      %v6827 = vpack.c.bf16 %v6763, %v6747
      %v6828 = vpack.c.bf16 %v6764, %v6748
      %v6829 = vpack.c.bf16 %v6765, %v6749
      %v6830 = vpack.c.bf16 %v6766, %v6750
      %v6831 = vpack.c.bf16 %v6767, %v6751
      %v6832 = vpack.c.bf16 %v6768, %v6752
      %v6833 = vpack.c.bf16 %v6769, %v6753
      %v6834 = vpack.c.bf16 %v6770, %v6754
      %v6835 = vpack.c.bf16 %v6771, %v6755
      %v6836 = vpack.c.bf16 %v6772, %v6756
      %s6837 = scalar_lea.vmem %s8, 1024
      %v6838 = vld [vmem:[%s6837] sm:$0xf]
      %v6839 = vld [vmem:[%s6837 + $0x4] sm:$0xf]
      %v6840 = vld [vmem:[%s6837 + $0x8] sm:$0xf]
      %v6841 = vld [vmem:[%s6837 + $0xc] sm:$0xf]
      %v6842 = vld [vmem:[%s6837 + $0x10] sm:$0xf]
      %v6843 = vld [vmem:[%s6837 + $0x14] sm:$0xf]
      %v6844 = vld [vmem:[%s6837 + $0x18] sm:$0xf]
      %v6845 = vld [vmem:[%s6837 + $0x1c] sm:$0xf]
      %v6846 = vld [vmem:[%s6837 + $0x20] sm:$0xf]
      %v6847 = vld [vmem:[%s6837 + $0x24] sm:$0xf]
      %v6848 = vld [vmem:[%s6837 + $0x28] sm:$0xf]
      %v6849 = vld [vmem:[%s6837 + $0x2c] sm:$0xf]
      %v6850 = vld [vmem:[%s6837 + $0x30] sm:$0xf]
      %v6851 = vld [vmem:[%s6837 + $0x34] sm:$0xf]
      %v6852 = vld [vmem:[%s6837 + $0x38] sm:$0xf]
      %v6853 = vld [vmem:[%s6837 + $0x3c] sm:$0xf]
      %v6854 = vld [vmem:[%s6837 + $0x40] sm:$0xf]
      %v6855 = vld [vmem:[%s6837 + $0x44] sm:$0xf]
      %v6856 = vld [vmem:[%s6837 + $0x48] sm:$0xf]
      %v6857 = vld [vmem:[%s6837 + $0x4c] sm:$0xf]
      %v6858 = vld [vmem:[%s6837 + $0x50] sm:$0xf]
      %v6859 = vld [vmem:[%s6837 + $0x54] sm:$0xf]
      %v6860 = vld [vmem:[%s6837 + $0x58] sm:$0xf]
      %v6861 = vld [vmem:[%s6837 + $0x5c] sm:$0xf]
      %v6862 = vld [vmem:[%s6837 + $0x60] sm:$0xf]
      %v6863 = vld [vmem:[%s6837 + $0x64] sm:$0xf]
      %v6864 = vld [vmem:[%s6837 + $0x68] sm:$0xf]
      %v6865 = vld [vmem:[%s6837 + $0x6c] sm:$0xf]
      %v6866 = vld [vmem:[%s6837 + $0x70] sm:$0xf]
      %v6867 = vld [vmem:[%s6837 + $0x74] sm:$0xf]
      %v6868 = vld [vmem:[%s6837 + $0x78] sm:$0xf]
      %v6869 = vld [vmem:[%s6837 + $0x7c] sm:$0xf]
      %v6870 = vld [vmem:[%s6837 + $0x80] sm:$0xf]
      %v6871 = vld [vmem:[%s6837 + $0x84] sm:$0xf]
      %v6872 = vld [vmem:[%s6837 + $0x88] sm:$0xf]
      %v6873 = vld [vmem:[%s6837 + $0x8c] sm:$0xf]
      %v6874 = vld [vmem:[%s6837 + $0x90] sm:$0xf]
      %v6875 = vld [vmem:[%s6837 + $0x94] sm:$0xf]
      %v6876 = vld [vmem:[%s6837 + $0x98] sm:$0xf]
      %v6877 = vld [vmem:[%s6837 + $0x9c] sm:$0xf]
      %v6878 = vld [vmem:[%s6837 + $0xa0] sm:$0xf]
      %v6879 = vld [vmem:[%s6837 + $0xa4] sm:$0xf]
      %v6880 = vld [vmem:[%s6837 + $0xa8] sm:$0xf]
      %v6881 = vld [vmem:[%s6837 + $0xac] sm:$0xf]
      %v6882 = vld [vmem:[%s6837 + $0xb0] sm:$0xf]
      %v6883 = vld [vmem:[%s6837 + $0xb4] sm:$0xf]
      %v6884 = vld [vmem:[%s6837 + $0xb8] sm:$0xf]
      %v6885 = vld [vmem:[%s6837 + $0xbc] sm:$0xf]
      %v6886 = vld [vmem:[%s6837 + $0xc0] sm:$0xf]
      %v6887 = vld [vmem:[%s6837 + $0xc4] sm:$0xf]
      %v6888 = vld [vmem:[%s6837 + $0xc8] sm:$0xf]
      %v6889 = vld [vmem:[%s6837 + $0xcc] sm:$0xf]
      %v6890 = vld [vmem:[%s6837 + $0xd0] sm:$0xf]
      %v6891 = vld [vmem:[%s6837 + $0xd4] sm:$0xf]
      %v6892 = vld [vmem:[%s6837 + $0xd8] sm:$0xf]
      %v6893 = vld [vmem:[%s6837 + $0xdc] sm:$0xf]
      %v6894 = vld [vmem:[%s6837 + $0xe0] sm:$0xf]
      %v6895 = vld [vmem:[%s6837 + $0xe4] sm:$0xf]
      %v6896 = vld [vmem:[%s6837 + $0xe8] sm:$0xf]
      %v6897 = vld [vmem:[%s6837 + $0xec] sm:$0xf]
      %v6898 = vld [vmem:[%s6837 + $0xf0] sm:$0xf]
      %v6899 = vld [vmem:[%s6837 + $0xf4] sm:$0xf]
      %v6900 = vld [vmem:[%s6837 + $0xf8] sm:$0xf]
      %v6901 = vld [vmem:[%s6837 + $0xfc] sm:$0xf]
      %v6902 = vld [vmem:[%s6837 + $0x100] sm:$0xf]
      %v6903 = vld [vmem:[%s6837 + $0x104] sm:$0xf]
      %v6904 = vld [vmem:[%s6837 + $0x108] sm:$0xf]
      %v6905 = vld [vmem:[%s6837 + $0x10c] sm:$0xf]
      %v6906 = vld [vmem:[%s6837 + $0x110] sm:$0xf]
      %v6907 = vld [vmem:[%s6837 + $0x114] sm:$0xf]
      %v6908 = vld [vmem:[%s6837 + $0x118] sm:$0xf]
      %v6909 = vld [vmem:[%s6837 + $0x11c] sm:$0xf]
      %v6910 = vld [vmem:[%s6837 + $0x120] sm:$0xf]
      %v6911 = vld [vmem:[%s6837 + $0x124] sm:$0xf]
      %v6912 = vld [vmem:[%s6837 + $0x128] sm:$0xf]
      %v6913 = vld [vmem:[%s6837 + $0x12c] sm:$0xf]
      %v6914 = vld [vmem:[%s6837 + $0x130] sm:$0xf]
      %v6915 = vld [vmem:[%s6837 + $0x134] sm:$0xf]
      %v6916 = vld [vmem:[%s6837 + $0x138] sm:$0xf]
      %v6917 = vld [vmem:[%s6837 + $0x13c] sm:$0xf]
      %v6918 = vld [vmem:[%s6837 + $0x140] sm:$0xf]
      %v6919 = vld [vmem:[%s6837 + $0x144] sm:$0xf]
      %v6920 = vld [vmem:[%s6837 + $0x148] sm:$0xf]
      %v6921 = vld [vmem:[%s6837 + $0x14c] sm:$0xf]
      %v6922 = vld [vmem:[%s6837 + $0x150] sm:$0xf]
      %v6923 = vld [vmem:[%s6837 + $0x154] sm:$0xf]
      %v6924 = vld [vmem:[%s6837 + $0x158] sm:$0xf]
      %v6925 = vld [vmem:[%s6837 + $0x15c] sm:$0xf]
      %v6926 = vld [vmem:[%s6837 + $0x160] sm:$0xf]
      %v6927 = vld [vmem:[%s6837 + $0x164] sm:$0xf]
      %v6928 = vld [vmem:[%s6837 + $0x168] sm:$0xf]
      %v6929 = vld [vmem:[%s6837 + $0x16c] sm:$0xf]
      %v6930 = vld [vmem:[%s6837 + $0x170] sm:$0xf]
      %v6931 = vld [vmem:[%s6837 + $0x174] sm:$0xf]
      %v6932 = vld [vmem:[%s6837 + $0x178] sm:$0xf]
      %v6933 = vld [vmem:[%s6837 + $0x17c] sm:$0xf]
      %v6934 = vld [vmem:[%s6837 + $0x180] sm:$0xf]
      %v6935 = vld [vmem:[%s6837 + $0x184] sm:$0xf]
      %v6936 = vld [vmem:[%s6837 + $0x188] sm:$0xf]
      %v6937 = vld [vmem:[%s6837 + $0x18c] sm:$0xf]
      %v6938 = vld [vmem:[%s6837 + $0x190] sm:$0xf]
      %v6939 = vld [vmem:[%s6837 + $0x194] sm:$0xf]
      %v6940 = vld [vmem:[%s6837 + $0x198] sm:$0xf]
      %v6941 = vld [vmem:[%s6837 + $0x19c] sm:$0xf]
      %v6942 = vld [vmem:[%s6837 + $0x1a0] sm:$0xf]
      %v6943 = vld [vmem:[%s6837 + $0x1a4] sm:$0xf]
      %v6944 = vld [vmem:[%s6837 + $0x1a8] sm:$0xf]
      %v6945 = vld [vmem:[%s6837 + $0x1ac] sm:$0xf]
      %v6946 = vld [vmem:[%s6837 + $0x1b0] sm:$0xf]
      %v6947 = vld [vmem:[%s6837 + $0x1b4] sm:$0xf]
      %v6948 = vld [vmem:[%s6837 + $0x1b8] sm:$0xf]
      %v6949 = vld [vmem:[%s6837 + $0x1bc] sm:$0xf]
      %v6950 = vld [vmem:[%s6837 + $0x1c0] sm:$0xf]
      %v6951 = vld [vmem:[%s6837 + $0x1c4] sm:$0xf]
      %v6952 = vld [vmem:[%s6837 + $0x1c8] sm:$0xf]
      %v6953 = vld [vmem:[%s6837 + $0x1cc] sm:$0xf]
      %v6954 = vld [vmem:[%s6837 + $0x1d0] sm:$0xf]
      %v6955 = vld [vmem:[%s6837 + $0x1d4] sm:$0xf]
      %v6956 = vld [vmem:[%s6837 + $0x1d8] sm:$0xf]
      %v6957 = vld [vmem:[%s6837 + $0x1dc] sm:$0xf]
      %v6958 = vld [vmem:[%s6837 + $0x1e0] sm:$0xf]
      %v6959 = vld [vmem:[%s6837 + $0x1e4] sm:$0xf]
      %v6960 = vld [vmem:[%s6837 + $0x1e8] sm:$0xf]
      %v6961 = vld [vmem:[%s6837 + $0x1ec] sm:$0xf]
      %v6962 = vld [vmem:[%s6837 + $0x1f0] sm:$0xf]
      %v6963 = vld [vmem:[%s6837 + $0x1f4] sm:$0xf]
      %v6964 = vld [vmem:[%s6837 + $0x1f8] sm:$0xf]
      %v6965 = vld [vmem:[%s6837 + $0x1fc] sm:$0xf]
      %v6966 = vld [vmem:[%s6837 + $0x200] sm:$0xf]
      %v6967 = vld [vmem:[%s6837 + $0x204] sm:$0xf]
      %v6968 = vld [vmem:[%s6837 + $0x208] sm:$0xf]
      %v6969 = vld [vmem:[%s6837 + $0x20c] sm:$0xf]
      %v6970 = vld [vmem:[%s6837 + $0x210] sm:$0xf]
      %v6971 = vld [vmem:[%s6837 + $0x214] sm:$0xf]
      %v6972 = vld [vmem:[%s6837 + $0x218] sm:$0xf]
      %v6973 = vld [vmem:[%s6837 + $0x21c] sm:$0xf]
      %v6974 = vld [vmem:[%s6837 + $0x220] sm:$0xf]
      %v6975 = vld [vmem:[%s6837 + $0x224] sm:$0xf]
      %v6976 = vld [vmem:[%s6837 + $0x228] sm:$0xf]
      %v6977 = vld [vmem:[%s6837 + $0x22c] sm:$0xf]
      %v6978 = vld [vmem:[%s6837 + $0x230] sm:$0xf]
      %v6979 = vld [vmem:[%s6837 + $0x234] sm:$0xf]
      %v6980 = vld [vmem:[%s6837 + $0x238] sm:$0xf]
      %v6981 = vld [vmem:[%s6837 + $0x23c] sm:$0xf]
      %v6982 = vld [vmem:[%s6837 + $0x240] sm:$0xf]
      %v6983 = vld [vmem:[%s6837 + $0x244] sm:$0xf]
      %v6984 = vld [vmem:[%s6837 + $0x248] sm:$0xf]
      %v6985 = vld [vmem:[%s6837 + $0x24c] sm:$0xf]
      %v6986 = vld [vmem:[%s6837 + $0x250] sm:$0xf]
      %v6987 = vld [vmem:[%s6837 + $0x254] sm:$0xf]
      %v6988 = vld [vmem:[%s6837 + $0x258] sm:$0xf]
      %v6989 = vld [vmem:[%s6837 + $0x25c] sm:$0xf]
      %v6990 = vld [vmem:[%s6837 + $0x260] sm:$0xf]
      %v6991 = vld [vmem:[%s6837 + $0x264] sm:$0xf]
      %v6992 = vld [vmem:[%s6837 + $0x268] sm:$0xf]
      %v6993 = vld [vmem:[%s6837 + $0x26c] sm:$0xf]
      %v6994 = vld [vmem:[%s6837 + $0x270] sm:$0xf]
      %v6995 = vld [vmem:[%s6837 + $0x274] sm:$0xf]
      %v6996 = vld [vmem:[%s6837 + $0x278] sm:$0xf]
      %v6997 = vld [vmem:[%s6837 + $0x27c] sm:$0xf]
      %v6998 = vld [vmem:[%s6837 + $0x280] sm:$0xf]
      %v6999 = vld [vmem:[%s6837 + $0x284] sm:$0xf]
      %v7000 = vld [vmem:[%s6837 + $0x288] sm:$0xf]
      %v7001 = vld [vmem:[%s6837 + $0x28c] sm:$0xf]
      %v7002 = vld [vmem:[%s6837 + $0x290] sm:$0xf]
      %v7003 = vld [vmem:[%s6837 + $0x294] sm:$0xf]
      %v7004 = vld [vmem:[%s6837 + $0x298] sm:$0xf]
      %v7005 = vld [vmem:[%s6837 + $0x29c] sm:$0xf]
      %v7006 = vld [vmem:[%s6837 + $0x2a0] sm:$0xf]
      %v7007 = vld [vmem:[%s6837 + $0x2a4] sm:$0xf]
      %v7008 = vld [vmem:[%s6837 + $0x2a8] sm:$0xf]
      %v7009 = vld [vmem:[%s6837 + $0x2ac] sm:$0xf]
      %v7010 = vld [vmem:[%s6837 + $0x2b0] sm:$0xf]
      %v7011 = vld [vmem:[%s6837 + $0x2b4] sm:$0xf]
      %v7012 = vld [vmem:[%s6837 + $0x2b8] sm:$0xf]
      %v7013 = vld [vmem:[%s6837 + $0x2bc] sm:$0xf]
      %v7014 = vld [vmem:[%s6837 + $0x2c0] sm:$0xf]
      %v7015 = vld [vmem:[%s6837 + $0x2c4] sm:$0xf]
      %v7016 = vld [vmem:[%s6837 + $0x2c8] sm:$0xf]
      %v7017 = vld [vmem:[%s6837 + $0x2cc] sm:$0xf]
      %v7018 = vld [vmem:[%s6837 + $0x2d0] sm:$0xf]
      %v7019 = vld [vmem:[%s6837 + $0x2d4] sm:$0xf]
      %v7020 = vld [vmem:[%s6837 + $0x2d8] sm:$0xf]
      %v7021 = vld [vmem:[%s6837 + $0x2dc] sm:$0xf]
      %v7022 = vld [vmem:[%s6837 + $0x2e0] sm:$0xf]
      %v7023 = vld [vmem:[%s6837 + $0x2e4] sm:$0xf]
      %v7024 = vld [vmem:[%s6837 + $0x2e8] sm:$0xf]
      %v7025 = vld [vmem:[%s6837 + $0x2ec] sm:$0xf]
      %v7026 = vld [vmem:[%s6837 + $0x2f0] sm:$0xf]
      %v7027 = vld [vmem:[%s6837 + $0x2f4] sm:$0xf]
      %v7028 = vld [vmem:[%s6837 + $0x2f8] sm:$0xf]
      %v7029 = vld [vmem:[%s6837 + $0x2fc] sm:$0xf]
      %v7030 = vld [vmem:[%s6837 + $0x300] sm:$0xf]
      %v7031 = vld [vmem:[%s6837 + $0x304] sm:$0xf]
      %v7032 = vld [vmem:[%s6837 + $0x308] sm:$0xf]
      %v7033 = vld [vmem:[%s6837 + $0x30c] sm:$0xf]
      %v7034 = vld [vmem:[%s6837 + $0x310] sm:$0xf]
      %v7035 = vld [vmem:[%s6837 + $0x314] sm:$0xf]
      %v7036 = vld [vmem:[%s6837 + $0x318] sm:$0xf]
      %v7037 = vld [vmem:[%s6837 + $0x31c] sm:$0xf]
      %v7038 = vld [vmem:[%s6837 + $0x320] sm:$0xf]
      %v7039 = vld [vmem:[%s6837 + $0x324] sm:$0xf]
      %v7040 = vld [vmem:[%s6837 + $0x328] sm:$0xf]
      %v7041 = vld [vmem:[%s6837 + $0x32c] sm:$0xf]
      %v7042 = vld [vmem:[%s6837 + $0x330] sm:$0xf]
      %v7043 = vld [vmem:[%s6837 + $0x334] sm:$0xf]
      %v7044 = vld [vmem:[%s6837 + $0x338] sm:$0xf]
      %v7045 = vld [vmem:[%s6837 + $0x33c] sm:$0xf]
      %v7046 = vld [vmem:[%s6837 + $0x340] sm:$0xf]
      %v7047 = vld [vmem:[%s6837 + $0x344] sm:$0xf]
      %v7048 = vld [vmem:[%s6837 + $0x348] sm:$0xf]
      %v7049 = vld [vmem:[%s6837 + $0x34c] sm:$0xf]
      %v7050 = vld [vmem:[%s6837 + $0x350] sm:$0xf]
      %v7051 = vld [vmem:[%s6837 + $0x354] sm:$0xf]
      %v7052 = vld [vmem:[%s6837 + $0x358] sm:$0xf]
      %v7053 = vld [vmem:[%s6837 + $0x35c] sm:$0xf]
      %v7054 = vld [vmem:[%s6837 + $0x360] sm:$0xf]
      %v7055 = vld [vmem:[%s6837 + $0x364] sm:$0xf]
      %v7056 = vld [vmem:[%s6837 + $0x368] sm:$0xf]
      %v7057 = vld [vmem:[%s6837 + $0x36c] sm:$0xf]
      %v7058 = vld [vmem:[%s6837 + $0x370] sm:$0xf]
      %v7059 = vld [vmem:[%s6837 + $0x374] sm:$0xf]
      %v7060 = vld [vmem:[%s6837 + $0x378] sm:$0xf]
      %v7061 = vld [vmem:[%s6837 + $0x37c] sm:$0xf]
      %v7062 = vld [vmem:[%s6837 + $0x380] sm:$0xf]
      %v7063 = vld [vmem:[%s6837 + $0x384] sm:$0xf]
      %v7064 = vld [vmem:[%s6837 + $0x388] sm:$0xf]
      %v7065 = vld [vmem:[%s6837 + $0x38c] sm:$0xf]
      %v7066 = vld [vmem:[%s6837 + $0x390] sm:$0xf]
      %v7067 = vld [vmem:[%s6837 + $0x394] sm:$0xf]
      %v7068 = vld [vmem:[%s6837 + $0x398] sm:$0xf]
      %v7069 = vld [vmem:[%s6837 + $0x39c] sm:$0xf]
      %v7070 = vld [vmem:[%s6837 + $0x3a0] sm:$0xf]
      %v7071 = vld [vmem:[%s6837 + $0x3a4] sm:$0xf]
      %v7072 = vld [vmem:[%s6837 + $0x3a8] sm:$0xf]
      %v7073 = vld [vmem:[%s6837 + $0x3ac] sm:$0xf]
      %v7074 = vld [vmem:[%s6837 + $0x3b0] sm:$0xf]
      %v7075 = vld [vmem:[%s6837 + $0x3b4] sm:$0xf]
      %v7076 = vld [vmem:[%s6837 + $0x3b8] sm:$0xf]
      %v7077 = vld [vmem:[%s6837 + $0x3bc] sm:$0xf]
      %v7078 = vld [vmem:[%s6837 + $0x3c0] sm:$0xf]
      %v7079 = vld [vmem:[%s6837 + $0x3c4] sm:$0xf]
      %v7080 = vld [vmem:[%s6837 + $0x3c8] sm:$0xf]
      %v7081 = vld [vmem:[%s6837 + $0x3cc] sm:$0xf]
      %v7082 = vld [vmem:[%s6837 + $0x3d0] sm:$0xf]
      %v7083 = vld [vmem:[%s6837 + $0x3d4] sm:$0xf]
      %v7084 = vld [vmem:[%s6837 + $0x3d8] sm:$0xf]
      %v7085 = vld [vmem:[%s6837 + $0x3dc] sm:$0xf]
      %v7086 = vld [vmem:[%s6837 + $0x3e0] sm:$0xf]
      %v7087 = vld [vmem:[%s6837 + $0x3e4] sm:$0xf]
      %v7088 = vld [vmem:[%s6837 + $0x3e8] sm:$0xf]
      %v7089 = vld [vmem:[%s6837 + $0x3ec] sm:$0xf]
      %v7090 = vld [vmem:[%s6837 + $0x3f0] sm:$0xf]
      %v7091 = vld [vmem:[%s6837 + $0x3f4] sm:$0xf]
      %v7092 = vld [vmem:[%s6837 + $0x3f8] sm:$0xf]
      %v7093 = vld [vmem:[%s6837 + $0x3fc] sm:$0xf]
      %v7094 = vlaneseq
      %v7095 = vshrl.u32 %v7094, 7
      %v7096 = vsub.s32 6, %v7095
      %v7097 = vrot.slane %v4633, %v7096
      %v7354 = vunpack.c.l.b16 %v6838
      %v7355 = vunpack.c.l.b16 %v6839
      %v7356 = vunpack.c.l.b16 %v6840
      %v7357 = vunpack.c.l.b16 %v6841
      %v7358 = vunpack.c.l.b16 %v6842
      %v7359 = vunpack.c.l.b16 %v6843
      %v7360 = vunpack.c.l.b16 %v6844
      %v7361 = vunpack.c.l.b16 %v6845
      %v7362 = vunpack.c.l.b16 %v6846
      %v7363 = vunpack.c.l.b16 %v6847
      %v7364 = vunpack.c.l.b16 %v6848
      %v7365 = vunpack.c.l.b16 %v6849
      %v7366 = vunpack.c.l.b16 %v6850
      %v7367 = vunpack.c.l.b16 %v6851
      %v7368 = vunpack.c.l.b16 %v6852
      %v7369 = vunpack.c.l.b16 %v6853
      %v7370 = vunpack.c.l.b16 %v6854
      %v7371 = vunpack.c.l.b16 %v6855
      %v7372 = vunpack.c.l.b16 %v6856
      %v7373 = vunpack.c.l.b16 %v6857
      %v7374 = vunpack.c.l.b16 %v6858
      %v7375 = vunpack.c.l.b16 %v6859
      %v7376 = vunpack.c.l.b16 %v6860
      %v7377 = vunpack.c.l.b16 %v6861
      %v7378 = vunpack.c.l.b16 %v6862
      %v7379 = vunpack.c.l.b16 %v6863
      %v7380 = vunpack.c.l.b16 %v6864
      %v7381 = vunpack.c.l.b16 %v6865
      %v7382 = vunpack.c.l.b16 %v6866
      %v7383 = vunpack.c.l.b16 %v6867
      %v7384 = vunpack.c.l.b16 %v6868
      %v7385 = vunpack.c.l.b16 %v6869
      %v7386 = vunpack.c.l.b16 %v6870
      %v7387 = vunpack.c.l.b16 %v6871
      %v7388 = vunpack.c.l.b16 %v6872
      %v7389 = vunpack.c.l.b16 %v6873
      %v7390 = vunpack.c.l.b16 %v6874
      %v7391 = vunpack.c.l.b16 %v6875
      %v7392 = vunpack.c.l.b16 %v6876
      %v7393 = vunpack.c.l.b16 %v6877
      %v7394 = vunpack.c.l.b16 %v6878
      %v7395 = vunpack.c.l.b16 %v6879
      %v7396 = vunpack.c.l.b16 %v6880
      %v7397 = vunpack.c.l.b16 %v6881
      %v7398 = vunpack.c.l.b16 %v6882
      %v7399 = vunpack.c.l.b16 %v6883
      %v7400 = vunpack.c.l.b16 %v6884
      %v7401 = vunpack.c.l.b16 %v6885
      %v7402 = vunpack.c.l.b16 %v6886
      %v7403 = vunpack.c.l.b16 %v6887
      %v7404 = vunpack.c.l.b16 %v6888
      %v7405 = vunpack.c.l.b16 %v6889
      %v7406 = vunpack.c.l.b16 %v6890
      %v7407 = vunpack.c.l.b16 %v6891
      %v7408 = vunpack.c.l.b16 %v6892
      %v7409 = vunpack.c.l.b16 %v6893
      %v7410 = vunpack.c.l.b16 %v6894
      %v7411 = vunpack.c.l.b16 %v6895
      %v7412 = vunpack.c.l.b16 %v6896
      %v7413 = vunpack.c.l.b16 %v6897
      %v7414 = vunpack.c.l.b16 %v6898
      %v7415 = vunpack.c.l.b16 %v6899
      %v7416 = vunpack.c.l.b16 %v6900
      %v7417 = vunpack.c.l.b16 %v6901
      %v7418 = vunpack.c.l.b16 %v6902
      %v7419 = vunpack.c.l.b16 %v6903
      %v7420 = vunpack.c.l.b16 %v6904
      %v7421 = vunpack.c.l.b16 %v6905
      %v7422 = vunpack.c.l.b16 %v6906
      %v7423 = vunpack.c.l.b16 %v6907
      %v7424 = vunpack.c.l.b16 %v6908
      %v7425 = vunpack.c.l.b16 %v6909
      %v7426 = vunpack.c.l.b16 %v6910
      %v7427 = vunpack.c.l.b16 %v6911
      %v7428 = vunpack.c.l.b16 %v6912
      %v7429 = vunpack.c.l.b16 %v6913
      %v7430 = vunpack.c.l.b16 %v6914
      %v7431 = vunpack.c.l.b16 %v6915
      %v7432 = vunpack.c.l.b16 %v6916
      %v7433 = vunpack.c.l.b16 %v6917
      %v7434 = vunpack.c.l.b16 %v6918
      %v7435 = vunpack.c.l.b16 %v6919
      %v7436 = vunpack.c.l.b16 %v6920
      %v7437 = vunpack.c.l.b16 %v6921
      %v7438 = vunpack.c.l.b16 %v6922
      %v7439 = vunpack.c.l.b16 %v6923
      %v7440 = vunpack.c.l.b16 %v6924
      %v7441 = vunpack.c.l.b16 %v6925
      %v7442 = vunpack.c.l.b16 %v6926
      %v7443 = vunpack.c.l.b16 %v6927
      %v7444 = vunpack.c.l.b16 %v6928
      %v7445 = vunpack.c.l.b16 %v6929
      %v7446 = vunpack.c.l.b16 %v6930
      %v7447 = vunpack.c.l.b16 %v6931
      %v7448 = vunpack.c.l.b16 %v6932
      %v7449 = vunpack.c.l.b16 %v6933
      %v7450 = vunpack.c.l.b16 %v6934
      %v7451 = vunpack.c.l.b16 %v6935
      %v7452 = vunpack.c.l.b16 %v6936
      %v7453 = vunpack.c.l.b16 %v6937
      %v7454 = vunpack.c.l.b16 %v6938
      %v7455 = vunpack.c.l.b16 %v6939
      %v7456 = vunpack.c.l.b16 %v6940
      %v7457 = vunpack.c.l.b16 %v6941
      %v7458 = vunpack.c.l.b16 %v6942
      %v7459 = vunpack.c.l.b16 %v6943
      %v7460 = vunpack.c.l.b16 %v6944
      %v7461 = vunpack.c.l.b16 %v6945
      %v7462 = vunpack.c.l.b16 %v6946
      %v7463 = vunpack.c.l.b16 %v6947
      %v7464 = vunpack.c.l.b16 %v6948
      %v7465 = vunpack.c.l.b16 %v6949
      %v7466 = vunpack.c.l.b16 %v6950
      %v7467 = vunpack.c.l.b16 %v6951
      %v7468 = vunpack.c.l.b16 %v6952
      %v7469 = vunpack.c.l.b16 %v6953
      %v7470 = vunpack.c.l.b16 %v6954
      %v7471 = vunpack.c.l.b16 %v6955
      %v7472 = vunpack.c.l.b16 %v6956
      %v7473 = vunpack.c.l.b16 %v6957
      %v7474 = vunpack.c.l.b16 %v6958
      %v7475 = vunpack.c.l.b16 %v6959
      %v7476 = vunpack.c.l.b16 %v6960
      %v7477 = vunpack.c.l.b16 %v6961
      %v7478 = vunpack.c.l.b16 %v6962
      %v7479 = vunpack.c.l.b16 %v6963
      %v7480 = vunpack.c.l.b16 %v6964
      %v7481 = vunpack.c.l.b16 %v6965
      %v7482 = vunpack.c.l.b16 %v6966
      %v7483 = vunpack.c.l.b16 %v6967
      %v7484 = vunpack.c.l.b16 %v6968
      %v7485 = vunpack.c.l.b16 %v6969
      %v7486 = vunpack.c.l.b16 %v6970
      %v7487 = vunpack.c.l.b16 %v6971
      %v7488 = vunpack.c.l.b16 %v6972
      %v7489 = vunpack.c.l.b16 %v6973
      %v7490 = vunpack.c.l.b16 %v6974
      %v7491 = vunpack.c.l.b16 %v6975
      %v7492 = vunpack.c.l.b16 %v6976
      %v7493 = vunpack.c.l.b16 %v6977
      %v7494 = vunpack.c.l.b16 %v6978
      %v7495 = vunpack.c.l.b16 %v6979
      %v7496 = vunpack.c.l.b16 %v6980
      %v7497 = vunpack.c.l.b16 %v6981
      %v7498 = vunpack.c.l.b16 %v6982
      %v7499 = vunpack.c.l.b16 %v6983
      %v7500 = vunpack.c.l.b16 %v6984
      %v7501 = vunpack.c.l.b16 %v6985
      %v7502 = vunpack.c.l.b16 %v6986
      %v7503 = vunpack.c.l.b16 %v6987
      %v7504 = vunpack.c.l.b16 %v6988
      %v7505 = vunpack.c.l.b16 %v6989
      %v7506 = vunpack.c.l.b16 %v6990
      %v7507 = vunpack.c.l.b16 %v6991
      %v7508 = vunpack.c.l.b16 %v6992
      %v7509 = vunpack.c.l.b16 %v6993
      %v7510 = vunpack.c.l.b16 %v6994
      %v7511 = vunpack.c.l.b16 %v6995
      %v7512 = vunpack.c.l.b16 %v6996
      %v7513 = vunpack.c.l.b16 %v6997
      %v7514 = vunpack.c.l.b16 %v6998
      %v7515 = vunpack.c.l.b16 %v6999
      %v7516 = vunpack.c.l.b16 %v7000
      %v7517 = vunpack.c.l.b16 %v7001
      %v7518 = vunpack.c.l.b16 %v7002
      %v7519 = vunpack.c.l.b16 %v7003
      %v7520 = vunpack.c.l.b16 %v7004
      %v7521 = vunpack.c.l.b16 %v7005
      %v7522 = vunpack.c.l.b16 %v7006
      %v7523 = vunpack.c.l.b16 %v7007
      %v7524 = vunpack.c.l.b16 %v7008
      %v7525 = vunpack.c.l.b16 %v7009
      %v7526 = vunpack.c.l.b16 %v7010
      %v7527 = vunpack.c.l.b16 %v7011
      %v7528 = vunpack.c.l.b16 %v7012
      %v7529 = vunpack.c.l.b16 %v7013
      %v7530 = vunpack.c.l.b16 %v7014
      %v7531 = vunpack.c.l.b16 %v7015
      %v7532 = vunpack.c.l.b16 %v7016
      %v7533 = vunpack.c.l.b16 %v7017
      %v7534 = vunpack.c.l.b16 %v7018
      %v7535 = vunpack.c.l.b16 %v7019
      %v7536 = vunpack.c.l.b16 %v7020
      %v7537 = vunpack.c.l.b16 %v7021
      %v7538 = vunpack.c.l.b16 %v7022
      %v7539 = vunpack.c.l.b16 %v7023
      %v7540 = vunpack.c.l.b16 %v7024
      %v7541 = vunpack.c.l.b16 %v7025
      %v7542 = vunpack.c.l.b16 %v7026
      %v7543 = vunpack.c.l.b16 %v7027
      %v7544 = vunpack.c.l.b16 %v7028
      %v7545 = vunpack.c.l.b16 %v7029
      %v7546 = vunpack.c.l.b16 %v7030
      %v7547 = vunpack.c.l.b16 %v7031
      %v7548 = vunpack.c.l.b16 %v7032
      %v7549 = vunpack.c.l.b16 %v7033
      %v7550 = vunpack.c.l.b16 %v7034
      %v7551 = vunpack.c.l.b16 %v7035
      %v7552 = vunpack.c.l.b16 %v7036
      %v7553 = vunpack.c.l.b16 %v7037
      %v7554 = vunpack.c.l.b16 %v7038
      %v7555 = vunpack.c.l.b16 %v7039
      %v7556 = vunpack.c.l.b16 %v7040
      %v7557 = vunpack.c.l.b16 %v7041
      %v7558 = vunpack.c.l.b16 %v7042
      %v7559 = vunpack.c.l.b16 %v7043
      %v7560 = vunpack.c.l.b16 %v7044
      %v7561 = vunpack.c.l.b16 %v7045
      %v7562 = vunpack.c.l.b16 %v7046
      %v7563 = vunpack.c.l.b16 %v7047
      %v7564 = vunpack.c.l.b16 %v7048
      %v7565 = vunpack.c.l.b16 %v7049
      %v7566 = vunpack.c.l.b16 %v7050
      %v7567 = vunpack.c.l.b16 %v7051
      %v7568 = vunpack.c.l.b16 %v7052
      %v7569 = vunpack.c.l.b16 %v7053
      %v7570 = vunpack.c.l.b16 %v7054
      %v7571 = vunpack.c.l.b16 %v7055
      %v7572 = vunpack.c.l.b16 %v7056
      %v7573 = vunpack.c.l.b16 %v7057
      %v7574 = vunpack.c.l.b16 %v7058
      %v7575 = vunpack.c.l.b16 %v7059
      %v7576 = vunpack.c.l.b16 %v7060
      %v7577 = vunpack.c.l.b16 %v7061
      %v7578 = vunpack.c.l.b16 %v7062
      %v7579 = vunpack.c.l.b16 %v7063
      %v7580 = vunpack.c.l.b16 %v7064
      %v7581 = vunpack.c.l.b16 %v7065
      %v7582 = vunpack.c.l.b16 %v7066
      %v7583 = vunpack.c.l.b16 %v7067
      %v7584 = vunpack.c.l.b16 %v7068
      %v7585 = vunpack.c.l.b16 %v7069
      %v7586 = vunpack.c.l.b16 %v7070
      %v7587 = vunpack.c.l.b16 %v7071
      %v7588 = vunpack.c.l.b16 %v7072
      %v7589 = vunpack.c.l.b16 %v7073
      %v7590 = vunpack.c.l.b16 %v7074
      %v7591 = vunpack.c.l.b16 %v7075
      %v7592 = vunpack.c.l.b16 %v7076
      %v7593 = vunpack.c.l.b16 %v7077
      %v7594 = vunpack.c.l.b16 %v7078
      %v7595 = vunpack.c.l.b16 %v7079
      %v7596 = vunpack.c.l.b16 %v7080
      %v7597 = vunpack.c.l.b16 %v7081
      %v7598 = vunpack.c.l.b16 %v7082
      %v7599 = vunpack.c.l.b16 %v7083
      %v7600 = vunpack.c.l.b16 %v7084
      %v7601 = vunpack.c.l.b16 %v7085
      %v7602 = vunpack.c.l.b16 %v7086
      %v7603 = vunpack.c.l.b16 %v7087
      %v7604 = vunpack.c.l.b16 %v7088
      %v7605 = vunpack.c.l.b16 %v7089
      %v7606 = vunpack.c.l.b16 %v7090
      %v7607 = vunpack.c.l.b16 %v7091
      %v7608 = vunpack.c.l.b16 %v7092
      %v7609 = vunpack.c.l.b16 %v7093
      %v7610 = vpack.c.b16 %v7355, %v7354
      %v7611 = vpack.c.b16 %v7357, %v7356
      %v7612 = vpack.c.b16 %v7359, %v7358
      %v7613 = vpack.c.b16 %v7361, %v7360
      %v7614 = vpack.c.b16 %v7363, %v7362
      %v7615 = vpack.c.b16 %v7365, %v7364
      %v7616 = vpack.c.b16 %v7367, %v7366
      %v7617 = vpack.c.b16 %v7369, %v7368
      %v7618 = vpack.c.b16 %v7371, %v7370
      %v7619 = vpack.c.b16 %v7373, %v7372
      %v7620 = vpack.c.b16 %v7375, %v7374
      %v7621 = vpack.c.b16 %v7377, %v7376
      %v7622 = vpack.c.b16 %v7379, %v7378
      %v7623 = vpack.c.b16 %v7381, %v7380
      %v7624 = vpack.c.b16 %v7383, %v7382
      %v7625 = vpack.c.b16 %v7385, %v7384
      %v7626 = vpack.c.b16 %v7387, %v7386
      %v7627 = vpack.c.b16 %v7389, %v7388
      %v7628 = vpack.c.b16 %v7391, %v7390
      %v7629 = vpack.c.b16 %v7393, %v7392
      %v7630 = vpack.c.b16 %v7395, %v7394
      %v7631 = vpack.c.b16 %v7397, %v7396
      %v7632 = vpack.c.b16 %v7399, %v7398
      %v7633 = vpack.c.b16 %v7401, %v7400
      %v7634 = vpack.c.b16 %v7403, %v7402
      %v7635 = vpack.c.b16 %v7405, %v7404
      %v7636 = vpack.c.b16 %v7407, %v7406
      %v7637 = vpack.c.b16 %v7409, %v7408
      %v7638 = vpack.c.b16 %v7411, %v7410
      %v7639 = vpack.c.b16 %v7413, %v7412
      %v7640 = vpack.c.b16 %v7415, %v7414
      %v7641 = vpack.c.b16 %v7417, %v7416
      %v7642 = vpack.c.b16 %v7419, %v7418
      %v7643 = vpack.c.b16 %v7421, %v7420
      %v7644 = vpack.c.b16 %v7423, %v7422
      %v7645 = vpack.c.b16 %v7425, %v7424
      %v7646 = vpack.c.b16 %v7427, %v7426
      %v7647 = vpack.c.b16 %v7429, %v7428
      %v7648 = vpack.c.b16 %v7431, %v7430
      %v7649 = vpack.c.b16 %v7433, %v7432
      %v7650 = vpack.c.b16 %v7435, %v7434
      %v7651 = vpack.c.b16 %v7437, %v7436
      %v7652 = vpack.c.b16 %v7439, %v7438
      %v7653 = vpack.c.b16 %v7441, %v7440
      %v7654 = vpack.c.b16 %v7443, %v7442
      %v7655 = vpack.c.b16 %v7445, %v7444
      %v7656 = vpack.c.b16 %v7447, %v7446
      %v7657 = vpack.c.b16 %v7449, %v7448
      %v7658 = vpack.c.b16 %v7451, %v7450
      %v7659 = vpack.c.b16 %v7453, %v7452
      %v7660 = vpack.c.b16 %v7455, %v7454
      %v7661 = vpack.c.b16 %v7457, %v7456
      %v7662 = vpack.c.b16 %v7459, %v7458
      %v7663 = vpack.c.b16 %v7461, %v7460
      %v7664 = vpack.c.b16 %v7463, %v7462
      %v7665 = vpack.c.b16 %v7465, %v7464
      %v7666 = vpack.c.b16 %v7467, %v7466
      %v7667 = vpack.c.b16 %v7469, %v7468
      %v7668 = vpack.c.b16 %v7471, %v7470
      %v7669 = vpack.c.b16 %v7473, %v7472
      %v7670 = vpack.c.b16 %v7475, %v7474
      %v7671 = vpack.c.b16 %v7477, %v7476
      %v7672 = vpack.c.b16 %v7479, %v7478
      %v7673 = vpack.c.b16 %v7481, %v7480
      %v7674 = vpack.c.b16 %v7483, %v7482
      %v7675 = vpack.c.b16 %v7485, %v7484
      %v7676 = vpack.c.b16 %v7487, %v7486
      %v7677 = vpack.c.b16 %v7489, %v7488
      %v7678 = vpack.c.b16 %v7491, %v7490
      %v7679 = vpack.c.b16 %v7493, %v7492
      %v7680 = vpack.c.b16 %v7495, %v7494
      %v7681 = vpack.c.b16 %v7497, %v7496
      %v7682 = vpack.c.b16 %v7499, %v7498
      %v7683 = vpack.c.b16 %v7501, %v7500
      %v7684 = vpack.c.b16 %v7503, %v7502
      %v7685 = vpack.c.b16 %v7505, %v7504
      %v7686 = vpack.c.b16 %v7507, %v7506
      %v7687 = vpack.c.b16 %v7509, %v7508
      %v7688 = vpack.c.b16 %v7511, %v7510
      %v7689 = vpack.c.b16 %v7513, %v7512
      %v7690 = vpack.c.b16 %v7515, %v7514
      %v7691 = vpack.c.b16 %v7517, %v7516
      %v7692 = vpack.c.b16 %v7519, %v7518
      %v7693 = vpack.c.b16 %v7521, %v7520
      %v7694 = vpack.c.b16 %v7523, %v7522
      %v7695 = vpack.c.b16 %v7525, %v7524
      %v7696 = vpack.c.b16 %v7527, %v7526
      %v7697 = vpack.c.b16 %v7529, %v7528
      %v7698 = vpack.c.b16 %v7531, %v7530
      %v7699 = vpack.c.b16 %v7533, %v7532
      %v7700 = vpack.c.b16 %v7535, %v7534
      %v7701 = vpack.c.b16 %v7537, %v7536
      %v7702 = vpack.c.b16 %v7539, %v7538
      %v7703 = vpack.c.b16 %v7541, %v7540
      %v7704 = vpack.c.b16 %v7543, %v7542
      %v7705 = vpack.c.b16 %v7545, %v7544
      %v7706 = vpack.c.b16 %v7547, %v7546
      %v7707 = vpack.c.b16 %v7549, %v7548
      %v7708 = vpack.c.b16 %v7551, %v7550
      %v7709 = vpack.c.b16 %v7553, %v7552
      %v7710 = vpack.c.b16 %v7555, %v7554
      %v7711 = vpack.c.b16 %v7557, %v7556
      %v7712 = vpack.c.b16 %v7559, %v7558
      %v7713 = vpack.c.b16 %v7561, %v7560
      %v7714 = vpack.c.b16 %v7563, %v7562
      %v7715 = vpack.c.b16 %v7565, %v7564
      %v7716 = vpack.c.b16 %v7567, %v7566
      %v7717 = vpack.c.b16 %v7569, %v7568
      %v7718 = vpack.c.b16 %v7571, %v7570
      %v7719 = vpack.c.b16 %v7573, %v7572
      %v7720 = vpack.c.b16 %v7575, %v7574
      %v7721 = vpack.c.b16 %v7577, %v7576
      %v7722 = vpack.c.b16 %v7579, %v7578
      %v7723 = vpack.c.b16 %v7581, %v7580
      %v7724 = vpack.c.b16 %v7583, %v7582
      %v7725 = vpack.c.b16 %v7585, %v7584
      %v7726 = vpack.c.b16 %v7587, %v7586
      %v7727 = vpack.c.b16 %v7589, %v7588
      %v7728 = vpack.c.b16 %v7591, %v7590
      %v7729 = vpack.c.b16 %v7593, %v7592
      %v7730 = vpack.c.b16 %v7595, %v7594
      %v7731 = vpack.c.b16 %v7597, %v7596
      %v7732 = vpack.c.b16 %v7599, %v7598
      %v7733 = vpack.c.b16 %v7601, %v7600
      %v7734 = vpack.c.b16 %v7603, %v7602
      %v7735 = vpack.c.b16 %v7605, %v7604
      %v7736 = vpack.c.b16 %v7607, %v7606
      %v7737 = vpack.c.b16 %v7609, %v7608
      %7866 = vmatprep.subr.bf16.mxu0 0
      %7867 = vmatpush1.bf16.msra.mxu0 %v7617
      %7868 = vmatprep.subr.bf16.mxu0 0
      %7869 = vmatpush1.bf16.msra.mxu0 %v7616
      %7870 = vmatprep.subr.bf16.mxu0 0
      %7871 = vmatpush1.bf16.msra.mxu0 %v7615
      %7872 = vmatprep.subr.bf16.mxu0 0
      %7873 = vmatpush1.bf16.msra.mxu0 %v7614
      %7874 = vmatprep.subr.bf16.mxu0 0
      %7875 = vmatpush1.bf16.msra.mxu0 %v7613
      %7876 = vmatprep.subr.bf16.mxu0 0
      %7877 = vmatpush1.bf16.msra.mxu0 %v7612
      %7878 = vmatprep.subr.bf16.mxu0 0
      %7879 = vmatpush1.bf16.msra.mxu0 %v7611
      %7880 = vmatprep.subr.bf16.mxu0 0
      %7881 = vmatpush1.bf16.msra.mxu0 %v7610
      %7882 = vmatprep.subr.bf16.mxu0 0
      %7883 = vmatpush2.bf16.msra.mxu0 %v7625
      %7884 = vmatprep.subr.bf16.mxu0 0
      %7885 = vmatpush2.bf16.msra.mxu0 %v7624
      %7886 = vmatprep.subr.bf16.mxu0 0
      %7887 = vmatpush2.bf16.msra.mxu0 %v7623
      %7888 = vmatprep.subr.bf16.mxu0 0
      %7889 = vmatpush2.bf16.msra.mxu0 %v7622
      %7890 = vmatprep.subr.bf16.mxu0 0
      %7891 = vmatpush2.bf16.msra.mxu0 %v7621
      %7892 = vmatprep.subr.bf16.mxu0 0
      %7893 = vmatpush2.bf16.msra.mxu0 %v7620
      %7894 = vmatprep.subr.bf16.mxu0 0
      %7895 = vmatpush2.bf16.msra.mxu0 %v7619
      %7896 = vmatprep.subr.bf16.mxu0 0
      %7897 = vmatpush2.bf16.msra.mxu0 %v7618
      %7898 = vmatprep.mubr.bf16.mxu0 %v6774
      %7899 = vmatmul.mubr.bf16.gmra.mxu0 %v6773
      %v7900 = vpop.f32.mrf.mxu0
      %v7901 = vadd.f32 %v7097, %v7900
      %v7902 = vpop.f32.mrf.mxu0
      %v7903 = vpop.f32.mrf.mxu0
      %v7904 = vadd.f32 %v7097, %v7903
      %v7905 = vpop.f32.mrf.mxu0
      %7906 = vmatprep.mubr.bf16.mxu0 %v6790
      %7907 = vmatmul.mubr.bf16.gmra.mxu0 %v6789
      %v7908 = vpop.f32.mrf.mxu0
      %v7909 = vadd.f32 %v7097, %v7908
      %v7910 = vpop.f32.mrf.mxu0
      %v7911 = vpop.f32.mrf.mxu0
      %v7912 = vadd.f32 %v7097, %v7911
      %v7913 = vpop.f32.mrf.mxu0
      %7914 = vmatprep.mubr.bf16.mxu0 %v6806
      %7915 = vmatmul.mubr.bf16.gmra.mxu0 %v6805
      %v7916 = vpop.f32.mrf.mxu0
      %v7917 = vadd.f32 %v7097, %v7916
      %v7918 = vpop.f32.mrf.mxu0
      %v7919 = vpop.f32.mrf.mxu0
      %v7920 = vadd.f32 %v7097, %v7919
      %v7921 = vpop.f32.mrf.mxu0
      %7922 = vmatprep.mubr.bf16.mxu0 %v6822
      %7923 = vmatmul.mubr.bf16.gmra.mxu0 %v6821
      %v7924 = vpop.f32.mrf.mxu0
      %v7925 = vadd.f32 %v7097, %v7924
      %v7926 = vpop.f32.mrf.mxu0
      %v7927 = vpop.f32.mrf.mxu0
      %v7928 = vadd.f32 %v7097, %v7927
      %v7929 = vpop.f32.mrf.mxu0
      %7930 = vdwg.mxu0
      %7931 = vmatprep.subr.bf16.mxu0 0
      %7932 = vmatpush1.bf16.msra.mxu0 %v7633
      %7933 = vmatprep.subr.bf16.mxu0 0
      %7934 = vmatpush1.bf16.msra.mxu0 %v7632
      %7935 = vmatprep.subr.bf16.mxu0 0
      %7936 = vmatpush1.bf16.msra.mxu0 %v7631
      %7937 = vmatprep.subr.bf16.mxu0 0
      %7938 = vmatpush1.bf16.msra.mxu0 %v7630
      %7939 = vmatprep.subr.bf16.mxu0 0
      %7940 = vmatpush1.bf16.msra.mxu0 %v7629
      %7941 = vmatprep.subr.bf16.mxu0 0
      %7942 = vmatpush1.bf16.msra.mxu0 %v7628
      %7943 = vmatprep.subr.bf16.mxu0 0
      %7944 = vmatpush1.bf16.msra.mxu0 %v7627
      %7945 = vmatprep.subr.bf16.mxu0 0
      %7946 = vmatpush1.bf16.msra.mxu0 %v7626
      %7947 = vmatprep.subr.bf16.mxu0 0
      %7948 = vmatpush2.bf16.msra.mxu0 %v7641
      %7949 = vmatprep.subr.bf16.mxu0 0
      %7950 = vmatpush2.bf16.msra.mxu0 %v7640
      %7951 = vmatprep.subr.bf16.mxu0 0
      %7952 = vmatpush2.bf16.msra.mxu0 %v7639
      %7953 = vmatprep.subr.bf16.mxu0 0
      %7954 = vmatpush2.bf16.msra.mxu0 %v7638
      %7955 = vmatprep.subr.bf16.mxu0 0
      %7956 = vmatpush2.bf16.msra.mxu0 %v7637
      %7957 = vmatprep.subr.bf16.mxu0 0
      %7958 = vmatpush2.bf16.msra.mxu0 %v7636
      %7959 = vmatprep.subr.bf16.mxu0 0
      %7960 = vmatpush2.bf16.msra.mxu0 %v7635
      %7961 = vmatprep.subr.bf16.mxu0 0
      %7962 = vmatpush2.bf16.msra.mxu0 %v7634
      %7963 = vmatprep.mubr.bf16.mxu0 %v6776
      %7964 = vmatmul.mubr.bf16.gmra.mxu0 %v6775
      %v7965 = vpop.f32.mrf.mxu0
      %v7966 = vadd.f32 %v7901, %v7965
      %v7967 = vpop.f32.mrf.mxu0
      %v7968 = vpop.f32.mrf.mxu0
      %v7969 = vadd.f32 %v7904, %v7968
      %v7970 = vpop.f32.mrf.mxu0
      %7971 = vmatprep.mubr.bf16.mxu0 %v6792
      %7972 = vmatmul.mubr.bf16.gmra.mxu0 %v6791
      %v7973 = vpop.f32.mrf.mxu0
      %v7974 = vadd.f32 %v7909, %v7973
      %v7975 = vpop.f32.mrf.mxu0
      %v7976 = vpop.f32.mrf.mxu0
      %v7977 = vadd.f32 %v7912, %v7976
      %v7978 = vpop.f32.mrf.mxu0
      %7979 = vmatprep.mubr.bf16.mxu0 %v6808
      %7980 = vmatmul.mubr.bf16.gmra.mxu0 %v6807
      %v7981 = vpop.f32.mrf.mxu0
      %v7982 = vadd.f32 %v7917, %v7981
      %v7983 = vpop.f32.mrf.mxu0
      %v7984 = vpop.f32.mrf.mxu0
      %v7985 = vadd.f32 %v7920, %v7984
      %v7986 = vpop.f32.mrf.mxu0
      %7987 = vmatprep.mubr.bf16.mxu0 %v6824
      %7988 = vmatmul.mubr.bf16.gmra.mxu0 %v6823
      %v7989 = vpop.f32.mrf.mxu0
      %v7990 = vadd.f32 %v7925, %v7989
      %v7991 = vpop.f32.mrf.mxu0
      %v7992 = vpop.f32.mrf.mxu0
      %v7993 = vadd.f32 %v7928, %v7992
      %v7994 = vpop.f32.mrf.mxu0
      %7995 = vdwg.mxu0
      %7996 = vmatprep.subr.bf16.mxu0 0
      %7997 = vmatpush1.bf16.msra.mxu0 %v7649
      %7998 = vmatprep.subr.bf16.mxu0 0
      %7999 = vmatpush1.bf16.msra.mxu0 %v7648
      %8000 = vmatprep.subr.bf16.mxu0 0
      %8001 = vmatpush1.bf16.msra.mxu0 %v7647
      %8002 = vmatprep.subr.bf16.mxu0 0
      %8003 = vmatpush1.bf16.msra.mxu0 %v7646
      %8004 = vmatprep.subr.bf16.mxu0 0
      %8005 = vmatpush1.bf16.msra.mxu0 %v7645
      %8006 = vmatprep.subr.bf16.mxu0 0
      %8007 = vmatpush1.bf16.msra.mxu0 %v7644
      %8008 = vmatprep.subr.bf16.mxu0 0
      %8009 = vmatpush1.bf16.msra.mxu0 %v7643
      %8010 = vmatprep.subr.bf16.mxu0 0
      %8011 = vmatpush1.bf16.msra.mxu0 %v7642
      %8012 = vmatprep.subr.bf16.mxu0 0
      %8013 = vmatpush2.bf16.msra.mxu0 %v7657
      %8014 = vmatprep.subr.bf16.mxu0 0
      %8015 = vmatpush2.bf16.msra.mxu0 %v7656
      %8016 = vmatprep.subr.bf16.mxu0 0
      %8017 = vmatpush2.bf16.msra.mxu0 %v7655
      %8018 = vmatprep.subr.bf16.mxu0 0
      %8019 = vmatpush2.bf16.msra.mxu0 %v7654
      %8020 = vmatprep.subr.bf16.mxu0 0
      %8021 = vmatpush2.bf16.msra.mxu0 %v7653
      %8022 = vmatprep.subr.bf16.mxu0 0
      %8023 = vmatpush2.bf16.msra.mxu0 %v7652
      %8024 = vmatprep.subr.bf16.mxu0 0
      %8025 = vmatpush2.bf16.msra.mxu0 %v7651
      %8026 = vmatprep.subr.bf16.mxu0 0
      %8027 = vmatpush2.bf16.msra.mxu0 %v7650
      %8028 = vmatprep.mubr.bf16.mxu0 %v6778
      %8029 = vmatmul.mubr.bf16.gmra.mxu0 %v6777
      %v8030 = vpop.f32.mrf.mxu0
      %v8031 = vadd.f32 %v7966, %v8030
      %v8032 = vpop.f32.mrf.mxu0
      %v8033 = vpop.f32.mrf.mxu0
      %v8034 = vadd.f32 %v7969, %v8033
      %v8035 = vpop.f32.mrf.mxu0
      %8036 = vmatprep.mubr.bf16.mxu0 %v6794
      %8037 = vmatmul.mubr.bf16.gmra.mxu0 %v6793
      %v8038 = vpop.f32.mrf.mxu0
      %v8039 = vadd.f32 %v7974, %v8038
      %v8040 = vpop.f32.mrf.mxu0
      %v8041 = vpop.f32.mrf.mxu0
      %v8042 = vadd.f32 %v7977, %v8041
      %v8043 = vpop.f32.mrf.mxu0
      %8044 = vmatprep.mubr.bf16.mxu0 %v6810
      %8045 = vmatmul.mubr.bf16.gmra.mxu0 %v6809
      %v8046 = vpop.f32.mrf.mxu0
      %v8047 = vadd.f32 %v7982, %v8046
      %v8048 = vpop.f32.mrf.mxu0
      %v8049 = vpop.f32.mrf.mxu0
      %v8050 = vadd.f32 %v7985, %v8049
      %v8051 = vpop.f32.mrf.mxu0
      %8052 = vmatprep.mubr.bf16.mxu0 %v6826
      %8053 = vmatmul.mubr.bf16.gmra.mxu0 %v6825
      %v8054 = vpop.f32.mrf.mxu0
      %v8055 = vadd.f32 %v7990, %v8054
      %v8056 = vpop.f32.mrf.mxu0
      %v8057 = vpop.f32.mrf.mxu0
      %v8058 = vadd.f32 %v7993, %v8057
      %v8059 = vpop.f32.mrf.mxu0
      %8060 = vdwg.mxu0
      %8061 = vmatprep.subr.bf16.mxu0 0
      %8062 = vmatpush1.bf16.msra.mxu0 %v7665
      %8063 = vmatprep.subr.bf16.mxu0 0
      %8064 = vmatpush1.bf16.msra.mxu0 %v7664
      %8065 = vmatprep.subr.bf16.mxu0 0
      %8066 = vmatpush1.bf16.msra.mxu0 %v7663
      %8067 = vmatprep.subr.bf16.mxu0 0
      %8068 = vmatpush1.bf16.msra.mxu0 %v7662
      %8069 = vmatprep.subr.bf16.mxu0 0
      %8070 = vmatpush1.bf16.msra.mxu0 %v7661
      %8071 = vmatprep.subr.bf16.mxu0 0
      %8072 = vmatpush1.bf16.msra.mxu0 %v7660
      %8073 = vmatprep.subr.bf16.mxu0 0
      %8074 = vmatpush1.bf16.msra.mxu0 %v7659
      %8075 = vmatprep.subr.bf16.mxu0 0
      %8076 = vmatpush1.bf16.msra.mxu0 %v7658
      %8077 = vmatprep.subr.bf16.mxu0 0
      %8078 = vmatpush2.bf16.msra.mxu0 %v7673
      %8079 = vmatprep.subr.bf16.mxu0 0
      %8080 = vmatpush2.bf16.msra.mxu0 %v7672
      %8081 = vmatprep.subr.bf16.mxu0 0
      %8082 = vmatpush2.bf16.msra.mxu0 %v7671
      %8083 = vmatprep.subr.bf16.mxu0 0
      %8084 = vmatpush2.bf16.msra.mxu0 %v7670
      %8085 = vmatprep.subr.bf16.mxu0 0
      %8086 = vmatpush2.bf16.msra.mxu0 %v7669
      %8087 = vmatprep.subr.bf16.mxu0 0
      %8088 = vmatpush2.bf16.msra.mxu0 %v7668
      %8089 = vmatprep.subr.bf16.mxu0 0
      %8090 = vmatpush2.bf16.msra.mxu0 %v7667
      %8091 = vmatprep.subr.bf16.mxu0 0
      %8092 = vmatpush2.bf16.msra.mxu0 %v7666
      %8093 = vmatprep.mubr.bf16.mxu0 %v6780
      %8094 = vmatmul.mubr.bf16.gmra.mxu0 %v6779
      %v8095 = vpop.f32.mrf.mxu0
      %v8096 = vadd.f32 %v8031, %v8095
      %v8097 = vpop.f32.mrf.mxu0
      %v8098 = vpop.f32.mrf.mxu0
      %v8099 = vadd.f32 %v8034, %v8098
      %v8100 = vpop.f32.mrf.mxu0
      %8101 = vmatprep.mubr.bf16.mxu0 %v6796
      %8102 = vmatmul.mubr.bf16.gmra.mxu0 %v6795
      %v8103 = vpop.f32.mrf.mxu0
      %v8104 = vadd.f32 %v8039, %v8103
      %v8105 = vpop.f32.mrf.mxu0
      %v8106 = vpop.f32.mrf.mxu0
      %v8107 = vadd.f32 %v8042, %v8106
      %v8108 = vpop.f32.mrf.mxu0
      %8109 = vmatprep.mubr.bf16.mxu0 %v6812
      %8110 = vmatmul.mubr.bf16.gmra.mxu0 %v6811
      %v8111 = vpop.f32.mrf.mxu0
      %v8112 = vadd.f32 %v8047, %v8111
      %v8113 = vpop.f32.mrf.mxu0
      %v8114 = vpop.f32.mrf.mxu0
      %v8115 = vadd.f32 %v8050, %v8114
      %v8116 = vpop.f32.mrf.mxu0
      %8117 = vmatprep.mubr.bf16.mxu0 %v6828
      %8118 = vmatmul.mubr.bf16.gmra.mxu0 %v6827
      %v8119 = vpop.f32.mrf.mxu0
      %v8120 = vadd.f32 %v8055, %v8119
      %v8121 = vpop.f32.mrf.mxu0
      %v8122 = vpop.f32.mrf.mxu0
      %v8123 = vadd.f32 %v8058, %v8122
      %v8124 = vpop.f32.mrf.mxu0
      %8125 = vdwg.mxu0
      %8126 = vmatprep.subr.bf16.mxu0 0
      %8127 = vmatpush1.bf16.msra.mxu0 %v7681
      %8128 = vmatprep.subr.bf16.mxu0 0
      %8129 = vmatpush1.bf16.msra.mxu0 %v7680
      %8130 = vmatprep.subr.bf16.mxu0 0
      %8131 = vmatpush1.bf16.msra.mxu0 %v7679
      %8132 = vmatprep.subr.bf16.mxu0 0
      %8133 = vmatpush1.bf16.msra.mxu0 %v7678
      %8134 = vmatprep.subr.bf16.mxu0 0
      %8135 = vmatpush1.bf16.msra.mxu0 %v7677
      %8136 = vmatprep.subr.bf16.mxu0 0
      %8137 = vmatpush1.bf16.msra.mxu0 %v7676
      %8138 = vmatprep.subr.bf16.mxu0 0
      %8139 = vmatpush1.bf16.msra.mxu0 %v7675
      %8140 = vmatprep.subr.bf16.mxu0 0
      %8141 = vmatpush1.bf16.msra.mxu0 %v7674
      %8142 = vmatprep.subr.bf16.mxu0 0
      %8143 = vmatpush2.bf16.msra.mxu0 %v7689
      %8144 = vmatprep.subr.bf16.mxu0 0
      %8145 = vmatpush2.bf16.msra.mxu0 %v7688
      %8146 = vmatprep.subr.bf16.mxu0 0
      %8147 = vmatpush2.bf16.msra.mxu0 %v7687
      %8148 = vmatprep.subr.bf16.mxu0 0
      %8149 = vmatpush2.bf16.msra.mxu0 %v7686
      %8150 = vmatprep.subr.bf16.mxu0 0
      %8151 = vmatpush2.bf16.msra.mxu0 %v7685
      %8152 = vmatprep.subr.bf16.mxu0 0
      %8153 = vmatpush2.bf16.msra.mxu0 %v7684
      %8154 = vmatprep.subr.bf16.mxu0 0
      %8155 = vmatpush2.bf16.msra.mxu0 %v7683
      %8156 = vmatprep.subr.bf16.mxu0 0
      %8157 = vmatpush2.bf16.msra.mxu0 %v7682
      %8158 = vmatprep.mubr.bf16.mxu0 %v6782
      %8159 = vmatmul.mubr.bf16.gmra.mxu0 %v6781
      %v8160 = vpop.f32.mrf.mxu0
      %v8161 = vadd.f32 %v8096, %v8160
      %v8162 = vpop.f32.mrf.mxu0
      %v8163 = vpop.f32.mrf.mxu0
      %v8164 = vadd.f32 %v8099, %v8163
      %v8165 = vpop.f32.mrf.mxu0
      %8166 = vmatprep.mubr.bf16.mxu0 %v6798
      %8167 = vmatmul.mubr.bf16.gmra.mxu0 %v6797
      %v8168 = vpop.f32.mrf.mxu0
      %v8169 = vadd.f32 %v8104, %v8168
      %v8170 = vpop.f32.mrf.mxu0
      %v8171 = vpop.f32.mrf.mxu0
      %v8172 = vadd.f32 %v8107, %v8171
      %v8173 = vpop.f32.mrf.mxu0
      %8174 = vmatprep.mubr.bf16.mxu0 %v6814
      %8175 = vmatmul.mubr.bf16.gmra.mxu0 %v6813
      %v8176 = vpop.f32.mrf.mxu0
      %v8177 = vadd.f32 %v8112, %v8176
      %v8178 = vpop.f32.mrf.mxu0
      %v8179 = vpop.f32.mrf.mxu0
      %v8180 = vadd.f32 %v8115, %v8179
      %v8181 = vpop.f32.mrf.mxu0
      %8182 = vmatprep.mubr.bf16.mxu0 %v6830
      %8183 = vmatmul.mubr.bf16.gmra.mxu0 %v6829
      %v8184 = vpop.f32.mrf.mxu0
      %v8185 = vadd.f32 %v8120, %v8184
      %v8186 = vpop.f32.mrf.mxu0
      %v8187 = vpop.f32.mrf.mxu0
      %v8188 = vadd.f32 %v8123, %v8187
      %v8189 = vpop.f32.mrf.mxu0
      %8190 = vdwg.mxu0
      %8191 = vmatprep.subr.bf16.mxu0 0
      %8192 = vmatpush1.bf16.msra.mxu0 %v7697
      %8193 = vmatprep.subr.bf16.mxu0 0
      %8194 = vmatpush1.bf16.msra.mxu0 %v7696
      %8195 = vmatprep.subr.bf16.mxu0 0
      %8196 = vmatpush1.bf16.msra.mxu0 %v7695
      %8197 = vmatprep.subr.bf16.mxu0 0
      %8198 = vmatpush1.bf16.msra.mxu0 %v7694
      %8199 = vmatprep.subr.bf16.mxu0 0
      %8200 = vmatpush1.bf16.msra.mxu0 %v7693
      %8201 = vmatprep.subr.bf16.mxu0 0
      %8202 = vmatpush1.bf16.msra.mxu0 %v7692
      %8203 = vmatprep.subr.bf16.mxu0 0
      %8204 = vmatpush1.bf16.msra.mxu0 %v7691
      %8205 = vmatprep.subr.bf16.mxu0 0
      %8206 = vmatpush1.bf16.msra.mxu0 %v7690
      %8207 = vmatprep.subr.bf16.mxu0 0
      %8208 = vmatpush2.bf16.msra.mxu0 %v7705
      %8209 = vmatprep.subr.bf16.mxu0 0
      %8210 = vmatpush2.bf16.msra.mxu0 %v7704
      %8211 = vmatprep.subr.bf16.mxu0 0
      %8212 = vmatpush2.bf16.msra.mxu0 %v7703
      %8213 = vmatprep.subr.bf16.mxu0 0
      %8214 = vmatpush2.bf16.msra.mxu0 %v7702
      %8215 = vmatprep.subr.bf16.mxu0 0
      %8216 = vmatpush2.bf16.msra.mxu0 %v7701
      %8217 = vmatprep.subr.bf16.mxu0 0
      %8218 = vmatpush2.bf16.msra.mxu0 %v7700
      %8219 = vmatprep.subr.bf16.mxu0 0
      %8220 = vmatpush2.bf16.msra.mxu0 %v7699
      %8221 = vmatprep.subr.bf16.mxu0 0
      %8222 = vmatpush2.bf16.msra.mxu0 %v7698
      %8223 = vmatprep.mubr.bf16.mxu0 %v6784
      %8224 = vmatmul.mubr.bf16.gmra.mxu0 %v6783
      %v8225 = vpop.f32.mrf.mxu0
      %v8226 = vadd.f32 %v8161, %v8225
      %v8227 = vpop.f32.mrf.mxu0
      %v8228 = vpop.f32.mrf.mxu0
      %v8229 = vadd.f32 %v8164, %v8228
      %v8230 = vpop.f32.mrf.mxu0
      %8231 = vmatprep.mubr.bf16.mxu0 %v6800
      %8232 = vmatmul.mubr.bf16.gmra.mxu0 %v6799
      %v8233 = vpop.f32.mrf.mxu0
      %v8234 = vadd.f32 %v8169, %v8233
      %v8235 = vpop.f32.mrf.mxu0
      %v8236 = vpop.f32.mrf.mxu0
      %v8237 = vadd.f32 %v8172, %v8236
      %v8238 = vpop.f32.mrf.mxu0
      %8239 = vmatprep.mubr.bf16.mxu0 %v6816
      %8240 = vmatmul.mubr.bf16.gmra.mxu0 %v6815
      %v8241 = vpop.f32.mrf.mxu0
      %v8242 = vadd.f32 %v8177, %v8241
      %v8243 = vpop.f32.mrf.mxu0
      %v8244 = vpop.f32.mrf.mxu0
      %v8245 = vadd.f32 %v8180, %v8244
      %v8246 = vpop.f32.mrf.mxu0
      %8247 = vmatprep.mubr.bf16.mxu0 %v6832
      %8248 = vmatmul.mubr.bf16.gmra.mxu0 %v6831
      %v8249 = vpop.f32.mrf.mxu0
      %v8250 = vadd.f32 %v8185, %v8249
      %v8251 = vpop.f32.mrf.mxu0
      %v8252 = vpop.f32.mrf.mxu0
      %v8253 = vadd.f32 %v8188, %v8252
      %v8254 = vpop.f32.mrf.mxu0
      %8255 = vdwg.mxu0
      %8256 = vmatprep.subr.bf16.mxu0 0
      %8257 = vmatpush1.bf16.msra.mxu0 %v7713
      %8258 = vmatprep.subr.bf16.mxu0 0
      %8259 = vmatpush1.bf16.msra.mxu0 %v7712
      %8260 = vmatprep.subr.bf16.mxu0 0
      %8261 = vmatpush1.bf16.msra.mxu0 %v7711
      %8262 = vmatprep.subr.bf16.mxu0 0
      %8263 = vmatpush1.bf16.msra.mxu0 %v7710
      %8264 = vmatprep.subr.bf16.mxu0 0
      %8265 = vmatpush1.bf16.msra.mxu0 %v7709
      %8266 = vmatprep.subr.bf16.mxu0 0
      %8267 = vmatpush1.bf16.msra.mxu0 %v7708
      %8268 = vmatprep.subr.bf16.mxu0 0
      %8269 = vmatpush1.bf16.msra.mxu0 %v7707
      %8270 = vmatprep.subr.bf16.mxu0 0
      %8271 = vmatpush1.bf16.msra.mxu0 %v7706
      %8272 = vmatprep.subr.bf16.mxu0 0
      %8273 = vmatpush2.bf16.msra.mxu0 %v7721
      %8274 = vmatprep.subr.bf16.mxu0 0
      %8275 = vmatpush2.bf16.msra.mxu0 %v7720
      %8276 = vmatprep.subr.bf16.mxu0 0
      %8277 = vmatpush2.bf16.msra.mxu0 %v7719
      %8278 = vmatprep.subr.bf16.mxu0 0
      %8279 = vmatpush2.bf16.msra.mxu0 %v7718
      %8280 = vmatprep.subr.bf16.mxu0 0
      %8281 = vmatpush2.bf16.msra.mxu0 %v7717
      %8282 = vmatprep.subr.bf16.mxu0 0
      %8283 = vmatpush2.bf16.msra.mxu0 %v7716
      %8284 = vmatprep.subr.bf16.mxu0 0
      %8285 = vmatpush2.bf16.msra.mxu0 %v7715
      %8286 = vmatprep.subr.bf16.mxu0 0
      %8287 = vmatpush2.bf16.msra.mxu0 %v7714
      %8288 = vmatprep.mubr.bf16.mxu0 %v6786
      %8289 = vmatmul.mubr.bf16.gmra.mxu0 %v6785
      %v8290 = vpop.f32.mrf.mxu0
      %v8291 = vadd.f32 %v8226, %v8290
      %v8292 = vpop.f32.mrf.mxu0
      %v8293 = vpop.f32.mrf.mxu0
      %v8294 = vadd.f32 %v8229, %v8293
      %v8295 = vpop.f32.mrf.mxu0
      %8296 = vmatprep.mubr.bf16.mxu0 %v6802
      %8297 = vmatmul.mubr.bf16.gmra.mxu0 %v6801
      %v8298 = vpop.f32.mrf.mxu0
      %v8299 = vadd.f32 %v8234, %v8298
      %v8300 = vpop.f32.mrf.mxu0
      %v8301 = vpop.f32.mrf.mxu0
      %v8302 = vadd.f32 %v8237, %v8301
      %v8303 = vpop.f32.mrf.mxu0
      %8304 = vmatprep.mubr.bf16.mxu0 %v6818
      %8305 = vmatmul.mubr.bf16.gmra.mxu0 %v6817
      %v8306 = vpop.f32.mrf.mxu0
      %v8307 = vadd.f32 %v8242, %v8306
      %v8308 = vpop.f32.mrf.mxu0
      %v8309 = vpop.f32.mrf.mxu0
      %v8310 = vadd.f32 %v8245, %v8309
      %v8311 = vpop.f32.mrf.mxu0
      %8312 = vmatprep.mubr.bf16.mxu0 %v6834
      %8313 = vmatmul.mubr.bf16.gmra.mxu0 %v6833
      %v8314 = vpop.f32.mrf.mxu0
      %v8315 = vadd.f32 %v8250, %v8314
      %v8316 = vpop.f32.mrf.mxu0
      %v8317 = vpop.f32.mrf.mxu0
      %v8318 = vadd.f32 %v8253, %v8317
      %v8319 = vpop.f32.mrf.mxu0
      %8320 = vdwg.mxu0
      %8321 = vmatprep.subr.bf16.mxu0 0
      %8322 = vmatpush1.bf16.msra.mxu0 %v7729
      %8323 = vmatprep.subr.bf16.mxu0 0
      %8324 = vmatpush1.bf16.msra.mxu0 %v7728
      %8325 = vmatprep.subr.bf16.mxu0 0
      %8326 = vmatpush1.bf16.msra.mxu0 %v7727
      %8327 = vmatprep.subr.bf16.mxu0 0
      %8328 = vmatpush1.bf16.msra.mxu0 %v7726
      %8329 = vmatprep.subr.bf16.mxu0 0
      %8330 = vmatpush1.bf16.msra.mxu0 %v7725
      %8331 = vmatprep.subr.bf16.mxu0 0
      %8332 = vmatpush1.bf16.msra.mxu0 %v7724
      %8333 = vmatprep.subr.bf16.mxu0 0
      %8334 = vmatpush1.bf16.msra.mxu0 %v7723
      %8335 = vmatprep.subr.bf16.mxu0 0
      %8336 = vmatpush1.bf16.msra.mxu0 %v7722
      %8337 = vmatprep.subr.bf16.mxu0 0
      %8338 = vmatpush2.bf16.msra.mxu0 %v7737
      %8339 = vmatprep.subr.bf16.mxu0 0
      %8340 = vmatpush2.bf16.msra.mxu0 %v7736
      %8341 = vmatprep.subr.bf16.mxu0 0
      %8342 = vmatpush2.bf16.msra.mxu0 %v7735
      %8343 = vmatprep.subr.bf16.mxu0 0
      %8344 = vmatpush2.bf16.msra.mxu0 %v7734
      %8345 = vmatprep.subr.bf16.mxu0 0
      %8346 = vmatpush2.bf16.msra.mxu0 %v7733
      %8347 = vmatprep.subr.bf16.mxu0 0
      %8348 = vmatpush2.bf16.msra.mxu0 %v7732
      %8349 = vmatprep.subr.bf16.mxu0 0
      %8350 = vmatpush2.bf16.msra.mxu0 %v7731
      %8351 = vmatprep.subr.bf16.mxu0 0
      %8352 = vmatpush2.bf16.msra.mxu0 %v7730
      %8353 = vmatprep.mubr.bf16.mxu0 %v6788
      %8354 = vmatmul.mubr.bf16.gmra.mxu0 %v6787
      %v8355 = vpop.f32.mrf.mxu0
      %v8356 = vadd.f32 %v8291, %v8355
      %v8357 = vpop.f32.mrf.mxu0
      %v8358 = vpop.f32.mrf.mxu0
      %v8359 = vadd.f32 %v8294, %v8358
      %v8360 = vpop.f32.mrf.mxu0
      %8361 = vmatprep.mubr.bf16.mxu0 %v6804
      %8362 = vmatmul.mubr.bf16.gmra.mxu0 %v6803
      %v8363 = vpop.f32.mrf.mxu0
      %v8364 = vadd.f32 %v8299, %v8363
      %v8365 = vpop.f32.mrf.mxu0
      %v8366 = vpop.f32.mrf.mxu0
      %v8367 = vadd.f32 %v8302, %v8366
      %v8368 = vpop.f32.mrf.mxu0
      %8369 = vmatprep.mubr.bf16.mxu0 %v6820
      %8370 = vmatmul.mubr.bf16.gmra.mxu0 %v6819
      %v8371 = vpop.f32.mrf.mxu0
      %v8372 = vadd.f32 %v8307, %v8371
      %v8373 = vpop.f32.mrf.mxu0
      %v8374 = vpop.f32.mrf.mxu0
      %v8375 = vadd.f32 %v8310, %v8374
      %v8376 = vpop.f32.mrf.mxu0
      %8377 = vmatprep.mubr.bf16.mxu0 %v6836
      %8378 = vmatmul.mubr.bf16.gmra.mxu0 %v6835
      %v8379 = vpop.f32.mrf.mxu0
      %v8380 = vadd.f32 %v8315, %v8379
      %v8381 = vpop.f32.mrf.mxu0
      %v8382 = vpop.f32.mrf.mxu0
      %v8383 = vadd.f32 %v8318, %v8382
      %v8384 = vpop.f32.mrf.mxu0
      %8385 = vdwg.mxu0
      %v8386 = vadd.f32 %v5567, %v8356
      %v8387 = vadd.f32 %v5568, %v8359
      %v8388 = vadd.f32 %v5569, %v8364
      %v8389 = vadd.f32 %v5570, %v8367
      %v8390 = vadd.f32 %v5571, %v8372
      %v8391 = vadd.f32 %v5572, %v8375
      %v8392 = vadd.f32 %v5573, %v8380
      %v8393 = vadd.f32 %v5574, %v8383
      %v8394 = vsel %vm763, %v8386, 0.0
      %8395 = vadd.xlane.f32.xlu0 %v8394
      %v8396 = vpop.xlane.xlu0 %8395
      %v8397 = vsel %vm763, %v8387, 0.0
      %8398 = vadd.xlane.f32.xlu0 %v8397
      %v8399 = vpop.xlane.xlu0 %8398
      %v8400 = vsel %vm763, %v8388, 0.0
      %8401 = vadd.xlane.f32.xlu0 %v8400
      %v8402 = vpop.xlane.xlu0 %8401
      %v8403 = vsel %vm763, %v8389, 0.0
      %8404 = vadd.xlane.f32.xlu0 %v8403
      %v8405 = vpop.xlane.xlu0 %8404
      %v8406 = vsel %vm763, %v8390, 0.0
      %8407 = vadd.xlane.f32.xlu0 %v8406
      %v8408 = vpop.xlane.xlu0 %8407
      %v8409 = vsel %vm763, %v8391, 0.0
      %8410 = vadd.xlane.f32.xlu0 %v8409
      %v8411 = vpop.xlane.xlu0 %8410
      %v8412 = vsel %vm763, %v8392, 0.0
      %8413 = vadd.xlane.f32.xlu0 %v8412
      %v8414 = vpop.xlane.xlu0 %8413
      %v8415 = vsel %vm763, %v8393, 0.0
      %8416 = vadd.xlane.f32.xlu0 %v8415
      %v8417 = vpop.xlane.xlu0 %8416
      %v8418 = vmul.f32 %v8396, %v1583
      %v8419 = vmul.f32 %v8399, %v1583
      %v8420 = vmul.f32 %v8402, %v1583
      %v8421 = vmul.f32 %v8405, %v1583
      %v8422 = vmul.f32 %v8408, %v1583
      %v8423 = vmul.f32 %v8411, %v1583
      %v8424 = vmul.f32 %v8414, %v1583
      %v8425 = vmul.f32 %v8417, %v1583
      %v8426 = vsub.f32 %v8386, %v8418
      %v8427 = vsub.f32 %v8387, %v8419
      %v8428 = vsub.f32 %v8388, %v8420
      %v8429 = vsub.f32 %v8389, %v8421
      %v8430 = vsub.f32 %v8390, %v8422
      %v8431 = vsub.f32 %v8391, %v8423
      %v8432 = vsub.f32 %v8392, %v8424
      %v8433 = vsub.f32 %v8393, %v8425
      %v8434 = vmul.f32 %v8426, %v8426
      %v8435 = vmul.f32 %v8427, %v8427
      %v8436 = vmul.f32 %v8428, %v8428
      %v8437 = vmul.f32 %v8429, %v8429
      %v8438 = vmul.f32 %v8430, %v8430
      %v8439 = vmul.f32 %v8431, %v8431
      %v8440 = vmul.f32 %v8432, %v8432
      %v8441 = vmul.f32 %v8433, %v8433
      %v8442 = vsel %vm763, %v8434, 0.0
      %8443 = vadd.xlane.f32.xlu0 %v8442
      %v8444 = vpop.xlane.xlu0 %8443
      %v8445 = vsel %vm763, %v8435, 0.0
      %8446 = vadd.xlane.f32.xlu0 %v8445
      %v8447 = vpop.xlane.xlu0 %8446
      %v8448 = vsel %vm763, %v8436, 0.0
      %8449 = vadd.xlane.f32.xlu0 %v8448
      %v8450 = vpop.xlane.xlu0 %8449
      %v8451 = vsel %vm763, %v8437, 0.0
      %8452 = vadd.xlane.f32.xlu0 %v8451
      %v8453 = vpop.xlane.xlu0 %8452
      %v8454 = vsel %vm763, %v8438, 0.0
      %8455 = vadd.xlane.f32.xlu0 %v8454
      %v8456 = vpop.xlane.xlu0 %8455
      %v8457 = vsel %vm763, %v8439, 0.0
      %8458 = vadd.xlane.f32.xlu0 %v8457
      %v8459 = vpop.xlane.xlu0 %8458
      %v8460 = vsel %vm763, %v8440, 0.0
      %8461 = vadd.xlane.f32.xlu0 %v8460
      %v8462 = vpop.xlane.xlu0 %8461
      %v8463 = vsel %vm763, %v8441, 0.0
      %8464 = vadd.xlane.f32.xlu0 %v8463
      %v8465 = vpop.xlane.xlu0 %8464
      %v8466 = vmul.f32 %v8444, %v1583
      %v8467 = vmul.f32 %v8447, %v1583
      %v8468 = vmul.f32 %v8450, %v1583
      %v8469 = vmul.f32 %v8453, %v1583
      %v8470 = vmul.f32 %v8456, %v1583
      %v8471 = vmul.f32 %v8459, %v1583
      %v8472 = vmul.f32 %v8462, %v1583
      %v8473 = vmul.f32 %v8465, %v1583
      %v8474 = vadd.f32 %v8466, 1e-05
      %v8475 = vadd.f32 %v8467, 1e-05
      %v8476 = vadd.f32 %v8468, 1e-05
      %v8477 = vadd.f32 %v8469, 1e-05
      %v8478 = vadd.f32 %v8470, 1e-05
      %v8479 = vadd.f32 %v8471, 1e-05
      %v8480 = vadd.f32 %v8472, 1e-05
      %v8481 = vadd.f32 %v8473, 1e-05
      %v8482 = vrsqrt.pop %v8474
      %v8483 = vrsqrt.pop %v8475
      %v8484 = vrsqrt.pop %v8476
      %v8485 = vrsqrt.pop %v8477
      %v8486 = vrsqrt.pop %v8478
      %v8487 = vrsqrt.pop %v8479
      %v8488 = vrsqrt.pop %v8480
      %v8489 = vrsqrt.pop %v8481
      %v8490 = vmul.f32 %v8426, %v8482
      %v8491 = vmul.f32 %v8427, %v8483
      %v8492 = vmul.f32 %v8428, %v8484
      %v8493 = vmul.f32 %v8429, %v8485
      %v8494 = vmul.f32 %v8430, %v8486
      %v8495 = vmul.f32 %v8431, %v8487
      %v8496 = vmul.f32 %v8432, %v8488
      %v8497 = vmul.f32 %v8433, %v8489
      %v8498 = vlaneseq
      %v8499 = vshrl.u32 %v8498, 7
      %v8500 = vsub.s32 7, %v8499
      %v8501 = vrot.slane %v4633, %v8500
      %v8502 = vmul.f32 %v8490, %v8501
      %v8503 = vmul.f32 %v8491, %v8501
      %v8504 = vmul.f32 %v8492, %v8501
      %v8505 = vmul.f32 %v8493, %v8501
      %v8506 = vmul.f32 %v8494, %v8501
      %v8507 = vmul.f32 %v8495, %v8501
      %v8508 = vmul.f32 %v8496, %v8501
      %v8509 = vmul.f32 %v8497, %v8501
      %v8510 = vlaneseq
      %v8511 = vshrl.u32 %v8510, 7
      %v8512 = vsub.s32 0, %v8511
      %v8513 = vrot.slane %v4634, %v8512
      %v8514 = vadd.f32 %v8502, %v8513
      %v8515 = vadd.f32 %v8503, %v8513
      %v8516 = vadd.f32 %v8504, %v8513
      %v8517 = vadd.f32 %v8505, %v8513
      %v8518 = vadd.f32 %v8506, %v8513
      %v8519 = vadd.f32 %v8507, %v8513
      %v8520 = vadd.f32 %v8508, %v8513
      %v8521 = vadd.f32 %v8509, %v8513
      %v8522 = vsel %vm763, %v8514, -inf
      %v8523 = vsel %vm763, %v8515, -inf
      %v8524 = vsel %vm763, %v8516, -inf
      %v8525 = vsel %vm763, %v8517, -inf
      %v8526 = vmax.f32 %v8522, %v8523
      %v8527 = vmax.f32 %v8524, %v8525
      %v8528 = vmax.f32 %v8526, %v8527
      %v8529 = vrot.slane %v8528, 4
      %v8530 = vmax.f32 %v8528, %v8529
      %v8531 = vrot.slane %v8530, 2
      %v8532 = vmax.f32 %v8530, %v8531
      %v8533 = vrot.slane %v8532, 1
      %v8534 = vmax.f32 %v8532, %v8533
      %v8535 = vsel %vm763, %v8518, -inf
      %v8536 = vsel %vm763, %v8519, -inf
      %v8537 = vsel %vm763, %v8520, -inf
      %v8538 = vsel %vm763, %v8521, -inf
      %v8539 = vmax.f32 %v8535, %v8536
      %v8540 = vmax.f32 %v8537, %v8538
      %v8541 = vmax.f32 %v8539, %v8540
      %v8542 = vrot.slane %v8541, 4
      %v8543 = vmax.f32 %v8541, %v8542
      %v8544 = vrot.slane %v8543, 2
      %v8545 = vmax.f32 %v8543, %v8544
      %v8546 = vrot.slane %v8545, 1
      %v8547 = vmax.f32 %v8545, %v8546
      %vm8548 = vcmask 1040384
      %v8549 = vsel %vm8548, %v8534, %v8547
      %vm8550 = vcmask 517120
      %8551 = vst.msk [vmem:[%s354] sm:$0x3] %vm8550, %v8549
      %p8552 = scmp.lt.s32.totalorder %s20, 1
      %s8553 = scalar_select %p8552, %s20, 1
      %s8554 = smul.addr %s8553, 2
      %s8555 = scalar_lea.vmem %s9, %s8554
      // Predicated region
      $region57: #{coatnet_forward.1} parent=55 // pred_check
        %p8556 = pneg %p237
      $region58: #{coatnet_forward.1} parent=55 // pred_check_branch
        %8558 = sbr.rel (%p8556) target = $region60
      $region59: #{coatnet_forward.1} parent=55 // pred_region
        _
      $region60: #{coatnet_forward.1} parent=55 // pred_fallthru
        _
    $region56: #{coatnet_forward.1} parent=5 // pred_fallthru
      _
    %p8559 = scmp.le.s32.totalorder 2, %s15
    // Predicated region
    $region61: #{coatnet_forward.1} parent=5 // pred_check
      %p8560 = pneg %p8559
    $region62: #{coatnet_forward.1} parent=5 // pred_check_branch
      %8562 = sbr.rel (%p8560) target = $region64
    $region63: #{coatnet_forward.1} parent=5 // pred_region
      %s8563 = ssub.s32 %s15, 2
      // Predicated region
      $region65: #{coatnet_forward.1} parent=63 // pred_check
        %p8564 = pneg %p243
      $region66: #{coatnet_forward.1} parent=63 // pred_check_branch
        %8566 = sbr.rel (%p8564) target = $region68
      $region67: #{coatnet_forward.1} parent=63 // pred_region
        %p8567 = scmp.lt.s32.totalorder %s21, 1
        %s8568 = scalar_select %p8567, %s21, 1
        %s8569 = smul.addr %s8568, 2
        %s8570 = scalar_lea.vmem %s9, %s8569
      $region68: #{coatnet_forward.1} parent=63 // pred_fallthru
        _
    $region64: #{coatnet_forward.1} parent=5 // pred_fallthru
      _
  $region6: #{coatnet_forward.1} parent=0 // loop_footer
    %s19 = sadd.s32 1, %s15
  $region7: #{coatnet_forward.1} parent=0 // loop_footer_branch
    %14 = sbr.rel target = $region3
  $region8: #{coatnet_forward.1} parent=0 // loop_exit
    _

</llo_original>
